<compile_context>
chip_gen: v5e
topology: v5e:2x2
jax: 0.10.0
libtpu: 0.0.40
codegen_flags: <defaults>
</compile_context>

<pallas_src>
import jax
import jax.numpy as jnp
from jax.experimental import pallas as pl
from jax.experimental.pallas import tpu as pltpu

_BN_EPS = 1e-5
_VMEM = pl.BlockSpec(memory_space=pltpu.MemorySpace.VMEM)


# ----------------------------- fused Pallas kernel -----------------------------

def _conv_block_kernel(x_ref, w1_ref, w2_ref, gamma_ref, beta_ref, out_ref,
                       xpad_ref, hpad_ref, patch1_ref, patch2_ref):
    """conv3x3(pad=1) -> BN(train) -> ReLU -> conv3x3(pad=1) -> BN(train) -> ReLU.

    x_ref:     (N, H, W, Cin)        NHWC input
    w1_ref:    (9*Cin, Cout)         conv1 weight, rows ordered (dy, dx, cin)
    w2_ref:    (9*Cout, Cout)        conv2 weight, rows ordered (dy, dx, cout)
    gamma_ref: (1, Cout)             shared BatchNorm2d scale
    beta_ref:  (1, Cout)             shared BatchNorm2d shift
    out_ref:   (N, H, W, Cout)
    scratch:   xpad   (N, H+2, W+2, Cin)    zero-padded input
               hpad   (N, H+2, W+2, Cout)   zero-padded intermediate activation
               patch1 (N*H*W, 9*Cin)        im2col matrix for conv1
               patch2 (N*H*W, 9*Cout)       im2col matrix for conv2
    """
    N, H, W, Cin = x_ref.shape
    Cout = out_ref.shape[-1]
    P = N * H * W

    def im2col(src_ref, patch_ref, c):
        # Column block t = dy*3 + dx holds tap (dy, dx) of every output pixel;
        # this matches w.reshape(9*c, Cout) row ordering (HWIO, row-major).
        for dy in range(3):
            for dx in range(3):
                t = dy * 3 + dx
                patch_ref[:, t * c:(t + 1) * c] = (
                    src_ref[:, dy:dy + H, dx:dx + W, :].reshape(P, c))

    def bn_relu(v):
        # nn.BatchNorm2d in training mode: biased batch stats over (N, H, W).
        # (A conv bias would be cancelled exactly by the mean subtraction below,
        #  which is why biases are omitted from the conv matmuls.)
        mean = jnp.mean(v, axis=0, keepdims=True)
        var = jnp.mean(jnp.square(v - mean), axis=0, keepdims=True)
        y = (v - mean) * jax.lax.rsqrt(var + _BN_EPS)
        y = y * gamma_ref[...] + beta_ref[...]
        return jnp.maximum(y, 0.0)

    # ---- conv1 as a single im2col matmul, then BN + ReLU (all in VMEM) ----
    xpad_ref[...] = jnp.zeros_like(xpad_ref)
    xpad_ref[:, 1:H + 1, 1:W + 1, :] = x_ref[...]
    im2col(xpad_ref, patch1_ref, Cin)
    h = jnp.dot(patch1_ref[...], w1_ref[...], preferred_element_type=jnp.float32)
    h = bn_relu(h)                                           # (P, Cout)

    # ---- conv2 + BN + ReLU, intermediate never leaves VMEM ----
    hpad_ref[...] = jnp.zeros_like(hpad_ref)
    hpad_ref[:, 1:H + 1, 1:W + 1, :] = h.reshape(N, H, W, Cout)
    im2col(hpad_ref, patch2_ref, Cout)
    h = jnp.dot(patch2_ref[...], w2_ref[...], preferred_element_type=jnp.float32)
    h = bn_relu(h)

    out_ref[...] = h.reshape(N, H, W, Cout)


# ----------------------------- wrapper -----------------------------

def conv_block(x_nhwc, w1_mat, w2_mat, gamma, beta):
    N, H, W, Cin = x_nhwc.shape
    Cout = w1_mat.shape[-1]
    return pl.pallas_call(
        _conv_block_kernel,
        in_specs=[_VMEM] * 5,
        out_specs=_VMEM,
        out_shape=jax.ShapeDtypeStruct((N, H, W, Cout), jnp.float32),
        scratch_shapes=[
            pltpu.VMEM((N, H + 2, W + 2, Cin), jnp.float32),
            pltpu.VMEM((N, H + 2, W + 2, Cout), jnp.float32),
            pltpu.VMEM((N * H * W, 9 * Cin), jnp.float32),
            pltpu.VMEM((N * H * W, 9 * Cout), jnp.float32),
        ],
    )(x_nhwc, w1_mat, w2_mat, gamma, beta)


def conv_forward(params, x_nchw):
    """PyTorch-style interface: NCHW in, NCHW out."""
    x = jnp.transpose(x_nchw, (0, 2, 3, 1))                  # NCHW -> NHWC
    cin = x.shape[-1]
    cout = params['w1'].shape[-1]
    y = conv_block(
        x,
        params['w1'].reshape(9 * cin, cout),                 # HWIO -> (9*Cin, Cout)
        params['w2'].reshape(9 * cout, cout),
        params['gamma'].reshape(1, cout),
        params['beta'].reshape(1, cout),
    )
    return jnp.transpose(y, (0, 3, 1, 2))                    # NHWC -> NCHW


# ----------------------------- pure-JAX reference (correctness check) -----------------------------

def reference_forward(params, x_nchw):
    x = jnp.transpose(x_nchw, (0, 2, 3, 1))
    gamma = params['gamma'].reshape(1, 1, 1, -1)
    beta = params['beta'].reshape(1, 1, 1, -1)

    def conv(v, w):
        return jax.lax.conv_general_dilated(
            v, w, window_strides=(1, 1), padding=((1, 1), (1, 1)),
            dimension_numbers=('NHWC', 'HWIO', 'NHWC'),
            precision=jax.lax.Precision.HIGHEST)

    def bn_relu(v):
        mean = jnp.mean(v, axis=(0, 1, 2), keepdims=True)
        var = jnp.mean(jnp.square(v - mean), axis=(0, 1, 2), keepdims=True)
        return jnp.maximum((v - mean) * jax.lax.rsqrt(var + _BN_EPS) * gamma + beta, 0.0)

    h = bn_relu(conv(x, params['w1']))
    h = bn_relu(conv(h, params['w2']))
    return jnp.transpose(h, (0, 3, 1, 2))


# ----------------------------- deterministic parameters -----------------------------

def init_params(key, cin, cout):
    # Weights are stored HWIO (3, 3, Cin, Cout).  A PyTorch Conv2d weight (OIHW:
    # Cout, Cin, 3, 3) maps to this layout via w.transpose(2, 3, 1, 0).
    # Conv biases are intentionally omitted: BN's batch-mean subtraction cancels them.
    k1, k2, k3, k4 = jax.random.split(key, 4)
    return dict(
        w1=0.1 * jax.random.normal(k1, (3, 3, cin, cout), jnp.float32),
        w2=0.1 * jax.random.normal(k2, (3, 3, cout, cout), jnp.float32),
        gamma=1.0 + 0.1 * jax.random.normal(k3, (cout,), jnp.float32),
        beta=0.1 * jax.random.normal(k4, (cout,), jnp.float32),
    )


# ----------------------------- main -----------------------------

if __name__ == "__main__":
    key = jax.random.PRNGKey(0)
    pkey, xkey = jax.random.split(key)

    ins, outs = 4, 16
    params = init_params(pkey, ins, outs)

    # PyTorch-style NCHW input: batch=2, 4 channels, 16x16.
    x = jax.random.normal(xkey, (2, ins, 16, 16), jnp.float32)

    fwd = jax.jit(conv_forward)
    out = jax.block_until_ready(fwd(params, x))

    assert out.shape == (2, outs, 16, 16), out.shape
    assert bool(jnp.all(jnp.isfinite(out)))

    # Cross-check the fused Pallas kernel against a pure-JAX/XLA reference.
    ref = jax.block_until_ready(jax.jit(reference_forward)(params, x))
    max_err = float(jnp.max(jnp.abs(out - ref)))
    assert bool(jnp.allclose(out, ref, atol=3e-2, rtol=3e-2)), max_err

    print("KERNEL_OK")
</pallas_src>

<mosaic_0001>
module attributes {stable_mosaic.version = 11 : i64} {
  func.func @_conv_block_kernel(%arg0: memref<2x16x16x4xf32, #tpu.memory_space<vmem>>, %arg1: memref<36x16xf32, #tpu.memory_space<vmem>>, %arg2: memref<144x16xf32, #tpu.memory_space<vmem>>, %arg3: memref<1x16xf32, #tpu.memory_space<vmem>>, %arg4: memref<1x16xf32, #tpu.memory_space<vmem>>, %arg5: memref<2x16x16x16xf32, #tpu.memory_space<vmem>>, %arg6: memref<2x18x18x4xf32, #tpu.memory_space<vmem>>, %arg7: memref<2x18x18x16xf32, #tpu.memory_space<vmem>>, %arg8: memref<512x36xf32, #tpu.memory_space<vmem>>, %arg9: memref<512x144xf32, #tpu.memory_space<vmem>>) attributes {dimension_semantics = [], scalar_prefetch = 0 : i64, scratch_operands = 4 : i64, tpu.core_type = #tpu.core_type<tc>} {
    %cst = arith.constant 0.000000e+00 : f32
    %0 = vector.broadcast %cst : f32 to vector<2x18x18x4xf32>
    %c0 = arith.constant 0 : index
    %c0_0 = arith.constant 0 : index
    %c0_1 = arith.constant 0 : index
    %c0_2 = arith.constant 0 : index
    %1 = vector.load %arg6[%c0, %c0_0, %c0_1, %c0_2] : memref<2x18x18x4xf32, #tpu.memory_space<vmem>>, vector<2x18x18x4xf32>
    tpu.vector_store %arg6[%c0, %c0_0, %c0_1, %c0_2], %0 {strides = array<i32>} : memref<2x18x18x4xf32, #tpu.memory_space<vmem>>, vector<2x18x18x4xf32>,
    %c0_3 = arith.constant 0 : index
    %c0_4 = arith.constant 0 : index
    %c0_5 = arith.constant 0 : index
    %c0_6 = arith.constant 0 : index
    %2 = vector.load %arg0[%c0_3, %c0_4, %c0_5, %c0_6] : memref<2x16x16x4xf32, #tpu.memory_space<vmem>>, vector<2x16x16x4xf32>
    %c0_7 = arith.constant 0 : index
    %c1 = arith.constant 1 : index
    %c1_8 = arith.constant 1 : index
    %c0_9 = arith.constant 0 : index
    %3 = vector.load %arg6[%c0_7, %c1, %c1_8, %c0_9] : memref<2x18x18x4xf32, #tpu.memory_space<vmem>>, vector<2x16x16x4xf32>
    tpu.vector_store %arg6[%c0_7, %c1, %c1_8, %c0_9], %2 {strides = array<i32>} : memref<2x18x18x4xf32, #tpu.memory_space<vmem>>, vector<2x16x16x4xf32>,
    %c0_10 = arith.constant 0 : index
    %c0_11 = arith.constant 0 : index
    %c0_12 = arith.constant 0 : index
    %c0_13 = arith.constant 0 : index
    %4 = vector.load %arg6[%c0_10, %c0_11, %c0_12, %c0_13] : memref<2x18x18x4xf32, #tpu.memory_space<vmem>>, vector<2x16x16x4xf32>
    %5 = vector.shape_cast %4 : vector<2x16x16x4xf32> to vector<512x4xf32>
    %c0_14 = arith.constant 0 : index
    %c0_15 = arith.constant 0 : index
    %6 = vector.load %arg8[%c0_14, %c0_15] : memref<512x36xf32, #tpu.memory_space<vmem>>, vector<512x4xf32>
    tpu.vector_store %arg8[%c0_14, %c0_15], %5 {strides = array<i32>} : memref<512x36xf32, #tpu.memory_space<vmem>>, vector<512x4xf32>,
    %c0_16 = arith.constant 0 : index
    %c0_17 = arith.constant 0 : index
    %c1_18 = arith.constant 1 : index
    %c0_19 = arith.constant 0 : index
    %7 = vector.load %arg6[%c0_16, %c0_17, %c1_18, %c0_19] : memref<2x18x18x4xf32, #tpu.memory_space<vmem>>, vector<2x16x16x4xf32>
    %8 = vector.shape_cast %7 : vector<2x16x16x4xf32> to vector<512x4xf32>
    %c0_20 = arith.constant 0 : index
    %c4 = arith.constant 4 : index
    %9 = vector.load %arg8[%c0_20, %c4] : memref<512x36xf32, #tpu.memory_space<vmem>>, vector<512x4xf32>
    tpu.vector_store %arg8[%c0_20, %c4], %8 {strides = array<i32>} : memref<512x36xf32, #tpu.memory_space<vmem>>, vector<512x4xf32>,
    %c0_21 = arith.constant 0 : index
    %c0_22 = arith.constant 0 : index
    %c2 = arith.constant 2 : index
    %c0_23 = arith.constant 0 : index
    %10 = vector.load %arg6[%c0_21, %c0_22, %c2, %c0_23] : memref<2x18x18x4xf32, #tpu.memory_space<vmem>>, vector<2x16x16x4xf32>
    %11 = vector.shape_cast %10 : vector<2x16x16x4xf32> to vector<512x4xf32>
    %c0_24 = arith.constant 0 : index
    %c8 = arith.constant 8 : index
    %12 = vector.load %arg8[%c0_24, %c8] : memref<512x36xf32, #tpu.memory_space<vmem>>, vector<512x4xf32>
    tpu.vector_store %arg8[%c0_24, %c8], %11 {strides = array<i32>} : memref<512x36xf32, #tpu.memory_space<vmem>>, vector<512x4xf32>,
    %c0_25 = arith.constant 0 : index
    %c1_26 = arith.constant 1 : index
    %c0_27 = arith.constant 0 : index
    %c0_28 = arith.constant 0 : index
    %13 = vector.load %arg6[%c0_25, %c1_26, %c0_27, %c0_28] : memref<2x18x18x4xf32, #tpu.memory_space<vmem>>, vector<2x16x16x4xf32>
    %14 = vector.shape_cast %13 : vector<2x16x16x4xf32> to vector<512x4xf32>
    %c0_29 = arith.constant 0 : index
    %c12 = arith.constant 12 : index
    %15 = vector.load %arg8[%c0_29, %c12] : memref<512x36xf32, #tpu.memory_space<vmem>>, vector<512x4xf32>
    tpu.vector_store %arg8[%c0_29, %c12], %14 {strides = array<i32>} : memref<512x36xf32, #tpu.memory_space<vmem>>, vector<512x4xf32>,
    %c0_30 = arith.constant 0 : index
    %c1_31 = arith.constant 1 : index
    %c1_32 = arith.constant 1 : index
    %c0_33 = arith.constant 0 : index
    %16 = vector.load %arg6[%c0_30, %c1_31, %c1_32, %c0_33] : memref<2x18x18x4xf32, #tpu.memory_space<vmem>>, vector<2x16x16x4xf32>
    %17 = vector.shape_cast %16 : vector<2x16x16x4xf32> to vector<512x4xf32>
    %c0_34 = arith.constant 0 : index
    %c16 = arith.constant 16 : index
    %18 = vector.load %arg8[%c0_34, %c16] : memref<512x36xf32, #tpu.memory_space<vmem>>, vector<512x4xf32>
    tpu.vector_store %arg8[%c0_34, %c16], %17 {strides = array<i32>} : memref<512x36xf32, #tpu.memory_space<vmem>>, vector<512x4xf32>,
    %c0_35 = arith.constant 0 : index
    %c1_36 = arith.constant 1 : index
    %c2_37 = arith.constant 2 : index
    %c0_38 = arith.constant 0 : index
    %19 = vector.load %arg6[%c0_35, %c1_36, %c2_37, %c0_38] : memref<2x18x18x4xf32, #tpu.memory_space<vmem>>, vector<2x16x16x4xf32>
    %20 = vector.shape_cast %19 : vector<2x16x16x4xf32> to vector<512x4xf32>
    %c0_39 = arith.constant 0 : index
    %c20 = arith.constant 20 : index
    %21 = vector.load %arg8[%c0_39, %c20] : memref<512x36xf32, #tpu.memory_space<vmem>>, vector<512x4xf32>
    tpu.vector_store %arg8[%c0_39, %c20], %20 {strides = array<i32>} : memref<512x36xf32, #tpu.memory_space<vmem>>, vector<512x4xf32>,
    %c0_40 = arith.constant 0 : index
    %c2_41 = arith.constant 2 : index
    %c0_42 = arith.constant 0 : index
    %c0_43 = arith.constant 0 : index
    %22 = vector.load %arg6[%c0_40, %c2_41, %c0_42, %c0_43] : memref<2x18x18x4xf32, #tpu.memory_space<vmem>>, vector<2x16x16x4xf32>
    %23 = vector.shape_cast %22 : vector<2x16x16x4xf32> to vector<512x4xf32>
    %c0_44 = arith.constant 0 : index
    %c24 = arith.constant 24 : index
    %24 = vector.load %arg8[%c0_44, %c24] : memref<512x36xf32, #tpu.memory_space<vmem>>, vector<512x4xf32>
    tpu.vector_store %arg8[%c0_44, %c24], %23 {strides = array<i32>} : memref<512x36xf32, #tpu.memory_space<vmem>>, vector<512x4xf32>,
    %c0_45 = arith.constant 0 : index
    %c2_46 = arith.constant 2 : index
    %c1_47 = arith.constant 1 : index
    %c0_48 = arith.constant 0 : index
    %25 = vector.load %arg6[%c0_45, %c2_46, %c1_47, %c0_48] : memref<2x18x18x4xf32, #tpu.memory_space<vmem>>, vector<2x16x16x4xf32>
    %26 = vector.shape_cast %25 : vector<2x16x16x4xf32> to vector<512x4xf32>
    %c0_49 = arith.constant 0 : index
    %c28 = arith.constant 28 : index
    %27 = vector.load %arg8[%c0_49, %c28] : memref<512x36xf32, #tpu.memory_space<vmem>>, vector<512x4xf32>
    tpu.vector_store %arg8[%c0_49, %c28], %26 {strides = array<i32>} : memref<512x36xf32, #tpu.memory_space<vmem>>, vector<512x4xf32>,
    %c0_50 = arith.constant 0 : index
    %c2_51 = arith.constant 2 : index
    %c2_52 = arith.constant 2 : index
    %c0_53 = arith.constant 0 : index
    %28 = vector.load %arg6[%c0_50, %c2_51, %c2_52, %c0_53] : memref<2x18x18x4xf32, #tpu.memory_space<vmem>>, vector<2x16x16x4xf32>
    %29 = vector.shape_cast %28 : vector<2x16x16x4xf32> to vector<512x4xf32>
    %c0_54 = arith.constant 0 : index
    %c32 = arith.constant 32 : index
    %30 = vector.load %arg8[%c0_54, %c32] : memref<512x36xf32, #tpu.memory_space<vmem>>, vector<512x4xf32>
    tpu.vector_store %arg8[%c0_54, %c32], %29 {strides = array<i32>} : memref<512x36xf32, #tpu.memory_space<vmem>>, vector<512x4xf32>,
    %c0_55 = arith.constant 0 : index
    %c0_56 = arith.constant 0 : index
    %31 = vector.load %arg8[%c0_55, %c0_56] : memref<512x36xf32, #tpu.memory_space<vmem>>, vector<512x36xf32>
    %c0_57 = arith.constant 0 : index
    %c0_58 = arith.constant 0 : index
    %32 = vector.load %arg1[%c0_57, %c0_58] : memref<36x16xf32, #tpu.memory_space<vmem>>, vector<36x16xf32>
    %cst_59 = arith.constant dense<0.000000e+00> : vector<512x16xf32>
    %33 = tpu.matmul %31, %32, %cst_59 {dimension_numbers = #tpu.dot_dimension_numbers<[1], [0], [0], [1], [0, 0, 1, 1], [], []>} : vector<512x36xf32>, vector<36x16xf32>, vector<512x16xf32> -> vector<512x16xf32>
    %cst_60 = arith.constant dense<0.000000e+00> : vector<16xf32>
    %34 = vector.multi_reduction <add>, %33, %cst_60 [0] : vector<512x16xf32> to vector<16xf32>
    %35 = vector.shape_cast %34 : vector<16xf32> to vector<1x16xf32>
    %cst_61 = arith.constant 5.120000e+02 : f32
    %36 = vector.broadcast %cst_61 : f32 to vector<1x16xf32>
    %37 = arith.divf %35, %36 : vector<1x16xf32>
    %38 = vector.broadcast %37 : vector<1x16xf32> to vector<512x16xf32>
    %39 = arith.subf %33, %38 : vector<512x16xf32>
    %40 = arith.mulf %39, %39 : vector<512x16xf32>
    %cst_62 = arith.constant dense<0.000000e+00> : vector<16xf32>
    %41 = vector.multi_reduction <add>, %40, %cst_62 [0] : vector<512x16xf32> to vector<16xf32>
    %42 = vector.shape_cast %41 : vector<16xf32> to vector<1x16xf32>
    %cst_63 = arith.constant 5.120000e+02 : f32
    %43 = vector.broadcast %cst_63 : f32 to vector<1x16xf32>
    %44 = arith.divf %42, %43 : vector<1x16xf32>
    %45 = vector.broadcast %37 : vector<1x16xf32> to vector<512x16xf32>
    %46 = arith.subf %33, %45 : vector<512x16xf32>
    %cst_64 = arith.constant 9.99999974E-6 : f32
    %47 = vector.broadcast %cst_64 : f32 to vector<1x16xf32>
    %48 = arith.addf %44, %47 : vector<1x16xf32>
    %49 = math.rsqrt %48 : vector<1x16xf32>
    %50 = vector.broadcast %49 : vector<1x16xf32> to vector<512x16xf32>
    %51 = arith.mulf %46, %50 : vector<512x16xf32>
    %c0_65 = arith.constant 0 : index
    %c0_66 = arith.constant 0 : index
    %52 = vector.load %arg3[%c0_65, %c0_66] : memref<1x16xf32, #tpu.memory_space<vmem>>, vector<1x16xf32>
    %53 = vector.broadcast %52 : vector<1x16xf32> to vector<512x16xf32>
    %54 = arith.mulf %51, %53 : vector<512x16xf32>
    %c0_67 = arith.constant 0 : index
    %c0_68 = arith.constant 0 : index
    %55 = vector.load %arg4[%c0_67, %c0_68] : memref<1x16xf32, #tpu.memory_space<vmem>>, vector<1x16xf32>
    %56 = vector.broadcast %55 : vector<1x16xf32> to vector<512x16xf32>
    %57 = arith.addf %54, %56 : vector<512x16xf32>
    %cst_69 = arith.constant 0.000000e+00 : f32
    %58 = vector.broadcast %cst_69 : f32 to vector<512x16xf32>
    %59 = arith.maximumf %57, %58 : vector<512x16xf32>
    %cst_70 = arith.constant 0.000000e+00 : f32
    %60 = vector.broadcast %cst_70 : f32 to vector<2x18x18x16xf32>
    %c0_71 = arith.constant 0 : index
    %c0_72 = arith.constant 0 : index
    %c0_73 = arith.constant 0 : index
    %c0_74 = arith.constant 0 : index
    %61 = vector.load %arg7[%c0_71, %c0_72, %c0_73, %c0_74] : memref<2x18x18x16xf32, #tpu.memory_space<vmem>>, vector<2x18x18x16xf32>
    tpu.vector_store %arg7[%c0_71, %c0_72, %c0_73, %c0_74], %60 {strides = array<i32>} : memref<2x18x18x16xf32, #tpu.memory_space<vmem>>, vector<2x18x18x16xf32>,
    %62 = vector.shape_cast %59 : vector<512x16xf32> to vector<2x16x16x16xf32>
    %c0_75 = arith.constant 0 : index
    %c1_76 = arith.constant 1 : index
    %c1_77 = arith.constant 1 : index
    %c0_78 = arith.constant 0 : index
    %63 = vector.load %arg7[%c0_75, %c1_76, %c1_77, %c0_78] : memref<2x18x18x16xf32, #tpu.memory_space<vmem>>, vector<2x16x16x16xf32>
    tpu.vector_store %arg7[%c0_75, %c1_76, %c1_77, %c0_78], %62 {strides = array<i32>} : memref<2x18x18x16xf32, #tpu.memory_space<vmem>>, vector<2x16x16x16xf32>,
    %c0_79 = arith.constant 0 : index
    %c0_80 = arith.constant 0 : index
    %c0_81 = arith.constant 0 : index
    %c0_82 = arith.constant 0 : index
    %64 = vector.load %arg7[%c0_79, %c0_80, %c0_81, %c0_82] : memref<2x18x18x16xf32, #tpu.memory_space<vmem>>, vector<2x16x16x16xf32>
    %65 = vector.shape_cast %64 : vector<2x16x16x16xf32> to vector<512x16xf32>
    %c0_83 = arith.constant 0 : index
    %c0_84 = arith.constant 0 : index
    %66 = vector.load %arg9[%c0_83, %c0_84] : memref<512x144xf32, #tpu.memory_space<vmem>>, vector<512x16xf32>
    tpu.vector_store %arg9[%c0_83, %c0_84], %65 {strides = array<i32>} : memref<512x144xf32, #tpu.memory_space<vmem>>, vector<512x16xf32>,
    %c0_85 = arith.constant 0 : index
    %c0_86 = arith.constant 0 : index
    %c1_87 = arith.constant 1 : index
    %c0_88 = arith.constant 0 : index
    %67 = vector.load %arg7[%c0_85, %c0_86, %c1_87, %c0_88] : memref<2x18x18x16xf32, #tpu.memory_space<vmem>>, vector<2x16x16x16xf32>
    %68 = vector.shape_cast %67 : vector<2x16x16x16xf32> to vector<512x16xf32>
    %c0_89 = arith.constant 0 : index
    %c16_90 = arith.constant 16 : index
    %69 = vector.load %arg9[%c0_89, %c16_90] : memref<512x144xf32, #tpu.memory_space<vmem>>, vector<512x16xf32>
    tpu.vector_store %arg9[%c0_89, %c16_90], %68 {strides = array<i32>} : memref<512x144xf32, #tpu.memory_space<vmem>>, vector<512x16xf32>,
    %c0_91 = arith.constant 0 : index
    %c0_92 = arith.constant 0 : index
    %c2_93 = arith.constant 2 : index
    %c0_94 = arith.constant 0 : index
    %70 = vector.load %arg7[%c0_91, %c0_92, %c2_93, %c0_94] : memref<2x18x18x16xf32, #tpu.memory_space<vmem>>, vector<2x16x16x16xf32>
    %71 = vector.shape_cast %70 : vector<2x16x16x16xf32> to vector<512x16xf32>
    %c0_95 = arith.constant 0 : index
    %c32_96 = arith.constant 32 : index
    %72 = vector.load %arg9[%c0_95, %c32_96] : memref<512x144xf32, #tpu.memory_space<vmem>>, vector<512x16xf32>
    tpu.vector_store %arg9[%c0_95, %c32_96], %71 {strides = array<i32>} : memref<512x144xf32, #tpu.memory_space<vmem>>, vector<512x16xf32>,
    %c0_97 = arith.constant 0 : index
    %c1_98 = arith.constant 1 : index
    %c0_99 = arith.constant 0 : index
    %c0_100 = arith.constant 0 : index
    %73 = vector.load %arg7[%c0_97, %c1_98, %c0_99, %c0_100] : memref<2x18x18x16xf32, #tpu.memory_space<vmem>>, vector<2x16x16x16xf32>
    %74 = vector.shape_cast %73 : vector<2x16x16x16xf32> to vector<512x16xf32>
    %c0_101 = arith.constant 0 : index
    %c48 = arith.constant 48 : index
    %75 = vector.load %arg9[%c0_101, %c48] : memref<512x144xf32, #tpu.memory_space<vmem>>, vector<512x16xf32>
    tpu.vector_store %arg9[%c0_101, %c48], %74 {strides = array<i32>} : memref<512x144xf32, #tpu.memory_space<vmem>>, vector<512x16xf32>,
    %c0_102 = arith.constant 0 : index
    %c1_103 = arith.constant 1 : index
    %c1_104 = arith.constant 1 : index
    %c0_105 = arith.constant 0 : index
    %76 = vector.load %arg7[%c0_102, %c1_103, %c1_104, %c0_105] : memref<2x18x18x16xf32, #tpu.memory_space<vmem>>, vector<2x16x16x16xf32>
    %77 = vector.shape_cast %76 : vector<2x16x16x16xf32> to vector<512x16xf32>
    %c0_106 = arith.constant 0 : index
    %c64 = arith.constant 64 : index
    %78 = vector.load %arg9[%c0_106, %c64] : memref<512x144xf32, #tpu.memory_space<vmem>>, vector<512x16xf32>
    tpu.vector_store %arg9[%c0_106, %c64], %77 {strides = array<i32>} : memref<512x144xf32, #tpu.memory_space<vmem>>, vector<512x16xf32>,
    %c0_107 = arith.constant 0 : index
    %c1_108 = arith.constant 1 : index
    %c2_109 = arith.constant 2 : index
    %c0_110 = arith.constant 0 : index
    %79 = vector.load %arg7[%c0_107, %c1_108, %c2_109, %c0_110] : memref<2x18x18x16xf32, #tpu.memory_space<vmem>>, vector<2x16x16x16xf32>
    %80 = vector.shape_cast %79 : vector<2x16x16x16xf32> to vector<512x16xf32>
    %c0_111 = arith.constant 0 : index
    %c80 = arith.constant 80 : index
    %81 = vector.load %arg9[%c0_111, %c80] : memref<512x144xf32, #tpu.memory_space<vmem>>, vector<512x16xf32>
    tpu.vector_store %arg9[%c0_111, %c80], %80 {strides = array<i32>} : memref<512x144xf32, #tpu.memory_space<vmem>>, vector<512x16xf32>,
    %c0_112 = arith.constant 0 : index
    %c2_113 = arith.constant 2 : index
    %c0_114 = arith.constant 0 : index
    %c0_115 = arith.constant 0 : index
    %82 = vector.load %arg7[%c0_112, %c2_113, %c0_114, %c0_115] : memref<2x18x18x16xf32, #tpu.memory_space<vmem>>, vector<2x16x16x16xf32>
    %83 = vector.shape_cast %82 : vector<2x16x16x16xf32> to vector<512x16xf32>
    %c0_116 = arith.constant 0 : index
    %c96 = arith.constant 96 : index
    %84 = vector.load %arg9[%c0_116, %c96] : memref<512x144xf32, #tpu.memory_space<vmem>>, vector<512x16xf32>
    tpu.vector_store %arg9[%c0_116, %c96], %83 {strides = array<i32>} : memref<512x144xf32, #tpu.memory_space<vmem>>, vector<512x16xf32>,
    %c0_117 = arith.constant 0 : index
    %c2_118 = arith.constant 2 : index
    %c1_119 = arith.constant 1 : index
    %c0_120 = arith.constant 0 : index
    %85 = vector.load %arg7[%c0_117, %c2_118, %c1_119, %c0_120] : memref<2x18x18x16xf32, #tpu.memory_space<vmem>>, vector<2x16x16x16xf32>
    %86 = vector.shape_cast %85 : vector<2x16x16x16xf32> to vector<512x16xf32>
    %c0_121 = arith.constant 0 : index
    %c112 = arith.constant 112 : index
    %87 = vector.load %arg9[%c0_121, %c112] : memref<512x144xf32, #tpu.memory_space<vmem>>, vector<512x16xf32>
    tpu.vector_store %arg9[%c0_121, %c112], %86 {strides = array<i32>} : memref<512x144xf32, #tpu.memory_space<vmem>>, vector<512x16xf32>,
    %c0_122 = arith.constant 0 : index
    %c2_123 = arith.constant 2 : index
    %c2_124 = arith.constant 2 : index
    %c0_125 = arith.constant 0 : index
    %88 = vector.load %arg7[%c0_122, %c2_123, %c2_124, %c0_125] : memref<2x18x18x16xf32, #tpu.memory_space<vmem>>, vector<2x16x16x16xf32>
    %89 = vector.shape_cast %88 : vector<2x16x16x16xf32> to vector<512x16xf32>
    %c0_126 = arith.constant 0 : index
    %c128 = arith.constant 128 : index
    %90 = vector.load %arg9[%c0_126, %c128] : memref<512x144xf32, #tpu.memory_space<vmem>>, vector<512x16xf32>
    tpu.vector_store %arg9[%c0_126, %c128], %89 {strides = array<i32>} : memref<512x144xf32, #tpu.memory_space<vmem>>, vector<512x16xf32>,
    %c0_127 = arith.constant 0 : index
    %c0_128 = arith.constant 0 : index
    %91 = vector.load %arg9[%c0_127, %c0_128] : memref<512x144xf32, #tpu.memory_space<vmem>>, vector<512x144xf32>
    %c0_129 = arith.constant 0 : index
    %c0_130 = arith.constant 0 : index
    %92 = vector.load %arg2[%c0_129, %c0_130] : memref<144x16xf32, #tpu.memory_space<vmem>>, vector<144x16xf32>
    %cst_131 = arith.constant dense<0.000000e+00> : vector<512x16xf32>
    %93 = tpu.matmul %91, %92, %cst_131 {dimension_numbers = #tpu.dot_dimension_numbers<[1], [0], [0], [1], [0, 0, 1, 1], [], []>} : vector<512x144xf32>, vector<144x16xf32>, vector<512x16xf32> -> vector<512x16xf32>
    %cst_132 = arith.constant dense<0.000000e+00> : vector<16xf32>
    %94 = vector.multi_reduction <add>, %93, %cst_132 [0] : vector<512x16xf32> to vector<16xf32>
    %95 = vector.shape_cast %94 : vector<16xf32> to vector<1x16xf32>
    %cst_133 = arith.constant 5.120000e+02 : f32
    %96 = vector.broadcast %cst_133 : f32 to vector<1x16xf32>
    %97 = arith.divf %95, %96 : vector<1x16xf32>
    %98 = vector.broadcast %97 : vector<1x16xf32> to vector<512x16xf32>
    %99 = arith.subf %93, %98 : vector<512x16xf32>
    %100 = arith.mulf %99, %99 : vector<512x16xf32>
    %cst_134 = arith.constant dense<0.000000e+00> : vector<16xf32>
    %101 = vector.multi_reduction <add>, %100, %cst_134 [0] : vector<512x16xf32> to vector<16xf32>
    %102 = vector.shape_cast %101 : vector<16xf32> to vector<1x16xf32>
    %cst_135 = arith.constant 5.120000e+02 : f32
    %103 = vector.broadcast %cst_135 : f32 to vector<1x16xf32>
    %104 = arith.divf %102, %103 : vector<1x16xf32>
    %105 = vector.broadcast %97 : vector<1x16xf32> to vector<512x16xf32>
    %106 = arith.subf %93, %105 : vector<512x16xf32>
    %cst_136 = arith.constant 9.99999974E-6 : f32
    %107 = vector.broadcast %cst_136 : f32 to vector<1x16xf32>
    %108 = arith.addf %104, %107 : vector<1x16xf32>
    %109 = math.rsqrt %108 : vector<1x16xf32>
    %110 = vector.broadcast %109 : vector<1x16xf32> to vector<512x16xf32>
    %111 = arith.mulf %106, %110 : vector<512x16xf32>
    %c0_137 = arith.constant 0 : index
    %c0_138 = arith.constant 0 : index
    %112 = vector.load %arg3[%c0_137, %c0_138] : memref<1x16xf32, #tpu.memory_space<vmem>>, vector<1x16xf32>
    %113 = vector.broadcast %112 : vector<1x16xf32> to vector<512x16xf32>
    %114 = arith.mulf %111, %113 : vector<512x16xf32>
    %c0_139 = arith.constant 0 : index
    %c0_140 = arith.constant 0 : index
    %115 = vector.load %arg4[%c0_139, %c0_140] : memref<1x16xf32, #tpu.memory_space<vmem>>, vector<1x16xf32>
    %116 = vector.broadcast %115 : vector<1x16xf32> to vector<512x16xf32>
    %117 = arith.addf %114, %116 : vector<512x16xf32>
    %cst_141 = arith.constant 0.000000e+00 : f32
    %118 = vector.broadcast %cst_141 : f32 to vector<512x16xf32>
    %119 = arith.maximumf %117, %118 : vector<512x16xf32>
    %120 = vector.shape_cast %119 : vector<512x16xf32> to vector<2x16x16x16xf32>
    %c0_142 = arith.constant 0 : index
    %c0_143 = arith.constant 0 : index
    %c0_144 = arith.constant 0 : index
    %c0_145 = arith.constant 0 : index
    %121 = vector.load %arg5[%c0_142, %c0_143, %c0_144, %c0_145] : memref<2x16x16x16xf32, #tpu.memory_space<vmem>>, vector<2x16x16x16xf32>
    tpu.vector_store %arg5[%c0_142, %c0_143, %c0_144, %c0_145], %120 {strides = array<i32>} : memref<2x16x16x16xf32, #tpu.memory_space<vmem>>, vector<2x16x16x16xf32>,
    return
  }
}

</mosaic_0001>

<llo_original>
// kernel: conv_forward.1
$region0: #{conv_forward.1}
  #allocation0 [shape = 'u32[]', space=smem, size = 0x4, offset = 0x4, fixed_abs, tag = 'smem constant byte address 0x4 - core index']
  #allocation1 [shape = 'u32[72,128]{1,0:T(1,128)}', space=vmem, size = 0x9000, scoped, tag = 'internal scratch']
  #allocation2 [shape = 'f32[2,18,18,4]{3,2,1,0:T(8,128)}', space=vmem, size = 0x6c000, scoped, tag = 'scratch operand']
  #allocation3 [shape = 'f32[2,18,18,16]{3,2,1,0:T(8,128)}', space=vmem, size = 0x6c000, scoped, tag = 'scratch operand']
  #allocation4 [shape = 'f32[512,36]{1,0:T(8,128)}', space=vmem, size = 0x40000, scoped, tag = 'scratch operand']
  #allocation5 [shape = 'f32[512,144]{1,0:T(8,128)}', space=vmem, size = 0x80000, scoped, tag = 'scratch operand']
  %s0 = inlined_call_operand.vmem [shape: f32[2,16,16,4], index: 0, kind: input, shape index: {}]
  %s1 = inlined_call_operand.vmem [shape: f32[36,16], index: 1, kind: input, shape index: {}]
  %s2 = inlined_call_operand.vmem [shape: f32[144,16], index: 2, kind: input, shape index: {}]
  %s3 = inlined_call_operand.vmem [shape: f32[1,16], index: 3, kind: input, shape index: {}]
  %s4 = inlined_call_operand.vmem [shape: f32[1,16], index: 4, kind: input, shape index: {}]
  %s5 = inlined_call_operand.vmem [shape: f32[2,16,16,16], index: 5, kind: output, shape index: {}]
  %s6 = sld [smem:[#allocation0]]
  $region30: #{conv_forward.1} parent=0
    _
  %s8 = ssub.s32 1, %s6
  %s9 = scalar_select 0, %s8, %s6
  // Predicated region
  $region2: #{conv_forward.1} parent=0 // pred_check
    _
  $region3: #{conv_forward.1} parent=0 // pred_check_branch
    %11 = sbr.rel (0) target = $region5
  $region4: #{conv_forward.1} parent=0 // pred_region
    _
  $region5: #{conv_forward.1} parent=0 // pred_fallthru
    _
  // Predicated region
  $region6: #{conv_forward.1} parent=0 // pred_check
    _
  $region7: #{conv_forward.1} parent=0 // pred_check_branch
    %13 = sbr.rel (0) target = $region9
  $region8: #{conv_forward.1} parent=0 // pred_region
    _
  $region9: #{conv_forward.1} parent=0 // pred_fallthru
    _
  // Predicated region
  $region10: #{conv_forward.1} parent=0 // pred_check
    _
  $region11: #{conv_forward.1} parent=0 // pred_check_branch
    %15 = sbr.rel (0) target = $region13
  $region12: #{conv_forward.1} parent=0 // pred_region
    _
  $region13: #{conv_forward.1} parent=0 // pred_fallthru
    _
  // Predicated region
  $region14: #{conv_forward.1} parent=0 // pred_check
    _
  $region15: #{conv_forward.1} parent=0 // pred_check_branch
    %17 = sbr.rel (0) target = $region17
  $region16: #{conv_forward.1} parent=0 // pred_region
    _
  $region17: #{conv_forward.1} parent=0 // pred_fallthru
    _
  // Predicated region
  $region18: #{conv_forward.1} parent=0 // pred_check
    _
  $region19: #{conv_forward.1} parent=0 // pred_check_branch
    %19 = sbr.rel (0) target = $region21
  $region20: #{conv_forward.1} parent=0 // pred_region
    _
  $region21: #{conv_forward.1} parent=0 // pred_fallthru
    _
  %vm20 = vcmask 31744
  %21 = vst.msk [vmem:[#allocation2] sm:$0xff] %vm20, 0.0
  %22 = vst.msk [vmem:[#allocation2 + $0x8] sm:$0xff] %vm20, 0.0
  %vm23 = vcmask 25600
  %24 = vst.msk [vmem:[#allocation2 + $0x10] sm:$0x3] %vm23, 0.0
  %25 = vst.msk [vmem:[#allocation2 + $0x18] sm:$0xff] %vm20, 0.0
  %26 = vst.msk [vmem:[#allocation2 + $0x20] sm:$0xff] %vm20, 0.0
  %27 = vst.msk [vmem:[#allocation2 + $0x28] sm:$0x3] %vm23, 0.0
  %28 = vst.msk [vmem:[#allocation2 + $0x30] sm:$0xff] %vm20, 0.0
  %29 = vst.msk [vmem:[#allocation2 + $0x38] sm:$0xff] %vm20, 0.0
  %30 = vst.msk [vmem:[#allocation2 + $0x40] sm:$0x3] %vm23, 0.0
  %31 = vst.msk [vmem:[#allocation2 + $0x48] sm:$0xff] %vm20, 0.0
  %32 = vst.msk [vmem:[#allocation2 + $0x50] sm:$0xff] %vm20, 0.0
  %33 = vst.msk [vmem:[#allocation2 + $0x58] sm:$0x3] %vm23, 0.0
  %34 = vst.msk [vmem:[#allocation2 + $0x60] sm:$0xff] %vm20, 0.0
  %35 = vst.msk [vmem:[#allocation2 + $0x68] sm:$0xff] %vm20, 0.0
  %36 = vst.msk [vmem:[#allocation2 + $0x70] sm:$0x3] %vm23, 0.0
  %37 = vst.msk [vmem:[#allocation2 + $0x78] sm:$0xff] %vm20, 0.0
  %38 = vst.msk [vmem:[#allocation2 + $0x80] sm:$0xff] %vm20, 0.0
  %39 = vst.msk [vmem:[#allocation2 + $0x88] sm:$0x3] %vm23, 0.0
  %40 = vst.msk [vmem:[#allocation2 + $0x90] sm:$0xff] %vm20, 0.0
  %41 = vst.msk [vmem:[#allocation2 + $0x98] sm:$0xff] %vm20, 0.0
  %42 = vst.msk [vmem:[#allocation2 + $0xa0] sm:$0x3] %vm23, 0.0
  %43 = vst.msk [vmem:[#allocation2 + $0xa8] sm:$0xff] %vm20, 0.0
  %44 = vst.msk [vmem:[#allocation2 + $0xb0] sm:$0xff] %vm20, 0.0
  %45 = vst.msk [vmem:[#allocation2 + $0xb8] sm:$0x3] %vm23, 0.0
  %46 = vst.msk [vmem:[#allocation2 + $0xc0] sm:$0xff] %vm20, 0.0
  %47 = vst.msk [vmem:[#allocation2 + $0xc8] sm:$0xff] %vm20, 0.0
  %48 = vst.msk [vmem:[#allocation2 + $0xd0] sm:$0x3] %vm23, 0.0
  %49 = vst.msk [vmem:[#allocation2 + $0xd8] sm:$0xff] %vm20, 0.0
  %50 = vst.msk [vmem:[#allocation2 + $0xe0] sm:$0xff] %vm20, 0.0
  %51 = vst.msk [vmem:[#allocation2 + $0xe8] sm:$0x3] %vm23, 0.0
  %52 = vst.msk [vmem:[#allocation2 + $0xf0] sm:$0xff] %vm20, 0.0
  %53 = vst.msk [vmem:[#allocation2 + $0xf8] sm:$0xff] %vm20, 0.0
  %54 = vst.msk [vmem:[#allocation2 + $0x100] sm:$0x3] %vm23, 0.0
  %55 = vst.msk [vmem:[#allocation2 + $0x108] sm:$0xff] %vm20, 0.0
  %56 = vst.msk [vmem:[#allocation2 + $0x110] sm:$0xff] %vm20, 0.0
  %57 = vst.msk [vmem:[#allocation2 + $0x118] sm:$0x3] %vm23, 0.0
  %58 = vst.msk [vmem:[#allocation2 + $0x120] sm:$0xff] %vm20, 0.0
  %59 = vst.msk [vmem:[#allocation2 + $0x128] sm:$0xff] %vm20, 0.0
  %60 = vst.msk [vmem:[#allocation2 + $0x130] sm:$0x3] %vm23, 0.0
  %61 = vst.msk [vmem:[#allocation2 + $0x138] sm:$0xff] %vm20, 0.0
  %62 = vst.msk [vmem:[#allocation2 + $0x140] sm:$0xff] %vm20, 0.0
  %63 = vst.msk [vmem:[#allocation2 + $0x148] sm:$0x3] %vm23, 0.0
  %64 = vst.msk [vmem:[#allocation2 + $0x150] sm:$0xff] %vm20, 0.0
  %65 = vst.msk [vmem:[#allocation2 + $0x158] sm:$0xff] %vm20, 0.0
  %66 = vst.msk [vmem:[#allocation2 + $0x160] sm:$0x3] %vm23, 0.0
  %67 = vst.msk [vmem:[#allocation2 + $0x168] sm:$0xff] %vm20, 0.0
  %68 = vst.msk [vmem:[#allocation2 + $0x170] sm:$0xff] %vm20, 0.0
  %69 = vst.msk [vmem:[#allocation2 + $0x178] sm:$0x3] %vm23, 0.0
  %70 = vst.msk [vmem:[#allocation2 + $0x180] sm:$0xff] %vm20, 0.0
  %71 = vst.msk [vmem:[#allocation2 + $0x188] sm:$0xff] %vm20, 0.0
  %72 = vst.msk [vmem:[#allocation2 + $0x190] sm:$0x3] %vm23, 0.0
  %73 = vst.msk [vmem:[#allocation2 + $0x198] sm:$0xff] %vm20, 0.0
  %74 = vst.msk [vmem:[#allocation2 + $0x1a0] sm:$0xff] %vm20, 0.0
  %75 = vst.msk [vmem:[#allocation2 + $0x1a8] sm:$0x3] %vm23, 0.0
  %76 = vst.msk [vmem:[#allocation2 + $0x1b0] sm:$0xff] %vm20, 0.0
  %77 = vst.msk [vmem:[#allocation2 + $0x1b8] sm:$0xff] %vm20, 0.0
  %78 = vst.msk [vmem:[#allocation2 + $0x1c0] sm:$0x3] %vm23, 0.0
  %79 = vst.msk [vmem:[#allocation2 + $0x1c8] sm:$0xff] %vm20, 0.0
  %80 = vst.msk [vmem:[#allocation2 + $0x1d0] sm:$0xff] %vm20, 0.0
  %81 = vst.msk [vmem:[#allocation2 + $0x1d8] sm:$0x3] %vm23, 0.0
  %82 = vst.msk [vmem:[#allocation2 + $0x1e0] sm:$0xff] %vm20, 0.0
  %83 = vst.msk [vmem:[#allocation2 + $0x1e8] sm:$0xff] %vm20, 0.0
  %84 = vst.msk [vmem:[#allocation2 + $0x1f0] sm:$0x3] %vm23, 0.0
  %85 = vst.msk [vmem:[#allocation2 + $0x1f8] sm:$0xff] %vm20, 0.0
  %86 = vst.msk [vmem:[#allocation2 + $0x200] sm:$0xff] %vm20, 0.0
  %87 = vst.msk [vmem:[#allocation2 + $0x208] sm:$0x3] %vm23, 0.0
  %88 = vst.msk [vmem:[#allocation2 + $0x210] sm:$0xff] %vm20, 0.0
  %89 = vst.msk [vmem:[#allocation2 + $0x218] sm:$0xff] %vm20, 0.0
  %90 = vst.msk [vmem:[#allocation2 + $0x220] sm:$0x3] %vm23, 0.0
  %91 = vst.msk [vmem:[#allocation2 + $0x228] sm:$0xff] %vm20, 0.0
  %92 = vst.msk [vmem:[#allocation2 + $0x230] sm:$0xff] %vm20, 0.0
  %93 = vst.msk [vmem:[#allocation2 + $0x238] sm:$0x3] %vm23, 0.0
  %94 = vst.msk [vmem:[#allocation2 + $0x240] sm:$0xff] %vm20, 0.0
  %95 = vst.msk [vmem:[#allocation2 + $0x248] sm:$0xff] %vm20, 0.0
  %96 = vst.msk [vmem:[#allocation2 + $0x250] sm:$0x3] %vm23, 0.0
  %97 = vst.msk [vmem:[#allocation2 + $0x258] sm:$0xff] %vm20, 0.0
  %98 = vst.msk [vmem:[#allocation2 + $0x260] sm:$0xff] %vm20, 0.0
  %99 = vst.msk [vmem:[#allocation2 + $0x268] sm:$0x3] %vm23, 0.0
  %100 = vst.msk [vmem:[#allocation2 + $0x270] sm:$0xff] %vm20, 0.0
  %101 = vst.msk [vmem:[#allocation2 + $0x278] sm:$0xff] %vm20, 0.0
  %102 = vst.msk [vmem:[#allocation2 + $0x280] sm:$0x3] %vm23, 0.0
  %103 = vst.msk [vmem:[#allocation2 + $0x288] sm:$0xff] %vm20, 0.0
  %104 = vst.msk [vmem:[#allocation2 + $0x290] sm:$0xff] %vm20, 0.0
  %105 = vst.msk [vmem:[#allocation2 + $0x298] sm:$0x3] %vm23, 0.0
  %106 = vst.msk [vmem:[#allocation2 + $0x2a0] sm:$0xff] %vm20, 0.0
  %107 = vst.msk [vmem:[#allocation2 + $0x2a8] sm:$0xff] %vm20, 0.0
  %108 = vst.msk [vmem:[#allocation2 + $0x2b0] sm:$0x3] %vm23, 0.0
  %109 = vst.msk [vmem:[#allocation2 + $0x2b8] sm:$0xff] %vm20, 0.0
  %110 = vst.msk [vmem:[#allocation2 + $0x2c0] sm:$0xff] %vm20, 0.0
  %111 = vst.msk [vmem:[#allocation2 + $0x2c8] sm:$0x3] %vm23, 0.0
  %112 = vst.msk [vmem:[#allocation2 + $0x2d0] sm:$0xff] %vm20, 0.0
  %113 = vst.msk [vmem:[#allocation2 + $0x2d8] sm:$0xff] %vm20, 0.0
  %114 = vst.msk [vmem:[#allocation2 + $0x2e0] sm:$0x3] %vm23, 0.0
  %115 = vst.msk [vmem:[#allocation2 + $0x2e8] sm:$0xff] %vm20, 0.0
  %116 = vst.msk [vmem:[#allocation2 + $0x2f0] sm:$0xff] %vm20, 0.0
  %117 = vst.msk [vmem:[#allocation2 + $0x2f8] sm:$0x3] %vm23, 0.0
  %118 = vst.msk [vmem:[#allocation2 + $0x300] sm:$0xff] %vm20, 0.0
  %119 = vst.msk [vmem:[#allocation2 + $0x308] sm:$0xff] %vm20, 0.0
  %120 = vst.msk [vmem:[#allocation2 + $0x310] sm:$0x3] %vm23, 0.0
  %121 = vst.msk [vmem:[#allocation2 + $0x318] sm:$0xff] %vm20, 0.0
  %122 = vst.msk [vmem:[#allocation2 + $0x320] sm:$0xff] %vm20, 0.0
  %123 = vst.msk [vmem:[#allocation2 + $0x328] sm:$0x3] %vm23, 0.0
  %124 = vst.msk [vmem:[#allocation2 + $0x330] sm:$0xff] %vm20, 0.0
  %125 = vst.msk [vmem:[#allocation2 + $0x338] sm:$0xff] %vm20, 0.0
  %126 = vst.msk [vmem:[#allocation2 + $0x340] sm:$0x3] %vm23, 0.0
  %127 = vst.msk [vmem:[#allocation2 + $0x348] sm:$0xff] %vm20, 0.0
  %128 = vst.msk [vmem:[#allocation2 + $0x350] sm:$0xff] %vm20, 0.0
  %129 = vst.msk [vmem:[#allocation2 + $0x358] sm:$0x3] %vm23, 0.0
  %v130 = vld [vmem:[%s0] sm:$0xff]
  %v131 = vld [vmem:[%s0 + $0x8] sm:$0xff]
  %v132 = vld [vmem:[%s0 + $0x10] sm:$0xff]
  %v133 = vld [vmem:[%s0 + $0x18] sm:$0xff]
  %v134 = vld [vmem:[%s0 + $0x20] sm:$0xff]
  %v135 = vld [vmem:[%s0 + $0x28] sm:$0xff]
  %v136 = vld [vmem:[%s0 + $0x30] sm:$0xff]
  %v137 = vld [vmem:[%s0 + $0x38] sm:$0xff]
  %v138 = vld [vmem:[%s0 + $0x40] sm:$0xff]
  %v139 = vld [vmem:[%s0 + $0x48] sm:$0xff]
  %v140 = vld [vmem:[%s0 + $0x50] sm:$0xff]
  %v141 = vld [vmem:[%s0 + $0x58] sm:$0xff]
  %v142 = vld [vmem:[%s0 + $0x60] sm:$0xff]
  %v143 = vld [vmem:[%s0 + $0x68] sm:$0xff]
  %v144 = vld [vmem:[%s0 + $0x70] sm:$0xff]
  %v145 = vld [vmem:[%s0 + $0x78] sm:$0xff]
  %v146 = vld [vmem:[%s0 + $0x80] sm:$0xff]
  %v147 = vld [vmem:[%s0 + $0x88] sm:$0xff]
  %v148 = vld [vmem:[%s0 + $0x90] sm:$0xff]
  %v149 = vld [vmem:[%s0 + $0x98] sm:$0xff]
  %v150 = vld [vmem:[%s0 + $0xa0] sm:$0xff]
  %v151 = vld [vmem:[%s0 + $0xa8] sm:$0xff]
  %v152 = vld [vmem:[%s0 + $0xb0] sm:$0xff]
  %v153 = vld [vmem:[%s0 + $0xb8] sm:$0xff]
  %v154 = vld [vmem:[%s0 + $0xc0] sm:$0xff]
  %v155 = vld [vmem:[%s0 + $0xc8] sm:$0xff]
  %v156 = vld [vmem:[%s0 + $0xd0] sm:$0xff]
  %v157 = vld [vmem:[%s0 + $0xd8] sm:$0xff]
  %v158 = vld [vmem:[%s0 + $0xe0] sm:$0xff]
  %v159 = vld [vmem:[%s0 + $0xe8] sm:$0xff]
  %v160 = vld [vmem:[%s0 + $0xf0] sm:$0xff]
  %v161 = vld [vmem:[%s0 + $0xf8] sm:$0xff]
  %v162 = vld [vmem:[%s0 + $0x100] sm:$0xff]
  %v163 = vld [vmem:[%s0 + $0x108] sm:$0xff]
  %v164 = vld [vmem:[%s0 + $0x110] sm:$0xff]
  %v165 = vld [vmem:[%s0 + $0x118] sm:$0xff]
  %v166 = vld [vmem:[%s0 + $0x120] sm:$0xff]
  %v167 = vld [vmem:[%s0 + $0x128] sm:$0xff]
  %v168 = vld [vmem:[%s0 + $0x130] sm:$0xff]
  %v169 = vld [vmem:[%s0 + $0x138] sm:$0xff]
  %v170 = vld [vmem:[%s0 + $0x140] sm:$0xff]
  %v171 = vld [vmem:[%s0 + $0x148] sm:$0xff]
  %v172 = vld [vmem:[%s0 + $0x150] sm:$0xff]
  %v173 = vld [vmem:[%s0 + $0x158] sm:$0xff]
  %v174 = vld [vmem:[%s0 + $0x160] sm:$0xff]
  %v175 = vld [vmem:[%s0 + $0x168] sm:$0xff]
  %v176 = vld [vmem:[%s0 + $0x170] sm:$0xff]
  %v177 = vld [vmem:[%s0 + $0x178] sm:$0xff]
  %v178 = vld [vmem:[%s0 + $0x180] sm:$0xff]
  %v179 = vld [vmem:[%s0 + $0x188] sm:$0xff]
  %v180 = vld [vmem:[%s0 + $0x190] sm:$0xff]
  %v181 = vld [vmem:[%s0 + $0x198] sm:$0xff]
  %v182 = vld [vmem:[%s0 + $0x1a0] sm:$0xff]
  %v183 = vld [vmem:[%s0 + $0x1a8] sm:$0xff]
  %v184 = vld [vmem:[%s0 + $0x1b0] sm:$0xff]
  %v185 = vld [vmem:[%s0 + $0x1b8] sm:$0xff]
  %v186 = vld [vmem:[%s0 + $0x1c0] sm:$0xff]
  %v187 = vld [vmem:[%s0 + $0x1c8] sm:$0xff]
  %v188 = vld [vmem:[%s0 + $0x1d0] sm:$0xff]
  %v189 = vld [vmem:[%s0 + $0x1d8] sm:$0xff]
  %v190 = vld [vmem:[%s0 + $0x1e0] sm:$0xff]
  %v191 = vld [vmem:[%s0 + $0x1e8] sm:$0xff]
  %v192 = vld [vmem:[%s0 + $0x1f0] sm:$0xff]
  %v193 = vld [vmem:[%s0 + $0x1f8] sm:$0xff]
  %s194 = scalar_lea.vmem [#allocation2], 24
  %195 = vst.msk [vmem:[%s194 + $0x1] sm:$0xff] %vm20, %v130
  %196 = vst.msk [vmem:[%s194 + $0x9] sm:$0xff] %vm20, %v131
  %197 = vst.msk [vmem:[%s194 + $0x19] sm:$0xff] %vm20, %v132
  %198 = vst.msk [vmem:[%s194 + $0x21] sm:$0xff] %vm20, %v133
  %199 = vst.msk [vmem:[%s194 + $0x31] sm:$0xff] %vm20, %v134
  %200 = vst.msk [vmem:[%s194 + $0x39] sm:$0xff] %vm20, %v135
  %201 = vst.msk [vmem:[%s194 + $0x49] sm:$0xff] %vm20, %v136
  %202 = vst.msk [vmem:[%s194 + $0x51] sm:$0xff] %vm20, %v137
  %203 = vst.msk [vmem:[%s194 + $0x61] sm:$0xff] %vm20, %v138
  %204 = vst.msk [vmem:[%s194 + $0x69] sm:$0xff] %vm20, %v139
  %205 = vst.msk [vmem:[%s194 + $0x79] sm:$0xff] %vm20, %v140
  %206 = vst.msk [vmem:[%s194 + $0x81] sm:$0xff] %vm20, %v141
  %207 = vst.msk [vmem:[%s194 + $0x91] sm:$0xff] %vm20, %v142
  %208 = vst.msk [vmem:[%s194 + $0x99] sm:$0xff] %vm20, %v143
  %209 = vst.msk [vmem:[%s194 + $0xa9] sm:$0xff] %vm20, %v144
  %210 = vst.msk [vmem:[%s194 + $0xb1] sm:$0xff] %vm20, %v145
  %211 = vst.msk [vmem:[%s194 + $0xc1] sm:$0xff] %vm20, %v146
  %212 = vst.msk [vmem:[%s194 + $0xc9] sm:$0xff] %vm20, %v147
  %213 = vst.msk [vmem:[%s194 + $0xd9] sm:$0xff] %vm20, %v148
  %214 = vst.msk [vmem:[%s194 + $0xe1] sm:$0xff] %vm20, %v149
  %215 = vst.msk [vmem:[%s194 + $0xf1] sm:$0xff] %vm20, %v150
  %216 = vst.msk [vmem:[%s194 + $0xf9] sm:$0xff] %vm20, %v151
  %217 = vst.msk [vmem:[%s194 + $0x109] sm:$0xff] %vm20, %v152
  %218 = vst.msk [vmem:[%s194 + $0x111] sm:$0xff] %vm20, %v153
  %219 = vst.msk [vmem:[%s194 + $0x121] sm:$0xff] %vm20, %v154
  %220 = vst.msk [vmem:[%s194 + $0x129] sm:$0xff] %vm20, %v155
  %221 = vst.msk [vmem:[%s194 + $0x139] sm:$0xff] %vm20, %v156
  %222 = vst.msk [vmem:[%s194 + $0x141] sm:$0xff] %vm20, %v157
  %223 = vst.msk [vmem:[%s194 + $0x151] sm:$0xff] %vm20, %v158
  %224 = vst.msk [vmem:[%s194 + $0x159] sm:$0xff] %vm20, %v159
  %225 = vst.msk [vmem:[%s194 + $0x169] sm:$0xff] %vm20, %v160
  %226 = vst.msk [vmem:[%s194 + $0x171] sm:$0xff] %vm20, %v161
  %227 = vst.msk [vmem:[%s194 + $0x1b1] sm:$0xff] %vm20, %v162
  %228 = vst.msk [vmem:[%s194 + $0x1b9] sm:$0xff] %vm20, %v163
  %229 = vst.msk [vmem:[%s194 + $0x1c9] sm:$0xff] %vm20, %v164
  %230 = vst.msk [vmem:[%s194 + $0x1d1] sm:$0xff] %vm20, %v165
  %231 = vst.msk [vmem:[%s194 + $0x1e1] sm:$0xff] %vm20, %v166
  %232 = vst.msk [vmem:[%s194 + $0x1e9] sm:$0xff] %vm20, %v167
  %233 = vst.msk [vmem:[%s194 + $0x1f9] sm:$0xff] %vm20, %v168
  %234 = vst.msk [vmem:[%s194 + $0x201] sm:$0xff] %vm20, %v169
  %235 = vst.msk [vmem:[%s194 + $0x211] sm:$0xff] %vm20, %v170
  %236 = vst.msk [vmem:[%s194 + $0x219] sm:$0xff] %vm20, %v171
  %237 = vst.msk [vmem:[%s194 + $0x229] sm:$0xff] %vm20, %v172
  %238 = vst.msk [vmem:[%s194 + $0x231] sm:$0xff] %vm20, %v173
  %239 = vst.msk [vmem:[%s194 + $0x241] sm:$0xff] %vm20, %v174
  %240 = vst.msk [vmem:[%s194 + $0x249] sm:$0xff] %vm20, %v175
  %241 = vst.msk [vmem:[%s194 + $0x259] sm:$0xff] %vm20, %v176
  %242 = vst.msk [vmem:[%s194 + $0x261] sm:$0xff] %vm20, %v177
  %243 = vst.msk [vmem:[%s194 + $0x271] sm:$0xff] %vm20, %v178
  %244 = vst.msk [vmem:[%s194 + $0x279] sm:$0xff] %vm20, %v179
  %245 = vst.msk [vmem:[%s194 + $0x289] sm:$0xff] %vm20, %v180
  %246 = vst.msk [vmem:[%s194 + $0x291] sm:$0xff] %vm20, %v181
  %247 = vst.msk [vmem:[%s194 + $0x2a1] sm:$0xff] %vm20, %v182
  %248 = vst.msk [vmem:[%s194 + $0x2a9] sm:$0xff] %vm20, %v183
  %249 = vst.msk [vmem:[%s194 + $0x2b9] sm:$0xff] %vm20, %v184
  %250 = vst.msk [vmem:[%s194 + $0x2c1] sm:$0xff] %vm20, %v185
  %251 = vst.msk [vmem:[%s194 + $0x2d1] sm:$0xff] %vm20, %v186
  %252 = vst.msk [vmem:[%s194 + $0x2d9] sm:$0xff] %vm20, %v187
  %253 = vst.msk [vmem:[%s194 + $0x2e9] sm:$0xff] %vm20, %v188
  %254 = vst.msk [vmem:[%s194 + $0x2f1] sm:$0xff] %vm20, %v189
  %255 = vst.msk [vmem:[%s194 + $0x301] sm:$0xff] %vm20, %v190
  %256 = vst.msk [vmem:[%s194 + $0x309] sm:$0xff] %vm20, %v191
  %257 = vst.msk [vmem:[%s194 + $0x319] sm:$0xff] %vm20, %v192
  %258 = vst.msk [vmem:[%s194 + $0x321] sm:$0xff] %vm20, %v193
  %v259 = vld [vmem:[#allocation2] sm:$0xff]
  %v260 = vld [vmem:[#allocation2 + $0x8] sm:$0xff]
  %v261 = vld [vmem:[#allocation2 + $0x18] sm:$0xff]
  %v262 = vld [vmem:[#allocation2 + $0x20] sm:$0xff]
  %v263 = vld [vmem:[#allocation2 + $0x30] sm:$0xff]
  %v264 = vld [vmem:[#allocation2 + $0x38] sm:$0xff]
  %v265 = vld [vmem:[#allocation2 + $0x48] sm:$0xff]
  %v266 = vld [vmem:[#allocation2 + $0x50] sm:$0xff]
  %v267 = vld [vmem:[#allocation2 + $0x60] sm:$0xff]
  %v268 = vld [vmem:[#allocation2 + $0x68] sm:$0xff]
  %v269 = vld [vmem:[#allocation2 + $0x78] sm:$0xff]
  %v270 = vld [vmem:[#allocation2 + $0x80] sm:$0xff]
  %v271 = vld [vmem:[#allocation2 + $0x90] sm:$0xff]
  %v272 = vld [vmem:[#allocation2 + $0x98] sm:$0xff]
  %v273 = vld [vmem:[#allocation2 + $0xa8] sm:$0xff]
  %v274 = vld [vmem:[#allocation2 + $0xb0] sm:$0xff]
  %v275 = vld [vmem:[#allocation2 + $0xc0] sm:$0xff]
  %v276 = vld [vmem:[#allocation2 + $0xc8] sm:$0xff]
  %v277 = vld [vmem:[#allocation2 + $0xd8] sm:$0xff]
  %v278 = vld [vmem:[#allocation2 + $0xe0] sm:$0xff]
  %v279 = vld [vmem:[#allocation2 + $0xf0] sm:$0xff]
  %v280 = vld [vmem:[#allocation2 + $0xf8] sm:$0xff]
  %v281 = vld [vmem:[#allocation2 + $0x108] sm:$0xff]
  %v282 = vld [vmem:[#allocation2 + $0x110] sm:$0xff]
  %v283 = vld [vmem:[#allocation2 + $0x120] sm:$0xff]
  %v284 = vld [vmem:[#allocation2 + $0x128] sm:$0xff]
  %v285 = vld [vmem:[#allocation2 + $0x138] sm:$0xff]
  %v286 = vld [vmem:[#allocation2 + $0x140] sm:$0xff]
  %v287 = vld [vmem:[#allocation2 + $0x150] sm:$0xff]
  %v288 = vld [vmem:[#allocation2 + $0x158] sm:$0xff]
  %v289 = vld [vmem:[#allocation2 + $0x168] sm:$0xff]
  %v290 = vld [vmem:[#allocation2 + $0x170] sm:$0xff]
  %v291 = vld [vmem:[#allocation2 + $0x1b0] sm:$0xff]
  %v292 = vld [vmem:[#allocation2 + $0x1b8] sm:$0xff]
  %v293 = vld [vmem:[#allocation2 + $0x1c8] sm:$0xff]
  %v294 = vld [vmem:[#allocation2 + $0x1d0] sm:$0xff]
  %v295 = vld [vmem:[#allocation2 + $0x1e0] sm:$0xff]
  %v296 = vld [vmem:[#allocation2 + $0x1e8] sm:$0xff]
  %v297 = vld [vmem:[#allocation2 + $0x1f8] sm:$0xff]
  %v298 = vld [vmem:[#allocation2 + $0x200] sm:$0xff]
  %v299 = vld [vmem:[#allocation2 + $0x210] sm:$0xff]
  %v300 = vld [vmem:[#allocation2 + $0x218] sm:$0xff]
  %v301 = vld [vmem:[#allocation2 + $0x228] sm:$0xff]
  %v302 = vld [vmem:[#allocation2 + $0x230] sm:$0xff]
  %v303 = vld [vmem:[#allocation2 + $0x240] sm:$0xff]
  %v304 = vld [vmem:[#allocation2 + $0x248] sm:$0xff]
  %v305 = vld [vmem:[#allocation2 + $0x258] sm:$0xff]
  %v306 = vld [vmem:[#allocation2 + $0x260] sm:$0xff]
  %v307 = vld [vmem:[#allocation2 + $0x270] sm:$0xff]
  %v308 = vld [vmem:[#allocation2 + $0x278] sm:$0xff]
  %v309 = vld [vmem:[#allocation2 + $0x288] sm:$0xff]
  %v310 = vld [vmem:[#allocation2 + $0x290] sm:$0xff]
  %v311 = vld [vmem:[#allocation2 + $0x2a0] sm:$0xff]
  %v312 = vld [vmem:[#allocation2 + $0x2a8] sm:$0xff]
  %v313 = vld [vmem:[#allocation2 + $0x2b8] sm:$0xff]
  %v314 = vld [vmem:[#allocation2 + $0x2c0] sm:$0xff]
  %v315 = vld [vmem:[#allocation2 + $0x2d0] sm:$0xff]
  %v316 = vld [vmem:[#allocation2 + $0x2d8] sm:$0xff]
  %v317 = vld [vmem:[#allocation2 + $0x2e8] sm:$0xff]
  %v318 = vld [vmem:[#allocation2 + $0x2f0] sm:$0xff]
  %v319 = vld [vmem:[#allocation2 + $0x300] sm:$0xff]
  %v320 = vld [vmem:[#allocation2 + $0x308] sm:$0xff]
  %v321 = vld [vmem:[#allocation2 + $0x318] sm:$0xff]
  %v322 = vld [vmem:[#allocation2 + $0x320] sm:$0xff]
  %323 = vst.msk [vmem:[#allocation4] sm:$0xff] %vm20, %v259
  %324 = vst.msk [vmem:[#allocation4 + $0x8] sm:$0xff] %vm20, %v260
  %325 = vst.msk [vmem:[#allocation4 + $0x10] sm:$0xff] %vm20, %v261
  %326 = vst.msk [vmem:[#allocation4 + $0x18] sm:$0xff] %vm20, %v262
  %327 = vst.msk [vmem:[#allocation4 + $0x20] sm:$0xff] %vm20, %v263
  %328 = vst.msk [vmem:[#allocation4 + $0x28] sm:$0xff] %vm20, %v264
  %329 = vst.msk [vmem:[#allocation4 + $0x30] sm:$0xff] %vm20, %v265
  %330 = vst.msk [vmem:[#allocation4 + $0x38] sm:$0xff] %vm20, %v266
  %331 = vst.msk [vmem:[#allocation4 + $0x40] sm:$0xff] %vm20, %v267
  %332 = vst.msk [vmem:[#allocation4 + $0x48] sm:$0xff] %vm20, %v268
  %333 = vst.msk [vmem:[#allocation4 + $0x50] sm:$0xff] %vm20, %v269
  %334 = vst.msk [vmem:[#allocation4 + $0x58] sm:$0xff] %vm20, %v270
  %335 = vst.msk [vmem:[#allocation4 + $0x60] sm:$0xff] %vm20, %v271
  %336 = vst.msk [vmem:[#allocation4 + $0x68] sm:$0xff] %vm20, %v272
  %337 = vst.msk [vmem:[#allocation4 + $0x70] sm:$0xff] %vm20, %v273
  %338 = vst.msk [vmem:[#allocation4 + $0x78] sm:$0xff] %vm20, %v274
  %339 = vst.msk [vmem:[#allocation4 + $0x80] sm:$0xff] %vm20, %v275
  %340 = vst.msk [vmem:[#allocation4 + $0x88] sm:$0xff] %vm20, %v276
  %341 = vst.msk [vmem:[#allocation4 + $0x90] sm:$0xff] %vm20, %v277
  %342 = vst.msk [vmem:[#allocation4 + $0x98] sm:$0xff] %vm20, %v278
  %343 = vst.msk [vmem:[#allocation4 + $0xa0] sm:$0xff] %vm20, %v279
  %344 = vst.msk [vmem:[#allocation4 + $0xa8] sm:$0xff] %vm20, %v280
  %345 = vst.msk [vmem:[#allocation4 + $0xb0] sm:$0xff] %vm20, %v281
  %346 = vst.msk [vmem:[#allocation4 + $0xb8] sm:$0xff] %vm20, %v282
  %347 = vst.msk [vmem:[#allocation4 + $0xc0] sm:$0xff] %vm20, %v283
  %348 = vst.msk [vmem:[#allocation4 + $0xc8] sm:$0xff] %vm20, %v284
  %349 = vst.msk [vmem:[#allocation4 + $0xd0] sm:$0xff] %vm20, %v285
  %350 = vst.msk [vmem:[#allocation4 + $0xd8] sm:$0xff] %vm20, %v286
  %351 = vst.msk [vmem:[#allocation4 + $0xe0] sm:$0xff] %vm20, %v287
  %352 = vst.msk [vmem:[#allocation4 + $0xe8] sm:$0xff] %vm20, %v288
  %353 = vst.msk [vmem:[#allocation4 + $0xf0] sm:$0xff] %vm20, %v289
  %354 = vst.msk [vmem:[#allocation4 + $0xf8] sm:$0xff] %vm20, %v290
  %355 = vst.msk [vmem:[#allocation4 + $0x100] sm:$0xff] %vm20, %v291
  %356 = vst.msk [vmem:[#allocation4 + $0x108] sm:$0xff] %vm20, %v292
  %357 = vst.msk [vmem:[#allocation4 + $0x110] sm:$0xff] %vm20, %v293
  %358 = vst.msk [vmem:[#allocation4 + $0x118] sm:$0xff] %vm20, %v294
  %359 = vst.msk [vmem:[#allocation4 + $0x120] sm:$0xff] %vm20, %v295
  %360 = vst.msk [vmem:[#allocation4 + $0x128] sm:$0xff] %vm20, %v296
  %361 = vst.msk [vmem:[#allocation4 + $0x130] sm:$0xff] %vm20, %v297
  %362 = vst.msk [vmem:[#allocation4 + $0x138] sm:$0xff] %vm20, %v298
  %363 = vst.msk [vmem:[#allocation4 + $0x140] sm:$0xff] %vm20, %v299
  %364 = vst.msk [vmem:[#allocation4 + $0x148] sm:$0xff] %vm20, %v300
  %365 = vst.msk [vmem:[#allocation4 + $0x150] sm:$0xff] %vm20, %v301
  %366 = vst.msk [vmem:[#allocation4 + $0x158] sm:$0xff] %vm20, %v302
  %367 = vst.msk [vmem:[#allocation4 + $0x160] sm:$0xff] %vm20, %v303
  %368 = vst.msk [vmem:[#allocation4 + $0x168] sm:$0xff] %vm20, %v304
  %369 = vst.msk [vmem:[#allocation4 + $0x170] sm:$0xff] %vm20, %v305
  %370 = vst.msk [vmem:[#allocation4 + $0x178] sm:$0xff] %vm20, %v306
  %371 = vst.msk [vmem:[#allocation4 + $0x180] sm:$0xff] %vm20, %v307
  %372 = vst.msk [vmem:[#allocation4 + $0x188] sm:$0xff] %vm20, %v308
  %373 = vst.msk [vmem:[#allocation4 + $0x190] sm:$0xff] %vm20, %v309
  %374 = vst.msk [vmem:[#allocation4 + $0x198] sm:$0xff] %vm20, %v310
  %375 = vst.msk [vmem:[#allocation4 + $0x1a0] sm:$0xff] %vm20, %v311
  %376 = vst.msk [vmem:[#allocation4 + $0x1a8] sm:$0xff] %vm20, %v312
  %377 = vst.msk [vmem:[#allocation4 + $0x1b0] sm:$0xff] %vm20, %v313
  %378 = vst.msk [vmem:[#allocation4 + $0x1b8] sm:$0xff] %vm20, %v314
  %379 = vst.msk [vmem:[#allocation4 + $0x1c0] sm:$0xff] %vm20, %v315
  %380 = vst.msk [vmem:[#allocation4 + $0x1c8] sm:$0xff] %vm20, %v316
  %381 = vst.msk [vmem:[#allocation4 + $0x1d0] sm:$0xff] %vm20, %v317
  %382 = vst.msk [vmem:[#allocation4 + $0x1d8] sm:$0xff] %vm20, %v318
  %383 = vst.msk [vmem:[#allocation4 + $0x1e0] sm:$0xff] %vm20, %v319
  %384 = vst.msk [vmem:[#allocation4 + $0x1e8] sm:$0xff] %vm20, %v320
  %385 = vst.msk [vmem:[#allocation4 + $0x1f0] sm:$0xff] %vm20, %v321
  %386 = vst.msk [vmem:[#allocation4 + $0x1f8] sm:$0xff] %vm20, %v322
  %v387 = vld [vmem:[#allocation2 + $0x1] sm:$0xff]
  %v388 = vld [vmem:[#allocation2 + $0x9] sm:$0xff]
  %v389 = vld [vmem:[#allocation2 + $0x19] sm:$0xff]
  %v390 = vld [vmem:[#allocation2 + $0x21] sm:$0xff]
  %v391 = vld [vmem:[#allocation2 + $0x31] sm:$0xff]
  %v392 = vld [vmem:[#allocation2 + $0x39] sm:$0xff]
  %v393 = vld [vmem:[#allocation2 + $0x49] sm:$0xff]
  %v394 = vld [vmem:[#allocation2 + $0x51] sm:$0xff]
  %v395 = vld [vmem:[#allocation2 + $0x61] sm:$0xff]
  %v396 = vld [vmem:[#allocation2 + $0x69] sm:$0xff]
  %v397 = vld [vmem:[#allocation2 + $0x79] sm:$0xff]
  %v398 = vld [vmem:[#allocation2 + $0x81] sm:$0xff]
  %v399 = vld [vmem:[#allocation2 + $0x91] sm:$0xff]
  %v400 = vld [vmem:[#allocation2 + $0x99] sm:$0xff]
  %v401 = vld [vmem:[#allocation2 + $0xa9] sm:$0xff]
  %v402 = vld [vmem:[#allocation2 + $0xb1] sm:$0xff]
  %v403 = vld [vmem:[#allocation2 + $0xc1] sm:$0xff]
  %v404 = vld [vmem:[#allocation2 + $0xc9] sm:$0xff]
  %v405 = vld [vmem:[#allocation2 + $0xd9] sm:$0xff]
  %v406 = vld [vmem:[#allocation2 + $0xe1] sm:$0xff]
  %v407 = vld [vmem:[#allocation2 + $0xf1] sm:$0xff]
  %v408 = vld [vmem:[#allocation2 + $0xf9] sm:$0xff]
  %v409 = vld [vmem:[#allocation2 + $0x109] sm:$0xff]
  %v410 = vld [vmem:[#allocation2 + $0x111] sm:$0xff]
  %v411 = vld [vmem:[#allocation2 + $0x121] sm:$0xff]
  %v412 = vld [vmem:[#allocation2 + $0x129] sm:$0xff]
  %v413 = vld [vmem:[#allocation2 + $0x139] sm:$0xff]
  %v414 = vld [vmem:[#allocation2 + $0x141] sm:$0xff]
  %v415 = vld [vmem:[#allocation2 + $0x151] sm:$0xff]
  %v416 = vld [vmem:[#allocation2 + $0x159] sm:$0xff]
  %v417 = vld [vmem:[#allocation2 + $0x169] sm:$0xff]
  %v418 = vld [vmem:[#allocation2 + $0x171] sm:$0xff]
  %v419 = vld [vmem:[#allocation2 + $0x1b1] sm:$0xff]
  %v420 = vld [vmem:[#allocation2 + $0x1b9] sm:$0xff]
  %v421 = vld [vmem:[#allocation2 + $0x1c9] sm:$0xff]
  %v422 = vld [vmem:[#allocation2 + $0x1d1] sm:$0xff]
  %v423 = vld [vmem:[#allocation2 + $0x1e1] sm:$0xff]
  %v424 = vld [vmem:[#allocation2 + $0x1e9] sm:$0xff]
  %v425 = vld [vmem:[#allocation2 + $0x1f9] sm:$0xff]
  %v426 = vld [vmem:[#allocation2 + $0x201] sm:$0xff]
  %v427 = vld [vmem:[#allocation2 + $0x211] sm:$0xff]
  %v428 = vld [vmem:[#allocation2 + $0x219] sm:$0xff]
  %v429 = vld [vmem:[#allocation2 + $0x229] sm:$0xff]
  %v430 = vld [vmem:[#allocation2 + $0x231] sm:$0xff]
  %v431 = vld [vmem:[#allocation2 + $0x241] sm:$0xff]
  %v432 = vld [vmem:[#allocation2 + $0x249] sm:$0xff]
  %v433 = vld [vmem:[#allocation2 + $0x259] sm:$0xff]
  %v434 = vld [vmem:[#allocation2 + $0x261] sm:$0xff]
  %v435 = vld [vmem:[#allocation2 + $0x271] sm:$0xff]
  %v436 = vld [vmem:[#allocation2 + $0x279] sm:$0xff]
  %v437 = vld [vmem:[#allocation2 + $0x289] sm:$0xff]
  %v438 = vld [vmem:[#allocation2 + $0x291] sm:$0xff]
  %v439 = vld [vmem:[#allocation2 + $0x2a1] sm:$0xff]
  %v440 = vld [vmem:[#allocation2 + $0x2a9] sm:$0xff]
  %v441 = vld [vmem:[#allocation2 + $0x2b9] sm:$0xff]
  %v442 = vld [vmem:[#allocation2 + $0x2c1] sm:$0xff]
  %v443 = vld [vmem:[#allocation2 + $0x2d1] sm:$0xff]
  %v444 = vld [vmem:[#allocation2 + $0x2d9] sm:$0xff]
  %v445 = vld [vmem:[#allocation2 + $0x2e9] sm:$0xff]
  %v446 = vld [vmem:[#allocation2 + $0x2f1] sm:$0xff]
  %v447 = vld [vmem:[#allocation2 + $0x301] sm:$0xff]
  %v448 = vld [vmem:[#allocation2 + $0x309] sm:$0xff]
  %v449 = vld [vmem:[#allocation2 + $0x319] sm:$0xff]
  %v450 = vld [vmem:[#allocation2 + $0x321] sm:$0xff]
  %515 = vrot.lane.b32.xlu0 %v387, 4
  %v516 = vpop.permute.xlu0 %515
  %517 = vrot.lane.b32.xlu0 %v388, 4
  %v518 = vpop.permute.xlu0 %517
  %519 = vrot.lane.b32.xlu0 %v389, 4
  %v520 = vpop.permute.xlu0 %519
  %521 = vrot.lane.b32.xlu0 %v390, 4
  %v522 = vpop.permute.xlu0 %521
  %523 = vrot.lane.b32.xlu0 %v391, 4
  %v524 = vpop.permute.xlu0 %523
  %525 = vrot.lane.b32.xlu0 %v392, 4
  %v526 = vpop.permute.xlu0 %525
  %527 = vrot.lane.b32.xlu0 %v393, 4
  %v528 = vpop.permute.xlu0 %527
  %529 = vrot.lane.b32.xlu0 %v394, 4
  %v530 = vpop.permute.xlu0 %529
  %531 = vrot.lane.b32.xlu0 %v395, 4
  %v532 = vpop.permute.xlu0 %531
  %533 = vrot.lane.b32.xlu0 %v396, 4
  %v534 = vpop.permute.xlu0 %533
  %535 = vrot.lane.b32.xlu0 %v397, 4
  %v536 = vpop.permute.xlu0 %535
  %537 = vrot.lane.b32.xlu0 %v398, 4
  %v538 = vpop.permute.xlu0 %537
  %539 = vrot.lane.b32.xlu0 %v399, 4
  %v540 = vpop.permute.xlu0 %539
  %541 = vrot.lane.b32.xlu0 %v400, 4
  %v542 = vpop.permute.xlu0 %541
  %543 = vrot.lane.b32.xlu0 %v401, 4
  %v544 = vpop.permute.xlu0 %543
  %545 = vrot.lane.b32.xlu0 %v402, 4
  %v546 = vpop.permute.xlu0 %545
  %547 = vrot.lane.b32.xlu0 %v403, 4
  %v548 = vpop.permute.xlu0 %547
  %549 = vrot.lane.b32.xlu0 %v404, 4
  %v550 = vpop.permute.xlu0 %549
  %551 = vrot.lane.b32.xlu0 %v405, 4
  %v552 = vpop.permute.xlu0 %551
  %553 = vrot.lane.b32.xlu0 %v406, 4
  %v554 = vpop.permute.xlu0 %553
  %555 = vrot.lane.b32.xlu0 %v407, 4
  %v556 = vpop.permute.xlu0 %555
  %557 = vrot.lane.b32.xlu0 %v408, 4
  %v558 = vpop.permute.xlu0 %557
  %559 = vrot.lane.b32.xlu0 %v409, 4
  %v560 = vpop.permute.xlu0 %559
  %561 = vrot.lane.b32.xlu0 %v410, 4
  %v562 = vpop.permute.xlu0 %561
  %563 = vrot.lane.b32.xlu0 %v411, 4
  %v564 = vpop.permute.xlu0 %563
  %565 = vrot.lane.b32.xlu0 %v412, 4
  %v566 = vpop.permute.xlu0 %565
  %567 = vrot.lane.b32.xlu0 %v413, 4
  %v568 = vpop.permute.xlu0 %567
  %569 = vrot.lane.b32.xlu0 %v414, 4
  %v570 = vpop.permute.xlu0 %569
  %571 = vrot.lane.b32.xlu0 %v415, 4
  %v572 = vpop.permute.xlu0 %571
  %573 = vrot.lane.b32.xlu0 %v416, 4
  %v574 = vpop.permute.xlu0 %573
  %575 = vrot.lane.b32.xlu0 %v417, 4
  %v576 = vpop.permute.xlu0 %575
  %577 = vrot.lane.b32.xlu0 %v418, 4
  %v578 = vpop.permute.xlu0 %577
  %579 = vrot.lane.b32.xlu0 %v419, 4
  %v580 = vpop.permute.xlu0 %579
  %581 = vrot.lane.b32.xlu0 %v420, 4
  %v582 = vpop.permute.xlu0 %581
  %583 = vrot.lane.b32.xlu0 %v421, 4
  %v584 = vpop.permute.xlu0 %583
  %585 = vrot.lane.b32.xlu0 %v422, 4
  %v586 = vpop.permute.xlu0 %585
  %587 = vrot.lane.b32.xlu0 %v423, 4
  %v588 = vpop.permute.xlu0 %587
  %589 = vrot.lane.b32.xlu0 %v424, 4
  %v590 = vpop.permute.xlu0 %589
  %591 = vrot.lane.b32.xlu0 %v425, 4
  %v592 = vpop.permute.xlu0 %591
  %593 = vrot.lane.b32.xlu0 %v426, 4
  %v594 = vpop.permute.xlu0 %593
  %595 = vrot.lane.b32.xlu0 %v427, 4
  %v596 = vpop.permute.xlu0 %595
  %597 = vrot.lane.b32.xlu0 %v428, 4
  %v598 = vpop.permute.xlu0 %597
  %599 = vrot.lane.b32.xlu0 %v429, 4
  %v600 = vpop.permute.xlu0 %599
  %601 = vrot.lane.b32.xlu0 %v430, 4
  %v602 = vpop.permute.xlu0 %601
  %603 = vrot.lane.b32.xlu0 %v431, 4
  %v604 = vpop.permute.xlu0 %603
  %605 = vrot.lane.b32.xlu0 %v432, 4
  %v606 = vpop.permute.xlu0 %605
  %607 = vrot.lane.b32.xlu0 %v433, 4
  %v608 = vpop.permute.xlu0 %607
  %609 = vrot.lane.b32.xlu0 %v434, 4
  %v610 = vpop.permute.xlu0 %609
  %611 = vrot.lane.b32.xlu0 %v435, 4
  %v612 = vpop.permute.xlu0 %611
  %613 = vrot.lane.b32.xlu0 %v436, 4
  %v614 = vpop.permute.xlu0 %613
  %615 = vrot.lane.b32.xlu0 %v437, 4
  %v616 = vpop.permute.xlu0 %615
  %617 = vrot.lane.b32.xlu0 %v438, 4
  %v618 = vpop.permute.xlu0 %617
  %619 = vrot.lane.b32.xlu0 %v439, 4
  %v620 = vpop.permute.xlu0 %619
  %621 = vrot.lane.b32.xlu0 %v440, 4
  %v622 = vpop.permute.xlu0 %621
  %623 = vrot.lane.b32.xlu0 %v441, 4
  %v624 = vpop.permute.xlu0 %623
  %625 = vrot.lane.b32.xlu0 %v442, 4
  %v626 = vpop.permute.xlu0 %625
  %627 = vrot.lane.b32.xlu0 %v443, 4
  %v628 = vpop.permute.xlu0 %627
  %629 = vrot.lane.b32.xlu0 %v444, 4
  %v630 = vpop.permute.xlu0 %629
  %631 = vrot.lane.b32.xlu0 %v445, 4
  %v632 = vpop.permute.xlu0 %631
  %633 = vrot.lane.b32.xlu0 %v446, 4
  %v634 = vpop.permute.xlu0 %633
  %635 = vrot.lane.b32.xlu0 %v447, 4
  %v636 = vpop.permute.xlu0 %635
  %637 = vrot.lane.b32.xlu0 %v448, 4
  %v638 = vpop.permute.xlu0 %637
  %639 = vrot.lane.b32.xlu0 %v449, 4
  %v640 = vpop.permute.xlu0 %639
  %641 = vrot.lane.b32.xlu0 %v450, 4
  %v642 = vpop.permute.xlu0 %641
  %vm707 = vcmask 64544
  %708 = vst.msk [vmem:[#allocation4] sm:$0xff] %vm707, %v516
  %709 = vst.msk [vmem:[#allocation4 + $0x8] sm:$0xff] %vm707, %v518
  %710 = vst.msk [vmem:[#allocation4 + $0x10] sm:$0xff] %vm707, %v520
  %711 = vst.msk [vmem:[#allocation4 + $0x18] sm:$0xff] %vm707, %v522
  %712 = vst.msk [vmem:[#allocation4 + $0x20] sm:$0xff] %vm707, %v524
  %713 = vst.msk [vmem:[#allocation4 + $0x28] sm:$0xff] %vm707, %v526
  %714 = vst.msk [vmem:[#allocation4 + $0x30] sm:$0xff] %vm707, %v528
  %715 = vst.msk [vmem:[#allocation4 + $0x38] sm:$0xff] %vm707, %v530
  %716 = vst.msk [vmem:[#allocation4 + $0x40] sm:$0xff] %vm707, %v532
  %717 = vst.msk [vmem:[#allocation4 + $0x48] sm:$0xff] %vm707, %v534
  %718 = vst.msk [vmem:[#allocation4 + $0x50] sm:$0xff] %vm707, %v536
  %719 = vst.msk [vmem:[#allocation4 + $0x58] sm:$0xff] %vm707, %v538
  %720 = vst.msk [vmem:[#allocation4 + $0x60] sm:$0xff] %vm707, %v540
  %721 = vst.msk [vmem:[#allocation4 + $0x68] sm:$0xff] %vm707, %v542
  %722 = vst.msk [vmem:[#allocation4 + $0x70] sm:$0xff] %vm707, %v544
  %723 = vst.msk [vmem:[#allocation4 + $0x78] sm:$0xff] %vm707, %v546
  %724 = vst.msk [vmem:[#allocation4 + $0x80] sm:$0xff] %vm707, %v548
  %725 = vst.msk [vmem:[#allocation4 + $0x88] sm:$0xff] %vm707, %v550
  %726 = vst.msk [vmem:[#allocation4 + $0x90] sm:$0xff] %vm707, %v552
  %727 = vst.msk [vmem:[#allocation4 + $0x98] sm:$0xff] %vm707, %v554
  %728 = vst.msk [vmem:[#allocation4 + $0xa0] sm:$0xff] %vm707, %v556
  %729 = vst.msk [vmem:[#allocation4 + $0xa8] sm:$0xff] %vm707, %v558
  %730 = vst.msk [vmem:[#allocation4 + $0xb0] sm:$0xff] %vm707, %v560
  %731 = vst.msk [vmem:[#allocation4 + $0xb8] sm:$0xff] %vm707, %v562
  %732 = vst.msk [vmem:[#allocation4 + $0xc0] sm:$0xff] %vm707, %v564
  %733 = vst.msk [vmem:[#allocation4 + $0xc8] sm:$0xff] %vm707, %v566
  %734 = vst.msk [vmem:[#allocation4 + $0xd0] sm:$0xff] %vm707, %v568
  %735 = vst.msk [vmem:[#allocation4 + $0xd8] sm:$0xff] %vm707, %v570
  %736 = vst.msk [vmem:[#allocation4 + $0xe0] sm:$0xff] %vm707, %v572
  %737 = vst.msk [vmem:[#allocation4 + $0xe8] sm:$0xff] %vm707, %v574
  %738 = vst.msk [vmem:[#allocation4 + $0xf0] sm:$0xff] %vm707, %v576
  %739 = vst.msk [vmem:[#allocation4 + $0xf8] sm:$0xff] %vm707, %v578
  %740 = vst.msk [vmem:[#allocation4 + $0x100] sm:$0xff] %vm707, %v580
  %741 = vst.msk [vmem:[#allocation4 + $0x108] sm:$0xff] %vm707, %v582
  %742 = vst.msk [vmem:[#allocation4 + $0x110] sm:$0xff] %vm707, %v584
  %743 = vst.msk [vmem:[#allocation4 + $0x118] sm:$0xff] %vm707, %v586
  %744 = vst.msk [vmem:[#allocation4 + $0x120] sm:$0xff] %vm707, %v588
  %745 = vst.msk [vmem:[#allocation4 + $0x128] sm:$0xff] %vm707, %v590
  %746 = vst.msk [vmem:[#allocation4 + $0x130] sm:$0xff] %vm707, %v592
  %747 = vst.msk [vmem:[#allocation4 + $0x138] sm:$0xff] %vm707, %v594
  %748 = vst.msk [vmem:[#allocation4 + $0x140] sm:$0xff] %vm707, %v596
  %749 = vst.msk [vmem:[#allocation4 + $0x148] sm:$0xff] %vm707, %v598
  %750 = vst.msk [vmem:[#allocation4 + $0x150] sm:$0xff] %vm707, %v600
  %751 = vst.msk [vmem:[#allocation4 + $0x158] sm:$0xff] %vm707, %v602
  %752 = vst.msk [vmem:[#allocation4 + $0x160] sm:$0xff] %vm707, %v604
  %753 = vst.msk [vmem:[#allocation4 + $0x168] sm:$0xff] %vm707, %v606
  %754 = vst.msk [vmem:[#allocation4 + $0x170] sm:$0xff] %vm707, %v608
  %755 = vst.msk [vmem:[#allocation4 + $0x178] sm:$0xff] %vm707, %v610
  %756 = vst.msk [vmem:[#allocation4 + $0x180] sm:$0xff] %vm707, %v612
  %757 = vst.msk [vmem:[#allocation4 + $0x188] sm:$0xff] %vm707, %v614
  %758 = vst.msk [vmem:[#allocation4 + $0x190] sm:$0xff] %vm707, %v616
  %759 = vst.msk [vmem:[#allocation4 + $0x198] sm:$0xff] %vm707, %v618
  %760 = vst.msk [vmem:[#allocation4 + $0x1a0] sm:$0xff] %vm707, %v620
  %761 = vst.msk [vmem:[#allocation4 + $0x1a8] sm:$0xff] %vm707, %v622
  %762 = vst.msk [vmem:[#allocation4 + $0x1b0] sm:$0xff] %vm707, %v624
  %763 = vst.msk [vmem:[#allocation4 + $0x1b8] sm:$0xff] %vm707, %v626
  %764 = vst.msk [vmem:[#allocation4 + $0x1c0] sm:$0xff] %vm707, %v628
  %765 = vst.msk [vmem:[#allocation4 + $0x1c8] sm:$0xff] %vm707, %v630
  %766 = vst.msk [vmem:[#allocation4 + $0x1d0] sm:$0xff] %vm707, %v632
  %767 = vst.msk [vmem:[#allocation4 + $0x1d8] sm:$0xff] %vm707, %v634
  %768 = vst.msk [vmem:[#allocation4 + $0x1e0] sm:$0xff] %vm707, %v636
  %769 = vst.msk [vmem:[#allocation4 + $0x1e8] sm:$0xff] %vm707, %v638
  %770 = vst.msk [vmem:[#allocation4 + $0x1f0] sm:$0xff] %vm707, %v640
  %771 = vst.msk [vmem:[#allocation4 + $0x1f8] sm:$0xff] %vm707, %v642
  %v772 = vld [vmem:[#allocation2 + $0x2] sm:$0xff]
  %v773 = vld [vmem:[#allocation2 + $0xa] sm:$0xff]
  %v774 = vld [vmem:[#allocation2 + $0x1a] sm:$0xff]
  %v775 = vld [vmem:[#allocation2 + $0x22] sm:$0xff]
  %v776 = vld [vmem:[#allocation2 + $0x32] sm:$0xff]
  %v777 = vld [vmem:[#allocation2 + $0x3a] sm:$0xff]
  %v778 = vld [vmem:[#allocation2 + $0x4a] sm:$0xff]
  %v779 = vld [vmem:[#allocation2 + $0x52] sm:$0xff]
  %v780 = vld [vmem:[#allocation2 + $0x62] sm:$0xff]
  %v781 = vld [vmem:[#allocation2 + $0x6a] sm:$0xff]
  %v782 = vld [vmem:[#allocation2 + $0x7a] sm:$0xff]
  %v783 = vld [vmem:[#allocation2 + $0x82] sm:$0xff]
  %v784 = vld [vmem:[#allocation2 + $0x92] sm:$0xff]
  %v785 = vld [vmem:[#allocation2 + $0x9a] sm:$0xff]
  %v786 = vld [vmem:[#allocation2 + $0xaa] sm:$0xff]
  %v787 = vld [vmem:[#allocation2 + $0xb2] sm:$0xff]
  %v788 = vld [vmem:[#allocation2 + $0xc2] sm:$0xff]
  %v789 = vld [vmem:[#allocation2 + $0xca] sm:$0xff]
  %v790 = vld [vmem:[#allocation2 + $0xda] sm:$0xff]
  %v791 = vld [vmem:[#allocation2 + $0xe2] sm:$0xff]
  %v792 = vld [vmem:[#allocation2 + $0xf2] sm:$0xff]
  %v793 = vld [vmem:[#allocation2 + $0xfa] sm:$0xff]
  %v794 = vld [vmem:[#allocation2 + $0x10a] sm:$0xff]
  %v795 = vld [vmem:[#allocation2 + $0x112] sm:$0xff]
  %v796 = vld [vmem:[#allocation2 + $0x122] sm:$0xff]
  %v797 = vld [vmem:[#allocation2 + $0x12a] sm:$0xff]
  %v798 = vld [vmem:[#allocation2 + $0x13a] sm:$0xff]
  %v799 = vld [vmem:[#allocation2 + $0x142] sm:$0xff]
  %v800 = vld [vmem:[#allocation2 + $0x152] sm:$0xff]
  %v801 = vld [vmem:[#allocation2 + $0x15a] sm:$0xff]
  %v802 = vld [vmem:[#allocation2 + $0x16a] sm:$0xff]
  %v803 = vld [vmem:[#allocation2 + $0x172] sm:$0xff]
  %v804 = vld [vmem:[#allocation2 + $0x1b2] sm:$0xff]
  %v805 = vld [vmem:[#allocation2 + $0x1ba] sm:$0xff]
  %v806 = vld [vmem:[#allocation2 + $0x1ca] sm:$0xff]
  %v807 = vld [vmem:[#allocation2 + $0x1d2] sm:$0xff]
  %v808 = vld [vmem:[#allocation2 + $0x1e2] sm:$0xff]
  %v809 = vld [vmem:[#allocation2 + $0x1ea] sm:$0xff]
  %v810 = vld [vmem:[#allocation2 + $0x1fa] sm:$0xff]
  %v811 = vld [vmem:[#allocation2 + $0x202] sm:$0xff]
  %v812 = vld [vmem:[#allocation2 + $0x212] sm:$0xff]
  %v813 = vld [vmem:[#allocation2 + $0x21a] sm:$0xff]
  %v814 = vld [vmem:[#allocation2 + $0x22a] sm:$0xff]
  %v815 = vld [vmem:[#allocation2 + $0x232] sm:$0xff]
  %v816 = vld [vmem:[#allocation2 + $0x242] sm:$0xff]
  %v817 = vld [vmem:[#allocation2 + $0x24a] sm:$0xff]
  %v818 = vld [vmem:[#allocation2 + $0x25a] sm:$0xff]
  %v819 = vld [vmem:[#allocation2 + $0x262] sm:$0xff]
  %v820 = vld [vmem:[#allocation2 + $0x272] sm:$0xff]
  %v821 = vld [vmem:[#allocation2 + $0x27a] sm:$0xff]
  %v822 = vld [vmem:[#allocation2 + $0x28a] sm:$0xff]
  %v823 = vld [vmem:[#allocation2 + $0x292] sm:$0xff]
  %v824 = vld [vmem:[#allocation2 + $0x2a2] sm:$0xff]
  %v825 = vld [vmem:[#allocation2 + $0x2aa] sm:$0xff]
  %v826 = vld [vmem:[#allocation2 + $0x2ba] sm:$0xff]
  %v827 = vld [vmem:[#allocation2 + $0x2c2] sm:$0xff]
  %v828 = vld [vmem:[#allocation2 + $0x2d2] sm:$0xff]
  %v829 = vld [vmem:[#allocation2 + $0x2da] sm:$0xff]
  %v830 = vld [vmem:[#allocation2 + $0x2ea] sm:$0xff]
  %v831 = vld [vmem:[#allocation2 + $0x2f2] sm:$0xff]
  %v832 = vld [vmem:[#allocation2 + $0x302] sm:$0xff]
  %v833 = vld [vmem:[#allocation2 + $0x30a] sm:$0xff]
  %v834 = vld [vmem:[#allocation2 + $0x31a] sm:$0xff]
  %v835 = vld [vmem:[#allocation2 + $0x322] sm:$0xff]
  %900 = vrot.lane.b32.xlu0 %v772, 8
  %v901 = vpop.permute.xlu0 %900
  %902 = vrot.lane.b32.xlu0 %v773, 8
  %v903 = vpop.permute.xlu0 %902
  %904 = vrot.lane.b32.xlu0 %v774, 8
  %v905 = vpop.permute.xlu0 %904
  %906 = vrot.lane.b32.xlu0 %v775, 8
  %v907 = vpop.permute.xlu0 %906
  %908 = vrot.lane.b32.xlu0 %v776, 8
  %v909 = vpop.permute.xlu0 %908
  %910 = vrot.lane.b32.xlu0 %v777, 8
  %v911 = vpop.permute.xlu0 %910
  %912 = vrot.lane.b32.xlu0 %v778, 8
  %v913 = vpop.permute.xlu0 %912
  %914 = vrot.lane.b32.xlu0 %v779, 8
  %v915 = vpop.permute.xlu0 %914
  %916 = vrot.lane.b32.xlu0 %v780, 8
  %v917 = vpop.permute.xlu0 %916
  %918 = vrot.lane.b32.xlu0 %v781, 8
  %v919 = vpop.permute.xlu0 %918
  %920 = vrot.lane.b32.xlu0 %v782, 8
  %v921 = vpop.permute.xlu0 %920
  %922 = vrot.lane.b32.xlu0 %v783, 8
  %v923 = vpop.permute.xlu0 %922
  %924 = vrot.lane.b32.xlu0 %v784, 8
  %v925 = vpop.permute.xlu0 %924
  %926 = vrot.lane.b32.xlu0 %v785, 8
  %v927 = vpop.permute.xlu0 %926
  %928 = vrot.lane.b32.xlu0 %v786, 8
  %v929 = vpop.permute.xlu0 %928
  %930 = vrot.lane.b32.xlu0 %v787, 8
  %v931 = vpop.permute.xlu0 %930
  %932 = vrot.lane.b32.xlu0 %v788, 8
  %v933 = vpop.permute.xlu0 %932
  %934 = vrot.lane.b32.xlu0 %v789, 8
  %v935 = vpop.permute.xlu0 %934
  %936 = vrot.lane.b32.xlu0 %v790, 8
  %v937 = vpop.permute.xlu0 %936
  %938 = vrot.lane.b32.xlu0 %v791, 8
  %v939 = vpop.permute.xlu0 %938
  %940 = vrot.lane.b32.xlu0 %v792, 8
  %v941 = vpop.permute.xlu0 %940
  %942 = vrot.lane.b32.xlu0 %v793, 8
  %v943 = vpop.permute.xlu0 %942
  %944 = vrot.lane.b32.xlu0 %v794, 8
  %v945 = vpop.permute.xlu0 %944
  %946 = vrot.lane.b32.xlu0 %v795, 8
  %v947 = vpop.permute.xlu0 %946
  %948 = vrot.lane.b32.xlu0 %v796, 8
  %v949 = vpop.permute.xlu0 %948
  %950 = vrot.lane.b32.xlu0 %v797, 8
  %v951 = vpop.permute.xlu0 %950
  %952 = vrot.lane.b32.xlu0 %v798, 8
  %v953 = vpop.permute.xlu0 %952
  %954 = vrot.lane.b32.xlu0 %v799, 8
  %v955 = vpop.permute.xlu0 %954
  %956 = vrot.lane.b32.xlu0 %v800, 8
  %v957 = vpop.permute.xlu0 %956
  %958 = vrot.lane.b32.xlu0 %v801, 8
  %v959 = vpop.permute.xlu0 %958
  %960 = vrot.lane.b32.xlu0 %v802, 8
  %v961 = vpop.permute.xlu0 %960
  %962 = vrot.lane.b32.xlu0 %v803, 8
  %v963 = vpop.permute.xlu0 %962
  %964 = vrot.lane.b32.xlu0 %v804, 8
  %v965 = vpop.permute.xlu0 %964
  %966 = vrot.lane.b32.xlu0 %v805, 8
  %v967 = vpop.permute.xlu0 %966
  %968 = vrot.lane.b32.xlu0 %v806, 8
  %v969 = vpop.permute.xlu0 %968
  %970 = vrot.lane.b32.xlu0 %v807, 8
  %v971 = vpop.permute.xlu0 %970
  %972 = vrot.lane.b32.xlu0 %v808, 8
  %v973 = vpop.permute.xlu0 %972
  %974 = vrot.lane.b32.xlu0 %v809, 8
  %v975 = vpop.permute.xlu0 %974
  %976 = vrot.lane.b32.xlu0 %v810, 8
  %v977 = vpop.permute.xlu0 %976
  %978 = vrot.lane.b32.xlu0 %v811, 8
  %v979 = vpop.permute.xlu0 %978
  %980 = vrot.lane.b32.xlu0 %v812, 8
  %v981 = vpop.permute.xlu0 %980
  %982 = vrot.lane.b32.xlu0 %v813, 8
  %v983 = vpop.permute.xlu0 %982
  %984 = vrot.lane.b32.xlu0 %v814, 8
  %v985 = vpop.permute.xlu0 %984
  %986 = vrot.lane.b32.xlu0 %v815, 8
  %v987 = vpop.permute.xlu0 %986
  %988 = vrot.lane.b32.xlu0 %v816, 8
  %v989 = vpop.permute.xlu0 %988
  %990 = vrot.lane.b32.xlu0 %v817, 8
  %v991 = vpop.permute.xlu0 %990
  %992 = vrot.lane.b32.xlu0 %v818, 8
  %v993 = vpop.permute.xlu0 %992
  %994 = vrot.lane.b32.xlu0 %v819, 8
  %v995 = vpop.permute.xlu0 %994
  %996 = vrot.lane.b32.xlu0 %v820, 8
  %v997 = vpop.permute.xlu0 %996
  %998 = vrot.lane.b32.xlu0 %v821, 8
  %v999 = vpop.permute.xlu0 %998
  %1000 = vrot.lane.b32.xlu0 %v822, 8
  %v1001 = vpop.permute.xlu0 %1000
  %1002 = vrot.lane.b32.xlu0 %v823, 8
  %v1003 = vpop.permute.xlu0 %1002
  %1004 = vrot.lane.b32.xlu0 %v824, 8
  %v1005 = vpop.permute.xlu0 %1004
  %1006 = vrot.lane.b32.xlu0 %v825, 8
  %v1007 = vpop.permute.xlu0 %1006
  %1008 = vrot.lane.b32.xlu0 %v826, 8
  %v1009 = vpop.permute.xlu0 %1008
  %1010 = vrot.lane.b32.xlu0 %v827, 8
  %v1011 = vpop.permute.xlu0 %1010
  %1012 = vrot.lane.b32.xlu0 %v828, 8
  %v1013 = vpop.permute.xlu0 %1012
  %1014 = vrot.lane.b32.xlu0 %v829, 8
  %v1015 = vpop.permute.xlu0 %1014
  %1016 = vrot.lane.b32.xlu0 %v830, 8
  %v1017 = vpop.permute.xlu0 %1016
  %1018 = vrot.lane.b32.xlu0 %v831, 8
  %v1019 = vpop.permute.xlu0 %1018
  %1020 = vrot.lane.b32.xlu0 %v832, 8
  %v1021 = vpop.permute.xlu0 %1020
  %1022 = vrot.lane.b32.xlu0 %v833, 8
  %v1023 = vpop.permute.xlu0 %1022
  %1024 = vrot.lane.b32.xlu0 %v834, 8
  %v1025 = vpop.permute.xlu0 %1024
  %1026 = vrot.lane.b32.xlu0 %v835, 8
  %v1027 = vpop.permute.xlu0 %1026
  %vm1092 = vcmask 97344
  %1093 = vst.msk [vmem:[#allocation4] sm:$0xff] %vm1092, %v901
  %1094 = vst.msk [vmem:[#allocation4 + $0x8] sm:$0xff] %vm1092, %v903
  %1095 = vst.msk [vmem:[#allocation4 + $0x10] sm:$0xff] %vm1092, %v905
  %1096 = vst.msk [vmem:[#allocation4 + $0x18] sm:$0xff] %vm1092, %v907
  %1097 = vst.msk [vmem:[#allocation4 + $0x20] sm:$0xff] %vm1092, %v909
  %1098 = vst.msk [vmem:[#allocation4 + $0x28] sm:$0xff] %vm1092, %v911
  %1099 = vst.msk [vmem:[#allocation4 + $0x30] sm:$0xff] %vm1092, %v913
  %1100 = vst.msk [vmem:[#allocation4 + $0x38] sm:$0xff] %vm1092, %v915
  %1101 = vst.msk [vmem:[#allocation4 + $0x40] sm:$0xff] %vm1092, %v917
  %1102 = vst.msk [vmem:[#allocation4 + $0x48] sm:$0xff] %vm1092, %v919
  %1103 = vst.msk [vmem:[#allocation4 + $0x50] sm:$0xff] %vm1092, %v921
  %1104 = vst.msk [vmem:[#allocation4 + $0x58] sm:$0xff] %vm1092, %v923
  %1105 = vst.msk [vmem:[#allocation4 + $0x60] sm:$0xff] %vm1092, %v925
  %1106 = vst.msk [vmem:[#allocation4 + $0x68] sm:$0xff] %vm1092, %v927
  %1107 = vst.msk [vmem:[#allocation4 + $0x70] sm:$0xff] %vm1092, %v929
  %1108 = vst.msk [vmem:[#allocation4 + $0x78] sm:$0xff] %vm1092, %v931
  %1109 = vst.msk [vmem:[#allocation4 + $0x80] sm:$0xff] %vm1092, %v933
  %1110 = vst.msk [vmem:[#allocation4 + $0x88] sm:$0xff] %vm1092, %v935
  %1111 = vst.msk [vmem:[#allocation4 + $0x90] sm:$0xff] %vm1092, %v937
  %1112 = vst.msk [vmem:[#allocation4 + $0x98] sm:$0xff] %vm1092, %v939
  %1113 = vst.msk [vmem:[#allocation4 + $0xa0] sm:$0xff] %vm1092, %v941
  %1114 = vst.msk [vmem:[#allocation4 + $0xa8] sm:$0xff] %vm1092, %v943
  %1115 = vst.msk [vmem:[#allocation4 + $0xb0] sm:$0xff] %vm1092, %v945
  %1116 = vst.msk [vmem:[#allocation4 + $0xb8] sm:$0xff] %vm1092, %v947
  %1117 = vst.msk [vmem:[#allocation4 + $0xc0] sm:$0xff] %vm1092, %v949
  %1118 = vst.msk [vmem:[#allocation4 + $0xc8] sm:$0xff] %vm1092, %v951
  %1119 = vst.msk [vmem:[#allocation4 + $0xd0] sm:$0xff] %vm1092, %v953
  %1120 = vst.msk [vmem:[#allocation4 + $0xd8] sm:$0xff] %vm1092, %v955
  %1121 = vst.msk [vmem:[#allocation4 + $0xe0] sm:$0xff] %vm1092, %v957
  %1122 = vst.msk [vmem:[#allocation4 + $0xe8] sm:$0xff] %vm1092, %v959
  %1123 = vst.msk [vmem:[#allocation4 + $0xf0] sm:$0xff] %vm1092, %v961
  %1124 = vst.msk [vmem:[#allocation4 + $0xf8] sm:$0xff] %vm1092, %v963
  %1125 = vst.msk [vmem:[#allocation4 + $0x100] sm:$0xff] %vm1092, %v965
  %1126 = vst.msk [vmem:[#allocation4 + $0x108] sm:$0xff] %vm1092, %v967
  %1127 = vst.msk [vmem:[#allocation4 + $0x110] sm:$0xff] %vm1092, %v969
  %1128 = vst.msk [vmem:[#allocation4 + $0x118] sm:$0xff] %vm1092, %v971
  %1129 = vst.msk [vmem:[#allocation4 + $0x120] sm:$0xff] %vm1092, %v973
  %1130 = vst.msk [vmem:[#allocation4 + $0x128] sm:$0xff] %vm1092, %v975
  %1131 = vst.msk [vmem:[#allocation4 + $0x130] sm:$0xff] %vm1092, %v977
  %1132 = vst.msk [vmem:[#allocation4 + $0x138] sm:$0xff] %vm1092, %v979
  %1133 = vst.msk [vmem:[#allocation4 + $0x140] sm:$0xff] %vm1092, %v981
  %1134 = vst.msk [vmem:[#allocation4 + $0x148] sm:$0xff] %vm1092, %v983
  %1135 = vst.msk [vmem:[#allocation4 + $0x150] sm:$0xff] %vm1092, %v985
  %1136 = vst.msk [vmem:[#allocation4 + $0x158] sm:$0xff] %vm1092, %v987
  %1137 = vst.msk [vmem:[#allocation4 + $0x160] sm:$0xff] %vm1092, %v989
  %1138 = vst.msk [vmem:[#allocation4 + $0x168] sm:$0xff] %vm1092, %v991
  %1139 = vst.msk [vmem:[#allocation4 + $0x170] sm:$0xff] %vm1092, %v993
  %1140 = vst.msk [vmem:[#allocation4 + $0x178] sm:$0xff] %vm1092, %v995
  %1141 = vst.msk [vmem:[#allocation4 + $0x180] sm:$0xff] %vm1092, %v997
  %1142 = vst.msk [vmem:[#allocation4 + $0x188] sm:$0xff] %vm1092, %v999
  %1143 = vst.msk [vmem:[#allocation4 + $0x190] sm:$0xff] %vm1092, %v1001
  %1144 = vst.msk [vmem:[#allocation4 + $0x198] sm:$0xff] %vm1092, %v1003
  %1145 = vst.msk [vmem:[#allocation4 + $0x1a0] sm:$0xff] %vm1092, %v1005
  %1146 = vst.msk [vmem:[#allocation4 + $0x1a8] sm:$0xff] %vm1092, %v1007
  %1147 = vst.msk [vmem:[#allocation4 + $0x1b0] sm:$0xff] %vm1092, %v1009
  %1148 = vst.msk [vmem:[#allocation4 + $0x1b8] sm:$0xff] %vm1092, %v1011
  %1149 = vst.msk [vmem:[#allocation4 + $0x1c0] sm:$0xff] %vm1092, %v1013
  %1150 = vst.msk [vmem:[#allocation4 + $0x1c8] sm:$0xff] %vm1092, %v1015
  %1151 = vst.msk [vmem:[#allocation4 + $0x1d0] sm:$0xff] %vm1092, %v1017
  %1152 = vst.msk [vmem:[#allocation4 + $0x1d8] sm:$0xff] %vm1092, %v1019
  %1153 = vst.msk [vmem:[#allocation4 + $0x1e0] sm:$0xff] %vm1092, %v1021
  %1154 = vst.msk [vmem:[#allocation4 + $0x1e8] sm:$0xff] %vm1092, %v1023
  %1155 = vst.msk [vmem:[#allocation4 + $0x1f0] sm:$0xff] %vm1092, %v1025
  %1156 = vst.msk [vmem:[#allocation4 + $0x1f8] sm:$0xff] %vm1092, %v1027
  %v1157 = vld [vmem:[%s194] sm:$0xff]
  %v1158 = vld [vmem:[%s194 + $0x8] sm:$0xff]
  %v1159 = vld [vmem:[%s194 + $0x18] sm:$0xff]
  %v1160 = vld [vmem:[%s194 + $0x20] sm:$0xff]
  %v1161 = vld [vmem:[%s194 + $0x30] sm:$0xff]
  %v1162 = vld [vmem:[%s194 + $0x38] sm:$0xff]
  %v1163 = vld [vmem:[%s194 + $0x48] sm:$0xff]
  %v1164 = vld [vmem:[%s194 + $0x50] sm:$0xff]
  %v1165 = vld [vmem:[%s194 + $0x60] sm:$0xff]
  %v1166 = vld [vmem:[%s194 + $0x68] sm:$0xff]
  %v1167 = vld [vmem:[%s194 + $0x78] sm:$0xff]
  %v1168 = vld [vmem:[%s194 + $0x80] sm:$0xff]
  %v1169 = vld [vmem:[%s194 + $0x90] sm:$0xff]
  %v1170 = vld [vmem:[%s194 + $0x98] sm:$0xff]
  %v1171 = vld [vmem:[%s194 + $0xa8] sm:$0xff]
  %v1172 = vld [vmem:[%s194 + $0xb0] sm:$0xff]
  %v1173 = vld [vmem:[%s194 + $0xc0] sm:$0xff]
  %v1174 = vld [vmem:[%s194 + $0xc8] sm:$0xff]
  %v1175 = vld [vmem:[%s194 + $0xd8] sm:$0xff]
  %v1176 = vld [vmem:[%s194 + $0xe0] sm:$0xff]
  %v1177 = vld [vmem:[%s194 + $0xf0] sm:$0xff]
  %v1178 = vld [vmem:[%s194 + $0xf8] sm:$0xff]
  %v1179 = vld [vmem:[%s194 + $0x108] sm:$0xff]
  %v1180 = vld [vmem:[%s194 + $0x110] sm:$0xff]
  %v1181 = vld [vmem:[%s194 + $0x120] sm:$0xff]
  %v1182 = vld [vmem:[%s194 + $0x128] sm:$0xff]
  %v1183 = vld [vmem:[%s194 + $0x138] sm:$0xff]
  %v1184 = vld [vmem:[%s194 + $0x140] sm:$0xff]
  %v1185 = vld [vmem:[%s194 + $0x150] sm:$0xff]
  %v1186 = vld [vmem:[%s194 + $0x158] sm:$0xff]
  %v1187 = vld [vmem:[%s194 + $0x168] sm:$0xff]
  %v1188 = vld [vmem:[%s194 + $0x170] sm:$0xff]
  %v1189 = vld [vmem:[%s194 + $0x1b0] sm:$0xff]
  %v1190 = vld [vmem:[%s194 + $0x1b8] sm:$0xff]
  %v1191 = vld [vmem:[%s194 + $0x1c8] sm:$0xff]
  %v1192 = vld [vmem:[%s194 + $0x1d0] sm:$0xff]
  %v1193 = vld [vmem:[%s194 + $0x1e0] sm:$0xff]
  %v1194 = vld [vmem:[%s194 + $0x1e8] sm:$0xff]
  %v1195 = vld [vmem:[%s194 + $0x1f8] sm:$0xff]
  %v1196 = vld [vmem:[%s194 + $0x200] sm:$0xff]
  %v1197 = vld [vmem:[%s194 + $0x210] sm:$0xff]
  %v1198 = vld [vmem:[%s194 + $0x218] sm:$0xff]
  %v1199 = vld [vmem:[%s194 + $0x228] sm:$0xff]
  %v1200 = vld [vmem:[%s194 + $0x230] sm:$0xff]
  %v1201 = vld [vmem:[%s194 + $0x240] sm:$0xff]
  %v1202 = vld [vmem:[%s194 + $0x248] sm:$0xff]
  %v1203 = vld [vmem:[%s194 + $0x258] sm:$0xff]
  %v1204 = vld [vmem:[%s194 + $0x260] sm:$0xff]
  %v1205 = vld [vmem:[%s194 + $0x270] sm:$0xff]
  %v1206 = vld [vmem:[%s194 + $0x278] sm:$0xff]
  %v1207 = vld [vmem:[%s194 + $0x288] sm:$0xff]
  %v1208 = vld [vmem:[%s194 + $0x290] sm:$0xff]
  %v1209 = vld [vmem:[%s194 + $0x2a0] sm:$0xff]
  %v1210 = vld [vmem:[%s194 + $0x2a8] sm:$0xff]
  %v1211 = vld [vmem:[%s194 + $0x2b8] sm:$0xff]
  %v1212 = vld [vmem:[%s194 + $0x2c0] sm:$0xff]
  %v1213 = vld [vmem:[%s194 + $0x2d0] sm:$0xff]
  %v1214 = vld [vmem:[%s194 + $0x2d8] sm:$0xff]
  %v1215 = vld [vmem:[%s194 + $0x2e8] sm:$0xff]
  %v1216 = vld [vmem:[%s194 + $0x2f0] sm:$0xff]
  %v1217 = vld [vmem:[%s194 + $0x300] sm:$0xff]
  %v1218 = vld [vmem:[%s194 + $0x308] sm:$0xff]
  %v1219 = vld [vmem:[%s194 + $0x318] sm:$0xff]
  %v1220 = vld [vmem:[%s194 + $0x320] sm:$0xff]
  %1285 = vrot.lane.b32.xlu0 %v1157, 12
  %v1286 = vpop.permute.xlu0 %1285
  %1287 = vrot.lane.b32.xlu0 %v1158, 12
  %v1288 = vpop.permute.xlu0 %1287
  %1289 = vrot.lane.b32.xlu0 %v1159, 12
  %v1290 = vpop.permute.xlu0 %1289
  %1291 = vrot.lane.b32.xlu0 %v1160, 12
  %v1292 = vpop.permute.xlu0 %1291
  %1293 = vrot.lane.b32.xlu0 %v1161, 12
  %v1294 = vpop.permute.xlu0 %1293
  %1295 = vrot.lane.b32.xlu0 %v1162, 12
  %v1296 = vpop.permute.xlu0 %1295
  %1297 = vrot.lane.b32.xlu0 %v1163, 12
  %v1298 = vpop.permute.xlu0 %1297
  %1299 = vrot.lane.b32.xlu0 %v1164, 12
  %v1300 = vpop.permute.xlu0 %1299
  %1301 = vrot.lane.b32.xlu0 %v1165, 12
  %v1302 = vpop.permute.xlu0 %1301
  %1303 = vrot.lane.b32.xlu0 %v1166, 12
  %v1304 = vpop.permute.xlu0 %1303
  %1305 = vrot.lane.b32.xlu0 %v1167, 12
  %v1306 = vpop.permute.xlu0 %1305
  %1307 = vrot.lane.b32.xlu0 %v1168, 12
  %v1308 = vpop.permute.xlu0 %1307
  %1309 = vrot.lane.b32.xlu0 %v1169, 12
  %v1310 = vpop.permute.xlu0 %1309
  %1311 = vrot.lane.b32.xlu0 %v1170, 12
  %v1312 = vpop.permute.xlu0 %1311
  %1313 = vrot.lane.b32.xlu0 %v1171, 12
  %v1314 = vpop.permute.xlu0 %1313
  %1315 = vrot.lane.b32.xlu0 %v1172, 12
  %v1316 = vpop.permute.xlu0 %1315
  %1317 = vrot.lane.b32.xlu0 %v1173, 12
  %v1318 = vpop.permute.xlu0 %1317
  %1319 = vrot.lane.b32.xlu0 %v1174, 12
  %v1320 = vpop.permute.xlu0 %1319
  %1321 = vrot.lane.b32.xlu0 %v1175, 12
  %v1322 = vpop.permute.xlu0 %1321
  %1323 = vrot.lane.b32.xlu0 %v1176, 12
  %v1324 = vpop.permute.xlu0 %1323
  %1325 = vrot.lane.b32.xlu0 %v1177, 12
  %v1326 = vpop.permute.xlu0 %1325
  %1327 = vrot.lane.b32.xlu0 %v1178, 12
  %v1328 = vpop.permute.xlu0 %1327
  %1329 = vrot.lane.b32.xlu0 %v1179, 12
  %v1330 = vpop.permute.xlu0 %1329
  %1331 = vrot.lane.b32.xlu0 %v1180, 12
  %v1332 = vpop.permute.xlu0 %1331
  %1333 = vrot.lane.b32.xlu0 %v1181, 12
  %v1334 = vpop.permute.xlu0 %1333
  %1335 = vrot.lane.b32.xlu0 %v1182, 12
  %v1336 = vpop.permute.xlu0 %1335
  %1337 = vrot.lane.b32.xlu0 %v1183, 12
  %v1338 = vpop.permute.xlu0 %1337
  %1339 = vrot.lane.b32.xlu0 %v1184, 12
  %v1340 = vpop.permute.xlu0 %1339
  %1341 = vrot.lane.b32.xlu0 %v1185, 12
  %v1342 = vpop.permute.xlu0 %1341
  %1343 = vrot.lane.b32.xlu0 %v1186, 12
  %v1344 = vpop.permute.xlu0 %1343
  %1345 = vrot.lane.b32.xlu0 %v1187, 12
  %v1346 = vpop.permute.xlu0 %1345
  %1347 = vrot.lane.b32.xlu0 %v1188, 12
  %v1348 = vpop.permute.xlu0 %1347
  %1349 = vrot.lane.b32.xlu0 %v1189, 12
  %v1350 = vpop.permute.xlu0 %1349
  %1351 = vrot.lane.b32.xlu0 %v1190, 12
  %v1352 = vpop.permute.xlu0 %1351
  %1353 = vrot.lane.b32.xlu0 %v1191, 12
  %v1354 = vpop.permute.xlu0 %1353
  %1355 = vrot.lane.b32.xlu0 %v1192, 12
  %v1356 = vpop.permute.xlu0 %1355
  %1357 = vrot.lane.b32.xlu0 %v1193, 12
  %v1358 = vpop.permute.xlu0 %1357
  %1359 = vrot.lane.b32.xlu0 %v1194, 12
  %v1360 = vpop.permute.xlu0 %1359
  %1361 = vrot.lane.b32.xlu0 %v1195, 12
  %v1362 = vpop.permute.xlu0 %1361
  %1363 = vrot.lane.b32.xlu0 %v1196, 12
  %v1364 = vpop.permute.xlu0 %1363
  %1365 = vrot.lane.b32.xlu0 %v1197, 12
  %v1366 = vpop.permute.xlu0 %1365
  %1367 = vrot.lane.b32.xlu0 %v1198, 12
  %v1368 = vpop.permute.xlu0 %1367
  %1369 = vrot.lane.b32.xlu0 %v1199, 12
  %v1370 = vpop.permute.xlu0 %1369
  %1371 = vrot.lane.b32.xlu0 %v1200, 12
  %v1372 = vpop.permute.xlu0 %1371
  %1373 = vrot.lane.b32.xlu0 %v1201, 12
  %v1374 = vpop.permute.xlu0 %1373
  %1375 = vrot.lane.b32.xlu0 %v1202, 12
  %v1376 = vpop.permute.xlu0 %1375
  %1377 = vrot.lane.b32.xlu0 %v1203, 12
  %v1378 = vpop.permute.xlu0 %1377
  %1379 = vrot.lane.b32.xlu0 %v1204, 12
  %v1380 = vpop.permute.xlu0 %1379
  %1381 = vrot.lane.b32.xlu0 %v1205, 12
  %v1382 = vpop.permute.xlu0 %1381
  %1383 = vrot.lane.b32.xlu0 %v1206, 12
  %v1384 = vpop.permute.xlu0 %1383
  %1385 = vrot.lane.b32.xlu0 %v1207, 12
  %v1386 = vpop.permute.xlu0 %1385
  %1387 = vrot.lane.b32.xlu0 %v1208, 12
  %v1388 = vpop.permute.xlu0 %1387
  %1389 = vrot.lane.b32.xlu0 %v1209, 12
  %v1390 = vpop.permute.xlu0 %1389
  %1391 = vrot.lane.b32.xlu0 %v1210, 12
  %v1392 = vpop.permute.xlu0 %1391
  %1393 = vrot.lane.b32.xlu0 %v1211, 12
  %v1394 = vpop.permute.xlu0 %1393
  %1395 = vrot.lane.b32.xlu0 %v1212, 12
  %v1396 = vpop.permute.xlu0 %1395
  %1397 = vrot.lane.b32.xlu0 %v1213, 12
  %v1398 = vpop.permute.xlu0 %1397
  %1399 = vrot.lane.b32.xlu0 %v1214, 12
  %v1400 = vpop.permute.xlu0 %1399
  %1401 = vrot.lane.b32.xlu0 %v1215, 12
  %v1402 = vpop.permute.xlu0 %1401
  %1403 = vrot.lane.b32.xlu0 %v1216, 12
  %v1404 = vpop.permute.xlu0 %1403
  %1405 = vrot.lane.b32.xlu0 %v1217, 12
  %v1406 = vpop.permute.xlu0 %1405
  %1407 = vrot.lane.b32.xlu0 %v1218, 12
  %v1408 = vpop.permute.xlu0 %1407
  %1409 = vrot.lane.b32.xlu0 %v1219, 12
  %v1410 = vpop.permute.xlu0 %1409
  %1411 = vrot.lane.b32.xlu0 %v1220, 12
  %v1412 = vpop.permute.xlu0 %1411
  %vm1477 = vcmask 130144
  %1478 = vst.msk [vmem:[#allocation4] sm:$0xff] %vm1477, %v1286
  %1479 = vst.msk [vmem:[#allocation4 + $0x8] sm:$0xff] %vm1477, %v1288
  %1480 = vst.msk [vmem:[#allocation4 + $0x10] sm:$0xff] %vm1477, %v1290
  %1481 = vst.msk [vmem:[#allocation4 + $0x18] sm:$0xff] %vm1477, %v1292
  %1482 = vst.msk [vmem:[#allocation4 + $0x20] sm:$0xff] %vm1477, %v1294
  %1483 = vst.msk [vmem:[#allocation4 + $0x28] sm:$0xff] %vm1477, %v1296
  %1484 = vst.msk [vmem:[#allocation4 + $0x30] sm:$0xff] %vm1477, %v1298
  %1485 = vst.msk [vmem:[#allocation4 + $0x38] sm:$0xff] %vm1477, %v1300
  %1486 = vst.msk [vmem:[#allocation4 + $0x40] sm:$0xff] %vm1477, %v1302
  %1487 = vst.msk [vmem:[#allocation4 + $0x48] sm:$0xff] %vm1477, %v1304
  %1488 = vst.msk [vmem:[#allocation4 + $0x50] sm:$0xff] %vm1477, %v1306
  %1489 = vst.msk [vmem:[#allocation4 + $0x58] sm:$0xff] %vm1477, %v1308
  %1490 = vst.msk [vmem:[#allocation4 + $0x60] sm:$0xff] %vm1477, %v1310
  %1491 = vst.msk [vmem:[#allocation4 + $0x68] sm:$0xff] %vm1477, %v1312
  %1492 = vst.msk [vmem:[#allocation4 + $0x70] sm:$0xff] %vm1477, %v1314
  %1493 = vst.msk [vmem:[#allocation4 + $0x78] sm:$0xff] %vm1477, %v1316
  %1494 = vst.msk [vmem:[#allocation4 + $0x80] sm:$0xff] %vm1477, %v1318
  %1495 = vst.msk [vmem:[#allocation4 + $0x88] sm:$0xff] %vm1477, %v1320
  %1496 = vst.msk [vmem:[#allocation4 + $0x90] sm:$0xff] %vm1477, %v1322
  %1497 = vst.msk [vmem:[#allocation4 + $0x98] sm:$0xff] %vm1477, %v1324
  %1498 = vst.msk [vmem:[#allocation4 + $0xa0] sm:$0xff] %vm1477, %v1326
  %1499 = vst.msk [vmem:[#allocation4 + $0xa8] sm:$0xff] %vm1477, %v1328
  %1500 = vst.msk [vmem:[#allocation4 + $0xb0] sm:$0xff] %vm1477, %v1330
  %1501 = vst.msk [vmem:[#allocation4 + $0xb8] sm:$0xff] %vm1477, %v1332
  %1502 = vst.msk [vmem:[#allocation4 + $0xc0] sm:$0xff] %vm1477, %v1334
  %1503 = vst.msk [vmem:[#allocation4 + $0xc8] sm:$0xff] %vm1477, %v1336
  %1504 = vst.msk [vmem:[#allocation4 + $0xd0] sm:$0xff] %vm1477, %v1338
  %1505 = vst.msk [vmem:[#allocation4 + $0xd8] sm:$0xff] %vm1477, %v1340
  %1506 = vst.msk [vmem:[#allocation4 + $0xe0] sm:$0xff] %vm1477, %v1342
  %1507 = vst.msk [vmem:[#allocation4 + $0xe8] sm:$0xff] %vm1477, %v1344
  %1508 = vst.msk [vmem:[#allocation4 + $0xf0] sm:$0xff] %vm1477, %v1346
  %1509 = vst.msk [vmem:[#allocation4 + $0xf8] sm:$0xff] %vm1477, %v1348
  %1510 = vst.msk [vmem:[#allocation4 + $0x100] sm:$0xff] %vm1477, %v1350
  %1511 = vst.msk [vmem:[#allocation4 + $0x108] sm:$0xff] %vm1477, %v1352
  %1512 = vst.msk [vmem:[#allocation4 + $0x110] sm:$0xff] %vm1477, %v1354
  %1513 = vst.msk [vmem:[#allocation4 + $0x118] sm:$0xff] %vm1477, %v1356
  %1514 = vst.msk [vmem:[#allocation4 + $0x120] sm:$0xff] %vm1477, %v1358
  %1515 = vst.msk [vmem:[#allocation4 + $0x128] sm:$0xff] %vm1477, %v1360
  %1516 = vst.msk [vmem:[#allocation4 + $0x130] sm:$0xff] %vm1477, %v1362
  %1517 = vst.msk [vmem:[#allocation4 + $0x138] sm:$0xff] %vm1477, %v1364
  %1518 = vst.msk [vmem:[#allocation4 + $0x140] sm:$0xff] %vm1477, %v1366
  %1519 = vst.msk [vmem:[#allocation4 + $0x148] sm:$0xff] %vm1477, %v1368
  %1520 = vst.msk [vmem:[#allocation4 + $0x150] sm:$0xff] %vm1477, %v1370
  %1521 = vst.msk [vmem:[#allocation4 + $0x158] sm:$0xff] %vm1477, %v1372
  %1522 = vst.msk [vmem:[#allocation4 + $0x160] sm:$0xff] %vm1477, %v1374
  %1523 = vst.msk [vmem:[#allocation4 + $0x168] sm:$0xff] %vm1477, %v1376
  %1524 = vst.msk [vmem:[#allocation4 + $0x170] sm:$0xff] %vm1477, %v1378
  %1525 = vst.msk [vmem:[#allocation4 + $0x178] sm:$0xff] %vm1477, %v1380
  %1526 = vst.msk [vmem:[#allocation4 + $0x180] sm:$0xff] %vm1477, %v1382
  %1527 = vst.msk [vmem:[#allocation4 + $0x188] sm:$0xff] %vm1477, %v1384
  %1528 = vst.msk [vmem:[#allocation4 + $0x190] sm:$0xff] %vm1477, %v1386
  %1529 = vst.msk [vmem:[#allocation4 + $0x198] sm:$0xff] %vm1477, %v1388
  %1530 = vst.msk [vmem:[#allocation4 + $0x1a0] sm:$0xff] %vm1477, %v1390
  %1531 = vst.msk [vmem:[#allocation4 + $0x1a8] sm:$0xff] %vm1477, %v1392
  %1532 = vst.msk [vmem:[#allocation4 + $0x1b0] sm:$0xff] %vm1477, %v1394
  %1533 = vst.msk [vmem:[#allocation4 + $0x1b8] sm:$0xff] %vm1477, %v1396
  %1534 = vst.msk [vmem:[#allocation4 + $0x1c0] sm:$0xff] %vm1477, %v1398
  %1535 = vst.msk [vmem:[#allocation4 + $0x1c8] sm:$0xff] %vm1477, %v1400
  %1536 = vst.msk [vmem:[#allocation4 + $0x1d0] sm:$0xff] %vm1477, %v1402
  %1537 = vst.msk [vmem:[#allocation4 + $0x1d8] sm:$0xff] %vm1477, %v1404
  %1538 = vst.msk [vmem:[#allocation4 + $0x1e0] sm:$0xff] %vm1477, %v1406
  %1539 = vst.msk [vmem:[#allocation4 + $0x1e8] sm:$0xff] %vm1477, %v1408
  %1540 = vst.msk [vmem:[#allocation4 + $0x1f0] sm:$0xff] %vm1477, %v1410
  %1541 = vst.msk [vmem:[#allocation4 + $0x1f8] sm:$0xff] %vm1477, %v1412
  %v1542 = vld [vmem:[%s194 + $0x1] sm:$0xff]
  %v1543 = vld [vmem:[%s194 + $0x9] sm:$0xff]
  %v1544 = vld [vmem:[%s194 + $0x19] sm:$0xff]
  %v1545 = vld [vmem:[%s194 + $0x21] sm:$0xff]
  %v1546 = vld [vmem:[%s194 + $0x31] sm:$0xff]
  %v1547 = vld [vmem:[%s194 + $0x39] sm:$0xff]
  %v1548 = vld [vmem:[%s194 + $0x49] sm:$0xff]
  %v1549 = vld [vmem:[%s194 + $0x51] sm:$0xff]
  %v1550 = vld [vmem:[%s194 + $0x61] sm:$0xff]
  %v1551 = vld [vmem:[%s194 + $0x69] sm:$0xff]
  %v1552 = vld [vmem:[%s194 + $0x79] sm:$0xff]
  %v1553 = vld [vmem:[%s194 + $0x81] sm:$0xff]
  %v1554 = vld [vmem:[%s194 + $0x91] sm:$0xff]
  %v1555 = vld [vmem:[%s194 + $0x99] sm:$0xff]
  %v1556 = vld [vmem:[%s194 + $0xa9] sm:$0xff]
  %v1557 = vld [vmem:[%s194 + $0xb1] sm:$0xff]
  %v1558 = vld [vmem:[%s194 + $0xc1] sm:$0xff]
  %v1559 = vld [vmem:[%s194 + $0xc9] sm:$0xff]
  %v1560 = vld [vmem:[%s194 + $0xd9] sm:$0xff]
  %v1561 = vld [vmem:[%s194 + $0xe1] sm:$0xff]
  %v1562 = vld [vmem:[%s194 + $0xf1] sm:$0xff]
  %v1563 = vld [vmem:[%s194 + $0xf9] sm:$0xff]
  %v1564 = vld [vmem:[%s194 + $0x109] sm:$0xff]
  %v1565 = vld [vmem:[%s194 + $0x111] sm:$0xff]
  %v1566 = vld [vmem:[%s194 + $0x121] sm:$0xff]
  %v1567 = vld [vmem:[%s194 + $0x129] sm:$0xff]
  %v1568 = vld [vmem:[%s194 + $0x139] sm:$0xff]
  %v1569 = vld [vmem:[%s194 + $0x141] sm:$0xff]
  %v1570 = vld [vmem:[%s194 + $0x151] sm:$0xff]
  %v1571 = vld [vmem:[%s194 + $0x159] sm:$0xff]
  %v1572 = vld [vmem:[%s194 + $0x169] sm:$0xff]
  %v1573 = vld [vmem:[%s194 + $0x171] sm:$0xff]
  %v1574 = vld [vmem:[%s194 + $0x1b1] sm:$0xff]
  %v1575 = vld [vmem:[%s194 + $0x1b9] sm:$0xff]
  %v1576 = vld [vmem:[%s194 + $0x1c9] sm:$0xff]
  %v1577 = vld [vmem:[%s194 + $0x1d1] sm:$0xff]
  %v1578 = vld [vmem:[%s194 + $0x1e1] sm:$0xff]
  %v1579 = vld [vmem:[%s194 + $0x1e9] sm:$0xff]
  %v1580 = vld [vmem:[%s194 + $0x1f9] sm:$0xff]
  %v1581 = vld [vmem:[%s194 + $0x201] sm:$0xff]
  %v1582 = vld [vmem:[%s194 + $0x211] sm:$0xff]
  %v1583 = vld [vmem:[%s194 + $0x219] sm:$0xff]
  %v1584 = vld [vmem:[%s194 + $0x229] sm:$0xff]
  %v1585 = vld [vmem:[%s194 + $0x231] sm:$0xff]
  %v1586 = vld [vmem:[%s194 + $0x241] sm:$0xff]
  %v1587 = vld [vmem:[%s194 + $0x249] sm:$0xff]
  %v1588 = vld [vmem:[%s194 + $0x259] sm:$0xff]
  %v1589 = vld [vmem:[%s194 + $0x261] sm:$0xff]
  %v1590 = vld [vmem:[%s194 + $0x271] sm:$0xff]
  %v1591 = vld [vmem:[%s194 + $0x279] sm:$0xff]
  %v1592 = vld [vmem:[%s194 + $0x289] sm:$0xff]
  %v1593 = vld [vmem:[%s194 + $0x291] sm:$0xff]
  %v1594 = vld [vmem:[%s194 + $0x2a1] sm:$0xff]
  %v1595 = vld [vmem:[%s194 + $0x2a9] sm:$0xff]
  %v1596 = vld [vmem:[%s194 + $0x2b9] sm:$0xff]
  %v1597 = vld [vmem:[%s194 + $0x2c1] sm:$0xff]
  %v1598 = vld [vmem:[%s194 + $0x2d1] sm:$0xff]
  %v1599 = vld [vmem:[%s194 + $0x2d9] sm:$0xff]
  %v1600 = vld [vmem:[%s194 + $0x2e9] sm:$0xff]
  %v1601 = vld [vmem:[%s194 + $0x2f1] sm:$0xff]
  %v1602 = vld [vmem:[%s194 + $0x301] sm:$0xff]
  %v1603 = vld [vmem:[%s194 + $0x309] sm:$0xff]
  %v1604 = vld [vmem:[%s194 + $0x319] sm:$0xff]
  %v1605 = vld [vmem:[%s194 + $0x321] sm:$0xff]
  %1670 = vrot.lane.b32.xlu0 %v1542, 16
  %v1671 = vpop.permute.xlu0 %1670
  %1672 = vrot.lane.b32.xlu0 %v1543, 16
  %v1673 = vpop.permute.xlu0 %1672
  %1674 = vrot.lane.b32.xlu0 %v1544, 16
  %v1675 = vpop.permute.xlu0 %1674
  %1676 = vrot.lane.b32.xlu0 %v1545, 16
  %v1677 = vpop.permute.xlu0 %1676
  %1678 = vrot.lane.b32.xlu0 %v1546, 16
  %v1679 = vpop.permute.xlu0 %1678
  %1680 = vrot.lane.b32.xlu0 %v1547, 16
  %v1681 = vpop.permute.xlu0 %1680
  %1682 = vrot.lane.b32.xlu0 %v1548, 16
  %v1683 = vpop.permute.xlu0 %1682
  %1684 = vrot.lane.b32.xlu0 %v1549, 16
  %v1685 = vpop.permute.xlu0 %1684
  %1686 = vrot.lane.b32.xlu0 %v1550, 16
  %v1687 = vpop.permute.xlu0 %1686
  %1688 = vrot.lane.b32.xlu0 %v1551, 16
  %v1689 = vpop.permute.xlu0 %1688
  %1690 = vrot.lane.b32.xlu0 %v1552, 16
  %v1691 = vpop.permute.xlu0 %1690
  %1692 = vrot.lane.b32.xlu0 %v1553, 16
  %v1693 = vpop.permute.xlu0 %1692
  %1694 = vrot.lane.b32.xlu0 %v1554, 16
  %v1695 = vpop.permute.xlu0 %1694
  %1696 = vrot.lane.b32.xlu0 %v1555, 16
  %v1697 = vpop.permute.xlu0 %1696
  %1698 = vrot.lane.b32.xlu0 %v1556, 16
  %v1699 = vpop.permute.xlu0 %1698
  %1700 = vrot.lane.b32.xlu0 %v1557, 16
  %v1701 = vpop.permute.xlu0 %1700
  %1702 = vrot.lane.b32.xlu0 %v1558, 16
  %v1703 = vpop.permute.xlu0 %1702
  %1704 = vrot.lane.b32.xlu0 %v1559, 16
  %v1705 = vpop.permute.xlu0 %1704
  %1706 = vrot.lane.b32.xlu0 %v1560, 16
  %v1707 = vpop.permute.xlu0 %1706
  %1708 = vrot.lane.b32.xlu0 %v1561, 16
  %v1709 = vpop.permute.xlu0 %1708
  %1710 = vrot.lane.b32.xlu0 %v1562, 16
  %v1711 = vpop.permute.xlu0 %1710
  %1712 = vrot.lane.b32.xlu0 %v1563, 16
  %v1713 = vpop.permute.xlu0 %1712
  %1714 = vrot.lane.b32.xlu0 %v1564, 16
  %v1715 = vpop.permute.xlu0 %1714
  %1716 = vrot.lane.b32.xlu0 %v1565, 16
  %v1717 = vpop.permute.xlu0 %1716
  %1718 = vrot.lane.b32.xlu0 %v1566, 16
  %v1719 = vpop.permute.xlu0 %1718
  %1720 = vrot.lane.b32.xlu0 %v1567, 16
  %v1721 = vpop.permute.xlu0 %1720
  %1722 = vrot.lane.b32.xlu0 %v1568, 16
  %v1723 = vpop.permute.xlu0 %1722
  %1724 = vrot.lane.b32.xlu0 %v1569, 16
  %v1725 = vpop.permute.xlu0 %1724
  %1726 = vrot.lane.b32.xlu0 %v1570, 16
  %v1727 = vpop.permute.xlu0 %1726
  %1728 = vrot.lane.b32.xlu0 %v1571, 16
  %v1729 = vpop.permute.xlu0 %1728
  %1730 = vrot.lane.b32.xlu0 %v1572, 16
  %v1731 = vpop.permute.xlu0 %1730
  %1732 = vrot.lane.b32.xlu0 %v1573, 16
  %v1733 = vpop.permute.xlu0 %1732
  %1734 = vrot.lane.b32.xlu0 %v1574, 16
  %v1735 = vpop.permute.xlu0 %1734
  %1736 = vrot.lane.b32.xlu0 %v1575, 16
  %v1737 = vpop.permute.xlu0 %1736
  %1738 = vrot.lane.b32.xlu0 %v1576, 16
  %v1739 = vpop.permute.xlu0 %1738
  %1740 = vrot.lane.b32.xlu0 %v1577, 16
  %v1741 = vpop.permute.xlu0 %1740
  %1742 = vrot.lane.b32.xlu0 %v1578, 16
  %v1743 = vpop.permute.xlu0 %1742
  %1744 = vrot.lane.b32.xlu0 %v1579, 16
  %v1745 = vpop.permute.xlu0 %1744
  %1746 = vrot.lane.b32.xlu0 %v1580, 16
  %v1747 = vpop.permute.xlu0 %1746
  %1748 = vrot.lane.b32.xlu0 %v1581, 16
  %v1749 = vpop.permute.xlu0 %1748
  %1750 = vrot.lane.b32.xlu0 %v1582, 16
  %v1751 = vpop.permute.xlu0 %1750
  %1752 = vrot.lane.b32.xlu0 %v1583, 16
  %v1753 = vpop.permute.xlu0 %1752
  %1754 = vrot.lane.b32.xlu0 %v1584, 16
  %v1755 = vpop.permute.xlu0 %1754
  %1756 = vrot.lane.b32.xlu0 %v1585, 16
  %v1757 = vpop.permute.xlu0 %1756
  %1758 = vrot.lane.b32.xlu0 %v1586, 16
  %v1759 = vpop.permute.xlu0 %1758
  %1760 = vrot.lane.b32.xlu0 %v1587, 16
  %v1761 = vpop.permute.xlu0 %1760
  %1762 = vrot.lane.b32.xlu0 %v1588, 16
  %v1763 = vpop.permute.xlu0 %1762
  %1764 = vrot.lane.b32.xlu0 %v1589, 16
  %v1765 = vpop.permute.xlu0 %1764
  %1766 = vrot.lane.b32.xlu0 %v1590, 16
  %v1767 = vpop.permute.xlu0 %1766
  %1768 = vrot.lane.b32.xlu0 %v1591, 16
  %v1769 = vpop.permute.xlu0 %1768
  %1770 = vrot.lane.b32.xlu0 %v1592, 16
  %v1771 = vpop.permute.xlu0 %1770
  %1772 = vrot.lane.b32.xlu0 %v1593, 16
  %v1773 = vpop.permute.xlu0 %1772
  %1774 = vrot.lane.b32.xlu0 %v1594, 16
  %v1775 = vpop.permute.xlu0 %1774
  %1776 = vrot.lane.b32.xlu0 %v1595, 16
  %v1777 = vpop.permute.xlu0 %1776
  %1778 = vrot.lane.b32.xlu0 %v1596, 16
  %v1779 = vpop.permute.xlu0 %1778
  %1780 = vrot.lane.b32.xlu0 %v1597, 16
  %v1781 = vpop.permute.xlu0 %1780
  %1782 = vrot.lane.b32.xlu0 %v1598, 16
  %v1783 = vpop.permute.xlu0 %1782
  %1784 = vrot.lane.b32.xlu0 %v1599, 16
  %v1785 = vpop.permute.xlu0 %1784
  %1786 = vrot.lane.b32.xlu0 %v1600, 16
  %v1787 = vpop.permute.xlu0 %1786
  %1788 = vrot.lane.b32.xlu0 %v1601, 16
  %v1789 = vpop.permute.xlu0 %1788
  %1790 = vrot.lane.b32.xlu0 %v1602, 16
  %v1791 = vpop.permute.xlu0 %1790
  %1792 = vrot.lane.b32.xlu0 %v1603, 16
  %v1793 = vpop.permute.xlu0 %1792
  %1794 = vrot.lane.b32.xlu0 %v1604, 16
  %v1795 = vpop.permute.xlu0 %1794
  %1796 = vrot.lane.b32.xlu0 %v1605, 16
  %v1797 = vpop.permute.xlu0 %1796
  %vm1862 = vcmask 162944
  %1863 = vst.msk [vmem:[#allocation4] sm:$0xff] %vm1862, %v1671
  %1864 = vst.msk [vmem:[#allocation4 + $0x8] sm:$0xff] %vm1862, %v1673
  %1865 = vst.msk [vmem:[#allocation4 + $0x10] sm:$0xff] %vm1862, %v1675
  %1866 = vst.msk [vmem:[#allocation4 + $0x18] sm:$0xff] %vm1862, %v1677
  %1867 = vst.msk [vmem:[#allocation4 + $0x20] sm:$0xff] %vm1862, %v1679
  %1868 = vst.msk [vmem:[#allocation4 + $0x28] sm:$0xff] %vm1862, %v1681
  %1869 = vst.msk [vmem:[#allocation4 + $0x30] sm:$0xff] %vm1862, %v1683
  %1870 = vst.msk [vmem:[#allocation4 + $0x38] sm:$0xff] %vm1862, %v1685
  %1871 = vst.msk [vmem:[#allocation4 + $0x40] sm:$0xff] %vm1862, %v1687
  %1872 = vst.msk [vmem:[#allocation4 + $0x48] sm:$0xff] %vm1862, %v1689
  %1873 = vst.msk [vmem:[#allocation4 + $0x50] sm:$0xff] %vm1862, %v1691
  %1874 = vst.msk [vmem:[#allocation4 + $0x58] sm:$0xff] %vm1862, %v1693
  %1875 = vst.msk [vmem:[#allocation4 + $0x60] sm:$0xff] %vm1862, %v1695
  %1876 = vst.msk [vmem:[#allocation4 + $0x68] sm:$0xff] %vm1862, %v1697
  %1877 = vst.msk [vmem:[#allocation4 + $0x70] sm:$0xff] %vm1862, %v1699
  %1878 = vst.msk [vmem:[#allocation4 + $0x78] sm:$0xff] %vm1862, %v1701
  %1879 = vst.msk [vmem:[#allocation4 + $0x80] sm:$0xff] %vm1862, %v1703
  %1880 = vst.msk [vmem:[#allocation4 + $0x88] sm:$0xff] %vm1862, %v1705
  %1881 = vst.msk [vmem:[#allocation4 + $0x90] sm:$0xff] %vm1862, %v1707
  %1882 = vst.msk [vmem:[#allocation4 + $0x98] sm:$0xff] %vm1862, %v1709
  %1883 = vst.msk [vmem:[#allocation4 + $0xa0] sm:$0xff] %vm1862, %v1711
  %1884 = vst.msk [vmem:[#allocation4 + $0xa8] sm:$0xff] %vm1862, %v1713
  %1885 = vst.msk [vmem:[#allocation4 + $0xb0] sm:$0xff] %vm1862, %v1715
  %1886 = vst.msk [vmem:[#allocation4 + $0xb8] sm:$0xff] %vm1862, %v1717
  %1887 = vst.msk [vmem:[#allocation4 + $0xc0] sm:$0xff] %vm1862, %v1719
  %1888 = vst.msk [vmem:[#allocation4 + $0xc8] sm:$0xff] %vm1862, %v1721
  %1889 = vst.msk [vmem:[#allocation4 + $0xd0] sm:$0xff] %vm1862, %v1723
  %1890 = vst.msk [vmem:[#allocation4 + $0xd8] sm:$0xff] %vm1862, %v1725
  %1891 = vst.msk [vmem:[#allocation4 + $0xe0] sm:$0xff] %vm1862, %v1727
  %1892 = vst.msk [vmem:[#allocation4 + $0xe8] sm:$0xff] %vm1862, %v1729
  %1893 = vst.msk [vmem:[#allocation4 + $0xf0] sm:$0xff] %vm1862, %v1731
  %1894 = vst.msk [vmem:[#allocation4 + $0xf8] sm:$0xff] %vm1862, %v1733
  %1895 = vst.msk [vmem:[#allocation4 + $0x100] sm:$0xff] %vm1862, %v1735
  %1896 = vst.msk [vmem:[#allocation4 + $0x108] sm:$0xff] %vm1862, %v1737
  %1897 = vst.msk [vmem:[#allocation4 + $0x110] sm:$0xff] %vm1862, %v1739
  %1898 = vst.msk [vmem:[#allocation4 + $0x118] sm:$0xff] %vm1862, %v1741
  %1899 = vst.msk [vmem:[#allocation4 + $0x120] sm:$0xff] %vm1862, %v1743
  %1900 = vst.msk [vmem:[#allocation4 + $0x128] sm:$0xff] %vm1862, %v1745
  %1901 = vst.msk [vmem:[#allocation4 + $0x130] sm:$0xff] %vm1862, %v1747
  %1902 = vst.msk [vmem:[#allocation4 + $0x138] sm:$0xff] %vm1862, %v1749
  %1903 = vst.msk [vmem:[#allocation4 + $0x140] sm:$0xff] %vm1862, %v1751
  %1904 = vst.msk [vmem:[#allocation4 + $0x148] sm:$0xff] %vm1862, %v1753
  %1905 = vst.msk [vmem:[#allocation4 + $0x150] sm:$0xff] %vm1862, %v1755
  %1906 = vst.msk [vmem:[#allocation4 + $0x158] sm:$0xff] %vm1862, %v1757
  %1907 = vst.msk [vmem:[#allocation4 + $0x160] sm:$0xff] %vm1862, %v1759
  %1908 = vst.msk [vmem:[#allocation4 + $0x168] sm:$0xff] %vm1862, %v1761
  %1909 = vst.msk [vmem:[#allocation4 + $0x170] sm:$0xff] %vm1862, %v1763
  %1910 = vst.msk [vmem:[#allocation4 + $0x178] sm:$0xff] %vm1862, %v1765
  %1911 = vst.msk [vmem:[#allocation4 + $0x180] sm:$0xff] %vm1862, %v1767
  %1912 = vst.msk [vmem:[#allocation4 + $0x188] sm:$0xff] %vm1862, %v1769
  %1913 = vst.msk [vmem:[#allocation4 + $0x190] sm:$0xff] %vm1862, %v1771
  %1914 = vst.msk [vmem:[#allocation4 + $0x198] sm:$0xff] %vm1862, %v1773
  %1915 = vst.msk [vmem:[#allocation4 + $0x1a0] sm:$0xff] %vm1862, %v1775
  %1916 = vst.msk [vmem:[#allocation4 + $0x1a8] sm:$0xff] %vm1862, %v1777
  %1917 = vst.msk [vmem:[#allocation4 + $0x1b0] sm:$0xff] %vm1862, %v1779
  %1918 = vst.msk [vmem:[#allocation4 + $0x1b8] sm:$0xff] %vm1862, %v1781
  %1919 = vst.msk [vmem:[#allocation4 + $0x1c0] sm:$0xff] %vm1862, %v1783
  %1920 = vst.msk [vmem:[#allocation4 + $0x1c8] sm:$0xff] %vm1862, %v1785
  %1921 = vst.msk [vmem:[#allocation4 + $0x1d0] sm:$0xff] %vm1862, %v1787
  %1922 = vst.msk [vmem:[#allocation4 + $0x1d8] sm:$0xff] %vm1862, %v1789
  %1923 = vst.msk [vmem:[#allocation4 + $0x1e0] sm:$0xff] %vm1862, %v1791
  %1924 = vst.msk [vmem:[#allocation4 + $0x1e8] sm:$0xff] %vm1862, %v1793
  %1925 = vst.msk [vmem:[#allocation4 + $0x1f0] sm:$0xff] %vm1862, %v1795
  %1926 = vst.msk [vmem:[#allocation4 + $0x1f8] sm:$0xff] %vm1862, %v1797
  %v1927 = vld [vmem:[%s194 + $0x2] sm:$0xff]
  %v1928 = vld [vmem:[%s194 + $0xa] sm:$0xff]
  %v1929 = vld [vmem:[%s194 + $0x1a] sm:$0xff]
  %v1930 = vld [vmem:[%s194 + $0x22] sm:$0xff]
  %v1931 = vld [vmem:[%s194 + $0x32] sm:$0xff]
  %v1932 = vld [vmem:[%s194 + $0x3a] sm:$0xff]
  %v1933 = vld [vmem:[%s194 + $0x4a] sm:$0xff]
  %v1934 = vld [vmem:[%s194 + $0x52] sm:$0xff]
  %v1935 = vld [vmem:[%s194 + $0x62] sm:$0xff]
  %v1936 = vld [vmem:[%s194 + $0x6a] sm:$0xff]
  %v1937 = vld [vmem:[%s194 + $0x7a] sm:$0xff]
  %v1938 = vld [vmem:[%s194 + $0x82] sm:$0xff]
  %v1939 = vld [vmem:[%s194 + $0x92] sm:$0xff]
  %v1940 = vld [vmem:[%s194 + $0x9a] sm:$0xff]
  %v1941 = vld [vmem:[%s194 + $0xaa] sm:$0xff]
  %v1942 = vld [vmem:[%s194 + $0xb2] sm:$0xff]
  %v1943 = vld [vmem:[%s194 + $0xc2] sm:$0xff]
  %v1944 = vld [vmem:[%s194 + $0xca] sm:$0xff]
  %v1945 = vld [vmem:[%s194 + $0xda] sm:$0xff]
  %v1946 = vld [vmem:[%s194 + $0xe2] sm:$0xff]
  %v1947 = vld [vmem:[%s194 + $0xf2] sm:$0xff]
  %v1948 = vld [vmem:[%s194 + $0xfa] sm:$0xff]
  %v1949 = vld [vmem:[%s194 + $0x10a] sm:$0xff]
  %v1950 = vld [vmem:[%s194 + $0x112] sm:$0xff]
  %v1951 = vld [vmem:[%s194 + $0x122] sm:$0xff]
  %v1952 = vld [vmem:[%s194 + $0x12a] sm:$0xff]
  %v1953 = vld [vmem:[%s194 + $0x13a] sm:$0xff]
  %v1954 = vld [vmem:[%s194 + $0x142] sm:$0xff]
  %v1955 = vld [vmem:[%s194 + $0x152] sm:$0xff]
  %v1956 = vld [vmem:[%s194 + $0x15a] sm:$0xff]
  %v1957 = vld [vmem:[%s194 + $0x16a] sm:$0xff]
  %v1958 = vld [vmem:[%s194 + $0x172] sm:$0xff]
  %v1959 = vld [vmem:[%s194 + $0x1b2] sm:$0xff]
  %v1960 = vld [vmem:[%s194 + $0x1ba] sm:$0xff]
  %v1961 = vld [vmem:[%s194 + $0x1ca] sm:$0xff]
  %v1962 = vld [vmem:[%s194 + $0x1d2] sm:$0xff]
  %v1963 = vld [vmem:[%s194 + $0x1e2] sm:$0xff]
  %v1964 = vld [vmem:[%s194 + $0x1ea] sm:$0xff]
  %v1965 = vld [vmem:[%s194 + $0x1fa] sm:$0xff]
  %v1966 = vld [vmem:[%s194 + $0x202] sm:$0xff]
  %v1967 = vld [vmem:[%s194 + $0x212] sm:$0xff]
  %v1968 = vld [vmem:[%s194 + $0x21a] sm:$0xff]
  %v1969 = vld [vmem:[%s194 + $0x22a] sm:$0xff]
  %v1970 = vld [vmem:[%s194 + $0x232] sm:$0xff]
  %v1971 = vld [vmem:[%s194 + $0x242] sm:$0xff]
  %v1972 = vld [vmem:[%s194 + $0x24a] sm:$0xff]
  %v1973 = vld [vmem:[%s194 + $0x25a] sm:$0xff]
  %v1974 = vld [vmem:[%s194 + $0x262] sm:$0xff]
  %v1975 = vld [vmem:[%s194 + $0x272] sm:$0xff]
  %v1976 = vld [vmem:[%s194 + $0x27a] sm:$0xff]
  %v1977 = vld [vmem:[%s194 + $0x28a] sm:$0xff]
  %v1978 = vld [vmem:[%s194 + $0x292] sm:$0xff]
  %v1979 = vld [vmem:[%s194 + $0x2a2] sm:$0xff]
  %v1980 = vld [vmem:[%s194 + $0x2aa] sm:$0xff]
  %v1981 = vld [vmem:[%s194 + $0x2ba] sm:$0xff]
  %v1982 = vld [vmem:[%s194 + $0x2c2] sm:$0xff]
  %v1983 = vld [vmem:[%s194 + $0x2d2] sm:$0xff]
  %v1984 = vld [vmem:[%s194 + $0x2da] sm:$0xff]
  %v1985 = vld [vmem:[%s194 + $0x2ea] sm:$0xff]
  %v1986 = vld [vmem:[%s194 + $0x2f2] sm:$0xff]
  %v1987 = vld [vmem:[%s194 + $0x302] sm:$0xff]
  %v1988 = vld [vmem:[%s194 + $0x30a] sm:$0xff]
  %v1989 = vld [vmem:[%s194 + $0x31a] sm:$0xff]
  %v1990 = vld [vmem:[%s194 + $0x322] sm:$0xff]
  %2055 = vrot.lane.b32.xlu0 %v1927, 20
  %v2056 = vpop.permute.xlu0 %2055
  %2057 = vrot.lane.b32.xlu0 %v1928, 20
  %v2058 = vpop.permute.xlu0 %2057
  %2059 = vrot.lane.b32.xlu0 %v1929, 20
  %v2060 = vpop.permute.xlu0 %2059
  %2061 = vrot.lane.b32.xlu0 %v1930, 20
  %v2062 = vpop.permute.xlu0 %2061
  %2063 = vrot.lane.b32.xlu0 %v1931, 20
  %v2064 = vpop.permute.xlu0 %2063
  %2065 = vrot.lane.b32.xlu0 %v1932, 20
  %v2066 = vpop.permute.xlu0 %2065
  %2067 = vrot.lane.b32.xlu0 %v1933, 20
  %v2068 = vpop.permute.xlu0 %2067
  %2069 = vrot.lane.b32.xlu0 %v1934, 20
  %v2070 = vpop.permute.xlu0 %2069
  %2071 = vrot.lane.b32.xlu0 %v1935, 20
  %v2072 = vpop.permute.xlu0 %2071
  %2073 = vrot.lane.b32.xlu0 %v1936, 20
  %v2074 = vpop.permute.xlu0 %2073
  %2075 = vrot.lane.b32.xlu0 %v1937, 20
  %v2076 = vpop.permute.xlu0 %2075
  %2077 = vrot.lane.b32.xlu0 %v1938, 20
  %v2078 = vpop.permute.xlu0 %2077
  %2079 = vrot.lane.b32.xlu0 %v1939, 20
  %v2080 = vpop.permute.xlu0 %2079
  %2081 = vrot.lane.b32.xlu0 %v1940, 20
  %v2082 = vpop.permute.xlu0 %2081
  %2083 = vrot.lane.b32.xlu0 %v1941, 20
  %v2084 = vpop.permute.xlu0 %2083
  %2085 = vrot.lane.b32.xlu0 %v1942, 20
  %v2086 = vpop.permute.xlu0 %2085
  %2087 = vrot.lane.b32.xlu0 %v1943, 20
  %v2088 = vpop.permute.xlu0 %2087
  %2089 = vrot.lane.b32.xlu0 %v1944, 20
  %v2090 = vpop.permute.xlu0 %2089
  %2091 = vrot.lane.b32.xlu0 %v1945, 20
  %v2092 = vpop.permute.xlu0 %2091
  %2093 = vrot.lane.b32.xlu0 %v1946, 20
  %v2094 = vpop.permute.xlu0 %2093
  %2095 = vrot.lane.b32.xlu0 %v1947, 20
  %v2096 = vpop.permute.xlu0 %2095
  %2097 = vrot.lane.b32.xlu0 %v1948, 20
  %v2098 = vpop.permute.xlu0 %2097
  %2099 = vrot.lane.b32.xlu0 %v1949, 20
  %v2100 = vpop.permute.xlu0 %2099
  %2101 = vrot.lane.b32.xlu0 %v1950, 20
  %v2102 = vpop.permute.xlu0 %2101
  %2103 = vrot.lane.b32.xlu0 %v1951, 20
  %v2104 = vpop.permute.xlu0 %2103
  %2105 = vrot.lane.b32.xlu0 %v1952, 20
  %v2106 = vpop.permute.xlu0 %2105
  %2107 = vrot.lane.b32.xlu0 %v1953, 20
  %v2108 = vpop.permute.xlu0 %2107
  %2109 = vrot.lane.b32.xlu0 %v1954, 20
  %v2110 = vpop.permute.xlu0 %2109
  %2111 = vrot.lane.b32.xlu0 %v1955, 20
  %v2112 = vpop.permute.xlu0 %2111
  %2113 = vrot.lane.b32.xlu0 %v1956, 20
  %v2114 = vpop.permute.xlu0 %2113
  %2115 = vrot.lane.b32.xlu0 %v1957, 20
  %v2116 = vpop.permute.xlu0 %2115
  %2117 = vrot.lane.b32.xlu0 %v1958, 20
  %v2118 = vpop.permute.xlu0 %2117
  %2119 = vrot.lane.b32.xlu0 %v1959, 20
  %v2120 = vpop.permute.xlu0 %2119
  %2121 = vrot.lane.b32.xlu0 %v1960, 20
  %v2122 = vpop.permute.xlu0 %2121
  %2123 = vrot.lane.b32.xlu0 %v1961, 20
  %v2124 = vpop.permute.xlu0 %2123
  %2125 = vrot.lane.b32.xlu0 %v1962, 20
  %v2126 = vpop.permute.xlu0 %2125
  %2127 = vrot.lane.b32.xlu0 %v1963, 20
  %v2128 = vpop.permute.xlu0 %2127
  %2129 = vrot.lane.b32.xlu0 %v1964, 20
  %v2130 = vpop.permute.xlu0 %2129
  %2131 = vrot.lane.b32.xlu0 %v1965, 20
  %v2132 = vpop.permute.xlu0 %2131
  %2133 = vrot.lane.b32.xlu0 %v1966, 20
  %v2134 = vpop.permute.xlu0 %2133
  %2135 = vrot.lane.b32.xlu0 %v1967, 20
  %v2136 = vpop.permute.xlu0 %2135
  %2137 = vrot.lane.b32.xlu0 %v1968, 20
  %v2138 = vpop.permute.xlu0 %2137
  %2139 = vrot.lane.b32.xlu0 %v1969, 20
  %v2140 = vpop.permute.xlu0 %2139
  %2141 = vrot.lane.b32.xlu0 %v1970, 20
  %v2142 = vpop.permute.xlu0 %2141
  %2143 = vrot.lane.b32.xlu0 %v1971, 20
  %v2144 = vpop.permute.xlu0 %2143
  %2145 = vrot.lane.b32.xlu0 %v1972, 20
  %v2146 = vpop.permute.xlu0 %2145
  %2147 = vrot.lane.b32.xlu0 %v1973, 20
  %v2148 = vpop.permute.xlu0 %2147
  %2149 = vrot.lane.b32.xlu0 %v1974, 20
  %v2150 = vpop.permute.xlu0 %2149
  %2151 = vrot.lane.b32.xlu0 %v1975, 20
  %v2152 = vpop.permute.xlu0 %2151
  %2153 = vrot.lane.b32.xlu0 %v1976, 20
  %v2154 = vpop.permute.xlu0 %2153
  %2155 = vrot.lane.b32.xlu0 %v1977, 20
  %v2156 = vpop.permute.xlu0 %2155
  %2157 = vrot.lane.b32.xlu0 %v1978, 20
  %v2158 = vpop.permute.xlu0 %2157
  %2159 = vrot.lane.b32.xlu0 %v1979, 20
  %v2160 = vpop.permute.xlu0 %2159
  %2161 = vrot.lane.b32.xlu0 %v1980, 20
  %v2162 = vpop.permute.xlu0 %2161
  %2163 = vrot.lane.b32.xlu0 %v1981, 20
  %v2164 = vpop.permute.xlu0 %2163
  %2165 = vrot.lane.b32.xlu0 %v1982, 20
  %v2166 = vpop.permute.xlu0 %2165
  %2167 = vrot.lane.b32.xlu0 %v1983, 20
  %v2168 = vpop.permute.xlu0 %2167
  %2169 = vrot.lane.b32.xlu0 %v1984, 20
  %v2170 = vpop.permute.xlu0 %2169
  %2171 = vrot.lane.b32.xlu0 %v1985, 20
  %v2172 = vpop.permute.xlu0 %2171
  %2173 = vrot.lane.b32.xlu0 %v1986, 20
  %v2174 = vpop.permute.xlu0 %2173
  %2175 = vrot.lane.b32.xlu0 %v1987, 20
  %v2176 = vpop.permute.xlu0 %2175
  %2177 = vrot.lane.b32.xlu0 %v1988, 20
  %v2178 = vpop.permute.xlu0 %2177
  %2179 = vrot.lane.b32.xlu0 %v1989, 20
  %v2180 = vpop.permute.xlu0 %2179
  %2181 = vrot.lane.b32.xlu0 %v1990, 20
  %v2182 = vpop.permute.xlu0 %2181
  %vm2247 = vcmask 195744
  %2248 = vst.msk [vmem:[#allocation4] sm:$0xff] %vm2247, %v2056
  %2249 = vst.msk [vmem:[#allocation4 + $0x8] sm:$0xff] %vm2247, %v2058
  %2250 = vst.msk [vmem:[#allocation4 + $0x10] sm:$0xff] %vm2247, %v2060
  %2251 = vst.msk [vmem:[#allocation4 + $0x18] sm:$0xff] %vm2247, %v2062
  %2252 = vst.msk [vmem:[#allocation4 + $0x20] sm:$0xff] %vm2247, %v2064
  %2253 = vst.msk [vmem:[#allocation4 + $0x28] sm:$0xff] %vm2247, %v2066
  %2254 = vst.msk [vmem:[#allocation4 + $0x30] sm:$0xff] %vm2247, %v2068
  %2255 = vst.msk [vmem:[#allocation4 + $0x38] sm:$0xff] %vm2247, %v2070
  %2256 = vst.msk [vmem:[#allocation4 + $0x40] sm:$0xff] %vm2247, %v2072
  %2257 = vst.msk [vmem:[#allocation4 + $0x48] sm:$0xff] %vm2247, %v2074
  %2258 = vst.msk [vmem:[#allocation4 + $0x50] sm:$0xff] %vm2247, %v2076
  %2259 = vst.msk [vmem:[#allocation4 + $0x58] sm:$0xff] %vm2247, %v2078
  %2260 = vst.msk [vmem:[#allocation4 + $0x60] sm:$0xff] %vm2247, %v2080
  %2261 = vst.msk [vmem:[#allocation4 + $0x68] sm:$0xff] %vm2247, %v2082
  %2262 = vst.msk [vmem:[#allocation4 + $0x70] sm:$0xff] %vm2247, %v2084
  %2263 = vst.msk [vmem:[#allocation4 + $0x78] sm:$0xff] %vm2247, %v2086
  %2264 = vst.msk [vmem:[#allocation4 + $0x80] sm:$0xff] %vm2247, %v2088
  %2265 = vst.msk [vmem:[#allocation4 + $0x88] sm:$0xff] %vm2247, %v2090
  %2266 = vst.msk [vmem:[#allocation4 + $0x90] sm:$0xff] %vm2247, %v2092
  %2267 = vst.msk [vmem:[#allocation4 + $0x98] sm:$0xff] %vm2247, %v2094
  %2268 = vst.msk [vmem:[#allocation4 + $0xa0] sm:$0xff] %vm2247, %v2096
  %2269 = vst.msk [vmem:[#allocation4 + $0xa8] sm:$0xff] %vm2247, %v2098
  %2270 = vst.msk [vmem:[#allocation4 + $0xb0] sm:$0xff] %vm2247, %v2100
  %2271 = vst.msk [vmem:[#allocation4 + $0xb8] sm:$0xff] %vm2247, %v2102
  %2272 = vst.msk [vmem:[#allocation4 + $0xc0] sm:$0xff] %vm2247, %v2104
  %2273 = vst.msk [vmem:[#allocation4 + $0xc8] sm:$0xff] %vm2247, %v2106
  %2274 = vst.msk [vmem:[#allocation4 + $0xd0] sm:$0xff] %vm2247, %v2108
  %2275 = vst.msk [vmem:[#allocation4 + $0xd8] sm:$0xff] %vm2247, %v2110
  %2276 = vst.msk [vmem:[#allocation4 + $0xe0] sm:$0xff] %vm2247, %v2112
  %2277 = vst.msk [vmem:[#allocation4 + $0xe8] sm:$0xff] %vm2247, %v2114
  %2278 = vst.msk [vmem:[#allocation4 + $0xf0] sm:$0xff] %vm2247, %v2116
  %2279 = vst.msk [vmem:[#allocation4 + $0xf8] sm:$0xff] %vm2247, %v2118
  %2280 = vst.msk [vmem:[#allocation4 + $0x100] sm:$0xff] %vm2247, %v2120
  %2281 = vst.msk [vmem:[#allocation4 + $0x108] sm:$0xff] %vm2247, %v2122
  %2282 = vst.msk [vmem:[#allocation4 + $0x110] sm:$0xff] %vm2247, %v2124
  %2283 = vst.msk [vmem:[#allocation4 + $0x118] sm:$0xff] %vm2247, %v2126
  %2284 = vst.msk [vmem:[#allocation4 + $0x120] sm:$0xff] %vm2247, %v2128
  %2285 = vst.msk [vmem:[#allocation4 + $0x128] sm:$0xff] %vm2247, %v2130
  %2286 = vst.msk [vmem:[#allocation4 + $0x130] sm:$0xff] %vm2247, %v2132
  %2287 = vst.msk [vmem:[#allocation4 + $0x138] sm:$0xff] %vm2247, %v2134
  %2288 = vst.msk [vmem:[#allocation4 + $0x140] sm:$0xff] %vm2247, %v2136
  %2289 = vst.msk [vmem:[#allocation4 + $0x148] sm:$0xff] %vm2247, %v2138
  %2290 = vst.msk [vmem:[#allocation4 + $0x150] sm:$0xff] %vm2247, %v2140
  %2291 = vst.msk [vmem:[#allocation4 + $0x158] sm:$0xff] %vm2247, %v2142
  %2292 = vst.msk [vmem:[#allocation4 + $0x160] sm:$0xff] %vm2247, %v2144
  %2293 = vst.msk [vmem:[#allocation4 + $0x168] sm:$0xff] %vm2247, %v2146
  %2294 = vst.msk [vmem:[#allocation4 + $0x170] sm:$0xff] %vm2247, %v2148
  %2295 = vst.msk [vmem:[#allocation4 + $0x178] sm:$0xff] %vm2247, %v2150
  %2296 = vst.msk [vmem:[#allocation4 + $0x180] sm:$0xff] %vm2247, %v2152
  %2297 = vst.msk [vmem:[#allocation4 + $0x188] sm:$0xff] %vm2247, %v2154
  %2298 = vst.msk [vmem:[#allocation4 + $0x190] sm:$0xff] %vm2247, %v2156
  %2299 = vst.msk [vmem:[#allocation4 + $0x198] sm:$0xff] %vm2247, %v2158
  %2300 = vst.msk [vmem:[#allocation4 + $0x1a0] sm:$0xff] %vm2247, %v2160
  %2301 = vst.msk [vmem:[#allocation4 + $0x1a8] sm:$0xff] %vm2247, %v2162
  %2302 = vst.msk [vmem:[#allocation4 + $0x1b0] sm:$0xff] %vm2247, %v2164
  %2303 = vst.msk [vmem:[#allocation4 + $0x1b8] sm:$0xff] %vm2247, %v2166
  %2304 = vst.msk [vmem:[#allocation4 + $0x1c0] sm:$0xff] %vm2247, %v2168
  %2305 = vst.msk [vmem:[#allocation4 + $0x1c8] sm:$0xff] %vm2247, %v2170
  %2306 = vst.msk [vmem:[#allocation4 + $0x1d0] sm:$0xff] %vm2247, %v2172
  %2307 = vst.msk [vmem:[#allocation4 + $0x1d8] sm:$0xff] %vm2247, %v2174
  %2308 = vst.msk [vmem:[#allocation4 + $0x1e0] sm:$0xff] %vm2247, %v2176
  %2309 = vst.msk [vmem:[#allocation4 + $0x1e8] sm:$0xff] %vm2247, %v2178
  %2310 = vst.msk [vmem:[#allocation4 + $0x1f0] sm:$0xff] %vm2247, %v2180
  %2311 = vst.msk [vmem:[#allocation4 + $0x1f8] sm:$0xff] %vm2247, %v2182
  %s2312 = scalar_lea.vmem [#allocation2], 48
  %v2313 = vld [vmem:[%s2312] sm:$0xff]
  %v2314 = vld [vmem:[%s2312 + $0x8] sm:$0xff]
  %v2315 = vld [vmem:[%s2312 + $0x18] sm:$0xff]
  %v2316 = vld [vmem:[%s2312 + $0x20] sm:$0xff]
  %v2317 = vld [vmem:[%s2312 + $0x30] sm:$0xff]
  %v2318 = vld [vmem:[%s2312 + $0x38] sm:$0xff]
  %v2319 = vld [vmem:[%s2312 + $0x48] sm:$0xff]
  %v2320 = vld [vmem:[%s2312 + $0x50] sm:$0xff]
  %v2321 = vld [vmem:[%s2312 + $0x60] sm:$0xff]
  %v2322 = vld [vmem:[%s2312 + $0x68] sm:$0xff]
  %v2323 = vld [vmem:[%s2312 + $0x78] sm:$0xff]
  %v2324 = vld [vmem:[%s2312 + $0x80] sm:$0xff]
  %v2325 = vld [vmem:[%s2312 + $0x90] sm:$0xff]
  %v2326 = vld [vmem:[%s2312 + $0x98] sm:$0xff]
  %v2327 = vld [vmem:[%s2312 + $0xa8] sm:$0xff]
  %v2328 = vld [vmem:[%s2312 + $0xb0] sm:$0xff]
  %v2329 = vld [vmem:[%s2312 + $0xc0] sm:$0xff]
  %v2330 = vld [vmem:[%s2312 + $0xc8] sm:$0xff]
  %v2331 = vld [vmem:[%s2312 + $0xd8] sm:$0xff]
  %v2332 = vld [vmem:[%s2312 + $0xe0] sm:$0xff]
  %v2333 = vld [vmem:[%s2312 + $0xf0] sm:$0xff]
  %v2334 = vld [vmem:[%s2312 + $0xf8] sm:$0xff]
  %v2335 = vld [vmem:[%s2312 + $0x108] sm:$0xff]
  %v2336 = vld [vmem:[%s2312 + $0x110] sm:$0xff]
  %v2337 = vld [vmem:[%s2312 + $0x120] sm:$0xff]
  %v2338 = vld [vmem:[%s2312 + $0x128] sm:$0xff]
  %v2339 = vld [vmem:[%s2312 + $0x138] sm:$0xff]
  %v2340 = vld [vmem:[%s2312 + $0x140] sm:$0xff]
  %v2341 = vld [vmem:[%s2312 + $0x150] sm:$0xff]
  %v2342 = vld [vmem:[%s2312 + $0x158] sm:$0xff]
  %v2343 = vld [vmem:[%s2312 + $0x168] sm:$0xff]
  %v2344 = vld [vmem:[%s2312 + $0x170] sm:$0xff]
  %v2345 = vld [vmem:[%s2312 + $0x1b0] sm:$0xff]
  %v2346 = vld [vmem:[%s2312 + $0x1b8] sm:$0xff]
  %v2347 = vld [vmem:[%s2312 + $0x1c8] sm:$0xff]
  %v2348 = vld [vmem:[%s2312 + $0x1d0] sm:$0xff]
  %v2349 = vld [vmem:[%s2312 + $0x1e0] sm:$0xff]
  %v2350 = vld [vmem:[%s2312 + $0x1e8] sm:$0xff]
  %v2351 = vld [vmem:[%s2312 + $0x1f8] sm:$0xff]
  %v2352 = vld [vmem:[%s2312 + $0x200] sm:$0xff]
  %v2353 = vld [vmem:[%s2312 + $0x210] sm:$0xff]
  %v2354 = vld [vmem:[%s2312 + $0x218] sm:$0xff]
  %v2355 = vld [vmem:[%s2312 + $0x228] sm:$0xff]
  %v2356 = vld [vmem:[%s2312 + $0x230] sm:$0xff]
  %v2357 = vld [vmem:[%s2312 + $0x240] sm:$0xff]
  %v2358 = vld [vmem:[%s2312 + $0x248] sm:$0xff]
  %v2359 = vld [vmem:[%s2312 + $0x258] sm:$0xff]
  %v2360 = vld [vmem:[%s2312 + $0x260] sm:$0xff]
  %v2361 = vld [vmem:[%s2312 + $0x270] sm:$0xff]
  %v2362 = vld [vmem:[%s2312 + $0x278] sm:$0xff]
  %v2363 = vld [vmem:[%s2312 + $0x288] sm:$0xff]
  %v2364 = vld [vmem:[%s2312 + $0x290] sm:$0xff]
  %v2365 = vld [vmem:[%s2312 + $0x2a0] sm:$0xff]
  %v2366 = vld [vmem:[%s2312 + $0x2a8] sm:$0xff]
  %v2367 = vld [vmem:[%s2312 + $0x2b8] sm:$0xff]
  %v2368 = vld [vmem:[%s2312 + $0x2c0] sm:$0xff]
  %v2369 = vld [vmem:[%s2312 + $0x2d0] sm:$0xff]
  %v2370 = vld [vmem:[%s2312 + $0x2d8] sm:$0xff]
  %v2371 = vld [vmem:[%s2312 + $0x2e8] sm:$0xff]
  %v2372 = vld [vmem:[%s2312 + $0x2f0] sm:$0xff]
  %v2373 = vld [vmem:[%s2312 + $0x300] sm:$0xff]
  %v2374 = vld [vmem:[%s2312 + $0x308] sm:$0xff]
  %v2375 = vld [vmem:[%s2312 + $0x318] sm:$0xff]
  %v2376 = vld [vmem:[%s2312 + $0x320] sm:$0xff]
  %2441 = vrot.lane.b32.xlu0 %v2313, 24
  %v2442 = vpop.permute.xlu0 %2441
  %2443 = vrot.lane.b32.xlu0 %v2314, 24
  %v2444 = vpop.permute.xlu0 %2443
  %2445 = vrot.lane.b32.xlu0 %v2315, 24
  %v2446 = vpop.permute.xlu0 %2445
  %2447 = vrot.lane.b32.xlu0 %v2316, 24
  %v2448 = vpop.permute.xlu0 %2447
  %2449 = vrot.lane.b32.xlu0 %v2317, 24
  %v2450 = vpop.permute.xlu0 %2449
  %2451 = vrot.lane.b32.xlu0 %v2318, 24
  %v2452 = vpop.permute.xlu0 %2451
  %2453 = vrot.lane.b32.xlu0 %v2319, 24
  %v2454 = vpop.permute.xlu0 %2453
  %2455 = vrot.lane.b32.xlu0 %v2320, 24
  %v2456 = vpop.permute.xlu0 %2455
  %2457 = vrot.lane.b32.xlu0 %v2321, 24
  %v2458 = vpop.permute.xlu0 %2457
  %2459 = vrot.lane.b32.xlu0 %v2322, 24
  %v2460 = vpop.permute.xlu0 %2459
  %2461 = vrot.lane.b32.xlu0 %v2323, 24
  %v2462 = vpop.permute.xlu0 %2461
  %2463 = vrot.lane.b32.xlu0 %v2324, 24
  %v2464 = vpop.permute.xlu0 %2463
  %2465 = vrot.lane.b32.xlu0 %v2325, 24
  %v2466 = vpop.permute.xlu0 %2465
  %2467 = vrot.lane.b32.xlu0 %v2326, 24
  %v2468 = vpop.permute.xlu0 %2467
  %2469 = vrot.lane.b32.xlu0 %v2327, 24
  %v2470 = vpop.permute.xlu0 %2469
  %2471 = vrot.lane.b32.xlu0 %v2328, 24
  %v2472 = vpop.permute.xlu0 %2471
  %2473 = vrot.lane.b32.xlu0 %v2329, 24
  %v2474 = vpop.permute.xlu0 %2473
  %2475 = vrot.lane.b32.xlu0 %v2330, 24
  %v2476 = vpop.permute.xlu0 %2475
  %2477 = vrot.lane.b32.xlu0 %v2331, 24
  %v2478 = vpop.permute.xlu0 %2477
  %2479 = vrot.lane.b32.xlu0 %v2332, 24
  %v2480 = vpop.permute.xlu0 %2479
  %2481 = vrot.lane.b32.xlu0 %v2333, 24
  %v2482 = vpop.permute.xlu0 %2481
  %2483 = vrot.lane.b32.xlu0 %v2334, 24
  %v2484 = vpop.permute.xlu0 %2483
  %2485 = vrot.lane.b32.xlu0 %v2335, 24
  %v2486 = vpop.permute.xlu0 %2485
  %2487 = vrot.lane.b32.xlu0 %v2336, 24
  %v2488 = vpop.permute.xlu0 %2487
  %2489 = vrot.lane.b32.xlu0 %v2337, 24
  %v2490 = vpop.permute.xlu0 %2489
  %2491 = vrot.lane.b32.xlu0 %v2338, 24
  %v2492 = vpop.permute.xlu0 %2491
  %2493 = vrot.lane.b32.xlu0 %v2339, 24
  %v2494 = vpop.permute.xlu0 %2493
  %2495 = vrot.lane.b32.xlu0 %v2340, 24
  %v2496 = vpop.permute.xlu0 %2495
  %2497 = vrot.lane.b32.xlu0 %v2341, 24
  %v2498 = vpop.permute.xlu0 %2497
  %2499 = vrot.lane.b32.xlu0 %v2342, 24
  %v2500 = vpop.permute.xlu0 %2499
  %2501 = vrot.lane.b32.xlu0 %v2343, 24
  %v2502 = vpop.permute.xlu0 %2501
  %2503 = vrot.lane.b32.xlu0 %v2344, 24
  %v2504 = vpop.permute.xlu0 %2503
  %2505 = vrot.lane.b32.xlu0 %v2345, 24
  %v2506 = vpop.permute.xlu0 %2505
  %2507 = vrot.lane.b32.xlu0 %v2346, 24
  %v2508 = vpop.permute.xlu0 %2507
  %2509 = vrot.lane.b32.xlu0 %v2347, 24
  %v2510 = vpop.permute.xlu0 %2509
  %2511 = vrot.lane.b32.xlu0 %v2348, 24
  %v2512 = vpop.permute.xlu0 %2511
  %2513 = vrot.lane.b32.xlu0 %v2349, 24
  %v2514 = vpop.permute.xlu0 %2513
  %2515 = vrot.lane.b32.xlu0 %v2350, 24
  %v2516 = vpop.permute.xlu0 %2515
  %2517 = vrot.lane.b32.xlu0 %v2351, 24
  %v2518 = vpop.permute.xlu0 %2517
  %2519 = vrot.lane.b32.xlu0 %v2352, 24
  %v2520 = vpop.permute.xlu0 %2519
  %2521 = vrot.lane.b32.xlu0 %v2353, 24
  %v2522 = vpop.permute.xlu0 %2521
  %2523 = vrot.lane.b32.xlu0 %v2354, 24
  %v2524 = vpop.permute.xlu0 %2523
  %2525 = vrot.lane.b32.xlu0 %v2355, 24
  %v2526 = vpop.permute.xlu0 %2525
  %2527 = vrot.lane.b32.xlu0 %v2356, 24
  %v2528 = vpop.permute.xlu0 %2527
  %2529 = vrot.lane.b32.xlu0 %v2357, 24
  %v2530 = vpop.permute.xlu0 %2529
  %2531 = vrot.lane.b32.xlu0 %v2358, 24
  %v2532 = vpop.permute.xlu0 %2531
  %2533 = vrot.lane.b32.xlu0 %v2359, 24
  %v2534 = vpop.permute.xlu0 %2533
  %2535 = vrot.lane.b32.xlu0 %v2360, 24
  %v2536 = vpop.permute.xlu0 %2535
  %2537 = vrot.lane.b32.xlu0 %v2361, 24
  %v2538 = vpop.permute.xlu0 %2537
  %2539 = vrot.lane.b32.xlu0 %v2362, 24
  %v2540 = vpop.permute.xlu0 %2539
  %2541 = vrot.lane.b32.xlu0 %v2363, 24
  %v2542 = vpop.permute.xlu0 %2541
  %2543 = vrot.lane.b32.xlu0 %v2364, 24
  %v2544 = vpop.permute.xlu0 %2543
  %2545 = vrot.lane.b32.xlu0 %v2365, 24
  %v2546 = vpop.permute.xlu0 %2545
  %2547 = vrot.lane.b32.xlu0 %v2366, 24
  %v2548 = vpop.permute.xlu0 %2547
  %2549 = vrot.lane.b32.xlu0 %v2367, 24
  %v2550 = vpop.permute.xlu0 %2549
  %2551 = vrot.lane.b32.xlu0 %v2368, 24
  %v2552 = vpop.permute.xlu0 %2551
  %2553 = vrot.lane.b32.xlu0 %v2369, 24
  %v2554 = vpop.permute.xlu0 %2553
  %2555 = vrot.lane.b32.xlu0 %v2370, 24
  %v2556 = vpop.permute.xlu0 %2555
  %2557 = vrot.lane.b32.xlu0 %v2371, 24
  %v2558 = vpop.permute.xlu0 %2557
  %2559 = vrot.lane.b32.xlu0 %v2372, 24
  %v2560 = vpop.permute.xlu0 %2559
  %2561 = vrot.lane.b32.xlu0 %v2373, 24
  %v2562 = vpop.permute.xlu0 %2561
  %2563 = vrot.lane.b32.xlu0 %v2374, 24
  %v2564 = vpop.permute.xlu0 %2563
  %2565 = vrot.lane.b32.xlu0 %v2375, 24
  %v2566 = vpop.permute.xlu0 %2565
  %2567 = vrot.lane.b32.xlu0 %v2376, 24
  %v2568 = vpop.permute.xlu0 %2567
  %vm2633 = vcmask 228544
  %2634 = vst.msk [vmem:[#allocation4] sm:$0xff] %vm2633, %v2442
  %2635 = vst.msk [vmem:[#allocation4 + $0x8] sm:$0xff] %vm2633, %v2444
  %2636 = vst.msk [vmem:[#allocation4 + $0x10] sm:$0xff] %vm2633, %v2446
  %2637 = vst.msk [vmem:[#allocation4 + $0x18] sm:$0xff] %vm2633, %v2448
  %2638 = vst.msk [vmem:[#allocation4 + $0x20] sm:$0xff] %vm2633, %v2450
  %2639 = vst.msk [vmem:[#allocation4 + $0x28] sm:$0xff] %vm2633, %v2452
  %2640 = vst.msk [vmem:[#allocation4 + $0x30] sm:$0xff] %vm2633, %v2454
  %2641 = vst.msk [vmem:[#allocation4 + $0x38] sm:$0xff] %vm2633, %v2456
  %2642 = vst.msk [vmem:[#allocation4 + $0x40] sm:$0xff] %vm2633, %v2458
  %2643 = vst.msk [vmem:[#allocation4 + $0x48] sm:$0xff] %vm2633, %v2460
  %2644 = vst.msk [vmem:[#allocation4 + $0x50] sm:$0xff] %vm2633, %v2462
  %2645 = vst.msk [vmem:[#allocation4 + $0x58] sm:$0xff] %vm2633, %v2464
  %2646 = vst.msk [vmem:[#allocation4 + $0x60] sm:$0xff] %vm2633, %v2466
  %2647 = vst.msk [vmem:[#allocation4 + $0x68] sm:$0xff] %vm2633, %v2468
  %2648 = vst.msk [vmem:[#allocation4 + $0x70] sm:$0xff] %vm2633, %v2470
  %2649 = vst.msk [vmem:[#allocation4 + $0x78] sm:$0xff] %vm2633, %v2472
  %2650 = vst.msk [vmem:[#allocation4 + $0x80] sm:$0xff] %vm2633, %v2474
  %2651 = vst.msk [vmem:[#allocation4 + $0x88] sm:$0xff] %vm2633, %v2476
  %2652 = vst.msk [vmem:[#allocation4 + $0x90] sm:$0xff] %vm2633, %v2478
  %2653 = vst.msk [vmem:[#allocation4 + $0x98] sm:$0xff] %vm2633, %v2480
  %2654 = vst.msk [vmem:[#allocation4 + $0xa0] sm:$0xff] %vm2633, %v2482
  %2655 = vst.msk [vmem:[#allocation4 + $0xa8] sm:$0xff] %vm2633, %v2484
  %2656 = vst.msk [vmem:[#allocation4 + $0xb0] sm:$0xff] %vm2633, %v2486
  %2657 = vst.msk [vmem:[#allocation4 + $0xb8] sm:$0xff] %vm2633, %v2488
  %2658 = vst.msk [vmem:[#allocation4 + $0xc0] sm:$0xff] %vm2633, %v2490
  %2659 = vst.msk [vmem:[#allocation4 + $0xc8] sm:$0xff] %vm2633, %v2492
  %2660 = vst.msk [vmem:[#allocation4 + $0xd0] sm:$0xff] %vm2633, %v2494
  %2661 = vst.msk [vmem:[#allocation4 + $0xd8] sm:$0xff] %vm2633, %v2496
  %2662 = vst.msk [vmem:[#allocation4 + $0xe0] sm:$0xff] %vm2633, %v2498
  %2663 = vst.msk [vmem:[#allocation4 + $0xe8] sm:$0xff] %vm2633, %v2500
  %2664 = vst.msk [vmem:[#allocation4 + $0xf0] sm:$0xff] %vm2633, %v2502
  %2665 = vst.msk [vmem:[#allocation4 + $0xf8] sm:$0xff] %vm2633, %v2504
  %2666 = vst.msk [vmem:[#allocation4 + $0x100] sm:$0xff] %vm2633, %v2506
  %2667 = vst.msk [vmem:[#allocation4 + $0x108] sm:$0xff] %vm2633, %v2508
  %2668 = vst.msk [vmem:[#allocation4 + $0x110] sm:$0xff] %vm2633, %v2510
  %2669 = vst.msk [vmem:[#allocation4 + $0x118] sm:$0xff] %vm2633, %v2512
  %2670 = vst.msk [vmem:[#allocation4 + $0x120] sm:$0xff] %vm2633, %v2514
  %2671 = vst.msk [vmem:[#allocation4 + $0x128] sm:$0xff] %vm2633, %v2516
  %2672 = vst.msk [vmem:[#allocation4 + $0x130] sm:$0xff] %vm2633, %v2518
  %2673 = vst.msk [vmem:[#allocation4 + $0x138] sm:$0xff] %vm2633, %v2520
  %2674 = vst.msk [vmem:[#allocation4 + $0x140] sm:$0xff] %vm2633, %v2522
  %2675 = vst.msk [vmem:[#allocation4 + $0x148] sm:$0xff] %vm2633, %v2524
  %2676 = vst.msk [vmem:[#allocation4 + $0x150] sm:$0xff] %vm2633, %v2526
  %2677 = vst.msk [vmem:[#allocation4 + $0x158] sm:$0xff] %vm2633, %v2528
  %2678 = vst.msk [vmem:[#allocation4 + $0x160] sm:$0xff] %vm2633, %v2530
  %2679 = vst.msk [vmem:[#allocation4 + $0x168] sm:$0xff] %vm2633, %v2532
  %2680 = vst.msk [vmem:[#allocation4 + $0x170] sm:$0xff] %vm2633, %v2534
  %2681 = vst.msk [vmem:[#allocation4 + $0x178] sm:$0xff] %vm2633, %v2536
  %2682 = vst.msk [vmem:[#allocation4 + $0x180] sm:$0xff] %vm2633, %v2538
  %2683 = vst.msk [vmem:[#allocation4 + $0x188] sm:$0xff] %vm2633, %v2540
  %2684 = vst.msk [vmem:[#allocation4 + $0x190] sm:$0xff] %vm2633, %v2542
  %2685 = vst.msk [vmem:[#allocation4 + $0x198] sm:$0xff] %vm2633, %v2544
  %2686 = vst.msk [vmem:[#allocation4 + $0x1a0] sm:$0xff] %vm2633, %v2546
  %2687 = vst.msk [vmem:[#allocation4 + $0x1a8] sm:$0xff] %vm2633, %v2548
  %2688 = vst.msk [vmem:[#allocation4 + $0x1b0] sm:$0xff] %vm2633, %v2550
  %2689 = vst.msk [vmem:[#allocation4 + $0x1b8] sm:$0xff] %vm2633, %v2552
  %2690 = vst.msk [vmem:[#allocation4 + $0x1c0] sm:$0xff] %vm2633, %v2554
  %2691 = vst.msk [vmem:[#allocation4 + $0x1c8] sm:$0xff] %vm2633, %v2556
  %2692 = vst.msk [vmem:[#allocation4 + $0x1d0] sm:$0xff] %vm2633, %v2558
  %2693 = vst.msk [vmem:[#allocation4 + $0x1d8] sm:$0xff] %vm2633, %v2560
  %2694 = vst.msk [vmem:[#allocation4 + $0x1e0] sm:$0xff] %vm2633, %v2562
  %2695 = vst.msk [vmem:[#allocation4 + $0x1e8] sm:$0xff] %vm2633, %v2564
  %2696 = vst.msk [vmem:[#allocation4 + $0x1f0] sm:$0xff] %vm2633, %v2566
  %2697 = vst.msk [vmem:[#allocation4 + $0x1f8] sm:$0xff] %vm2633, %v2568
  %v2698 = vld [vmem:[%s2312 + $0x1] sm:$0xff]
  %v2699 = vld [vmem:[%s2312 + $0x9] sm:$0xff]
  %v2700 = vld [vmem:[%s2312 + $0x19] sm:$0xff]
  %v2701 = vld [vmem:[%s2312 + $0x21] sm:$0xff]
  %v2702 = vld [vmem:[%s2312 + $0x31] sm:$0xff]
  %v2703 = vld [vmem:[%s2312 + $0x39] sm:$0xff]
  %v2704 = vld [vmem:[%s2312 + $0x49] sm:$0xff]
  %v2705 = vld [vmem:[%s2312 + $0x51] sm:$0xff]
  %v2706 = vld [vmem:[%s2312 + $0x61] sm:$0xff]
  %v2707 = vld [vmem:[%s2312 + $0x69] sm:$0xff]
  %v2708 = vld [vmem:[%s2312 + $0x79] sm:$0xff]
  %v2709 = vld [vmem:[%s2312 + $0x81] sm:$0xff]
  %v2710 = vld [vmem:[%s2312 + $0x91] sm:$0xff]
  %v2711 = vld [vmem:[%s2312 + $0x99] sm:$0xff]
  %v2712 = vld [vmem:[%s2312 + $0xa9] sm:$0xff]
  %v2713 = vld [vmem:[%s2312 + $0xb1] sm:$0xff]
  %v2714 = vld [vmem:[%s2312 + $0xc1] sm:$0xff]
  %v2715 = vld [vmem:[%s2312 + $0xc9] sm:$0xff]
  %v2716 = vld [vmem:[%s2312 + $0xd9] sm:$0xff]
  %v2717 = vld [vmem:[%s2312 + $0xe1] sm:$0xff]
  %v2718 = vld [vmem:[%s2312 + $0xf1] sm:$0xff]
  %v2719 = vld [vmem:[%s2312 + $0xf9] sm:$0xff]
  %v2720 = vld [vmem:[%s2312 + $0x109] sm:$0xff]
  %v2721 = vld [vmem:[%s2312 + $0x111] sm:$0xff]
  %v2722 = vld [vmem:[%s2312 + $0x121] sm:$0xff]
  %v2723 = vld [vmem:[%s2312 + $0x129] sm:$0xff]
  %v2724 = vld [vmem:[%s2312 + $0x139] sm:$0xff]
  %v2725 = vld [vmem:[%s2312 + $0x141] sm:$0xff]
  %v2726 = vld [vmem:[%s2312 + $0x151] sm:$0xff]
  %v2727 = vld [vmem:[%s2312 + $0x159] sm:$0xff]
  %v2728 = vld [vmem:[%s2312 + $0x169] sm:$0xff]
  %v2729 = vld [vmem:[%s2312 + $0x171] sm:$0xff]
  %v2730 = vld [vmem:[%s2312 + $0x1b1] sm:$0xff]
  %v2731 = vld [vmem:[%s2312 + $0x1b9] sm:$0xff]
  %v2732 = vld [vmem:[%s2312 + $0x1c9] sm:$0xff]
  %v2733 = vld [vmem:[%s2312 + $0x1d1] sm:$0xff]
  %v2734 = vld [vmem:[%s2312 + $0x1e1] sm:$0xff]
  %v2735 = vld [vmem:[%s2312 + $0x1e9] sm:$0xff]
  %v2736 = vld [vmem:[%s2312 + $0x1f9] sm:$0xff]
  %v2737 = vld [vmem:[%s2312 + $0x201] sm:$0xff]
  %v2738 = vld [vmem:[%s2312 + $0x211] sm:$0xff]
  %v2739 = vld [vmem:[%s2312 + $0x219] sm:$0xff]
  %v2740 = vld [vmem:[%s2312 + $0x229] sm:$0xff]
  %v2741 = vld [vmem:[%s2312 + $0x231] sm:$0xff]
  %v2742 = vld [vmem:[%s2312 + $0x241] sm:$0xff]
  %v2743 = vld [vmem:[%s2312 + $0x249] sm:$0xff]
  %v2744 = vld [vmem:[%s2312 + $0x259] sm:$0xff]
  %v2745 = vld [vmem:[%s2312 + $0x261] sm:$0xff]
  %v2746 = vld [vmem:[%s2312 + $0x271] sm:$0xff]
  %v2747 = vld [vmem:[%s2312 + $0x279] sm:$0xff]
  %v2748 = vld [vmem:[%s2312 + $0x289] sm:$0xff]
  %v2749 = vld [vmem:[%s2312 + $0x291] sm:$0xff]
  %v2750 = vld [vmem:[%s2312 + $0x2a1] sm:$0xff]
  %v2751 = vld [vmem:[%s2312 + $0x2a9] sm:$0xff]
  %v2752 = vld [vmem:[%s2312 + $0x2b9] sm:$0xff]
  %v2753 = vld [vmem:[%s2312 + $0x2c1] sm:$0xff]
  %v2754 = vld [vmem:[%s2312 + $0x2d1] sm:$0xff]
  %v2755 = vld [vmem:[%s2312 + $0x2d9] sm:$0xff]
  %v2756 = vld [vmem:[%s2312 + $0x2e9] sm:$0xff]
  %v2757 = vld [vmem:[%s2312 + $0x2f1] sm:$0xff]
  %v2758 = vld [vmem:[%s2312 + $0x301] sm:$0xff]
  %v2759 = vld [vmem:[%s2312 + $0x309] sm:$0xff]
  %v2760 = vld [vmem:[%s2312 + $0x319] sm:$0xff]
  %v2761 = vld [vmem:[%s2312 + $0x321] sm:$0xff]
  %2826 = vrot.lane.b32.xlu0 %v2698, 28
  %v2827 = vpop.permute.xlu0 %2826
  %2828 = vrot.lane.b32.xlu0 %v2699, 28
  %v2829 = vpop.permute.xlu0 %2828
  %2830 = vrot.lane.b32.xlu0 %v2700, 28
  %v2831 = vpop.permute.xlu0 %2830
  %2832 = vrot.lane.b32.xlu0 %v2701, 28
  %v2833 = vpop.permute.xlu0 %2832
  %2834 = vrot.lane.b32.xlu0 %v2702, 28
  %v2835 = vpop.permute.xlu0 %2834
  %2836 = vrot.lane.b32.xlu0 %v2703, 28
  %v2837 = vpop.permute.xlu0 %2836
  %2838 = vrot.lane.b32.xlu0 %v2704, 28
  %v2839 = vpop.permute.xlu0 %2838
  %2840 = vrot.lane.b32.xlu0 %v2705, 28
  %v2841 = vpop.permute.xlu0 %2840
  %2842 = vrot.lane.b32.xlu0 %v2706, 28
  %v2843 = vpop.permute.xlu0 %2842
  %2844 = vrot.lane.b32.xlu0 %v2707, 28
  %v2845 = vpop.permute.xlu0 %2844
  %2846 = vrot.lane.b32.xlu0 %v2708, 28
  %v2847 = vpop.permute.xlu0 %2846
  %2848 = vrot.lane.b32.xlu0 %v2709, 28
  %v2849 = vpop.permute.xlu0 %2848
  %2850 = vrot.lane.b32.xlu0 %v2710, 28
  %v2851 = vpop.permute.xlu0 %2850
  %2852 = vrot.lane.b32.xlu0 %v2711, 28
  %v2853 = vpop.permute.xlu0 %2852
  %2854 = vrot.lane.b32.xlu0 %v2712, 28
  %v2855 = vpop.permute.xlu0 %2854
  %2856 = vrot.lane.b32.xlu0 %v2713, 28
  %v2857 = vpop.permute.xlu0 %2856
  %2858 = vrot.lane.b32.xlu0 %v2714, 28
  %v2859 = vpop.permute.xlu0 %2858
  %2860 = vrot.lane.b32.xlu0 %v2715, 28
  %v2861 = vpop.permute.xlu0 %2860
  %2862 = vrot.lane.b32.xlu0 %v2716, 28
  %v2863 = vpop.permute.xlu0 %2862
  %2864 = vrot.lane.b32.xlu0 %v2717, 28
  %v2865 = vpop.permute.xlu0 %2864
  %2866 = vrot.lane.b32.xlu0 %v2718, 28
  %v2867 = vpop.permute.xlu0 %2866
  %2868 = vrot.lane.b32.xlu0 %v2719, 28
  %v2869 = vpop.permute.xlu0 %2868
  %2870 = vrot.lane.b32.xlu0 %v2720, 28
  %v2871 = vpop.permute.xlu0 %2870
  %2872 = vrot.lane.b32.xlu0 %v2721, 28
  %v2873 = vpop.permute.xlu0 %2872
  %2874 = vrot.lane.b32.xlu0 %v2722, 28
  %v2875 = vpop.permute.xlu0 %2874
  %2876 = vrot.lane.b32.xlu0 %v2723, 28
  %v2877 = vpop.permute.xlu0 %2876
  %2878 = vrot.lane.b32.xlu0 %v2724, 28
  %v2879 = vpop.permute.xlu0 %2878
  %2880 = vrot.lane.b32.xlu0 %v2725, 28
  %v2881 = vpop.permute.xlu0 %2880
  %2882 = vrot.lane.b32.xlu0 %v2726, 28
  %v2883 = vpop.permute.xlu0 %2882
  %2884 = vrot.lane.b32.xlu0 %v2727, 28
  %v2885 = vpop.permute.xlu0 %2884
  %2886 = vrot.lane.b32.xlu0 %v2728, 28
  %v2887 = vpop.permute.xlu0 %2886
  %2888 = vrot.lane.b32.xlu0 %v2729, 28
  %v2889 = vpop.permute.xlu0 %2888
  %2890 = vrot.lane.b32.xlu0 %v2730, 28
  %v2891 = vpop.permute.xlu0 %2890
  %2892 = vrot.lane.b32.xlu0 %v2731, 28
  %v2893 = vpop.permute.xlu0 %2892
  %2894 = vrot.lane.b32.xlu0 %v2732, 28
  %v2895 = vpop.permute.xlu0 %2894
  %2896 = vrot.lane.b32.xlu0 %v2733, 28
  %v2897 = vpop.permute.xlu0 %2896
  %2898 = vrot.lane.b32.xlu0 %v2734, 28
  %v2899 = vpop.permute.xlu0 %2898
  %2900 = vrot.lane.b32.xlu0 %v2735, 28
  %v2901 = vpop.permute.xlu0 %2900
  %2902 = vrot.lane.b32.xlu0 %v2736, 28
  %v2903 = vpop.permute.xlu0 %2902
  %2904 = vrot.lane.b32.xlu0 %v2737, 28
  %v2905 = vpop.permute.xlu0 %2904
  %2906 = vrot.lane.b32.xlu0 %v2738, 28
  %v2907 = vpop.permute.xlu0 %2906
  %2908 = vrot.lane.b32.xlu0 %v2739, 28
  %v2909 = vpop.permute.xlu0 %2908
  %2910 = vrot.lane.b32.xlu0 %v2740, 28
  %v2911 = vpop.permute.xlu0 %2910
  %2912 = vrot.lane.b32.xlu0 %v2741, 28
  %v2913 = vpop.permute.xlu0 %2912
  %2914 = vrot.lane.b32.xlu0 %v2742, 28
  %v2915 = vpop.permute.xlu0 %2914
  %2916 = vrot.lane.b32.xlu0 %v2743, 28
  %v2917 = vpop.permute.xlu0 %2916
  %2918 = vrot.lane.b32.xlu0 %v2744, 28
  %v2919 = vpop.permute.xlu0 %2918
  %2920 = vrot.lane.b32.xlu0 %v2745, 28
  %v2921 = vpop.permute.xlu0 %2920
  %2922 = vrot.lane.b32.xlu0 %v2746, 28
  %v2923 = vpop.permute.xlu0 %2922
  %2924 = vrot.lane.b32.xlu0 %v2747, 28
  %v2925 = vpop.permute.xlu0 %2924
  %2926 = vrot.lane.b32.xlu0 %v2748, 28
  %v2927 = vpop.permute.xlu0 %2926
  %2928 = vrot.lane.b32.xlu0 %v2749, 28
  %v2929 = vpop.permute.xlu0 %2928
  %2930 = vrot.lane.b32.xlu0 %v2750, 28
  %v2931 = vpop.permute.xlu0 %2930
  %2932 = vrot.lane.b32.xlu0 %v2751, 28
  %v2933 = vpop.permute.xlu0 %2932
  %2934 = vrot.lane.b32.xlu0 %v2752, 28
  %v2935 = vpop.permute.xlu0 %2934
  %2936 = vrot.lane.b32.xlu0 %v2753, 28
  %v2937 = vpop.permute.xlu0 %2936
  %2938 = vrot.lane.b32.xlu0 %v2754, 28
  %v2939 = vpop.permute.xlu0 %2938
  %2940 = vrot.lane.b32.xlu0 %v2755, 28
  %v2941 = vpop.permute.xlu0 %2940
  %2942 = vrot.lane.b32.xlu0 %v2756, 28
  %v2943 = vpop.permute.xlu0 %2942
  %2944 = vrot.lane.b32.xlu0 %v2757, 28
  %v2945 = vpop.permute.xlu0 %2944
  %2946 = vrot.lane.b32.xlu0 %v2758, 28
  %v2947 = vpop.permute.xlu0 %2946
  %2948 = vrot.lane.b32.xlu0 %v2759, 28
  %v2949 = vpop.permute.xlu0 %2948
  %2950 = vrot.lane.b32.xlu0 %v2760, 28
  %v2951 = vpop.permute.xlu0 %2950
  %2952 = vrot.lane.b32.xlu0 %v2761, 28
  %v2953 = vpop.permute.xlu0 %2952
  %vm3018 = vcmask 261344
  %3019 = vst.msk [vmem:[#allocation4] sm:$0xff] %vm3018, %v2827
  %3020 = vst.msk [vmem:[#allocation4 + $0x8] sm:$0xff] %vm3018, %v2829
  %3021 = vst.msk [vmem:[#allocation4 + $0x10] sm:$0xff] %vm3018, %v2831
  %3022 = vst.msk [vmem:[#allocation4 + $0x18] sm:$0xff] %vm3018, %v2833
  %3023 = vst.msk [vmem:[#allocation4 + $0x20] sm:$0xff] %vm3018, %v2835
  %3024 = vst.msk [vmem:[#allocation4 + $0x28] sm:$0xff] %vm3018, %v2837
  %3025 = vst.msk [vmem:[#allocation4 + $0x30] sm:$0xff] %vm3018, %v2839
  %3026 = vst.msk [vmem:[#allocation4 + $0x38] sm:$0xff] %vm3018, %v2841
  %3027 = vst.msk [vmem:[#allocation4 + $0x40] sm:$0xff] %vm3018, %v2843
  %3028 = vst.msk [vmem:[#allocation4 + $0x48] sm:$0xff] %vm3018, %v2845
  %3029 = vst.msk [vmem:[#allocation4 + $0x50] sm:$0xff] %vm3018, %v2847
  %3030 = vst.msk [vmem:[#allocation4 + $0x58] sm:$0xff] %vm3018, %v2849
  %3031 = vst.msk [vmem:[#allocation4 + $0x60] sm:$0xff] %vm3018, %v2851
  %3032 = vst.msk [vmem:[#allocation4 + $0x68] sm:$0xff] %vm3018, %v2853
  %3033 = vst.msk [vmem:[#allocation4 + $0x70] sm:$0xff] %vm3018, %v2855
  %3034 = vst.msk [vmem:[#allocation4 + $0x78] sm:$0xff] %vm3018, %v2857
  %3035 = vst.msk [vmem:[#allocation4 + $0x80] sm:$0xff] %vm3018, %v2859
  %3036 = vst.msk [vmem:[#allocation4 + $0x88] sm:$0xff] %vm3018, %v2861
  %3037 = vst.msk [vmem:[#allocation4 + $0x90] sm:$0xff] %vm3018, %v2863
  %3038 = vst.msk [vmem:[#allocation4 + $0x98] sm:$0xff] %vm3018, %v2865
  %3039 = vst.msk [vmem:[#allocation4 + $0xa0] sm:$0xff] %vm3018, %v2867
  %3040 = vst.msk [vmem:[#allocation4 + $0xa8] sm:$0xff] %vm3018, %v2869
  %3041 = vst.msk [vmem:[#allocation4 + $0xb0] sm:$0xff] %vm3018, %v2871
  %3042 = vst.msk [vmem:[#allocation4 + $0xb8] sm:$0xff] %vm3018, %v2873
  %3043 = vst.msk [vmem:[#allocation4 + $0xc0] sm:$0xff] %vm3018, %v2875
  %3044 = vst.msk [vmem:[#allocation4 + $0xc8] sm:$0xff] %vm3018, %v2877
  %3045 = vst.msk [vmem:[#allocation4 + $0xd0] sm:$0xff] %vm3018, %v2879
  %3046 = vst.msk [vmem:[#allocation4 + $0xd8] sm:$0xff] %vm3018, %v2881
  %3047 = vst.msk [vmem:[#allocation4 + $0xe0] sm:$0xff] %vm3018, %v2883
  %3048 = vst.msk [vmem:[#allocation4 + $0xe8] sm:$0xff] %vm3018, %v2885
  %3049 = vst.msk [vmem:[#allocation4 + $0xf0] sm:$0xff] %vm3018, %v2887
  %3050 = vst.msk [vmem:[#allocation4 + $0xf8] sm:$0xff] %vm3018, %v2889
  %3051 = vst.msk [vmem:[#allocation4 + $0x100] sm:$0xff] %vm3018, %v2891
  %3052 = vst.msk [vmem:[#allocation4 + $0x108] sm:$0xff] %vm3018, %v2893
  %3053 = vst.msk [vmem:[#allocation4 + $0x110] sm:$0xff] %vm3018, %v2895
  %3054 = vst.msk [vmem:[#allocation4 + $0x118] sm:$0xff] %vm3018, %v2897
  %3055 = vst.msk [vmem:[#allocation4 + $0x120] sm:$0xff] %vm3018, %v2899
  %3056 = vst.msk [vmem:[#allocation4 + $0x128] sm:$0xff] %vm3018, %v2901
  %3057 = vst.msk [vmem:[#allocation4 + $0x130] sm:$0xff] %vm3018, %v2903
  %3058 = vst.msk [vmem:[#allocation4 + $0x138] sm:$0xff] %vm3018, %v2905
  %3059 = vst.msk [vmem:[#allocation4 + $0x140] sm:$0xff] %vm3018, %v2907
  %3060 = vst.msk [vmem:[#allocation4 + $0x148] sm:$0xff] %vm3018, %v2909
  %3061 = vst.msk [vmem:[#allocation4 + $0x150] sm:$0xff] %vm3018, %v2911
  %3062 = vst.msk [vmem:[#allocation4 + $0x158] sm:$0xff] %vm3018, %v2913
  %3063 = vst.msk [vmem:[#allocation4 + $0x160] sm:$0xff] %vm3018, %v2915
  %3064 = vst.msk [vmem:[#allocation4 + $0x168] sm:$0xff] %vm3018, %v2917
  %3065 = vst.msk [vmem:[#allocation4 + $0x170] sm:$0xff] %vm3018, %v2919
  %3066 = vst.msk [vmem:[#allocation4 + $0x178] sm:$0xff] %vm3018, %v2921
  %3067 = vst.msk [vmem:[#allocation4 + $0x180] sm:$0xff] %vm3018, %v2923
  %3068 = vst.msk [vmem:[#allocation4 + $0x188] sm:$0xff] %vm3018, %v2925
  %3069 = vst.msk [vmem:[#allocation4 + $0x190] sm:$0xff] %vm3018, %v2927
  %3070 = vst.msk [vmem:[#allocation4 + $0x198] sm:$0xff] %vm3018, %v2929
  %3071 = vst.msk [vmem:[#allocation4 + $0x1a0] sm:$0xff] %vm3018, %v2931
  %3072 = vst.msk [vmem:[#allocation4 + $0x1a8] sm:$0xff] %vm3018, %v2933
  %3073 = vst.msk [vmem:[#allocation4 + $0x1b0] sm:$0xff] %vm3018, %v2935
  %3074 = vst.msk [vmem:[#allocation4 + $0x1b8] sm:$0xff] %vm3018, %v2937
  %3075 = vst.msk [vmem:[#allocation4 + $0x1c0] sm:$0xff] %vm3018, %v2939
  %3076 = vst.msk [vmem:[#allocation4 + $0x1c8] sm:$0xff] %vm3018, %v2941
  %3077 = vst.msk [vmem:[#allocation4 + $0x1d0] sm:$0xff] %vm3018, %v2943
  %3078 = vst.msk [vmem:[#allocation4 + $0x1d8] sm:$0xff] %vm3018, %v2945
  %3079 = vst.msk [vmem:[#allocation4 + $0x1e0] sm:$0xff] %vm3018, %v2947
  %3080 = vst.msk [vmem:[#allocation4 + $0x1e8] sm:$0xff] %vm3018, %v2949
  %3081 = vst.msk [vmem:[#allocation4 + $0x1f0] sm:$0xff] %vm3018, %v2951
  %3082 = vst.msk [vmem:[#allocation4 + $0x1f8] sm:$0xff] %vm3018, %v2953
  %v3083 = vld [vmem:[%s2312 + $0x2] sm:$0xff]
  %v3084 = vld [vmem:[%s2312 + $0xa] sm:$0xff]
  %v3085 = vld [vmem:[%s2312 + $0x1a] sm:$0xff]
  %v3086 = vld [vmem:[%s2312 + $0x22] sm:$0xff]
  %v3087 = vld [vmem:[%s2312 + $0x32] sm:$0xff]
  %v3088 = vld [vmem:[%s2312 + $0x3a] sm:$0xff]
  %v3089 = vld [vmem:[%s2312 + $0x4a] sm:$0xff]
  %v3090 = vld [vmem:[%s2312 + $0x52] sm:$0xff]
  %v3091 = vld [vmem:[%s2312 + $0x62] sm:$0xff]
  %v3092 = vld [vmem:[%s2312 + $0x6a] sm:$0xff]
  %v3093 = vld [vmem:[%s2312 + $0x7a] sm:$0xff]
  %v3094 = vld [vmem:[%s2312 + $0x82] sm:$0xff]
  %v3095 = vld [vmem:[%s2312 + $0x92] sm:$0xff]
  %v3096 = vld [vmem:[%s2312 + $0x9a] sm:$0xff]
  %v3097 = vld [vmem:[%s2312 + $0xaa] sm:$0xff]
  %v3098 = vld [vmem:[%s2312 + $0xb2] sm:$0xff]
  %v3099 = vld [vmem:[%s2312 + $0xc2] sm:$0xff]
  %v3100 = vld [vmem:[%s2312 + $0xca] sm:$0xff]
  %v3101 = vld [vmem:[%s2312 + $0xda] sm:$0xff]
  %v3102 = vld [vmem:[%s2312 + $0xe2] sm:$0xff]
  %v3103 = vld [vmem:[%s2312 + $0xf2] sm:$0xff]
  %v3104 = vld [vmem:[%s2312 + $0xfa] sm:$0xff]
  %v3105 = vld [vmem:[%s2312 + $0x10a] sm:$0xff]
  %v3106 = vld [vmem:[%s2312 + $0x112] sm:$0xff]
  %v3107 = vld [vmem:[%s2312 + $0x122] sm:$0xff]
  %v3108 = vld [vmem:[%s2312 + $0x12a] sm:$0xff]
  %v3109 = vld [vmem:[%s2312 + $0x13a] sm:$0xff]
  %v3110 = vld [vmem:[%s2312 + $0x142] sm:$0xff]
  %v3111 = vld [vmem:[%s2312 + $0x152] sm:$0xff]
  %v3112 = vld [vmem:[%s2312 + $0x15a] sm:$0xff]
  %v3113 = vld [vmem:[%s2312 + $0x16a] sm:$0xff]
  %v3114 = vld [vmem:[%s2312 + $0x172] sm:$0xff]
  %v3115 = vld [vmem:[%s2312 + $0x1b2] sm:$0xff]
  %v3116 = vld [vmem:[%s2312 + $0x1ba] sm:$0xff]
  %v3117 = vld [vmem:[%s2312 + $0x1ca] sm:$0xff]
  %v3118 = vld [vmem:[%s2312 + $0x1d2] sm:$0xff]
  %v3119 = vld [vmem:[%s2312 + $0x1e2] sm:$0xff]
  %v3120 = vld [vmem:[%s2312 + $0x1ea] sm:$0xff]
  %v3121 = vld [vmem:[%s2312 + $0x1fa] sm:$0xff]
  %v3122 = vld [vmem:[%s2312 + $0x202] sm:$0xff]
  %v3123 = vld [vmem:[%s2312 + $0x212] sm:$0xff]
  %v3124 = vld [vmem:[%s2312 + $0x21a] sm:$0xff]
  %v3125 = vld [vmem:[%s2312 + $0x22a] sm:$0xff]
  %v3126 = vld [vmem:[%s2312 + $0x232] sm:$0xff]
  %v3127 = vld [vmem:[%s2312 + $0x242] sm:$0xff]
  %v3128 = vld [vmem:[%s2312 + $0x24a] sm:$0xff]
  %v3129 = vld [vmem:[%s2312 + $0x25a] sm:$0xff]
  %v3130 = vld [vmem:[%s2312 + $0x262] sm:$0xff]
  %v3131 = vld [vmem:[%s2312 + $0x272] sm:$0xff]
  %v3132 = vld [vmem:[%s2312 + $0x27a] sm:$0xff]
  %v3133 = vld [vmem:[%s2312 + $0x28a] sm:$0xff]
  %v3134 = vld [vmem:[%s2312 + $0x292] sm:$0xff]
  %v3135 = vld [vmem:[%s2312 + $0x2a2] sm:$0xff]
  %v3136 = vld [vmem:[%s2312 + $0x2aa] sm:$0xff]
  %v3137 = vld [vmem:[%s2312 + $0x2ba] sm:$0xff]
  %v3138 = vld [vmem:[%s2312 + $0x2c2] sm:$0xff]
  %v3139 = vld [vmem:[%s2312 + $0x2d2] sm:$0xff]
  %v3140 = vld [vmem:[%s2312 + $0x2da] sm:$0xff]
  %v3141 = vld [vmem:[%s2312 + $0x2ea] sm:$0xff]
  %v3142 = vld [vmem:[%s2312 + $0x2f2] sm:$0xff]
  %v3143 = vld [vmem:[%s2312 + $0x302] sm:$0xff]
  %v3144 = vld [vmem:[%s2312 + $0x30a] sm:$0xff]
  %v3145 = vld [vmem:[%s2312 + $0x31a] sm:$0xff]
  %v3146 = vld [vmem:[%s2312 + $0x322] sm:$0xff]
  %3211 = vrot.lane.b32.xlu0 %v3083, 32
  %v3212 = vpop.permute.xlu0 %3211
  %3213 = vrot.lane.b32.xlu0 %v3084, 32
  %v3214 = vpop.permute.xlu0 %3213
  %3215 = vrot.lane.b32.xlu0 %v3085, 32
  %v3216 = vpop.permute.xlu0 %3215
  %3217 = vrot.lane.b32.xlu0 %v3086, 32
  %v3218 = vpop.permute.xlu0 %3217
  %3219 = vrot.lane.b32.xlu0 %v3087, 32
  %v3220 = vpop.permute.xlu0 %3219
  %3221 = vrot.lane.b32.xlu0 %v3088, 32
  %v3222 = vpop.permute.xlu0 %3221
  %3223 = vrot.lane.b32.xlu0 %v3089, 32
  %v3224 = vpop.permute.xlu0 %3223
  %3225 = vrot.lane.b32.xlu0 %v3090, 32
  %v3226 = vpop.permute.xlu0 %3225
  %3227 = vrot.lane.b32.xlu0 %v3091, 32
  %v3228 = vpop.permute.xlu0 %3227
  %3229 = vrot.lane.b32.xlu0 %v3092, 32
  %v3230 = vpop.permute.xlu0 %3229
  %3231 = vrot.lane.b32.xlu0 %v3093, 32
  %v3232 = vpop.permute.xlu0 %3231
  %3233 = vrot.lane.b32.xlu0 %v3094, 32
  %v3234 = vpop.permute.xlu0 %3233
  %3235 = vrot.lane.b32.xlu0 %v3095, 32
  %v3236 = vpop.permute.xlu0 %3235
  %3237 = vrot.lane.b32.xlu0 %v3096, 32
  %v3238 = vpop.permute.xlu0 %3237
  %3239 = vrot.lane.b32.xlu0 %v3097, 32
  %v3240 = vpop.permute.xlu0 %3239
  %3241 = vrot.lane.b32.xlu0 %v3098, 32
  %v3242 = vpop.permute.xlu0 %3241
  %3243 = vrot.lane.b32.xlu0 %v3099, 32
  %v3244 = vpop.permute.xlu0 %3243
  %3245 = vrot.lane.b32.xlu0 %v3100, 32
  %v3246 = vpop.permute.xlu0 %3245
  %3247 = vrot.lane.b32.xlu0 %v3101, 32
  %v3248 = vpop.permute.xlu0 %3247
  %3249 = vrot.lane.b32.xlu0 %v3102, 32
  %v3250 = vpop.permute.xlu0 %3249
  %3251 = vrot.lane.b32.xlu0 %v3103, 32
  %v3252 = vpop.permute.xlu0 %3251
  %3253 = vrot.lane.b32.xlu0 %v3104, 32
  %v3254 = vpop.permute.xlu0 %3253
  %3255 = vrot.lane.b32.xlu0 %v3105, 32
  %v3256 = vpop.permute.xlu0 %3255
  %3257 = vrot.lane.b32.xlu0 %v3106, 32
  %v3258 = vpop.permute.xlu0 %3257
  %3259 = vrot.lane.b32.xlu0 %v3107, 32
  %v3260 = vpop.permute.xlu0 %3259
  %3261 = vrot.lane.b32.xlu0 %v3108, 32
  %v3262 = vpop.permute.xlu0 %3261
  %3263 = vrot.lane.b32.xlu0 %v3109, 32
  %v3264 = vpop.permute.xlu0 %3263
  %3265 = vrot.lane.b32.xlu0 %v3110, 32
  %v3266 = vpop.permute.xlu0 %3265
  %3267 = vrot.lane.b32.xlu0 %v3111, 32
  %v3268 = vpop.permute.xlu0 %3267
  %3269 = vrot.lane.b32.xlu0 %v3112, 32
  %v3270 = vpop.permute.xlu0 %3269
  %3271 = vrot.lane.b32.xlu0 %v3113, 32
  %v3272 = vpop.permute.xlu0 %3271
  %3273 = vrot.lane.b32.xlu0 %v3114, 32
  %v3274 = vpop.permute.xlu0 %3273
  %3275 = vrot.lane.b32.xlu0 %v3115, 32
  %v3276 = vpop.permute.xlu0 %3275
  %3277 = vrot.lane.b32.xlu0 %v3116, 32
  %v3278 = vpop.permute.xlu0 %3277
  %3279 = vrot.lane.b32.xlu0 %v3117, 32
  %v3280 = vpop.permute.xlu0 %3279
  %3281 = vrot.lane.b32.xlu0 %v3118, 32
  %v3282 = vpop.permute.xlu0 %3281
  %3283 = vrot.lane.b32.xlu0 %v3119, 32
  %v3284 = vpop.permute.xlu0 %3283
  %3285 = vrot.lane.b32.xlu0 %v3120, 32
  %v3286 = vpop.permute.xlu0 %3285
  %3287 = vrot.lane.b32.xlu0 %v3121, 32
  %v3288 = vpop.permute.xlu0 %3287
  %3289 = vrot.lane.b32.xlu0 %v3122, 32
  %v3290 = vpop.permute.xlu0 %3289
  %3291 = vrot.lane.b32.xlu0 %v3123, 32
  %v3292 = vpop.permute.xlu0 %3291
  %3293 = vrot.lane.b32.xlu0 %v3124, 32
  %v3294 = vpop.permute.xlu0 %3293
  %3295 = vrot.lane.b32.xlu0 %v3125, 32
  %v3296 = vpop.permute.xlu0 %3295
  %3297 = vrot.lane.b32.xlu0 %v3126, 32
  %v3298 = vpop.permute.xlu0 %3297
  %3299 = vrot.lane.b32.xlu0 %v3127, 32
  %v3300 = vpop.permute.xlu0 %3299
  %3301 = vrot.lane.b32.xlu0 %v3128, 32
  %v3302 = vpop.permute.xlu0 %3301
  %3303 = vrot.lane.b32.xlu0 %v3129, 32
  %v3304 = vpop.permute.xlu0 %3303
  %3305 = vrot.lane.b32.xlu0 %v3130, 32
  %v3306 = vpop.permute.xlu0 %3305
  %3307 = vrot.lane.b32.xlu0 %v3131, 32
  %v3308 = vpop.permute.xlu0 %3307
  %3309 = vrot.lane.b32.xlu0 %v3132, 32
  %v3310 = vpop.permute.xlu0 %3309
  %3311 = vrot.lane.b32.xlu0 %v3133, 32
  %v3312 = vpop.permute.xlu0 %3311
  %3313 = vrot.lane.b32.xlu0 %v3134, 32
  %v3314 = vpop.permute.xlu0 %3313
  %3315 = vrot.lane.b32.xlu0 %v3135, 32
  %v3316 = vpop.permute.xlu0 %3315
  %3317 = vrot.lane.b32.xlu0 %v3136, 32
  %v3318 = vpop.permute.xlu0 %3317
  %3319 = vrot.lane.b32.xlu0 %v3137, 32
  %v3320 = vpop.permute.xlu0 %3319
  %3321 = vrot.lane.b32.xlu0 %v3138, 32
  %v3322 = vpop.permute.xlu0 %3321
  %3323 = vrot.lane.b32.xlu0 %v3139, 32
  %v3324 = vpop.permute.xlu0 %3323
  %3325 = vrot.lane.b32.xlu0 %v3140, 32
  %v3326 = vpop.permute.xlu0 %3325
  %3327 = vrot.lane.b32.xlu0 %v3141, 32
  %v3328 = vpop.permute.xlu0 %3327
  %3329 = vrot.lane.b32.xlu0 %v3142, 32
  %v3330 = vpop.permute.xlu0 %3329
  %3331 = vrot.lane.b32.xlu0 %v3143, 32
  %v3332 = vpop.permute.xlu0 %3331
  %3333 = vrot.lane.b32.xlu0 %v3144, 32
  %v3334 = vpop.permute.xlu0 %3333
  %3335 = vrot.lane.b32.xlu0 %v3145, 32
  %v3336 = vpop.permute.xlu0 %3335
  %3337 = vrot.lane.b32.xlu0 %v3146, 32
  %v3338 = vpop.permute.xlu0 %3337
  %vm3403 = vcmask 294144
  %3404 = vst.msk [vmem:[#allocation4] sm:$0xff] %vm3403, %v3212
  %3405 = vst.msk [vmem:[#allocation4 + $0x8] sm:$0xff] %vm3403, %v3214
  %3406 = vst.msk [vmem:[#allocation4 + $0x10] sm:$0xff] %vm3403, %v3216
  %3407 = vst.msk [vmem:[#allocation4 + $0x18] sm:$0xff] %vm3403, %v3218
  %3408 = vst.msk [vmem:[#allocation4 + $0x20] sm:$0xff] %vm3403, %v3220
  %3409 = vst.msk [vmem:[#allocation4 + $0x28] sm:$0xff] %vm3403, %v3222
  %3410 = vst.msk [vmem:[#allocation4 + $0x30] sm:$0xff] %vm3403, %v3224
  %3411 = vst.msk [vmem:[#allocation4 + $0x38] sm:$0xff] %vm3403, %v3226
  %3412 = vst.msk [vmem:[#allocation4 + $0x40] sm:$0xff] %vm3403, %v3228
  %3413 = vst.msk [vmem:[#allocation4 + $0x48] sm:$0xff] %vm3403, %v3230
  %3414 = vst.msk [vmem:[#allocation4 + $0x50] sm:$0xff] %vm3403, %v3232
  %3415 = vst.msk [vmem:[#allocation4 + $0x58] sm:$0xff] %vm3403, %v3234
  %3416 = vst.msk [vmem:[#allocation4 + $0x60] sm:$0xff] %vm3403, %v3236
  %3417 = vst.msk [vmem:[#allocation4 + $0x68] sm:$0xff] %vm3403, %v3238
  %3418 = vst.msk [vmem:[#allocation4 + $0x70] sm:$0xff] %vm3403, %v3240
  %3419 = vst.msk [vmem:[#allocation4 + $0x78] sm:$0xff] %vm3403, %v3242
  %3420 = vst.msk [vmem:[#allocation4 + $0x80] sm:$0xff] %vm3403, %v3244
  %3421 = vst.msk [vmem:[#allocation4 + $0x88] sm:$0xff] %vm3403, %v3246
  %3422 = vst.msk [vmem:[#allocation4 + $0x90] sm:$0xff] %vm3403, %v3248
  %3423 = vst.msk [vmem:[#allocation4 + $0x98] sm:$0xff] %vm3403, %v3250
  %3424 = vst.msk [vmem:[#allocation4 + $0xa0] sm:$0xff] %vm3403, %v3252
  %3425 = vst.msk [vmem:[#allocation4 + $0xa8] sm:$0xff] %vm3403, %v3254
  %3426 = vst.msk [vmem:[#allocation4 + $0xb0] sm:$0xff] %vm3403, %v3256
  %3427 = vst.msk [vmem:[#allocation4 + $0xb8] sm:$0xff] %vm3403, %v3258
  %3428 = vst.msk [vmem:[#allocation4 + $0xc0] sm:$0xff] %vm3403, %v3260
  %3429 = vst.msk [vmem:[#allocation4 + $0xc8] sm:$0xff] %vm3403, %v3262
  %3430 = vst.msk [vmem:[#allocation4 + $0xd0] sm:$0xff] %vm3403, %v3264
  %3431 = vst.msk [vmem:[#allocation4 + $0xd8] sm:$0xff] %vm3403, %v3266
  %3432 = vst.msk [vmem:[#allocation4 + $0xe0] sm:$0xff] %vm3403, %v3268
  %3433 = vst.msk [vmem:[#allocation4 + $0xe8] sm:$0xff] %vm3403, %v3270
  %3434 = vst.msk [vmem:[#allocation4 + $0xf0] sm:$0xff] %vm3403, %v3272
  %3435 = vst.msk [vmem:[#allocation4 + $0xf8] sm:$0xff] %vm3403, %v3274
  %3436 = vst.msk [vmem:[#allocation4 + $0x100] sm:$0xff] %vm3403, %v3276
  %3437 = vst.msk [vmem:[#allocation4 + $0x108] sm:$0xff] %vm3403, %v3278
  %3438 = vst.msk [vmem:[#allocation4 + $0x110] sm:$0xff] %vm3403, %v3280
  %3439 = vst.msk [vmem:[#allocation4 + $0x118] sm:$0xff] %vm3403, %v3282
  %3440 = vst.msk [vmem:[#allocation4 + $0x120] sm:$0xff] %vm3403, %v3284
  %3441 = vst.msk [vmem:[#allocation4 + $0x128] sm:$0xff] %vm3403, %v3286
  %3442 = vst.msk [vmem:[#allocation4 + $0x130] sm:$0xff] %vm3403, %v3288
  %3443 = vst.msk [vmem:[#allocation4 + $0x138] sm:$0xff] %vm3403, %v3290
  %3444 = vst.msk [vmem:[#allocation4 + $0x140] sm:$0xff] %vm3403, %v3292
  %3445 = vst.msk [vmem:[#allocation4 + $0x148] sm:$0xff] %vm3403, %v3294
  %3446 = vst.msk [vmem:[#allocation4 + $0x150] sm:$0xff] %vm3403, %v3296
  %3447 = vst.msk [vmem:[#allocation4 + $0x158] sm:$0xff] %vm3403, %v3298
  %3448 = vst.msk [vmem:[#allocation4 + $0x160] sm:$0xff] %vm3403, %v3300
  %3449 = vst.msk [vmem:[#allocation4 + $0x168] sm:$0xff] %vm3403, %v3302
  %3450 = vst.msk [vmem:[#allocation4 + $0x170] sm:$0xff] %vm3403, %v3304
  %3451 = vst.msk [vmem:[#allocation4 + $0x178] sm:$0xff] %vm3403, %v3306
  %3452 = vst.msk [vmem:[#allocation4 + $0x180] sm:$0xff] %vm3403, %v3308
  %3453 = vst.msk [vmem:[#allocation4 + $0x188] sm:$0xff] %vm3403, %v3310
  %3454 = vst.msk [vmem:[#allocation4 + $0x190] sm:$0xff] %vm3403, %v3312
  %3455 = vst.msk [vmem:[#allocation4 + $0x198] sm:$0xff] %vm3403, %v3314
  %3456 = vst.msk [vmem:[#allocation4 + $0x1a0] sm:$0xff] %vm3403, %v3316
  %3457 = vst.msk [vmem:[#allocation4 + $0x1a8] sm:$0xff] %vm3403, %v3318
  %3458 = vst.msk [vmem:[#allocation4 + $0x1b0] sm:$0xff] %vm3403, %v3320
  %3459 = vst.msk [vmem:[#allocation4 + $0x1b8] sm:$0xff] %vm3403, %v3322
  %3460 = vst.msk [vmem:[#allocation4 + $0x1c0] sm:$0xff] %vm3403, %v3324
  %3461 = vst.msk [vmem:[#allocation4 + $0x1c8] sm:$0xff] %vm3403, %v3326
  %3462 = vst.msk [vmem:[#allocation4 + $0x1d0] sm:$0xff] %vm3403, %v3328
  %3463 = vst.msk [vmem:[#allocation4 + $0x1d8] sm:$0xff] %vm3403, %v3330
  %3464 = vst.msk [vmem:[#allocation4 + $0x1e0] sm:$0xff] %vm3403, %v3332
  %3465 = vst.msk [vmem:[#allocation4 + $0x1e8] sm:$0xff] %vm3403, %v3334
  %3466 = vst.msk [vmem:[#allocation4 + $0x1f0] sm:$0xff] %vm3403, %v3336
  %3467 = vst.msk [vmem:[#allocation4 + $0x1f8] sm:$0xff] %vm3403, %v3338
  %v3468 = vld [vmem:[#allocation4] sm:$0xff]
  %v3469 = vld [vmem:[#allocation4 + $0x8] sm:$0xff]
  %v3470 = vld [vmem:[#allocation4 + $0x10] sm:$0xff]
  %v3471 = vld [vmem:[#allocation4 + $0x18] sm:$0xff]
  %v3472 = vld [vmem:[#allocation4 + $0x20] sm:$0xff]
  %v3473 = vld [vmem:[#allocation4 + $0x28] sm:$0xff]
  %v3474 = vld [vmem:[#allocation4 + $0x30] sm:$0xff]
  %v3475 = vld [vmem:[#allocation4 + $0x38] sm:$0xff]
  %v3476 = vld [vmem:[#allocation4 + $0x40] sm:$0xff]
  %v3477 = vld [vmem:[#allocation4 + $0x48] sm:$0xff]
  %v3478 = vld [vmem:[#allocation4 + $0x50] sm:$0xff]
  %v3479 = vld [vmem:[#allocation4 + $0x58] sm:$0xff]
  %v3480 = vld [vmem:[#allocation4 + $0x60] sm:$0xff]
  %v3481 = vld [vmem:[#allocation4 + $0x68] sm:$0xff]
  %v3482 = vld [vmem:[#allocation4 + $0x70] sm:$0xff]
  %v3483 = vld [vmem:[#allocation4 + $0x78] sm:$0xff]
  %v3484 = vld [vmem:[#allocation4 + $0x80] sm:$0xff]
  %v3485 = vld [vmem:[#allocation4 + $0x88] sm:$0xff]
  %v3486 = vld [vmem:[#allocation4 + $0x90] sm:$0xff]
  %v3487 = vld [vmem:[#allocation4 + $0x98] sm:$0xff]
  %v3488 = vld [vmem:[#allocation4 + $0xa0] sm:$0xff]
  %v3489 = vld [vmem:[#allocation4 + $0xa8] sm:$0xff]
  %v3490 = vld [vmem:[#allocation4 + $0xb0] sm:$0xff]
  %v3491 = vld [vmem:[#allocation4 + $0xb8] sm:$0xff]
  %v3492 = vld [vmem:[#allocation4 + $0xc0] sm:$0xff]
  %v3493 = vld [vmem:[#allocation4 + $0xc8] sm:$0xff]
  %v3494 = vld [vmem:[#allocation4 + $0xd0] sm:$0xff]
  %v3495 = vld [vmem:[#allocation4 + $0xd8] sm:$0xff]
  %v3496 = vld [vmem:[#allocation4 + $0xe0] sm:$0xff]
  %v3497 = vld [vmem:[#allocation4 + $0xe8] sm:$0xff]
  %v3498 = vld [vmem:[#allocation4 + $0xf0] sm:$0xff]
  %v3499 = vld [vmem:[#allocation4 + $0xf8] sm:$0xff]
  %v3500 = vld [vmem:[#allocation4 + $0x100] sm:$0xff]
  %v3501 = vld [vmem:[#allocation4 + $0x108] sm:$0xff]
  %v3502 = vld [vmem:[#allocation4 + $0x110] sm:$0xff]
  %v3503 = vld [vmem:[#allocation4 + $0x118] sm:$0xff]
  %v3504 = vld [vmem:[#allocation4 + $0x120] sm:$0xff]
  %v3505 = vld [vmem:[#allocation4 + $0x128] sm:$0xff]
  %v3506 = vld [vmem:[#allocation4 + $0x130] sm:$0xff]
  %v3507 = vld [vmem:[#allocation4 + $0x138] sm:$0xff]
  %v3508 = vld [vmem:[#allocation4 + $0x140] sm:$0xff]
  %v3509 = vld [vmem:[#allocation4 + $0x148] sm:$0xff]
  %v3510 = vld [vmem:[#allocation4 + $0x150] sm:$0xff]
  %v3511 = vld [vmem:[#allocation4 + $0x158] sm:$0xff]
  %v3512 = vld [vmem:[#allocation4 + $0x160] sm:$0xff]
  %v3513 = vld [vmem:[#allocation4 + $0x168] sm:$0xff]
  %v3514 = vld [vmem:[#allocation4 + $0x170] sm:$0xff]
  %v3515 = vld [vmem:[#allocation4 + $0x178] sm:$0xff]
  %v3516 = vld [vmem:[#allocation4 + $0x180] sm:$0xff]
  %v3517 = vld [vmem:[#allocation4 + $0x188] sm:$0xff]
  %v3518 = vld [vmem:[#allocation4 + $0x190] sm:$0xff]
  %v3519 = vld [vmem:[#allocation4 + $0x198] sm:$0xff]
  %v3520 = vld [vmem:[#allocation4 + $0x1a0] sm:$0xff]
  %v3521 = vld [vmem:[#allocation4 + $0x1a8] sm:$0xff]
  %v3522 = vld [vmem:[#allocation4 + $0x1b0] sm:$0xff]
  %v3523 = vld [vmem:[#allocation4 + $0x1b8] sm:$0xff]
  %v3524 = vld [vmem:[#allocation4 + $0x1c0] sm:$0xff]
  %v3525 = vld [vmem:[#allocation4 + $0x1c8] sm:$0xff]
  %v3526 = vld [vmem:[#allocation4 + $0x1d0] sm:$0xff]
  %v3527 = vld [vmem:[#allocation4 + $0x1d8] sm:$0xff]
  %v3528 = vld [vmem:[#allocation4 + $0x1e0] sm:$0xff]
  %v3529 = vld [vmem:[#allocation4 + $0x1e8] sm:$0xff]
  %v3530 = vld [vmem:[#allocation4 + $0x1f0] sm:$0xff]
  %v3531 = vld [vmem:[#allocation4 + $0x1f8] sm:$0xff]
  %v3532 = vld [vmem:[%s1] sm:$0xff]
  %v3533 = vld [vmem:[%s1 + $0x8] sm:$0xff]
  %v3534 = vld [vmem:[%s1 + $0x10] sm:$0xff]
  %v3535 = vld [vmem:[%s1 + $0x18] sm:$0xff]
  %v3536 = vld [vmem:[%s1 + $0x20] sm:$0xf]
  %vm3537 = vcmask 293888
  %v3539 = vsel %vm3537, %v3468, 0
  %v3542 = vsel %vm3537, %v3469, 0
  %v3545 = vsel %vm3537, %v3470, 0
  %v3548 = vsel %vm3537, %v3471, 0
  %v3551 = vsel %vm3537, %v3472, 0
  %v3554 = vsel %vm3537, %v3473, 0
  %v3557 = vsel %vm3537, %v3474, 0
  %v3560 = vsel %vm3537, %v3475, 0
  %v3563 = vsel %vm3537, %v3476, 0
  %v3566 = vsel %vm3537, %v3477, 0
  %v3569 = vsel %vm3537, %v3478, 0
  %v3572 = vsel %vm3537, %v3479, 0
  %v3575 = vsel %vm3537, %v3480, 0
  %v3578 = vsel %vm3537, %v3481, 0
  %v3581 = vsel %vm3537, %v3482, 0
  %v3584 = vsel %vm3537, %v3483, 0
  %v3587 = vsel %vm3537, %v3484, 0
  %v3590 = vsel %vm3537, %v3485, 0
  %v3593 = vsel %vm3537, %v3486, 0
  %v3596 = vsel %vm3537, %v3487, 0
  %v3599 = vsel %vm3537, %v3488, 0
  %v3602 = vsel %vm3537, %v3489, 0
  %v3605 = vsel %vm3537, %v3490, 0
  %v3608 = vsel %vm3537, %v3491, 0
  %v3611 = vsel %vm3537, %v3492, 0
  %v3614 = vsel %vm3537, %v3493, 0
  %v3617 = vsel %vm3537, %v3494, 0
  %v3620 = vsel %vm3537, %v3495, 0
  %v3623 = vsel %vm3537, %v3496, 0
  %v3626 = vsel %vm3537, %v3497, 0
  %v3629 = vsel %vm3537, %v3498, 0
  %v3632 = vsel %vm3537, %v3499, 0
  %v3635 = vsel %vm3537, %v3500, 0
  %v3638 = vsel %vm3537, %v3501, 0
  %v3641 = vsel %vm3537, %v3502, 0
  %v3644 = vsel %vm3537, %v3503, 0
  %v3647 = vsel %vm3537, %v3504, 0
  %v3650 = vsel %vm3537, %v3505, 0
  %v3653 = vsel %vm3537, %v3506, 0
  %v3656 = vsel %vm3537, %v3507, 0
  %v3659 = vsel %vm3537, %v3508, 0
  %v3662 = vsel %vm3537, %v3509, 0
  %v3665 = vsel %vm3537, %v3510, 0
  %v3668 = vsel %vm3537, %v3511, 0
  %v3671 = vsel %vm3537, %v3512, 0
  %v3674 = vsel %vm3537, %v3513, 0
  %v3677 = vsel %vm3537, %v3514, 0
  %v3680 = vsel %vm3537, %v3515, 0
  %v3683 = vsel %vm3537, %v3516, 0
  %v3686 = vsel %vm3537, %v3517, 0
  %v3689 = vsel %vm3537, %v3518, 0
  %v3692 = vsel %vm3537, %v3519, 0
  %v3695 = vsel %vm3537, %v3520, 0
  %v3698 = vsel %vm3537, %v3521, 0
  %v3701 = vsel %vm3537, %v3522, 0
  %v3704 = vsel %vm3537, %v3523, 0
  %v3707 = vsel %vm3537, %v3524, 0
  %v3710 = vsel %vm3537, %v3525, 0
  %v3713 = vsel %vm3537, %v3526, 0
  %v3716 = vsel %vm3537, %v3527, 0
  %v3719 = vsel %vm3537, %v3528, 0
  %v3722 = vsel %vm3537, %v3529, 0
  %v3725 = vsel %vm3537, %v3530, 0
  %v3728 = vsel %vm3537, %v3531, 0
  %vm3730 = vcmask 1043456
  %v3732 = vsel %vm3730, %v3536, 0
  %3734 = vmatpush.msra.mxu0 0.0
  %3735 = vmatpush.msra.mxu0 0.0
  %3736 = vmatpush.msra.mxu0 0.0
  %3737 = vmatpush.msra.mxu0 0.0
  %3738 = vmatpush.msra.mxu0 0.0
  %3739 = vmatpush.msra.mxu0 0.0
  %3740 = vmatpush.msra.mxu0 0.0
  %3741 = vmatpush.msra.mxu0 0.0
  %3742 = vmatpush.msra.mxu0 0.0
  %3743 = vmatpush.msra.mxu0 0.0
  %3744 = vmatpush.msra.mxu0 0.0
  %3745 = vmatpush.msra.mxu0 %v3732
  %3746 = vmatpush.msra.mxu0 %v3535
  %3747 = vmatpush.msra.mxu0 %v3534
  %3748 = vmatpush.msra.mxu0 %v3533
  %3749 = vmatpush.msra.mxu0 %v3532
  %3750 = vmatmul.f32.gmra.mxu0 %v3539
  %v3751 = vpop.f32.mrf.mxu0
  %v3752 = vadd.f32 0.0, %v3751
  %3753 = vmatmul.f32.gmra.mxu0 %v3542
  %v3754 = vpop.f32.mrf.mxu0
  %v3755 = vadd.f32 0.0, %v3754
  %3756 = vmatmul.f32.gmra.mxu0 %v3545
  %v3757 = vpop.f32.mrf.mxu0
  %v3758 = vadd.f32 0.0, %v3757
  %3759 = vmatmul.f32.gmra.mxu0 %v3548
  %v3760 = vpop.f32.mrf.mxu0
  %v3761 = vadd.f32 0.0, %v3760
  %3762 = vmatmul.f32.gmra.mxu0 %v3551
  %v3763 = vpop.f32.mrf.mxu0
  %v3764 = vadd.f32 0.0, %v3763
  %3765 = vmatmul.f32.gmra.mxu0 %v3554
  %v3766 = vpop.f32.mrf.mxu0
  %v3767 = vadd.f32 0.0, %v3766
  %3768 = vmatmul.f32.gmra.mxu0 %v3557
  %v3769 = vpop.f32.mrf.mxu0
  %v3770 = vadd.f32 0.0, %v3769
  %3771 = vmatmul.f32.gmra.mxu0 %v3560
  %v3772 = vpop.f32.mrf.mxu0
  %v3773 = vadd.f32 0.0, %v3772
  %3774 = vmatmul.f32.gmra.mxu0 %v3563
  %v3775 = vpop.f32.mrf.mxu0
  %v3776 = vadd.f32 0.0, %v3775
  %3777 = vmatmul.f32.gmra.mxu0 %v3566
  %v3778 = vpop.f32.mrf.mxu0
  %v3779 = vadd.f32 0.0, %v3778
  %3780 = vmatmul.f32.gmra.mxu0 %v3569
  %v3781 = vpop.f32.mrf.mxu0
  %v3782 = vadd.f32 0.0, %v3781
  %3783 = vmatmul.f32.gmra.mxu0 %v3572
  %v3784 = vpop.f32.mrf.mxu0
  %v3785 = vadd.f32 0.0, %v3784
  %3786 = vmatmul.f32.gmra.mxu0 %v3575
  %v3787 = vpop.f32.mrf.mxu0
  %v3788 = vadd.f32 0.0, %v3787
  %3789 = vmatmul.f32.gmra.mxu0 %v3578
  %v3790 = vpop.f32.mrf.mxu0
  %v3791 = vadd.f32 0.0, %v3790
  %3792 = vmatmul.f32.gmra.mxu0 %v3581
  %v3793 = vpop.f32.mrf.mxu0
  %v3794 = vadd.f32 0.0, %v3793
  %3795 = vmatmul.f32.gmra.mxu0 %v3584
  %v3796 = vpop.f32.mrf.mxu0
  %v3797 = vadd.f32 0.0, %v3796
  %3798 = vmatmul.f32.gmra.mxu0 %v3587
  %v3799 = vpop.f32.mrf.mxu0
  %v3800 = vadd.f32 0.0, %v3799
  %3801 = vmatmul.f32.gmra.mxu0 %v3590
  %v3802 = vpop.f32.mrf.mxu0
  %v3803 = vadd.f32 0.0, %v3802
  %3804 = vmatmul.f32.gmra.mxu0 %v3593
  %v3805 = vpop.f32.mrf.mxu0
  %v3806 = vadd.f32 0.0, %v3805
  %3807 = vmatmul.f32.gmra.mxu0 %v3596
  %v3808 = vpop.f32.mrf.mxu0
  %v3809 = vadd.f32 0.0, %v3808
  %3810 = vmatmul.f32.gmra.mxu0 %v3599
  %v3811 = vpop.f32.mrf.mxu0
  %v3812 = vadd.f32 0.0, %v3811
  %3813 = vmatmul.f32.gmra.mxu0 %v3602
  %v3814 = vpop.f32.mrf.mxu0
  %v3815 = vadd.f32 0.0, %v3814
  %3816 = vmatmul.f32.gmra.mxu0 %v3605
  %v3817 = vpop.f32.mrf.mxu0
  %v3818 = vadd.f32 0.0, %v3817
  %3819 = vmatmul.f32.gmra.mxu0 %v3608
  %v3820 = vpop.f32.mrf.mxu0
  %v3821 = vadd.f32 0.0, %v3820
  %3822 = vmatmul.f32.gmra.mxu0 %v3611
  %v3823 = vpop.f32.mrf.mxu0
  %v3824 = vadd.f32 0.0, %v3823
  %3825 = vmatmul.f32.gmra.mxu0 %v3614
  %v3826 = vpop.f32.mrf.mxu0
  %v3827 = vadd.f32 0.0, %v3826
  %3828 = vmatmul.f32.gmra.mxu0 %v3617
  %v3829 = vpop.f32.mrf.mxu0
  %v3830 = vadd.f32 0.0, %v3829
  %3831 = vmatmul.f32.gmra.mxu0 %v3620
  %v3832 = vpop.f32.mrf.mxu0
  %v3833 = vadd.f32 0.0, %v3832
  %3834 = vmatmul.f32.gmra.mxu0 %v3623
  %v3835 = vpop.f32.mrf.mxu0
  %v3836 = vadd.f32 0.0, %v3835
  %3837 = vmatmul.f32.gmra.mxu0 %v3626
  %v3838 = vpop.f32.mrf.mxu0
  %v3839 = vadd.f32 0.0, %v3838
  %3840 = vmatmul.f32.gmra.mxu0 %v3629
  %v3841 = vpop.f32.mrf.mxu0
  %v3842 = vadd.f32 0.0, %v3841
  %3843 = vmatmul.f32.gmra.mxu0 %v3632
  %v3844 = vpop.f32.mrf.mxu0
  %v3845 = vadd.f32 0.0, %v3844
  %3846 = vmatmul.f32.gmra.mxu0 %v3635
  %v3847 = vpop.f32.mrf.mxu0
  %v3848 = vadd.f32 0.0, %v3847
  %3849 = vmatmul.f32.gmra.mxu0 %v3638
  %v3850 = vpop.f32.mrf.mxu0
  %v3851 = vadd.f32 0.0, %v3850
  %3852 = vmatmul.f32.gmra.mxu0 %v3641
  %v3853 = vpop.f32.mrf.mxu0
  %v3854 = vadd.f32 0.0, %v3853
  %3855 = vmatmul.f32.gmra.mxu0 %v3644
  %v3856 = vpop.f32.mrf.mxu0
  %v3857 = vadd.f32 0.0, %v3856
  %3858 = vmatmul.f32.gmra.mxu0 %v3647
  %v3859 = vpop.f32.mrf.mxu0
  %v3860 = vadd.f32 0.0, %v3859
  %3861 = vmatmul.f32.gmra.mxu0 %v3650
  %v3862 = vpop.f32.mrf.mxu0
  %v3863 = vadd.f32 0.0, %v3862
  %3864 = vmatmul.f32.gmra.mxu0 %v3653
  %v3865 = vpop.f32.mrf.mxu0
  %v3866 = vadd.f32 0.0, %v3865
  %3867 = vmatmul.f32.gmra.mxu0 %v3656
  %v3868 = vpop.f32.mrf.mxu0
  %v3869 = vadd.f32 0.0, %v3868
  %3870 = vmatmul.f32.gmra.mxu0 %v3659
  %v3871 = vpop.f32.mrf.mxu0
  %v3872 = vadd.f32 0.0, %v3871
  %3873 = vmatmul.f32.gmra.mxu0 %v3662
  %v3874 = vpop.f32.mrf.mxu0
  %v3875 = vadd.f32 0.0, %v3874
  %3876 = vmatmul.f32.gmra.mxu0 %v3665
  %v3877 = vpop.f32.mrf.mxu0
  %v3878 = vadd.f32 0.0, %v3877
  %3879 = vmatmul.f32.gmra.mxu0 %v3668
  %v3880 = vpop.f32.mrf.mxu0
  %v3881 = vadd.f32 0.0, %v3880
  %3882 = vmatmul.f32.gmra.mxu0 %v3671
  %v3883 = vpop.f32.mrf.mxu0
  %v3884 = vadd.f32 0.0, %v3883
  %3885 = vmatmul.f32.gmra.mxu0 %v3674
  %v3886 = vpop.f32.mrf.mxu0
  %v3887 = vadd.f32 0.0, %v3886
  %3888 = vmatmul.f32.gmra.mxu0 %v3677
  %v3889 = vpop.f32.mrf.mxu0
  %v3890 = vadd.f32 0.0, %v3889
  %3891 = vmatmul.f32.gmra.mxu0 %v3680
  %v3892 = vpop.f32.mrf.mxu0
  %v3893 = vadd.f32 0.0, %v3892
  %3894 = vmatmul.f32.gmra.mxu0 %v3683
  %v3895 = vpop.f32.mrf.mxu0
  %v3896 = vadd.f32 0.0, %v3895
  %3897 = vmatmul.f32.gmra.mxu0 %v3686
  %v3898 = vpop.f32.mrf.mxu0
  %v3899 = vadd.f32 0.0, %v3898
  %3900 = vmatmul.f32.gmra.mxu0 %v3689
  %v3901 = vpop.f32.mrf.mxu0
  %v3902 = vadd.f32 0.0, %v3901
  %3903 = vmatmul.f32.gmra.mxu0 %v3692
  %v3904 = vpop.f32.mrf.mxu0
  %v3905 = vadd.f32 0.0, %v3904
  %3906 = vmatmul.f32.gmra.mxu0 %v3695
  %v3907 = vpop.f32.mrf.mxu0
  %v3908 = vadd.f32 0.0, %v3907
  %3909 = vmatmul.f32.gmra.mxu0 %v3698
  %v3910 = vpop.f32.mrf.mxu0
  %v3911 = vadd.f32 0.0, %v3910
  %3912 = vmatmul.f32.gmra.mxu0 %v3701
  %v3913 = vpop.f32.mrf.mxu0
  %v3914 = vadd.f32 0.0, %v3913
  %3915 = vmatmul.f32.gmra.mxu0 %v3704
  %v3916 = vpop.f32.mrf.mxu0
  %v3917 = vadd.f32 0.0, %v3916
  %3918 = vmatmul.f32.gmra.mxu0 %v3707
  %v3919 = vpop.f32.mrf.mxu0
  %v3920 = vadd.f32 0.0, %v3919
  %3921 = vmatmul.f32.gmra.mxu0 %v3710
  %v3922 = vpop.f32.mrf.mxu0
  %v3923 = vadd.f32 0.0, %v3922
  %3924 = vmatmul.f32.gmra.mxu0 %v3713
  %v3925 = vpop.f32.mrf.mxu0
  %v3926 = vadd.f32 0.0, %v3925
  %3927 = vmatmul.f32.gmra.mxu0 %v3716
  %v3928 = vpop.f32.mrf.mxu0
  %v3929 = vadd.f32 0.0, %v3928
  %3930 = vmatmul.f32.gmra.mxu0 %v3719
  %v3931 = vpop.f32.mrf.mxu0
  %v3932 = vadd.f32 0.0, %v3931
  %3933 = vmatmul.f32.gmra.mxu0 %v3722
  %v3934 = vpop.f32.mrf.mxu0
  %v3935 = vadd.f32 0.0, %v3934
  %3936 = vmatmul.f32.gmra.mxu0 %v3725
  %v3937 = vpop.f32.mrf.mxu0
  %v3938 = vadd.f32 0.0, %v3937
  %3939 = vmatmul.f32.gmra.mxu0 %v3728
  %v3940 = vpop.f32.mrf.mxu0
  %v3941 = vadd.f32 0.0, %v3940
  %3942 = vdwg.mxu0
  %vm3943 = vcmask 130048
  %v3944 = vsel %vm3943, %v3752, 0.0
  %v3945 = vsel %vm3943, %v3755, 0.0
  %v3946 = vadd.f32 %v3944, %v3945
  %v3947 = vsel %vm3943, %v3758, 0.0
  %v3948 = vadd.f32 %v3946, %v3947
  %v3949 = vsel %vm3943, %v3761, 0.0
  %v3950 = vadd.f32 %v3948, %v3949
  %v3951 = vsel %vm3943, %v3764, 0.0
  %v3952 = vadd.f32 %v3950, %v3951
  %v3953 = vsel %vm3943, %v3767, 0.0
  %v3954 = vadd.f32 %v3952, %v3953
  %v3955 = vsel %vm3943, %v3770, 0.0
  %v3956 = vadd.f32 %v3954, %v3955
  %v3957 = vsel %vm3943, %v3773, 0.0
  %v3958 = vadd.f32 %v3956, %v3957
  %v3959 = vsel %vm3943, %v3776, 0.0
  %v3960 = vadd.f32 %v3958, %v3959
  %v3961 = vsel %vm3943, %v3779, 0.0
  %v3962 = vadd.f32 %v3960, %v3961
  %v3963 = vsel %vm3943, %v3782, 0.0
  %v3964 = vadd.f32 %v3962, %v3963
  %v3965 = vsel %vm3943, %v3785, 0.0
  %v3966 = vadd.f32 %v3964, %v3965
  %v3967 = vsel %vm3943, %v3788, 0.0
  %v3968 = vadd.f32 %v3966, %v3967
  %v3969 = vsel %vm3943, %v3791, 0.0
  %v3970 = vadd.f32 %v3968, %v3969
  %v3971 = vsel %vm3943, %v3794, 0.0
  %v3972 = vadd.f32 %v3970, %v3971
  %v3973 = vsel %vm3943, %v3797, 0.0
  %v3974 = vadd.f32 %v3972, %v3973
  %v3975 = vsel %vm3943, %v3800, 0.0
  %v3976 = vadd.f32 %v3974, %v3975
  %v3977 = vsel %vm3943, %v3803, 0.0
  %v3978 = vadd.f32 %v3976, %v3977
  %v3979 = vsel %vm3943, %v3806, 0.0
  %v3980 = vadd.f32 %v3978, %v3979
  %v3981 = vsel %vm3943, %v3809, 0.0
  %v3982 = vadd.f32 %v3980, %v3981
  %v3983 = vsel %vm3943, %v3812, 0.0
  %v3984 = vadd.f32 %v3982, %v3983
  %v3985 = vsel %vm3943, %v3815, 0.0
  %v3986 = vadd.f32 %v3984, %v3985
  %v3987 = vsel %vm3943, %v3818, 0.0
  %v3988 = vadd.f32 %v3986, %v3987
  %v3989 = vsel %vm3943, %v3821, 0.0
  %v3990 = vadd.f32 %v3988, %v3989
  %v3991 = vsel %vm3943, %v3824, 0.0
  %v3992 = vadd.f32 %v3990, %v3991
  %v3993 = vsel %vm3943, %v3827, 0.0
  %v3994 = vadd.f32 %v3992, %v3993
  %v3995 = vsel %vm3943, %v3830, 0.0
  %v3996 = vadd.f32 %v3994, %v3995
  %v3997 = vsel %vm3943, %v3833, 0.0
  %v3998 = vadd.f32 %v3996, %v3997
  %v3999 = vsel %vm3943, %v3836, 0.0
  %v4000 = vadd.f32 %v3998, %v3999
  %v4001 = vsel %vm3943, %v3839, 0.0
  %v4002 = vadd.f32 %v4000, %v4001
  %v4003 = vsel %vm3943, %v3842, 0.0
  %v4004 = vadd.f32 %v4002, %v4003
  %v4005 = vsel %vm3943, %v3845, 0.0
  %v4006 = vadd.f32 %v4004, %v4005
  %v4007 = vsel %vm3943, %v3848, 0.0
  %v4008 = vadd.f32 %v4006, %v4007
  %v4009 = vsel %vm3943, %v3851, 0.0
  %v4010 = vadd.f32 %v4008, %v4009
  %v4011 = vsel %vm3943, %v3854, 0.0
  %v4012 = vadd.f32 %v4010, %v4011
  %v4013 = vsel %vm3943, %v3857, 0.0
  %v4014 = vadd.f32 %v4012, %v4013
  %v4015 = vsel %vm3943, %v3860, 0.0
  %v4016 = vadd.f32 %v4014, %v4015
  %v4017 = vsel %vm3943, %v3863, 0.0
  %v4018 = vadd.f32 %v4016, %v4017
  %v4019 = vsel %vm3943, %v3866, 0.0
  %v4020 = vadd.f32 %v4018, %v4019
  %v4021 = vsel %vm3943, %v3869, 0.0
  %v4022 = vadd.f32 %v4020, %v4021
  %v4023 = vsel %vm3943, %v3872, 0.0
  %v4024 = vadd.f32 %v4022, %v4023
  %v4025 = vsel %vm3943, %v3875, 0.0
  %v4026 = vadd.f32 %v4024, %v4025
  %v4027 = vsel %vm3943, %v3878, 0.0
  %v4028 = vadd.f32 %v4026, %v4027
  %v4029 = vsel %vm3943, %v3881, 0.0
  %v4030 = vadd.f32 %v4028, %v4029
  %v4031 = vsel %vm3943, %v3884, 0.0
  %v4032 = vadd.f32 %v4030, %v4031
  %v4033 = vsel %vm3943, %v3887, 0.0
  %v4034 = vadd.f32 %v4032, %v4033
  %v4035 = vsel %vm3943, %v3890, 0.0
  %v4036 = vadd.f32 %v4034, %v4035
  %v4037 = vsel %vm3943, %v3893, 0.0
  %v4038 = vadd.f32 %v4036, %v4037
  %v4039 = vsel %vm3943, %v3896, 0.0
  %v4040 = vadd.f32 %v4038, %v4039
  %v4041 = vsel %vm3943, %v3899, 0.0
  %v4042 = vadd.f32 %v4040, %v4041
  %v4043 = vsel %vm3943, %v3902, 0.0
  %v4044 = vadd.f32 %v4042, %v4043
  %v4045 = vsel %vm3943, %v3905, 0.0
  %v4046 = vadd.f32 %v4044, %v4045
  %v4047 = vsel %vm3943, %v3908, 0.0
  %v4048 = vadd.f32 %v4046, %v4047
  %v4049 = vsel %vm3943, %v3911, 0.0
  %v4050 = vadd.f32 %v4048, %v4049
  %v4051 = vsel %vm3943, %v3914, 0.0
  %v4052 = vadd.f32 %v4050, %v4051
  %v4053 = vsel %vm3943, %v3917, 0.0
  %v4054 = vadd.f32 %v4052, %v4053
  %v4055 = vsel %vm3943, %v3920, 0.0
  %v4056 = vadd.f32 %v4054, %v4055
  %v4057 = vsel %vm3943, %v3923, 0.0
  %v4058 = vadd.f32 %v4056, %v4057
  %v4059 = vsel %vm3943, %v3926, 0.0
  %v4060 = vadd.f32 %v4058, %v4059
  %v4061 = vsel %vm3943, %v3929, 0.0
  %v4062 = vadd.f32 %v4060, %v4061
  %v4063 = vsel %vm3943, %v3932, 0.0
  %v4064 = vadd.f32 %v4062, %v4063
  %v4065 = vsel %vm3943, %v3935, 0.0
  %v4066 = vadd.f32 %v4064, %v4065
  %v4067 = vsel %vm3943, %v3938, 0.0
  %v4068 = vadd.f32 %v4066, %v4067
  %v4069 = vsel %vm3943, %v3941, 0.0
  %v4070 = vadd.f32 %v4068, %v4069
  %v4071 = vrot.slane %v4070, 4
  %v4072 = vadd.f32 %v4070, %v4071
  %v4073 = vrot.slane %v4072, 2
  %v4074 = vadd.f32 %v4072, %v4073
  %v4075 = vrot.slane %v4074, 1
  %v4076 = vadd.f32 %v4074, %v4075
  %v4077 = vrcp.pop 512.0
  %v4078 = vmul.f32 512.0, %v4077
  %v4079 = vsub.f32 1.0, %v4078
  %v4080 = vmul.f32 %v4077, %v4079
  %v4081 = vadd.f32 %v4077, %v4080
  %vm4082 = vweird.f32 %v4077
  %v4083 = vsel %vm4082, %v4077, %v4081
  %v4084 = vmul.f32 %v4076, %v4083
  %v4085 = vsub.f32 %v3752, %v4084
  %v4086 = vsub.f32 %v3755, %v4084
  %v4087 = vsub.f32 %v3758, %v4084
  %v4088 = vsub.f32 %v3761, %v4084
  %v4089 = vsub.f32 %v3764, %v4084
  %v4090 = vsub.f32 %v3767, %v4084
  %v4091 = vsub.f32 %v3770, %v4084
  %v4092 = vsub.f32 %v3773, %v4084
  %v4093 = vsub.f32 %v3776, %v4084
  %v4094 = vsub.f32 %v3779, %v4084
  %v4095 = vsub.f32 %v3782, %v4084
  %v4096 = vsub.f32 %v3785, %v4084
  %v4097 = vsub.f32 %v3788, %v4084
  %v4098 = vsub.f32 %v3791, %v4084
  %v4099 = vsub.f32 %v3794, %v4084
  %v4100 = vsub.f32 %v3797, %v4084
  %v4101 = vsub.f32 %v3800, %v4084
  %v4102 = vsub.f32 %v3803, %v4084
  %v4103 = vsub.f32 %v3806, %v4084
  %v4104 = vsub.f32 %v3809, %v4084
  %v4105 = vsub.f32 %v3812, %v4084
  %v4106 = vsub.f32 %v3815, %v4084
  %v4107 = vsub.f32 %v3818, %v4084
  %v4108 = vsub.f32 %v3821, %v4084
  %v4109 = vsub.f32 %v3824, %v4084
  %v4110 = vsub.f32 %v3827, %v4084
  %v4111 = vsub.f32 %v3830, %v4084
  %v4112 = vsub.f32 %v3833, %v4084
  %v4113 = vsub.f32 %v3836, %v4084
  %v4114 = vsub.f32 %v3839, %v4084
  %v4115 = vsub.f32 %v3842, %v4084
  %v4116 = vsub.f32 %v3845, %v4084
  %v4117 = vsub.f32 %v3848, %v4084
  %v4118 = vsub.f32 %v3851, %v4084
  %v4119 = vsub.f32 %v3854, %v4084
  %v4120 = vsub.f32 %v3857, %v4084
  %v4121 = vsub.f32 %v3860, %v4084
  %v4122 = vsub.f32 %v3863, %v4084
  %v4123 = vsub.f32 %v3866, %v4084
  %v4124 = vsub.f32 %v3869, %v4084
  %v4125 = vsub.f32 %v3872, %v4084
  %v4126 = vsub.f32 %v3875, %v4084
  %v4127 = vsub.f32 %v3878, %v4084
  %v4128 = vsub.f32 %v3881, %v4084
  %v4129 = vsub.f32 %v3884, %v4084
  %v4130 = vsub.f32 %v3887, %v4084
  %v4131 = vsub.f32 %v3890, %v4084
  %v4132 = vsub.f32 %v3893, %v4084
  %v4133 = vsub.f32 %v3896, %v4084
  %v4134 = vsub.f32 %v3899, %v4084
  %v4135 = vsub.f32 %v3902, %v4084
  %v4136 = vsub.f32 %v3905, %v4084
  %v4137 = vsub.f32 %v3908, %v4084
  %v4138 = vsub.f32 %v3911, %v4084
  %v4139 = vsub.f32 %v3914, %v4084
  %v4140 = vsub.f32 %v3917, %v4084
  %v4141 = vsub.f32 %v3920, %v4084
  %v4142 = vsub.f32 %v3923, %v4084
  %v4143 = vsub.f32 %v3926, %v4084
  %v4144 = vsub.f32 %v3929, %v4084
  %v4145 = vsub.f32 %v3932, %v4084
  %v4146 = vsub.f32 %v3935, %v4084
  %v4147 = vsub.f32 %v3938, %v4084
  %v4148 = vsub.f32 %v3941, %v4084
  %v4149 = vmul.f32 %v4085, %v4085
  %v4150 = vmul.f32 %v4086, %v4086
  %v4151 = vmul.f32 %v4087, %v4087
  %v4152 = vmul.f32 %v4088, %v4088
  %v4153 = vmul.f32 %v4089, %v4089
  %v4154 = vmul.f32 %v4090, %v4090
  %v4155 = vmul.f32 %v4091, %v4091
  %v4156 = vmul.f32 %v4092, %v4092
  %v4157 = vmul.f32 %v4093, %v4093
  %v4158 = vmul.f32 %v4094, %v4094
  %v4159 = vmul.f32 %v4095, %v4095
  %v4160 = vmul.f32 %v4096, %v4096
  %v4161 = vmul.f32 %v4097, %v4097
  %v4162 = vmul.f32 %v4098, %v4098
  %v4163 = vmul.f32 %v4099, %v4099
  %v4164 = vmul.f32 %v4100, %v4100
  %v4165 = vmul.f32 %v4101, %v4101
  %v4166 = vmul.f32 %v4102, %v4102
  %v4167 = vmul.f32 %v4103, %v4103
  %v4168 = vmul.f32 %v4104, %v4104
  %v4169 = vmul.f32 %v4105, %v4105
  %v4170 = vmul.f32 %v4106, %v4106
  %v4171 = vmul.f32 %v4107, %v4107
  %v4172 = vmul.f32 %v4108, %v4108
  %v4173 = vmul.f32 %v4109, %v4109
  %v4174 = vmul.f32 %v4110, %v4110
  %v4175 = vmul.f32 %v4111, %v4111
  %v4176 = vmul.f32 %v4112, %v4112
  %v4177 = vmul.f32 %v4113, %v4113
  %v4178 = vmul.f32 %v4114, %v4114
  %v4179 = vmul.f32 %v4115, %v4115
  %v4180 = vmul.f32 %v4116, %v4116
  %v4181 = vmul.f32 %v4117, %v4117
  %v4182 = vmul.f32 %v4118, %v4118
  %v4183 = vmul.f32 %v4119, %v4119
  %v4184 = vmul.f32 %v4120, %v4120
  %v4185 = vmul.f32 %v4121, %v4121
  %v4186 = vmul.f32 %v4122, %v4122
  %v4187 = vmul.f32 %v4123, %v4123
  %v4188 = vmul.f32 %v4124, %v4124
  %v4189 = vmul.f32 %v4125, %v4125
  %v4190 = vmul.f32 %v4126, %v4126
  %v4191 = vmul.f32 %v4127, %v4127
  %v4192 = vmul.f32 %v4128, %v4128
  %v4193 = vmul.f32 %v4129, %v4129
  %v4194 = vmul.f32 %v4130, %v4130
  %v4195 = vmul.f32 %v4131, %v4131
  %v4196 = vmul.f32 %v4132, %v4132
  %v4197 = vmul.f32 %v4133, %v4133
  %v4198 = vmul.f32 %v4134, %v4134
  %v4199 = vmul.f32 %v4135, %v4135
  %v4200 = vmul.f32 %v4136, %v4136
  %v4201 = vmul.f32 %v4137, %v4137
  %v4202 = vmul.f32 %v4138, %v4138
  %v4203 = vmul.f32 %v4139, %v4139
  %v4204 = vmul.f32 %v4140, %v4140
  %v4205 = vmul.f32 %v4141, %v4141
  %v4206 = vmul.f32 %v4142, %v4142
  %v4207 = vmul.f32 %v4143, %v4143
  %v4208 = vmul.f32 %v4144, %v4144
  %v4209 = vmul.f32 %v4145, %v4145
  %v4210 = vmul.f32 %v4146, %v4146
  %v4211 = vmul.f32 %v4147, %v4147
  %v4212 = vmul.f32 %v4148, %v4148
  %v4213 = vsel %vm3943, %v4149, 0.0
  %v4214 = vsel %vm3943, %v4150, 0.0
  %v4215 = vadd.f32 %v4213, %v4214
  %v4216 = vsel %vm3943, %v4151, 0.0
  %v4217 = vadd.f32 %v4215, %v4216
  %v4218 = vsel %vm3943, %v4152, 0.0
  %v4219 = vadd.f32 %v4217, %v4218
  %v4220 = vsel %vm3943, %v4153, 0.0
  %v4221 = vadd.f32 %v4219, %v4220
  %v4222 = vsel %vm3943, %v4154, 0.0
  %v4223 = vadd.f32 %v4221, %v4222
  %v4224 = vsel %vm3943, %v4155, 0.0
  %v4225 = vadd.f32 %v4223, %v4224
  %v4226 = vsel %vm3943, %v4156, 0.0
  %v4227 = vadd.f32 %v4225, %v4226
  %v4228 = vsel %vm3943, %v4157, 0.0
  %v4229 = vadd.f32 %v4227, %v4228
  %v4230 = vsel %vm3943, %v4158, 0.0
  %v4231 = vadd.f32 %v4229, %v4230
  %v4232 = vsel %vm3943, %v4159, 0.0
  %v4233 = vadd.f32 %v4231, %v4232
  %v4234 = vsel %vm3943, %v4160, 0.0
  %v4235 = vadd.f32 %v4233, %v4234
  %v4236 = vsel %vm3943, %v4161, 0.0
  %v4237 = vadd.f32 %v4235, %v4236
  %v4238 = vsel %vm3943, %v4162, 0.0
  %v4239 = vadd.f32 %v4237, %v4238
  %v4240 = vsel %vm3943, %v4163, 0.0
  %v4241 = vadd.f32 %v4239, %v4240
  %v4242 = vsel %vm3943, %v4164, 0.0
  %v4243 = vadd.f32 %v4241, %v4242
  %v4244 = vsel %vm3943, %v4165, 0.0
  %v4245 = vadd.f32 %v4243, %v4244
  %v4246 = vsel %vm3943, %v4166, 0.0
  %v4247 = vadd.f32 %v4245, %v4246
  %v4248 = vsel %vm3943, %v4167, 0.0
  %v4249 = vadd.f32 %v4247, %v4248
  %v4250 = vsel %vm3943, %v4168, 0.0
  %v4251 = vadd.f32 %v4249, %v4250
  %v4252 = vsel %vm3943, %v4169, 0.0
  %v4253 = vadd.f32 %v4251, %v4252
  %v4254 = vsel %vm3943, %v4170, 0.0
  %v4255 = vadd.f32 %v4253, %v4254
  %v4256 = vsel %vm3943, %v4171, 0.0
  %v4257 = vadd.f32 %v4255, %v4256
  %v4258 = vsel %vm3943, %v4172, 0.0
  %v4259 = vadd.f32 %v4257, %v4258
  %v4260 = vsel %vm3943, %v4173, 0.0
  %v4261 = vadd.f32 %v4259, %v4260
  %v4262 = vsel %vm3943, %v4174, 0.0
  %v4263 = vadd.f32 %v4261, %v4262
  %v4264 = vsel %vm3943, %v4175, 0.0
  %v4265 = vadd.f32 %v4263, %v4264
  %v4266 = vsel %vm3943, %v4176, 0.0
  %v4267 = vadd.f32 %v4265, %v4266
  %v4268 = vsel %vm3943, %v4177, 0.0
  %v4269 = vadd.f32 %v4267, %v4268
  %v4270 = vsel %vm3943, %v4178, 0.0
  %v4271 = vadd.f32 %v4269, %v4270
  %v4272 = vsel %vm3943, %v4179, 0.0
  %v4273 = vadd.f32 %v4271, %v4272
  %v4274 = vsel %vm3943, %v4180, 0.0
  %v4275 = vadd.f32 %v4273, %v4274
  %v4276 = vsel %vm3943, %v4181, 0.0
  %v4277 = vadd.f32 %v4275, %v4276
  %v4278 = vsel %vm3943, %v4182, 0.0
  %v4279 = vadd.f32 %v4277, %v4278
  %v4280 = vsel %vm3943, %v4183, 0.0
  %v4281 = vadd.f32 %v4279, %v4280
  %v4282 = vsel %vm3943, %v4184, 0.0
  %v4283 = vadd.f32 %v4281, %v4282
  %v4284 = vsel %vm3943, %v4185, 0.0
  %v4285 = vadd.f32 %v4283, %v4284
  %v4286 = vsel %vm3943, %v4186, 0.0
  %v4287 = vadd.f32 %v4285, %v4286
  %v4288 = vsel %vm3943, %v4187, 0.0
  %v4289 = vadd.f32 %v4287, %v4288
  %v4290 = vsel %vm3943, %v4188, 0.0
  %v4291 = vadd.f32 %v4289, %v4290
  %v4292 = vsel %vm3943, %v4189, 0.0
  %v4293 = vadd.f32 %v4291, %v4292
  %v4294 = vsel %vm3943, %v4190, 0.0
  %v4295 = vadd.f32 %v4293, %v4294
  %v4296 = vsel %vm3943, %v4191, 0.0
  %v4297 = vadd.f32 %v4295, %v4296
  %v4298 = vsel %vm3943, %v4192, 0.0
  %v4299 = vadd.f32 %v4297, %v4298
  %v4300 = vsel %vm3943, %v4193, 0.0
  %v4301 = vadd.f32 %v4299, %v4300
  %v4302 = vsel %vm3943, %v4194, 0.0
  %v4303 = vadd.f32 %v4301, %v4302
  %v4304 = vsel %vm3943, %v4195, 0.0
  %v4305 = vadd.f32 %v4303, %v4304
  %v4306 = vsel %vm3943, %v4196, 0.0
  %v4307 = vadd.f32 %v4305, %v4306
  %v4308 = vsel %vm3943, %v4197, 0.0
  %v4309 = vadd.f32 %v4307, %v4308
  %v4310 = vsel %vm3943, %v4198, 0.0
  %v4311 = vadd.f32 %v4309, %v4310
  %v4312 = vsel %vm3943, %v4199, 0.0
  %v4313 = vadd.f32 %v4311, %v4312
  %v4314 = vsel %vm3943, %v4200, 0.0
  %v4315 = vadd.f32 %v4313, %v4314
  %v4316 = vsel %vm3943, %v4201, 0.0
  %v4317 = vadd.f32 %v4315, %v4316
  %v4318 = vsel %vm3943, %v4202, 0.0
  %v4319 = vadd.f32 %v4317, %v4318
  %v4320 = vsel %vm3943, %v4203, 0.0
  %v4321 = vadd.f32 %v4319, %v4320
  %v4322 = vsel %vm3943, %v4204, 0.0
  %v4323 = vadd.f32 %v4321, %v4322
  %v4324 = vsel %vm3943, %v4205, 0.0
  %v4325 = vadd.f32 %v4323, %v4324
  %v4326 = vsel %vm3943, %v4206, 0.0
  %v4327 = vadd.f32 %v4325, %v4326
  %v4328 = vsel %vm3943, %v4207, 0.0
  %v4329 = vadd.f32 %v4327, %v4328
  %v4330 = vsel %vm3943, %v4208, 0.0
  %v4331 = vadd.f32 %v4329, %v4330
  %v4332 = vsel %vm3943, %v4209, 0.0
  %v4333 = vadd.f32 %v4331, %v4332
  %v4334 = vsel %vm3943, %v4210, 0.0
  %v4335 = vadd.f32 %v4333, %v4334
  %v4336 = vsel %vm3943, %v4211, 0.0
  %v4337 = vadd.f32 %v4335, %v4336
  %v4338 = vsel %vm3943, %v4212, 0.0
  %v4339 = vadd.f32 %v4337, %v4338
  %v4340 = vrot.slane %v4339, 4
  %v4341 = vadd.f32 %v4339, %v4340
  %v4342 = vrot.slane %v4341, 2
  %v4343 = vadd.f32 %v4341, %v4342
  %v4344 = vrot.slane %v4343, 1
  %v4345 = vadd.f32 %v4343, %v4344
  %v4346 = vmul.f32 %v4345, %v4083
  %v4347 = vadd.f32 %v4346, 1e-05
  %v4348 = vrsqrt.pop %v4347
  %v4349 = vmul.f32 %v4348, %v4347
  %v4350 = vmul.f32 %v4349, %v4348
  %v4351 = vmul.f32 0.5, %v4350
  %v4352 = vsub.f32 1.5, %v4351
  %v4353 = vmul.f32 %v4348, %v4352
  %vm4354 = vweird.f32 %v4347
  %vm4355 = vweird.f32 %v4348
  %vm4356 = vmor %vm4354, %vm4355
  %v4357 = vsel %vm4356, %v4348, %v4353
  %v4358 = vmul.f32 %v4085, %v4357
  %v4359 = vmul.f32 %v4086, %v4357
  %v4360 = vmul.f32 %v4087, %v4357
  %v4361 = vmul.f32 %v4088, %v4357
  %v4362 = vmul.f32 %v4089, %v4357
  %v4363 = vmul.f32 %v4090, %v4357
  %v4364 = vmul.f32 %v4091, %v4357
  %v4365 = vmul.f32 %v4092, %v4357
  %v4366 = vmul.f32 %v4093, %v4357
  %v4367 = vmul.f32 %v4094, %v4357
  %v4368 = vmul.f32 %v4095, %v4357
  %v4369 = vmul.f32 %v4096, %v4357
  %v4370 = vmul.f32 %v4097, %v4357
  %v4371 = vmul.f32 %v4098, %v4357
  %v4372 = vmul.f32 %v4099, %v4357
  %v4373 = vmul.f32 %v4100, %v4357
  %v4374 = vmul.f32 %v4101, %v4357
  %v4375 = vmul.f32 %v4102, %v4357
  %v4376 = vmul.f32 %v4103, %v4357
  %v4377 = vmul.f32 %v4104, %v4357
  %v4378 = vmul.f32 %v4105, %v4357
  %v4379 = vmul.f32 %v4106, %v4357
  %v4380 = vmul.f32 %v4107, %v4357
  %v4381 = vmul.f32 %v4108, %v4357
  %v4382 = vmul.f32 %v4109, %v4357
  %v4383 = vmul.f32 %v4110, %v4357
  %v4384 = vmul.f32 %v4111, %v4357
  %v4385 = vmul.f32 %v4112, %v4357
  %v4386 = vmul.f32 %v4113, %v4357
  %v4387 = vmul.f32 %v4114, %v4357
  %v4388 = vmul.f32 %v4115, %v4357
  %v4389 = vmul.f32 %v4116, %v4357
  %v4390 = vmul.f32 %v4117, %v4357
  %v4391 = vmul.f32 %v4118, %v4357
  %v4392 = vmul.f32 %v4119, %v4357
  %v4393 = vmul.f32 %v4120, %v4357
  %v4394 = vmul.f32 %v4121, %v4357
  %v4395 = vmul.f32 %v4122, %v4357
  %v4396 = vmul.f32 %v4123, %v4357
  %v4397 = vmul.f32 %v4124, %v4357
  %v4398 = vmul.f32 %v4125, %v4357
  %v4399 = vmul.f32 %v4126, %v4357
  %v4400 = vmul.f32 %v4127, %v4357
  %v4401 = vmul.f32 %v4128, %v4357
  %v4402 = vmul.f32 %v4129, %v4357
  %v4403 = vmul.f32 %v4130, %v4357
  %v4404 = vmul.f32 %v4131, %v4357
  %v4405 = vmul.f32 %v4132, %v4357
  %v4406 = vmul.f32 %v4133, %v4357
  %v4407 = vmul.f32 %v4134, %v4357
  %v4408 = vmul.f32 %v4135, %v4357
  %v4409 = vmul.f32 %v4136, %v4357
  %v4410 = vmul.f32 %v4137, %v4357
  %v4411 = vmul.f32 %v4138, %v4357
  %v4412 = vmul.f32 %v4139, %v4357
  %v4413 = vmul.f32 %v4140, %v4357
  %v4414 = vmul.f32 %v4141, %v4357
  %v4415 = vmul.f32 %v4142, %v4357
  %v4416 = vmul.f32 %v4143, %v4357
  %v4417 = vmul.f32 %v4144, %v4357
  %v4418 = vmul.f32 %v4145, %v4357
  %v4419 = vmul.f32 %v4146, %v4357
  %v4420 = vmul.f32 %v4147, %v4357
  %v4421 = vmul.f32 %v4148, %v4357
  %v4422 = vld [vmem:[%s3] sm:$0x1]
  %v4424 = vperm.slane %v4422, 0
  %v4426 = vmul.f32 %v4358, %v4424
  %v4427 = vmul.f32 %v4359, %v4424
  %v4428 = vmul.f32 %v4360, %v4424
  %v4429 = vmul.f32 %v4361, %v4424
  %v4430 = vmul.f32 %v4362, %v4424
  %v4431 = vmul.f32 %v4363, %v4424
  %v4432 = vmul.f32 %v4364, %v4424
  %v4433 = vmul.f32 %v4365, %v4424
  %v4434 = vmul.f32 %v4366, %v4424
  %v4435 = vmul.f32 %v4367, %v4424
  %v4436 = vmul.f32 %v4368, %v4424
  %v4437 = vmul.f32 %v4369, %v4424
  %v4438 = vmul.f32 %v4370, %v4424
  %v4439 = vmul.f32 %v4371, %v4424
  %v4440 = vmul.f32 %v4372, %v4424
  %v4441 = vmul.f32 %v4373, %v4424
  %v4442 = vmul.f32 %v4374, %v4424
  %v4443 = vmul.f32 %v4375, %v4424
  %v4444 = vmul.f32 %v4376, %v4424
  %v4445 = vmul.f32 %v4377, %v4424
  %v4446 = vmul.f32 %v4378, %v4424
  %v4447 = vmul.f32 %v4379, %v4424
  %v4448 = vmul.f32 %v4380, %v4424
  %v4449 = vmul.f32 %v4381, %v4424
  %v4450 = vmul.f32 %v4382, %v4424
  %v4451 = vmul.f32 %v4383, %v4424
  %v4452 = vmul.f32 %v4384, %v4424
  %v4453 = vmul.f32 %v4385, %v4424
  %v4454 = vmul.f32 %v4386, %v4424
  %v4455 = vmul.f32 %v4387, %v4424
  %v4456 = vmul.f32 %v4388, %v4424
  %v4457 = vmul.f32 %v4389, %v4424
  %v4458 = vmul.f32 %v4390, %v4424
  %v4459 = vmul.f32 %v4391, %v4424
  %v4460 = vmul.f32 %v4392, %v4424
  %v4461 = vmul.f32 %v4393, %v4424
  %v4462 = vmul.f32 %v4394, %v4424
  %v4463 = vmul.f32 %v4395, %v4424
  %v4464 = vmul.f32 %v4396, %v4424
  %v4465 = vmul.f32 %v4397, %v4424
  %v4466 = vmul.f32 %v4398, %v4424
  %v4467 = vmul.f32 %v4399, %v4424
  %v4468 = vmul.f32 %v4400, %v4424
  %v4469 = vmul.f32 %v4401, %v4424
  %v4470 = vmul.f32 %v4402, %v4424
  %v4471 = vmul.f32 %v4403, %v4424
  %v4472 = vmul.f32 %v4404, %v4424
  %v4473 = vmul.f32 %v4405, %v4424
  %v4474 = vmul.f32 %v4406, %v4424
  %v4475 = vmul.f32 %v4407, %v4424
  %v4476 = vmul.f32 %v4408, %v4424
  %v4477 = vmul.f32 %v4409, %v4424
  %v4478 = vmul.f32 %v4410, %v4424
  %v4479 = vmul.f32 %v4411, %v4424
  %v4480 = vmul.f32 %v4412, %v4424
  %v4481 = vmul.f32 %v4413, %v4424
  %v4482 = vmul.f32 %v4414, %v4424
  %v4483 = vmul.f32 %v4415, %v4424
  %v4484 = vmul.f32 %v4416, %v4424
  %v4485 = vmul.f32 %v4417, %v4424
  %v4486 = vmul.f32 %v4418, %v4424
  %v4487 = vmul.f32 %v4419, %v4424
  %v4488 = vmul.f32 %v4420, %v4424
  %v4489 = vmul.f32 %v4421, %v4424
  %v4490 = vld [vmem:[%s4] sm:$0x1]
  %v4492 = vperm.slane %v4490, 0
  %v4494 = vadd.f32 %v4426, %v4492
  %v4495 = vadd.f32 %v4427, %v4492
  %v4496 = vadd.f32 %v4428, %v4492
  %v4497 = vadd.f32 %v4429, %v4492
  %v4498 = vadd.f32 %v4430, %v4492
  %v4499 = vadd.f32 %v4431, %v4492
  %v4500 = vadd.f32 %v4432, %v4492
  %v4501 = vadd.f32 %v4433, %v4492
  %v4502 = vadd.f32 %v4434, %v4492
  %v4503 = vadd.f32 %v4435, %v4492
  %v4504 = vadd.f32 %v4436, %v4492
  %v4505 = vadd.f32 %v4437, %v4492
  %v4506 = vadd.f32 %v4438, %v4492
  %v4507 = vadd.f32 %v4439, %v4492
  %v4508 = vadd.f32 %v4440, %v4492
  %v4509 = vadd.f32 %v4441, %v4492
  %v4510 = vadd.f32 %v4442, %v4492
  %v4511 = vadd.f32 %v4443, %v4492
  %v4512 = vadd.f32 %v4444, %v4492
  %v4513 = vadd.f32 %v4445, %v4492
  %v4514 = vadd.f32 %v4446, %v4492
  %v4515 = vadd.f32 %v4447, %v4492
  %v4516 = vadd.f32 %v4448, %v4492
  %v4517 = vadd.f32 %v4449, %v4492
  %v4518 = vadd.f32 %v4450, %v4492
  %v4519 = vadd.f32 %v4451, %v4492
  %v4520 = vadd.f32 %v4452, %v4492
  %v4521 = vadd.f32 %v4453, %v4492
  %v4522 = vadd.f32 %v4454, %v4492
  %v4523 = vadd.f32 %v4455, %v4492
  %v4524 = vadd.f32 %v4456, %v4492
  %v4525 = vadd.f32 %v4457, %v4492
  %v4526 = vadd.f32 %v4458, %v4492
  %v4527 = vadd.f32 %v4459, %v4492
  %v4528 = vadd.f32 %v4460, %v4492
  %v4529 = vadd.f32 %v4461, %v4492
  %v4530 = vadd.f32 %v4462, %v4492
  %v4531 = vadd.f32 %v4463, %v4492
  %v4532 = vadd.f32 %v4464, %v4492
  %v4533 = vadd.f32 %v4465, %v4492
  %v4534 = vadd.f32 %v4466, %v4492
  %v4535 = vadd.f32 %v4467, %v4492
  %v4536 = vadd.f32 %v4468, %v4492
  %v4537 = vadd.f32 %v4469, %v4492
  %v4538 = vadd.f32 %v4470, %v4492
  %v4539 = vadd.f32 %v4471, %v4492
  %v4540 = vadd.f32 %v4472, %v4492
  %v4541 = vadd.f32 %v4473, %v4492
  %v4542 = vadd.f32 %v4474, %v4492
  %v4543 = vadd.f32 %v4475, %v4492
  %v4544 = vadd.f32 %v4476, %v4492
  %v4545 = vadd.f32 %v4477, %v4492
  %v4546 = vadd.f32 %v4478, %v4492
  %v4547 = vadd.f32 %v4479, %v4492
  %v4548 = vadd.f32 %v4480, %v4492
  %v4549 = vadd.f32 %v4481, %v4492
  %v4550 = vadd.f32 %v4482, %v4492
  %v4551 = vadd.f32 %v4483, %v4492
  %v4552 = vadd.f32 %v4484, %v4492
  %v4553 = vadd.f32 %v4485, %v4492
  %v4554 = vadd.f32 %v4486, %v4492
  %v4555 = vadd.f32 %v4487, %v4492
  %v4556 = vadd.f32 %v4488, %v4492
  %v4557 = vadd.f32 %v4489, %v4492
  %v4558 = vmax.f32 %v4494, 0.0
  %v4559 = vmax.f32 %v4495, 0.0
  %v4560 = vmax.f32 %v4496, 0.0
  %v4561 = vmax.f32 %v4497, 0.0
  %v4562 = vmax.f32 %v4498, 0.0
  %v4563 = vmax.f32 %v4499, 0.0
  %v4564 = vmax.f32 %v4500, 0.0
  %v4565 = vmax.f32 %v4501, 0.0
  %v4566 = vmax.f32 %v4502, 0.0
  %v4567 = vmax.f32 %v4503, 0.0
  %v4568 = vmax.f32 %v4504, 0.0
  %v4569 = vmax.f32 %v4505, 0.0
  %v4570 = vmax.f32 %v4506, 0.0
  %v4571 = vmax.f32 %v4507, 0.0
  %v4572 = vmax.f32 %v4508, 0.0
  %v4573 = vmax.f32 %v4509, 0.0
  %v4574 = vmax.f32 %v4510, 0.0
  %v4575 = vmax.f32 %v4511, 0.0
  %v4576 = vmax.f32 %v4512, 0.0
  %v4577 = vmax.f32 %v4513, 0.0
  %v4578 = vmax.f32 %v4514, 0.0
  %v4579 = vmax.f32 %v4515, 0.0
  %v4580 = vmax.f32 %v4516, 0.0
  %v4581 = vmax.f32 %v4517, 0.0
  %v4582 = vmax.f32 %v4518, 0.0
  %v4583 = vmax.f32 %v4519, 0.0
  %v4584 = vmax.f32 %v4520, 0.0
  %v4585 = vmax.f32 %v4521, 0.0
  %v4586 = vmax.f32 %v4522, 0.0
  %v4587 = vmax.f32 %v4523, 0.0
  %v4588 = vmax.f32 %v4524, 0.0
  %v4589 = vmax.f32 %v4525, 0.0
  %v4590 = vmax.f32 %v4526, 0.0
  %v4591 = vmax.f32 %v4527, 0.0
  %v4592 = vmax.f32 %v4528, 0.0
  %v4593 = vmax.f32 %v4529, 0.0
  %v4594 = vmax.f32 %v4530, 0.0
  %v4595 = vmax.f32 %v4531, 0.0
  %v4596 = vmax.f32 %v4532, 0.0
  %v4597 = vmax.f32 %v4533, 0.0
  %v4598 = vmax.f32 %v4534, 0.0
  %v4599 = vmax.f32 %v4535, 0.0
  %v4600 = vmax.f32 %v4536, 0.0
  %v4601 = vmax.f32 %v4537, 0.0
  %v4602 = vmax.f32 %v4538, 0.0
  %v4603 = vmax.f32 %v4539, 0.0
  %v4604 = vmax.f32 %v4540, 0.0
  %v4605 = vmax.f32 %v4541, 0.0
  %v4606 = vmax.f32 %v4542, 0.0
  %v4607 = vmax.f32 %v4543, 0.0
  %v4608 = vmax.f32 %v4544, 0.0
  %v4609 = vmax.f32 %v4545, 0.0
  %v4610 = vmax.f32 %v4546, 0.0
  %v4611 = vmax.f32 %v4547, 0.0
  %v4612 = vmax.f32 %v4548, 0.0
  %v4613 = vmax.f32 %v4549, 0.0
  %v4614 = vmax.f32 %v4550, 0.0
  %v4615 = vmax.f32 %v4551, 0.0
  %v4616 = vmax.f32 %v4552, 0.0
  %v4617 = vmax.f32 %v4553, 0.0
  %v4618 = vmax.f32 %v4554, 0.0
  %v4619 = vmax.f32 %v4555, 0.0
  %v4620 = vmax.f32 %v4556, 0.0
  %v4621 = vmax.f32 %v4557, 0.0
  %4622 = vst.msk [vmem:[#allocation3] sm:$0xff] %vm3943, 0.0
  %4623 = vst.msk [vmem:[#allocation3 + $0x8] sm:$0xff] %vm3943, 0.0
  %vm4624 = vcmask 123904
  %4625 = vst.msk [vmem:[#allocation3 + $0x10] sm:$0x3] %vm4624, 0.0
  %4626 = vst.msk [vmem:[#allocation3 + $0x18] sm:$0xff] %vm3943, 0.0
  %4627 = vst.msk [vmem:[#allocation3 + $0x20] sm:$0xff] %vm3943, 0.0
  %4628 = vst.msk [vmem:[#allocation3 + $0x28] sm:$0x3] %vm4624, 0.0
  %4629 = vst.msk [vmem:[#allocation3 + $0x30] sm:$0xff] %vm3943, 0.0
  %4630 = vst.msk [vmem:[#allocation3 + $0x38] sm:$0xff] %vm3943, 0.0
  %4631 = vst.msk [vmem:[#allocation3 + $0x40] sm:$0x3] %vm4624, 0.0
  %4632 = vst.msk [vmem:[#allocation3 + $0x48] sm:$0xff] %vm3943, 0.0
  %4633 = vst.msk [vmem:[#allocation3 + $0x50] sm:$0xff] %vm3943, 0.0
  %4634 = vst.msk [vmem:[#allocation3 + $0x58] sm:$0x3] %vm4624, 0.0
  %4635 = vst.msk [vmem:[#allocation3 + $0x60] sm:$0xff] %vm3943, 0.0
  %4636 = vst.msk [vmem:[#allocation3 + $0x68] sm:$0xff] %vm3943, 0.0
  %4637 = vst.msk [vmem:[#allocation3 + $0x70] sm:$0x3] %vm4624, 0.0
  %4638 = vst.msk [vmem:[#allocation3 + $0x78] sm:$0xff] %vm3943, 0.0
  %4639 = vst.msk [vmem:[#allocation3 + $0x80] sm:$0xff] %vm3943, 0.0
  %4640 = vst.msk [vmem:[#allocation3 + $0x88] sm:$0x3] %vm4624, 0.0
  %4641 = vst.msk [vmem:[#allocation3 + $0x90] sm:$0xff] %vm3943, 0.0
  %4642 = vst.msk [vmem:[#allocation3 + $0x98] sm:$0xff] %vm3943, 0.0
  %4643 = vst.msk [vmem:[#allocation3 + $0xa0] sm:$0x3] %vm4624, 0.0
  %4644 = vst.msk [vmem:[#allocation3 + $0xa8] sm:$0xff] %vm3943, 0.0
  %4645 = vst.msk [vmem:[#allocation3 + $0xb0] sm:$0xff] %vm3943, 0.0
  %4646 = vst.msk [vmem:[#allocation3 + $0xb8] sm:$0x3] %vm4624, 0.0
  %4647 = vst.msk [vmem:[#allocation3 + $0xc0] sm:$0xff] %vm3943, 0.0
  %4648 = vst.msk [vmem:[#allocation3 + $0xc8] sm:$0xff] %vm3943, 0.0
  %4649 = vst.msk [vmem:[#allocation3 + $0xd0] sm:$0x3] %vm4624, 0.0
  %4650 = vst.msk [vmem:[#allocation3 + $0xd8] sm:$0xff] %vm3943, 0.0
  %4651 = vst.msk [vmem:[#allocation3 + $0xe0] sm:$0xff] %vm3943, 0.0
  %4652 = vst.msk [vmem:[#allocation3 + $0xe8] sm:$0x3] %vm4624, 0.0
  %4653 = vst.msk [vmem:[#allocation3 + $0xf0] sm:$0xff] %vm3943, 0.0
  %4654 = vst.msk [vmem:[#allocation3 + $0xf8] sm:$0xff] %vm3943, 0.0
  %4655 = vst.msk [vmem:[#allocation3 + $0x100] sm:$0x3] %vm4624, 0.0
  %4656 = vst.msk [vmem:[#allocation3 + $0x108] sm:$0xff] %vm3943, 0.0
  %4657 = vst.msk [vmem:[#allocation3 + $0x110] sm:$0xff] %vm3943, 0.0
  %4658 = vst.msk [vmem:[#allocation3 + $0x118] sm:$0x3] %vm4624, 0.0
  %4659 = vst.msk [vmem:[#allocation3 + $0x120] sm:$0xff] %vm3943, 0.0
  %4660 = vst.msk [vmem:[#allocation3 + $0x128] sm:$0xff] %vm3943, 0.0
  %4661 = vst.msk [vmem:[#allocation3 + $0x130] sm:$0x3] %vm4624, 0.0
  %4662 = vst.msk [vmem:[#allocation3 + $0x138] sm:$0xff] %vm3943, 0.0
  %4663 = vst.msk [vmem:[#allocation3 + $0x140] sm:$0xff] %vm3943, 0.0
  %4664 = vst.msk [vmem:[#allocation3 + $0x148] sm:$0x3] %vm4624, 0.0
  %4665 = vst.msk [vmem:[#allocation3 + $0x150] sm:$0xff] %vm3943, 0.0
  %4666 = vst.msk [vmem:[#allocation3 + $0x158] sm:$0xff] %vm3943, 0.0
  %4667 = vst.msk [vmem:[#allocation3 + $0x160] sm:$0x3] %vm4624, 0.0
  %4668 = vst.msk [vmem:[#allocation3 + $0x168] sm:$0xff] %vm3943, 0.0
  %4669 = vst.msk [vmem:[#allocation3 + $0x170] sm:$0xff] %vm3943, 0.0
  %4670 = vst.msk [vmem:[#allocation3 + $0x178] sm:$0x3] %vm4624, 0.0
  %4671 = vst.msk [vmem:[#allocation3 + $0x180] sm:$0xff] %vm3943, 0.0
  %4672 = vst.msk [vmem:[#allocation3 + $0x188] sm:$0xff] %vm3943, 0.0
  %4673 = vst.msk [vmem:[#allocation3 + $0x190] sm:$0x3] %vm4624, 0.0
  %4674 = vst.msk [vmem:[#allocation3 + $0x198] sm:$0xff] %vm3943, 0.0
  %4675 = vst.msk [vmem:[#allocation3 + $0x1a0] sm:$0xff] %vm3943, 0.0
  %4676 = vst.msk [vmem:[#allocation3 + $0x1a8] sm:$0x3] %vm4624, 0.0
  %4677 = vst.msk [vmem:[#allocation3 + $0x1b0] sm:$0xff] %vm3943, 0.0
  %4678 = vst.msk [vmem:[#allocation3 + $0x1b8] sm:$0xff] %vm3943, 0.0
  %4679 = vst.msk [vmem:[#allocation3 + $0x1c0] sm:$0x3] %vm4624, 0.0
  %4680 = vst.msk [vmem:[#allocation3 + $0x1c8] sm:$0xff] %vm3943, 0.0
  %4681 = vst.msk [vmem:[#allocation3 + $0x1d0] sm:$0xff] %vm3943, 0.0
  %4682 = vst.msk [vmem:[#allocation3 + $0x1d8] sm:$0x3] %vm4624, 0.0
  %4683 = vst.msk [vmem:[#allocation3 + $0x1e0] sm:$0xff] %vm3943, 0.0
  %4684 = vst.msk [vmem:[#allocation3 + $0x1e8] sm:$0xff] %vm3943, 0.0
  %4685 = vst.msk [vmem:[#allocation3 + $0x1f0] sm:$0x3] %vm4624, 0.0
  %4686 = vst.msk [vmem:[#allocation3 + $0x1f8] sm:$0xff] %vm3943, 0.0
  %4687 = vst.msk [vmem:[#allocation3 + $0x200] sm:$0xff] %vm3943, 0.0
  %4688 = vst.msk [vmem:[#allocation3 + $0x208] sm:$0x3] %vm4624, 0.0
  %4689 = vst.msk [vmem:[#allocation3 + $0x210] sm:$0xff] %vm3943, 0.0
  %4690 = vst.msk [vmem:[#allocation3 + $0x218] sm:$0xff] %vm3943, 0.0
  %4691 = vst.msk [vmem:[#allocation3 + $0x220] sm:$0x3] %vm4624, 0.0
  %4692 = vst.msk [vmem:[#allocation3 + $0x228] sm:$0xff] %vm3943, 0.0
  %4693 = vst.msk [vmem:[#allocation3 + $0x230] sm:$0xff] %vm3943, 0.0
  %4694 = vst.msk [vmem:[#allocation3 + $0x238] sm:$0x3] %vm4624, 0.0
  %4695 = vst.msk [vmem:[#allocation3 + $0x240] sm:$0xff] %vm3943, 0.0
  %4696 = vst.msk [vmem:[#allocation3 + $0x248] sm:$0xff] %vm3943, 0.0
  %4697 = vst.msk [vmem:[#allocation3 + $0x250] sm:$0x3] %vm4624, 0.0
  %4698 = vst.msk [vmem:[#allocation3 + $0x258] sm:$0xff] %vm3943, 0.0
  %4699 = vst.msk [vmem:[#allocation3 + $0x260] sm:$0xff] %vm3943, 0.0
  %4700 = vst.msk [vmem:[#allocation3 + $0x268] sm:$0x3] %vm4624, 0.0
  %4701 = vst.msk [vmem:[#allocation3 + $0x270] sm:$0xff] %vm3943, 0.0
  %4702 = vst.msk [vmem:[#allocation3 + $0x278] sm:$0xff] %vm3943, 0.0
  %4703 = vst.msk [vmem:[#allocation3 + $0x280] sm:$0x3] %vm4624, 0.0
  %4704 = vst.msk [vmem:[#allocation3 + $0x288] sm:$0xff] %vm3943, 0.0
  %4705 = vst.msk [vmem:[#allocation3 + $0x290] sm:$0xff] %vm3943, 0.0
  %4706 = vst.msk [vmem:[#allocation3 + $0x298] sm:$0x3] %vm4624, 0.0
  %4707 = vst.msk [vmem:[#allocation3 + $0x2a0] sm:$0xff] %vm3943, 0.0
  %4708 = vst.msk [vmem:[#allocation3 + $0x2a8] sm:$0xff] %vm3943, 0.0
  %4709 = vst.msk [vmem:[#allocation3 + $0x2b0] sm:$0x3] %vm4624, 0.0
  %4710 = vst.msk [vmem:[#allocation3 + $0x2b8] sm:$0xff] %vm3943, 0.0
  %4711 = vst.msk [vmem:[#allocation3 + $0x2c0] sm:$0xff] %vm3943, 0.0
  %4712 = vst.msk [vmem:[#allocation3 + $0x2c8] sm:$0x3] %vm4624, 0.0
  %4713 = vst.msk [vmem:[#allocation3 + $0x2d0] sm:$0xff] %vm3943, 0.0
  %4714 = vst.msk [vmem:[#allocation3 + $0x2d8] sm:$0xff] %vm3943, 0.0
  %4715 = vst.msk [vmem:[#allocation3 + $0x2e0] sm:$0x3] %vm4624, 0.0
  %4716 = vst.msk [vmem:[#allocation3 + $0x2e8] sm:$0xff] %vm3943, 0.0
  %4717 = vst.msk [vmem:[#allocation3 + $0x2f0] sm:$0xff] %vm3943, 0.0
  %4718 = vst.msk [vmem:[#allocation3 + $0x2f8] sm:$0x3] %vm4624, 0.0
  %4719 = vst.msk [vmem:[#allocation3 + $0x300] sm:$0xff] %vm3943, 0.0
  %4720 = vst.msk [vmem:[#allocation3 + $0x308] sm:$0xff] %vm3943, 0.0
  %4721 = vst.msk [vmem:[#allocation3 + $0x310] sm:$0x3] %vm4624, 0.0
  %4722 = vst.msk [vmem:[#allocation3 + $0x318] sm:$0xff] %vm3943, 0.0
  %4723 = vst.msk [vmem:[#allocation3 + $0x320] sm:$0xff] %vm3943, 0.0
  %4724 = vst.msk [vmem:[#allocation3 + $0x328] sm:$0x3] %vm4624, 0.0
  %4725 = vst.msk [vmem:[#allocation3 + $0x330] sm:$0xff] %vm3943, 0.0
  %4726 = vst.msk [vmem:[#allocation3 + $0x338] sm:$0xff] %vm3943, 0.0
  %4727 = vst.msk [vmem:[#allocation3 + $0x340] sm:$0x3] %vm4624, 0.0
  %4728 = vst.msk [vmem:[#allocation3 + $0x348] sm:$0xff] %vm3943, 0.0
  %4729 = vst.msk [vmem:[#allocation3 + $0x350] sm:$0xff] %vm3943, 0.0
  %4730 = vst.msk [vmem:[#allocation3 + $0x358] sm:$0x3] %vm4624, 0.0
  %s4731 = scalar_lea.vmem [#allocation3], 24
  %4732 = vst.msk [vmem:[%s4731 + $0x1] sm:$0xff] %vm3943, %v4558
  %4733 = vst.msk [vmem:[%s4731 + $0x9] sm:$0xff] %vm3943, %v4559
  %4734 = vst.msk [vmem:[%s4731 + $0x19] sm:$0xff] %vm3943, %v4560
  %4735 = vst.msk [vmem:[%s4731 + $0x21] sm:$0xff] %vm3943, %v4561
  %4736 = vst.msk [vmem:[%s4731 + $0x31] sm:$0xff] %vm3943, %v4562
  %4737 = vst.msk [vmem:[%s4731 + $0x39] sm:$0xff] %vm3943, %v4563
  %4738 = vst.msk [vmem:[%s4731 + $0x49] sm:$0xff] %vm3943, %v4564
  %4739 = vst.msk [vmem:[%s4731 + $0x51] sm:$0xff] %vm3943, %v4565
  %4740 = vst.msk [vmem:[%s4731 + $0x61] sm:$0xff] %vm3943, %v4566
  %4741 = vst.msk [vmem:[%s4731 + $0x69] sm:$0xff] %vm3943, %v4567
  %4742 = vst.msk [vmem:[%s4731 + $0x79] sm:$0xff] %vm3943, %v4568
  %4743 = vst.msk [vmem:[%s4731 + $0x81] sm:$0xff] %vm3943, %v4569
  %4744 = vst.msk [vmem:[%s4731 + $0x91] sm:$0xff] %vm3943, %v4570
  %4745 = vst.msk [vmem:[%s4731 + $0x99] sm:$0xff] %vm3943, %v4571
  %4746 = vst.msk [vmem:[%s4731 + $0xa9] sm:$0xff] %vm3943, %v4572
  %4747 = vst.msk [vmem:[%s4731 + $0xb1] sm:$0xff] %vm3943, %v4573
  %4748 = vst.msk [vmem:[%s4731 + $0xc1] sm:$0xff] %vm3943, %v4574
  %4749 = vst.msk [vmem:[%s4731 + $0xc9] sm:$0xff] %vm3943, %v4575
  %4750 = vst.msk [vmem:[%s4731 + $0xd9] sm:$0xff] %vm3943, %v4576
  %4751 = vst.msk [vmem:[%s4731 + $0xe1] sm:$0xff] %vm3943, %v4577
  %4752 = vst.msk [vmem:[%s4731 + $0xf1] sm:$0xff] %vm3943, %v4578
  %4753 = vst.msk [vmem:[%s4731 + $0xf9] sm:$0xff] %vm3943, %v4579
  %4754 = vst.msk [vmem:[%s4731 + $0x109] sm:$0xff] %vm3943, %v4580
  %4755 = vst.msk [vmem:[%s4731 + $0x111] sm:$0xff] %vm3943, %v4581
  %4756 = vst.msk [vmem:[%s4731 + $0x121] sm:$0xff] %vm3943, %v4582
  %4757 = vst.msk [vmem:[%s4731 + $0x129] sm:$0xff] %vm3943, %v4583
  %4758 = vst.msk [vmem:[%s4731 + $0x139] sm:$0xff] %vm3943, %v4584
  %4759 = vst.msk [vmem:[%s4731 + $0x141] sm:$0xff] %vm3943, %v4585
  %4760 = vst.msk [vmem:[%s4731 + $0x151] sm:$0xff] %vm3943, %v4586
  %4761 = vst.msk [vmem:[%s4731 + $0x159] sm:$0xff] %vm3943, %v4587
  %4762 = vst.msk [vmem:[%s4731 + $0x169] sm:$0xff] %vm3943, %v4588
  %4763 = vst.msk [vmem:[%s4731 + $0x171] sm:$0xff] %vm3943, %v4589
  %4764 = vst.msk [vmem:[%s4731 + $0x1b1] sm:$0xff] %vm3943, %v4590
  %4765 = vst.msk [vmem:[%s4731 + $0x1b9] sm:$0xff] %vm3943, %v4591
  %4766 = vst.msk [vmem:[%s4731 + $0x1c9] sm:$0xff] %vm3943, %v4592
  %4767 = vst.msk [vmem:[%s4731 + $0x1d1] sm:$0xff] %vm3943, %v4593
  %4768 = vst.msk [vmem:[%s4731 + $0x1e1] sm:$0xff] %vm3943, %v4594
  %4769 = vst.msk [vmem:[%s4731 + $0x1e9] sm:$0xff] %vm3943, %v4595
  %4770 = vst.msk [vmem:[%s4731 + $0x1f9] sm:$0xff] %vm3943, %v4596
  %4771 = vst.msk [vmem:[%s4731 + $0x201] sm:$0xff] %vm3943, %v4597
  %4772 = vst.msk [vmem:[%s4731 + $0x211] sm:$0xff] %vm3943, %v4598
  %4773 = vst.msk [vmem:[%s4731 + $0x219] sm:$0xff] %vm3943, %v4599
  %4774 = vst.msk [vmem:[%s4731 + $0x229] sm:$0xff] %vm3943, %v4600
  %4775 = vst.msk [vmem:[%s4731 + $0x231] sm:$0xff] %vm3943, %v4601
  %4776 = vst.msk [vmem:[%s4731 + $0x241] sm:$0xff] %vm3943, %v4602
  %4777 = vst.msk [vmem:[%s4731 + $0x249] sm:$0xff] %vm3943, %v4603
  %4778 = vst.msk [vmem:[%s4731 + $0x259] sm:$0xff] %vm3943, %v4604
  %4779 = vst.msk [vmem:[%s4731 + $0x261] sm:$0xff] %vm3943, %v4605
  %4780 = vst.msk [vmem:[%s4731 + $0x271] sm:$0xff] %vm3943, %v4606
  %4781 = vst.msk [vmem:[%s4731 + $0x279] sm:$0xff] %vm3943, %v4607
  %4782 = vst.msk [vmem:[%s4731 + $0x289] sm:$0xff] %vm3943, %v4608
  %4783 = vst.msk [vmem:[%s4731 + $0x291] sm:$0xff] %vm3943, %v4609
  %4784 = vst.msk [vmem:[%s4731 + $0x2a1] sm:$0xff] %vm3943, %v4610
  %4785 = vst.msk [vmem:[%s4731 + $0x2a9] sm:$0xff] %vm3943, %v4611
  %4786 = vst.msk [vmem:[%s4731 + $0x2b9] sm:$0xff] %vm3943, %v4612
  %4787 = vst.msk [vmem:[%s4731 + $0x2c1] sm:$0xff] %vm3943, %v4613
  %4788 = vst.msk [vmem:[%s4731 + $0x2d1] sm:$0xff] %vm3943, %v4614
  %4789 = vst.msk [vmem:[%s4731 + $0x2d9] sm:$0xff] %vm3943, %v4615
  %4790 = vst.msk [vmem:[%s4731 + $0x2e9] sm:$0xff] %vm3943, %v4616
  %4791 = vst.msk [vmem:[%s4731 + $0x2f1] sm:$0xff] %vm3943, %v4617
  %4792 = vst.msk [vmem:[%s4731 + $0x301] sm:$0xff] %vm3943, %v4618
  %4793 = vst.msk [vmem:[%s4731 + $0x309] sm:$0xff] %vm3943, %v4619
  %4794 = vst.msk [vmem:[%s4731 + $0x319] sm:$0xff] %vm3943, %v4620
  %4795 = vst.msk [vmem:[%s4731 + $0x321] sm:$0xff] %vm3943, %v4621
  %v4796 = vld [vmem:[#allocation3] sm:$0xff]
  %v4797 = vld [vmem:[#allocation3 + $0x8] sm:$0xff]
  %v4798 = vld [vmem:[#allocation3 + $0x18] sm:$0xff]
  %v4799 = vld [vmem:[#allocation3 + $0x20] sm:$0xff]
  %v4800 = vld [vmem:[#allocation3 + $0x30] sm:$0xff]
  %v4801 = vld [vmem:[#allocation3 + $0x38] sm:$0xff]
  %v4802 = vld [vmem:[#allocation3 + $0x48] sm:$0xff]
  %v4803 = vld [vmem:[#allocation3 + $0x50] sm:$0xff]
  %v4804 = vld [vmem:[#allocation3 + $0x60] sm:$0xff]
  %v4805 = vld [vmem:[#allocation3 + $0x68] sm:$0xff]
  %v4806 = vld [vmem:[#allocation3 + $0x78] sm:$0xff]
  %v4807 = vld [vmem:[#allocation3 + $0x80] sm:$0xff]
  %v4808 = vld [vmem:[#allocation3 + $0x90] sm:$0xff]
  %v4809 = vld [vmem:[#allocation3 + $0x98] sm:$0xff]
  %v4810 = vld [vmem:[#allocation3 + $0xa8] sm:$0xff]
  %v4811 = vld [vmem:[#allocation3 + $0xb0] sm:$0xff]
  %v4812 = vld [vmem:[#allocation3 + $0xc0] sm:$0xff]
  %v4813 = vld [vmem:[#allocation3 + $0xc8] sm:$0xff]
  %v4814 = vld [vmem:[#allocation3 + $0xd8] sm:$0xff]
  %v4815 = vld [vmem:[#allocation3 + $0xe0] sm:$0xff]
  %v4816 = vld [vmem:[#allocation3 + $0xf0] sm:$0xff]
  %v4817 = vld [vmem:[#allocation3 + $0xf8] sm:$0xff]
  %v4818 = vld [vmem:[#allocation3 + $0x108] sm:$0xff]
  %v4819 = vld [vmem:[#allocation3 + $0x110] sm:$0xff]
  %v4820 = vld [vmem:[#allocation3 + $0x120] sm:$0xff]
  %v4821 = vld [vmem:[#allocation3 + $0x128] sm:$0xff]
  %v4822 = vld [vmem:[#allocation3 + $0x138] sm:$0xff]
  %v4823 = vld [vmem:[#allocation3 + $0x140] sm:$0xff]
  %v4824 = vld [vmem:[#allocation3 + $0x150] sm:$0xff]
  %v4825 = vld [vmem:[#allocation3 + $0x158] sm:$0xff]
  %v4826 = vld [vmem:[#allocation3 + $0x168] sm:$0xff]
  %v4827 = vld [vmem:[#allocation3 + $0x170] sm:$0xff]
  %v4828 = vld [vmem:[#allocation3 + $0x1b0] sm:$0xff]
  %v4829 = vld [vmem:[#allocation3 + $0x1b8] sm:$0xff]
  %v4830 = vld [vmem:[#allocation3 + $0x1c8] sm:$0xff]
  %v4831 = vld [vmem:[#allocation3 + $0x1d0] sm:$0xff]
  %v4832 = vld [vmem:[#allocation3 + $0x1e0] sm:$0xff]
  %v4833 = vld [vmem:[#allocation3 + $0x1e8] sm:$0xff]
  %v4834 = vld [vmem:[#allocation3 + $0x1f8] sm:$0xff]
  %v4835 = vld [vmem:[#allocation3 + $0x200] sm:$0xff]
  %v4836 = vld [vmem:[#allocation3 + $0x210] sm:$0xff]
  %v4837 = vld [vmem:[#allocation3 + $0x218] sm:$0xff]
  %v4838 = vld [vmem:[#allocation3 + $0x228] sm:$0xff]
  %v4839 = vld [vmem:[#allocation3 + $0x230] sm:$0xff]
  %v4840 = vld [vmem:[#allocation3 + $0x240] sm:$0xff]
  %v4841 = vld [vmem:[#allocation3 + $0x248] sm:$0xff]
  %v4842 = vld [vmem:[#allocation3 + $0x258] sm:$0xff]
  %v4843 = vld [vmem:[#allocation3 + $0x260] sm:$0xff]
  %v4844 = vld [vmem:[#allocation3 + $0x270] sm:$0xff]
  %v4845 = vld [vmem:[#allocation3 + $0x278] sm:$0xff]
  %v4846 = vld [vmem:[#allocation3 + $0x288] sm:$0xff]
  %v4847 = vld [vmem:[#allocation3 + $0x290] sm:$0xff]
  %v4848 = vld [vmem:[#allocation3 + $0x2a0] sm:$0xff]
  %v4849 = vld [vmem:[#allocation3 + $0x2a8] sm:$0xff]
  %v4850 = vld [vmem:[#allocation3 + $0x2b8] sm:$0xff]
  %v4851 = vld [vmem:[#allocation3 + $0x2c0] sm:$0xff]
  %v4852 = vld [vmem:[#allocation3 + $0x2d0] sm:$0xff]
  %v4853 = vld [vmem:[#allocation3 + $0x2d8] sm:$0xff]
  %v4854 = vld [vmem:[#allocation3 + $0x2e8] sm:$0xff]
  %v4855 = vld [vmem:[#allocation3 + $0x2f0] sm:$0xff]
  %v4856 = vld [vmem:[#allocation3 + $0x300] sm:$0xff]
  %v4857 = vld [vmem:[#allocation3 + $0x308] sm:$0xff]
  %v4858 = vld [vmem:[#allocation3 + $0x318] sm:$0xff]
  %v4859 = vld [vmem:[#allocation3 + $0x320] sm:$0xff]
  %4860 = vst.msk [vmem:[#allocation5] sm:$0xff] %vm3943, %v4796
  %4861 = vst.msk [vmem:[#allocation5 + $0x10] sm:$0xff] %vm3943, %v4797
  %4862 = vst.msk [vmem:[#allocation5 + $0x20] sm:$0xff] %vm3943, %v4798
  %4863 = vst.msk [vmem:[#allocation5 + $0x30] sm:$0xff] %vm3943, %v4799
  %4864 = vst.msk [vmem:[#allocation5 + $0x40] sm:$0xff] %vm3943, %v4800
  %4865 = vst.msk [vmem:[#allocation5 + $0x50] sm:$0xff] %vm3943, %v4801
  %4866 = vst.msk [vmem:[#allocation5 + $0x60] sm:$0xff] %vm3943, %v4802
  %4867 = vst.msk [vmem:[#allocation5 + $0x70] sm:$0xff] %vm3943, %v4803
  %4868 = vst.msk [vmem:[#allocation5 + $0x80] sm:$0xff] %vm3943, %v4804
  %4869 = vst.msk [vmem:[#allocation5 + $0x90] sm:$0xff] %vm3943, %v4805
  %4870 = vst.msk [vmem:[#allocation5 + $0xa0] sm:$0xff] %vm3943, %v4806
  %4871 = vst.msk [vmem:[#allocation5 + $0xb0] sm:$0xff] %vm3943, %v4807
  %4872 = vst.msk [vmem:[#allocation5 + $0xc0] sm:$0xff] %vm3943, %v4808
  %4873 = vst.msk [vmem:[#allocation5 + $0xd0] sm:$0xff] %vm3943, %v4809
  %4874 = vst.msk [vmem:[#allocation5 + $0xe0] sm:$0xff] %vm3943, %v4810
  %4875 = vst.msk [vmem:[#allocation5 + $0xf0] sm:$0xff] %vm3943, %v4811
  %4876 = vst.msk [vmem:[#allocation5 + $0x100] sm:$0xff] %vm3943, %v4812
  %4877 = vst.msk [vmem:[#allocation5 + $0x110] sm:$0xff] %vm3943, %v4813
  %4878 = vst.msk [vmem:[#allocation5 + $0x120] sm:$0xff] %vm3943, %v4814
  %4879 = vst.msk [vmem:[#allocation5 + $0x130] sm:$0xff] %vm3943, %v4815
  %4880 = vst.msk [vmem:[#allocation5 + $0x140] sm:$0xff] %vm3943, %v4816
  %4881 = vst.msk [vmem:[#allocation5 + $0x150] sm:$0xff] %vm3943, %v4817
  %4882 = vst.msk [vmem:[#allocation5 + $0x160] sm:$0xff] %vm3943, %v4818
  %4883 = vst.msk [vmem:[#allocation5 + $0x170] sm:$0xff] %vm3943, %v4819
  %4884 = vst.msk [vmem:[#allocation5 + $0x180] sm:$0xff] %vm3943, %v4820
  %4885 = vst.msk [vmem:[#allocation5 + $0x190] sm:$0xff] %vm3943, %v4821
  %4886 = vst.msk [vmem:[#allocation5 + $0x1a0] sm:$0xff] %vm3943, %v4822
  %4887 = vst.msk [vmem:[#allocation5 + $0x1b0] sm:$0xff] %vm3943, %v4823
  %4888 = vst.msk [vmem:[#allocation5 + $0x1c0] sm:$0xff] %vm3943, %v4824
  %4889 = vst.msk [vmem:[#allocation5 + $0x1d0] sm:$0xff] %vm3943, %v4825
  %4890 = vst.msk [vmem:[#allocation5 + $0x1e0] sm:$0xff] %vm3943, %v4826
  %4891 = vst.msk [vmem:[#allocation5 + $0x1f0] sm:$0xff] %vm3943, %v4827
  %4892 = vst.msk [vmem:[#allocation5 + $0x200] sm:$0xff] %vm3943, %v4828
  %4893 = vst.msk [vmem:[#allocation5 + $0x210] sm:$0xff] %vm3943, %v4829
  %4894 = vst.msk [vmem:[#allocation5 + $0x220] sm:$0xff] %vm3943, %v4830
  %4895 = vst.msk [vmem:[#allocation5 + $0x230] sm:$0xff] %vm3943, %v4831
  %4896 = vst.msk [vmem:[#allocation5 + $0x240] sm:$0xff] %vm3943, %v4832
  %4897 = vst.msk [vmem:[#allocation5 + $0x250] sm:$0xff] %vm3943, %v4833
  %4898 = vst.msk [vmem:[#allocation5 + $0x260] sm:$0xff] %vm3943, %v4834
  %4899 = vst.msk [vmem:[#allocation5 + $0x270] sm:$0xff] %vm3943, %v4835
  %4900 = vst.msk [vmem:[#allocation5 + $0x280] sm:$0xff] %vm3943, %v4836
  %4901 = vst.msk [vmem:[#allocation5 + $0x290] sm:$0xff] %vm3943, %v4837
  %4902 = vst.msk [vmem:[#allocation5 + $0x2a0] sm:$0xff] %vm3943, %v4838
  %4903 = vst.msk [vmem:[#allocation5 + $0x2b0] sm:$0xff] %vm3943, %v4839
  %4904 = vst.msk [vmem:[#allocation5 + $0x2c0] sm:$0xff] %vm3943, %v4840
  %4905 = vst.msk [vmem:[#allocation5 + $0x2d0] sm:$0xff] %vm3943, %v4841
  %4906 = vst.msk [vmem:[#allocation5 + $0x2e0] sm:$0xff] %vm3943, %v4842
  %4907 = vst.msk [vmem:[#allocation5 + $0x2f0] sm:$0xff] %vm3943, %v4843
  %4908 = vst.msk [vmem:[#allocation5 + $0x300] sm:$0xff] %vm3943, %v4844
  %4909 = vst.msk [vmem:[#allocation5 + $0x310] sm:$0xff] %vm3943, %v4845
  %4910 = vst.msk [vmem:[#allocation5 + $0x320] sm:$0xff] %vm3943, %v4846
  %4911 = vst.msk [vmem:[#allocation5 + $0x330] sm:$0xff] %vm3943, %v4847
  %4912 = vst.msk [vmem:[#allocation5 + $0x340] sm:$0xff] %vm3943, %v4848
  %4913 = vst.msk [vmem:[#allocation5 + $0x350] sm:$0xff] %vm3943, %v4849
  %4914 = vst.msk [vmem:[#allocation5 + $0x360] sm:$0xff] %vm3943, %v4850
  %4915 = vst.msk [vmem:[#allocation5 + $0x370] sm:$0xff] %vm3943, %v4851
  %4916 = vst.msk [vmem:[#allocation5 + $0x380] sm:$0xff] %vm3943, %v4852
  %4917 = vst.msk [vmem:[#allocation5 + $0x390] sm:$0xff] %vm3943, %v4853
  %4918 = vst.msk [vmem:[#allocation5 + $0x3a0] sm:$0xff] %vm3943, %v4854
  %4919 = vst.msk [vmem:[#allocation5 + $0x3b0] sm:$0xff] %vm3943, %v4855
  %4920 = vst.msk [vmem:[#allocation5 + $0x3c0] sm:$0xff] %vm3943, %v4856
  %4921 = vst.msk [vmem:[#allocation5 + $0x3d0] sm:$0xff] %vm3943, %v4857
  %4922 = vst.msk [vmem:[#allocation5 + $0x3e0] sm:$0xff] %vm3943, %v4858
  %4923 = vst.msk [vmem:[#allocation5 + $0x3f0] sm:$0xff] %vm3943, %v4859
  %v4924 = vld [vmem:[#allocation3 + $0x1] sm:$0xff]
  %v4925 = vld [vmem:[#allocation3 + $0x9] sm:$0xff]
  %v4926 = vld [vmem:[#allocation3 + $0x19] sm:$0xff]
  %v4927 = vld [vmem:[#allocation3 + $0x21] sm:$0xff]
  %v4928 = vld [vmem:[#allocation3 + $0x31] sm:$0xff]
  %v4929 = vld [vmem:[#allocation3 + $0x39] sm:$0xff]
  %v4930 = vld [vmem:[#allocation3 + $0x49] sm:$0xff]
  %v4931 = vld [vmem:[#allocation3 + $0x51] sm:$0xff]
  %v4932 = vld [vmem:[#allocation3 + $0x61] sm:$0xff]
  %v4933 = vld [vmem:[#allocation3 + $0x69] sm:$0xff]
  %v4934 = vld [vmem:[#allocation3 + $0x79] sm:$0xff]
  %v4935 = vld [vmem:[#allocation3 + $0x81] sm:$0xff]
  %v4936 = vld [vmem:[#allocation3 + $0x91] sm:$0xff]
  %v4937 = vld [vmem:[#allocation3 + $0x99] sm:$0xff]
  %v4938 = vld [vmem:[#allocation3 + $0xa9] sm:$0xff]
  %v4939 = vld [vmem:[#allocation3 + $0xb1] sm:$0xff]
  %v4940 = vld [vmem:[#allocation3 + $0xc1] sm:$0xff]
  %v4941 = vld [vmem:[#allocation3 + $0xc9] sm:$0xff]
  %v4942 = vld [vmem:[#allocation3 + $0xd9] sm:$0xff]
  %v4943 = vld [vmem:[#allocation3 + $0xe1] sm:$0xff]
  %v4944 = vld [vmem:[#allocation3 + $0xf1] sm:$0xff]
  %v4945 = vld [vmem:[#allocation3 + $0xf9] sm:$0xff]
  %v4946 = vld [vmem:[#allocation3 + $0x109] sm:$0xff]
  %v4947 = vld [vmem:[#allocation3 + $0x111] sm:$0xff]
  %v4948 = vld [vmem:[#allocation3 + $0x121] sm:$0xff]
  %v4949 = vld [vmem:[#allocation3 + $0x129] sm:$0xff]
  %v4950 = vld [vmem:[#allocation3 + $0x139] sm:$0xff]
  %v4951 = vld [vmem:[#allocation3 + $0x141] sm:$0xff]
  %v4952 = vld [vmem:[#allocation3 + $0x151] sm:$0xff]
  %v4953 = vld [vmem:[#allocation3 + $0x159] sm:$0xff]
  %v4954 = vld [vmem:[#allocation3 + $0x169] sm:$0xff]
  %v4955 = vld [vmem:[#allocation3 + $0x171] sm:$0xff]
  %v4956 = vld [vmem:[#allocation3 + $0x1b1] sm:$0xff]
  %v4957 = vld [vmem:[#allocation3 + $0x1b9] sm:$0xff]
  %v4958 = vld [vmem:[#allocation3 + $0x1c9] sm:$0xff]
  %v4959 = vld [vmem:[#allocation3 + $0x1d1] sm:$0xff]
  %v4960 = vld [vmem:[#allocation3 + $0x1e1] sm:$0xff]
  %v4961 = vld [vmem:[#allocation3 + $0x1e9] sm:$0xff]
  %v4962 = vld [vmem:[#allocation3 + $0x1f9] sm:$0xff]
  %v4963 = vld [vmem:[#allocation3 + $0x201] sm:$0xff]
  %v4964 = vld [vmem:[#allocation3 + $0x211] sm:$0xff]
  %v4965 = vld [vmem:[#allocation3 + $0x219] sm:$0xff]
  %v4966 = vld [vmem:[#allocation3 + $0x229] sm:$0xff]
  %v4967 = vld [vmem:[#allocation3 + $0x231] sm:$0xff]
  %v4968 = vld [vmem:[#allocation3 + $0x241] sm:$0xff]
  %v4969 = vld [vmem:[#allocation3 + $0x249] sm:$0xff]
  %v4970 = vld [vmem:[#allocation3 + $0x259] sm:$0xff]
  %v4971 = vld [vmem:[#allocation3 + $0x261] sm:$0xff]
  %v4972 = vld [vmem:[#allocation3 + $0x271] sm:$0xff]
  %v4973 = vld [vmem:[#allocation3 + $0x279] sm:$0xff]
  %v4974 = vld [vmem:[#allocation3 + $0x289] sm:$0xff]
  %v4975 = vld [vmem:[#allocation3 + $0x291] sm:$0xff]
  %v4976 = vld [vmem:[#allocation3 + $0x2a1] sm:$0xff]
  %v4977 = vld [vmem:[#allocation3 + $0x2a9] sm:$0xff]
  %v4978 = vld [vmem:[#allocation3 + $0x2b9] sm:$0xff]
  %v4979 = vld [vmem:[#allocation3 + $0x2c1] sm:$0xff]
  %v4980 = vld [vmem:[#allocation3 + $0x2d1] sm:$0xff]
  %v4981 = vld [vmem:[#allocation3 + $0x2d9] sm:$0xff]
  %v4982 = vld [vmem:[#allocation3 + $0x2e9] sm:$0xff]
  %v4983 = vld [vmem:[#allocation3 + $0x2f1] sm:$0xff]
  %v4984 = vld [vmem:[#allocation3 + $0x301] sm:$0xff]
  %v4985 = vld [vmem:[#allocation3 + $0x309] sm:$0xff]
  %v4986 = vld [vmem:[#allocation3 + $0x319] sm:$0xff]
  %v4987 = vld [vmem:[#allocation3 + $0x321] sm:$0xff]
  %5052 = vrot.lane.b32.xlu0 %v4924, 16
  %v5053 = vpop.permute.xlu0 %5052
  %5054 = vrot.lane.b32.xlu0 %v4925, 16
  %v5055 = vpop.permute.xlu0 %5054
  %5056 = vrot.lane.b32.xlu0 %v4926, 16
  %v5057 = vpop.permute.xlu0 %5056
  %5058 = vrot.lane.b32.xlu0 %v4927, 16
  %v5059 = vpop.permute.xlu0 %5058
  %5060 = vrot.lane.b32.xlu0 %v4928, 16
  %v5061 = vpop.permute.xlu0 %5060
  %5062 = vrot.lane.b32.xlu0 %v4929, 16
  %v5063 = vpop.permute.xlu0 %5062
  %5064 = vrot.lane.b32.xlu0 %v4930, 16
  %v5065 = vpop.permute.xlu0 %5064
  %5066 = vrot.lane.b32.xlu0 %v4931, 16
  %v5067 = vpop.permute.xlu0 %5066
  %5068 = vrot.lane.b32.xlu0 %v4932, 16
  %v5069 = vpop.permute.xlu0 %5068
  %5070 = vrot.lane.b32.xlu0 %v4933, 16
  %v5071 = vpop.permute.xlu0 %5070
  %5072 = vrot.lane.b32.xlu0 %v4934, 16
  %v5073 = vpop.permute.xlu0 %5072
  %5074 = vrot.lane.b32.xlu0 %v4935, 16
  %v5075 = vpop.permute.xlu0 %5074
  %5076 = vrot.lane.b32.xlu0 %v4936, 16
  %v5077 = vpop.permute.xlu0 %5076
  %5078 = vrot.lane.b32.xlu0 %v4937, 16
  %v5079 = vpop.permute.xlu0 %5078
  %5080 = vrot.lane.b32.xlu0 %v4938, 16
  %v5081 = vpop.permute.xlu0 %5080
  %5082 = vrot.lane.b32.xlu0 %v4939, 16
  %v5083 = vpop.permute.xlu0 %5082
  %5084 = vrot.lane.b32.xlu0 %v4940, 16
  %v5085 = vpop.permute.xlu0 %5084
  %5086 = vrot.lane.b32.xlu0 %v4941, 16
  %v5087 = vpop.permute.xlu0 %5086
  %5088 = vrot.lane.b32.xlu0 %v4942, 16
  %v5089 = vpop.permute.xlu0 %5088
  %5090 = vrot.lane.b32.xlu0 %v4943, 16
  %v5091 = vpop.permute.xlu0 %5090
  %5092 = vrot.lane.b32.xlu0 %v4944, 16
  %v5093 = vpop.permute.xlu0 %5092
  %5094 = vrot.lane.b32.xlu0 %v4945, 16
  %v5095 = vpop.permute.xlu0 %5094
  %5096 = vrot.lane.b32.xlu0 %v4946, 16
  %v5097 = vpop.permute.xlu0 %5096
  %5098 = vrot.lane.b32.xlu0 %v4947, 16
  %v5099 = vpop.permute.xlu0 %5098
  %5100 = vrot.lane.b32.xlu0 %v4948, 16
  %v5101 = vpop.permute.xlu0 %5100
  %5102 = vrot.lane.b32.xlu0 %v4949, 16
  %v5103 = vpop.permute.xlu0 %5102
  %5104 = vrot.lane.b32.xlu0 %v4950, 16
  %v5105 = vpop.permute.xlu0 %5104
  %5106 = vrot.lane.b32.xlu0 %v4951, 16
  %v5107 = vpop.permute.xlu0 %5106
  %5108 = vrot.lane.b32.xlu0 %v4952, 16
  %v5109 = vpop.permute.xlu0 %5108
  %5110 = vrot.lane.b32.xlu0 %v4953, 16
  %v5111 = vpop.permute.xlu0 %5110
  %5112 = vrot.lane.b32.xlu0 %v4954, 16
  %v5113 = vpop.permute.xlu0 %5112
  %5114 = vrot.lane.b32.xlu0 %v4955, 16
  %v5115 = vpop.permute.xlu0 %5114
  %5116 = vrot.lane.b32.xlu0 %v4956, 16
  %v5117 = vpop.permute.xlu0 %5116
  %5118 = vrot.lane.b32.xlu0 %v4957, 16
  %v5119 = vpop.permute.xlu0 %5118
  %5120 = vrot.lane.b32.xlu0 %v4958, 16
  %v5121 = vpop.permute.xlu0 %5120
  %5122 = vrot.lane.b32.xlu0 %v4959, 16
  %v5123 = vpop.permute.xlu0 %5122
  %5124 = vrot.lane.b32.xlu0 %v4960, 16
  %v5125 = vpop.permute.xlu0 %5124
  %5126 = vrot.lane.b32.xlu0 %v4961, 16
  %v5127 = vpop.permute.xlu0 %5126
  %5128 = vrot.lane.b32.xlu0 %v4962, 16
  %v5129 = vpop.permute.xlu0 %5128
  %5130 = vrot.lane.b32.xlu0 %v4963, 16
  %v5131 = vpop.permute.xlu0 %5130
  %5132 = vrot.lane.b32.xlu0 %v4964, 16
  %v5133 = vpop.permute.xlu0 %5132
  %5134 = vrot.lane.b32.xlu0 %v4965, 16
  %v5135 = vpop.permute.xlu0 %5134
  %5136 = vrot.lane.b32.xlu0 %v4966, 16
  %v5137 = vpop.permute.xlu0 %5136
  %5138 = vrot.lane.b32.xlu0 %v4967, 16
  %v5139 = vpop.permute.xlu0 %5138
  %5140 = vrot.lane.b32.xlu0 %v4968, 16
  %v5141 = vpop.permute.xlu0 %5140
  %5142 = vrot.lane.b32.xlu0 %v4969, 16
  %v5143 = vpop.permute.xlu0 %5142
  %5144 = vrot.lane.b32.xlu0 %v4970, 16
  %v5145 = vpop.permute.xlu0 %5144
  %5146 = vrot.lane.b32.xlu0 %v4971, 16
  %v5147 = vpop.permute.xlu0 %5146
  %5148 = vrot.lane.b32.xlu0 %v4972, 16
  %v5149 = vpop.permute.xlu0 %5148
  %5150 = vrot.lane.b32.xlu0 %v4973, 16
  %v5151 = vpop.permute.xlu0 %5150
  %5152 = vrot.lane.b32.xlu0 %v4974, 16
  %v5153 = vpop.permute.xlu0 %5152
  %5154 = vrot.lane.b32.xlu0 %v4975, 16
  %v5155 = vpop.permute.xlu0 %5154
  %5156 = vrot.lane.b32.xlu0 %v4976, 16
  %v5157 = vpop.permute.xlu0 %5156
  %5158 = vrot.lane.b32.xlu0 %v4977, 16
  %v5159 = vpop.permute.xlu0 %5158
  %5160 = vrot.lane.b32.xlu0 %v4978, 16
  %v5161 = vpop.permute.xlu0 %5160
  %5162 = vrot.lane.b32.xlu0 %v4979, 16
  %v5163 = vpop.permute.xlu0 %5162
  %5164 = vrot.lane.b32.xlu0 %v4980, 16
  %v5165 = vpop.permute.xlu0 %5164
  %5166 = vrot.lane.b32.xlu0 %v4981, 16
  %v5167 = vpop.permute.xlu0 %5166
  %5168 = vrot.lane.b32.xlu0 %v4982, 16
  %v5169 = vpop.permute.xlu0 %5168
  %5170 = vrot.lane.b32.xlu0 %v4983, 16
  %v5171 = vpop.permute.xlu0 %5170
  %5172 = vrot.lane.b32.xlu0 %v4984, 16
  %v5173 = vpop.permute.xlu0 %5172
  %5174 = vrot.lane.b32.xlu0 %v4985, 16
  %v5175 = vpop.permute.xlu0 %5174
  %5176 = vrot.lane.b32.xlu0 %v4986, 16
  %v5177 = vpop.permute.xlu0 %5176
  %5178 = vrot.lane.b32.xlu0 %v4987, 16
  %v5179 = vpop.permute.xlu0 %5178
  %vm5244 = vcmask 261248
  %5245 = vst.msk [vmem:[#allocation5] sm:$0xff] %vm5244, %v5053
  %5246 = vst.msk [vmem:[#allocation5 + $0x10] sm:$0xff] %vm5244, %v5055
  %5247 = vst.msk [vmem:[#allocation5 + $0x20] sm:$0xff] %vm5244, %v5057
  %5248 = vst.msk [vmem:[#allocation5 + $0x30] sm:$0xff] %vm5244, %v5059
  %5249 = vst.msk [vmem:[#allocation5 + $0x40] sm:$0xff] %vm5244, %v5061
  %5250 = vst.msk [vmem:[#allocation5 + $0x50] sm:$0xff] %vm5244, %v5063
  %5251 = vst.msk [vmem:[#allocation5 + $0x60] sm:$0xff] %vm5244, %v5065
  %5252 = vst.msk [vmem:[#allocation5 + $0x70] sm:$0xff] %vm5244, %v5067
  %5253 = vst.msk [vmem:[#allocation5 + $0x80] sm:$0xff] %vm5244, %v5069
  %5254 = vst.msk [vmem:[#allocation5 + $0x90] sm:$0xff] %vm5244, %v5071
  %5255 = vst.msk [vmem:[#allocation5 + $0xa0] sm:$0xff] %vm5244, %v5073
  %5256 = vst.msk [vmem:[#allocation5 + $0xb0] sm:$0xff] %vm5244, %v5075
  %5257 = vst.msk [vmem:[#allocation5 + $0xc0] sm:$0xff] %vm5244, %v5077
  %5258 = vst.msk [vmem:[#allocation5 + $0xd0] sm:$0xff] %vm5244, %v5079
  %5259 = vst.msk [vmem:[#allocation5 + $0xe0] sm:$0xff] %vm5244, %v5081
  %5260 = vst.msk [vmem:[#allocation5 + $0xf0] sm:$0xff] %vm5244, %v5083
  %5261 = vst.msk [vmem:[#allocation5 + $0x100] sm:$0xff] %vm5244, %v5085
  %5262 = vst.msk [vmem:[#allocation5 + $0x110] sm:$0xff] %vm5244, %v5087
  %5263 = vst.msk [vmem:[#allocation5 + $0x120] sm:$0xff] %vm5244, %v5089
  %5264 = vst.msk [vmem:[#allocation5 + $0x130] sm:$0xff] %vm5244, %v5091
  %5265 = vst.msk [vmem:[#allocation5 + $0x140] sm:$0xff] %vm5244, %v5093
  %5266 = vst.msk [vmem:[#allocation5 + $0x150] sm:$0xff] %vm5244, %v5095
  %5267 = vst.msk [vmem:[#allocation5 + $0x160] sm:$0xff] %vm5244, %v5097
  %5268 = vst.msk [vmem:[#allocation5 + $0x170] sm:$0xff] %vm5244, %v5099
  %5269 = vst.msk [vmem:[#allocation5 + $0x180] sm:$0xff] %vm5244, %v5101
  %5270 = vst.msk [vmem:[#allocation5 + $0x190] sm:$0xff] %vm5244, %v5103
  %5271 = vst.msk [vmem:[#allocation5 + $0x1a0] sm:$0xff] %vm5244, %v5105
  %5272 = vst.msk [vmem:[#allocation5 + $0x1b0] sm:$0xff] %vm5244, %v5107
  %5273 = vst.msk [vmem:[#allocation5 + $0x1c0] sm:$0xff] %vm5244, %v5109
  %5274 = vst.msk [vmem:[#allocation5 + $0x1d0] sm:$0xff] %vm5244, %v5111
  %5275 = vst.msk [vmem:[#allocation5 + $0x1e0] sm:$0xff] %vm5244, %v5113
  %5276 = vst.msk [vmem:[#allocation5 + $0x1f0] sm:$0xff] %vm5244, %v5115
  %5277 = vst.msk [vmem:[#allocation5 + $0x200] sm:$0xff] %vm5244, %v5117
  %5278 = vst.msk [vmem:[#allocation5 + $0x210] sm:$0xff] %vm5244, %v5119
  %5279 = vst.msk [vmem:[#allocation5 + $0x220] sm:$0xff] %vm5244, %v5121
  %5280 = vst.msk [vmem:[#allocation5 + $0x230] sm:$0xff] %vm5244, %v5123
  %5281 = vst.msk [vmem:[#allocation5 + $0x240] sm:$0xff] %vm5244, %v5125
  %5282 = vst.msk [vmem:[#allocation5 + $0x250] sm:$0xff] %vm5244, %v5127
  %5283 = vst.msk [vmem:[#allocation5 + $0x260] sm:$0xff] %vm5244, %v5129
  %5284 = vst.msk [vmem:[#allocation5 + $0x270] sm:$0xff] %vm5244, %v5131
  %5285 = vst.msk [vmem:[#allocation5 + $0x280] sm:$0xff] %vm5244, %v5133
  %5286 = vst.msk [vmem:[#allocation5 + $0x290] sm:$0xff] %vm5244, %v5135
  %5287 = vst.msk [vmem:[#allocation5 + $0x2a0] sm:$0xff] %vm5244, %v5137
  %5288 = vst.msk [vmem:[#allocation5 + $0x2b0] sm:$0xff] %vm5244, %v5139
  %5289 = vst.msk [vmem:[#allocation5 + $0x2c0] sm:$0xff] %vm5244, %v5141
  %5290 = vst.msk [vmem:[#allocation5 + $0x2d0] sm:$0xff] %vm5244, %v5143
  %5291 = vst.msk [vmem:[#allocation5 + $0x2e0] sm:$0xff] %vm5244, %v5145
  %5292 = vst.msk [vmem:[#allocation5 + $0x2f0] sm:$0xff] %vm5244, %v5147
  %5293 = vst.msk [vmem:[#allocation5 + $0x300] sm:$0xff] %vm5244, %v5149
  %5294 = vst.msk [vmem:[#allocation5 + $0x310] sm:$0xff] %vm5244, %v5151
  %5295 = vst.msk [vmem:[#allocation5 + $0x320] sm:$0xff] %vm5244, %v5153
  %5296 = vst.msk [vmem:[#allocation5 + $0x330] sm:$0xff] %vm5244, %v5155
  %5297 = vst.msk [vmem:[#allocation5 + $0x340] sm:$0xff] %vm5244, %v5157
  %5298 = vst.msk [vmem:[#allocation5 + $0x350] sm:$0xff] %vm5244, %v5159
  %5299 = vst.msk [vmem:[#allocation5 + $0x360] sm:$0xff] %vm5244, %v5161
  %5300 = vst.msk [vmem:[#allocation5 + $0x370] sm:$0xff] %vm5244, %v5163
  %5301 = vst.msk [vmem:[#allocation5 + $0x380] sm:$0xff] %vm5244, %v5165
  %5302 = vst.msk [vmem:[#allocation5 + $0x390] sm:$0xff] %vm5244, %v5167
  %5303 = vst.msk [vmem:[#allocation5 + $0x3a0] sm:$0xff] %vm5244, %v5169
  %5304 = vst.msk [vmem:[#allocation5 + $0x3b0] sm:$0xff] %vm5244, %v5171
  %5305 = vst.msk [vmem:[#allocation5 + $0x3c0] sm:$0xff] %vm5244, %v5173
  %5306 = vst.msk [vmem:[#allocation5 + $0x3d0] sm:$0xff] %vm5244, %v5175
  %5307 = vst.msk [vmem:[#allocation5 + $0x3e0] sm:$0xff] %vm5244, %v5177
  %5308 = vst.msk [vmem:[#allocation5 + $0x3f0] sm:$0xff] %vm5244, %v5179
  %v5309 = vld [vmem:[#allocation3 + $0x2] sm:$0xff]
  %v5310 = vld [vmem:[#allocation3 + $0xa] sm:$0xff]
  %v5311 = vld [vmem:[#allocation3 + $0x1a] sm:$0xff]
  %v5312 = vld [vmem:[#allocation3 + $0x22] sm:$0xff]
  %v5313 = vld [vmem:[#allocation3 + $0x32] sm:$0xff]
  %v5314 = vld [vmem:[#allocation3 + $0x3a] sm:$0xff]
  %v5315 = vld [vmem:[#allocation3 + $0x4a] sm:$0xff]
  %v5316 = vld [vmem:[#allocation3 + $0x52] sm:$0xff]
  %v5317 = vld [vmem:[#allocation3 + $0x62] sm:$0xff]
  %v5318 = vld [vmem:[#allocation3 + $0x6a] sm:$0xff]
  %v5319 = vld [vmem:[#allocation3 + $0x7a] sm:$0xff]
  %v5320 = vld [vmem:[#allocation3 + $0x82] sm:$0xff]
  %v5321 = vld [vmem:[#allocation3 + $0x92] sm:$0xff]
  %v5322 = vld [vmem:[#allocation3 + $0x9a] sm:$0xff]
  %v5323 = vld [vmem:[#allocation3 + $0xaa] sm:$0xff]
  %v5324 = vld [vmem:[#allocation3 + $0xb2] sm:$0xff]
  %v5325 = vld [vmem:[#allocation3 + $0xc2] sm:$0xff]
  %v5326 = vld [vmem:[#allocation3 + $0xca] sm:$0xff]
  %v5327 = vld [vmem:[#allocation3 + $0xda] sm:$0xff]
  %v5328 = vld [vmem:[#allocation3 + $0xe2] sm:$0xff]
  %v5329 = vld [vmem:[#allocation3 + $0xf2] sm:$0xff]
  %v5330 = vld [vmem:[#allocation3 + $0xfa] sm:$0xff]
  %v5331 = vld [vmem:[#allocation3 + $0x10a] sm:$0xff]
  %v5332 = vld [vmem:[#allocation3 + $0x112] sm:$0xff]
  %v5333 = vld [vmem:[#allocation3 + $0x122] sm:$0xff]
  %v5334 = vld [vmem:[#allocation3 + $0x12a] sm:$0xff]
  %v5335 = vld [vmem:[#allocation3 + $0x13a] sm:$0xff]
  %v5336 = vld [vmem:[#allocation3 + $0x142] sm:$0xff]
  %v5337 = vld [vmem:[#allocation3 + $0x152] sm:$0xff]
  %v5338 = vld [vmem:[#allocation3 + $0x15a] sm:$0xff]
  %v5339 = vld [vmem:[#allocation3 + $0x16a] sm:$0xff]
  %v5340 = vld [vmem:[#allocation3 + $0x172] sm:$0xff]
  %v5341 = vld [vmem:[#allocation3 + $0x1b2] sm:$0xff]
  %v5342 = vld [vmem:[#allocation3 + $0x1ba] sm:$0xff]
  %v5343 = vld [vmem:[#allocation3 + $0x1ca] sm:$0xff]
  %v5344 = vld [vmem:[#allocation3 + $0x1d2] sm:$0xff]
  %v5345 = vld [vmem:[#allocation3 + $0x1e2] sm:$0xff]
  %v5346 = vld [vmem:[#allocation3 + $0x1ea] sm:$0xff]
  %v5347 = vld [vmem:[#allocation3 + $0x1fa] sm:$0xff]
  %v5348 = vld [vmem:[#allocation3 + $0x202] sm:$0xff]
  %v5349 = vld [vmem:[#allocation3 + $0x212] sm:$0xff]
  %v5350 = vld [vmem:[#allocation3 + $0x21a] sm:$0xff]
  %v5351 = vld [vmem:[#allocation3 + $0x22a] sm:$0xff]
  %v5352 = vld [vmem:[#allocation3 + $0x232] sm:$0xff]
  %v5353 = vld [vmem:[#allocation3 + $0x242] sm:$0xff]
  %v5354 = vld [vmem:[#allocation3 + $0x24a] sm:$0xff]
  %v5355 = vld [vmem:[#allocation3 + $0x25a] sm:$0xff]
  %v5356 = vld [vmem:[#allocation3 + $0x262] sm:$0xff]
  %v5357 = vld [vmem:[#allocation3 + $0x272] sm:$0xff]
  %v5358 = vld [vmem:[#allocation3 + $0x27a] sm:$0xff]
  %v5359 = vld [vmem:[#allocation3 + $0x28a] sm:$0xff]
  %v5360 = vld [vmem:[#allocation3 + $0x292] sm:$0xff]
  %v5361 = vld [vmem:[#allocation3 + $0x2a2] sm:$0xff]
  %v5362 = vld [vmem:[#allocation3 + $0x2aa] sm:$0xff]
  %v5363 = vld [vmem:[#allocation3 + $0x2ba] sm:$0xff]
  %v5364 = vld [vmem:[#allocation3 + $0x2c2] sm:$0xff]
  %v5365 = vld [vmem:[#allocation3 + $0x2d2] sm:$0xff]
  %v5366 = vld [vmem:[#allocation3 + $0x2da] sm:$0xff]
  %v5367 = vld [vmem:[#allocation3 + $0x2ea] sm:$0xff]
  %v5368 = vld [vmem:[#allocation3 + $0x2f2] sm:$0xff]
  %v5369 = vld [vmem:[#allocation3 + $0x302] sm:$0xff]
  %v5370 = vld [vmem:[#allocation3 + $0x30a] sm:$0xff]
  %v5371 = vld [vmem:[#allocation3 + $0x31a] sm:$0xff]
  %v5372 = vld [vmem:[#allocation3 + $0x322] sm:$0xff]
  %5437 = vrot.lane.b32.xlu0 %v5309, 32
  %v5438 = vpop.permute.xlu0 %5437
  %5439 = vrot.lane.b32.xlu0 %v5310, 32
  %v5440 = vpop.permute.xlu0 %5439
  %5441 = vrot.lane.b32.xlu0 %v5311, 32
  %v5442 = vpop.permute.xlu0 %5441
  %5443 = vrot.lane.b32.xlu0 %v5312, 32
  %v5444 = vpop.permute.xlu0 %5443
  %5445 = vrot.lane.b32.xlu0 %v5313, 32
  %v5446 = vpop.permute.xlu0 %5445
  %5447 = vrot.lane.b32.xlu0 %v5314, 32
  %v5448 = vpop.permute.xlu0 %5447
  %5449 = vrot.lane.b32.xlu0 %v5315, 32
  %v5450 = vpop.permute.xlu0 %5449
  %5451 = vrot.lane.b32.xlu0 %v5316, 32
  %v5452 = vpop.permute.xlu0 %5451
  %5453 = vrot.lane.b32.xlu0 %v5317, 32
  %v5454 = vpop.permute.xlu0 %5453
  %5455 = vrot.lane.b32.xlu0 %v5318, 32
  %v5456 = vpop.permute.xlu0 %5455
  %5457 = vrot.lane.b32.xlu0 %v5319, 32
  %v5458 = vpop.permute.xlu0 %5457
  %5459 = vrot.lane.b32.xlu0 %v5320, 32
  %v5460 = vpop.permute.xlu0 %5459
  %5461 = vrot.lane.b32.xlu0 %v5321, 32
  %v5462 = vpop.permute.xlu0 %5461
  %5463 = vrot.lane.b32.xlu0 %v5322, 32
  %v5464 = vpop.permute.xlu0 %5463
  %5465 = vrot.lane.b32.xlu0 %v5323, 32
  %v5466 = vpop.permute.xlu0 %5465
  %5467 = vrot.lane.b32.xlu0 %v5324, 32
  %v5468 = vpop.permute.xlu0 %5467
  %5469 = vrot.lane.b32.xlu0 %v5325, 32
  %v5470 = vpop.permute.xlu0 %5469
  %5471 = vrot.lane.b32.xlu0 %v5326, 32
  %v5472 = vpop.permute.xlu0 %5471
  %5473 = vrot.lane.b32.xlu0 %v5327, 32
  %v5474 = vpop.permute.xlu0 %5473
  %5475 = vrot.lane.b32.xlu0 %v5328, 32
  %v5476 = vpop.permute.xlu0 %5475
  %5477 = vrot.lane.b32.xlu0 %v5329, 32
  %v5478 = vpop.permute.xlu0 %5477
  %5479 = vrot.lane.b32.xlu0 %v5330, 32
  %v5480 = vpop.permute.xlu0 %5479
  %5481 = vrot.lane.b32.xlu0 %v5331, 32
  %v5482 = vpop.permute.xlu0 %5481
  %5483 = vrot.lane.b32.xlu0 %v5332, 32
  %v5484 = vpop.permute.xlu0 %5483
  %5485 = vrot.lane.b32.xlu0 %v5333, 32
  %v5486 = vpop.permute.xlu0 %5485
  %5487 = vrot.lane.b32.xlu0 %v5334, 32
  %v5488 = vpop.permute.xlu0 %5487
  %5489 = vrot.lane.b32.xlu0 %v5335, 32
  %v5490 = vpop.permute.xlu0 %5489
  %5491 = vrot.lane.b32.xlu0 %v5336, 32
  %v5492 = vpop.permute.xlu0 %5491
  %5493 = vrot.lane.b32.xlu0 %v5337, 32
  %v5494 = vpop.permute.xlu0 %5493
  %5495 = vrot.lane.b32.xlu0 %v5338, 32
  %v5496 = vpop.permute.xlu0 %5495
  %5497 = vrot.lane.b32.xlu0 %v5339, 32
  %v5498 = vpop.permute.xlu0 %5497
  %5499 = vrot.lane.b32.xlu0 %v5340, 32
  %v5500 = vpop.permute.xlu0 %5499
  %5501 = vrot.lane.b32.xlu0 %v5341, 32
  %v5502 = vpop.permute.xlu0 %5501
  %5503 = vrot.lane.b32.xlu0 %v5342, 32
  %v5504 = vpop.permute.xlu0 %5503
  %5505 = vrot.lane.b32.xlu0 %v5343, 32
  %v5506 = vpop.permute.xlu0 %5505
  %5507 = vrot.lane.b32.xlu0 %v5344, 32
  %v5508 = vpop.permute.xlu0 %5507
  %5509 = vrot.lane.b32.xlu0 %v5345, 32
  %v5510 = vpop.permute.xlu0 %5509
  %5511 = vrot.lane.b32.xlu0 %v5346, 32
  %v5512 = vpop.permute.xlu0 %5511
  %5513 = vrot.lane.b32.xlu0 %v5347, 32
  %v5514 = vpop.permute.xlu0 %5513
  %5515 = vrot.lane.b32.xlu0 %v5348, 32
  %v5516 = vpop.permute.xlu0 %5515
  %5517 = vrot.lane.b32.xlu0 %v5349, 32
  %v5518 = vpop.permute.xlu0 %5517
  %5519 = vrot.lane.b32.xlu0 %v5350, 32
  %v5520 = vpop.permute.xlu0 %5519
  %5521 = vrot.lane.b32.xlu0 %v5351, 32
  %v5522 = vpop.permute.xlu0 %5521
  %5523 = vrot.lane.b32.xlu0 %v5352, 32
  %v5524 = vpop.permute.xlu0 %5523
  %5525 = vrot.lane.b32.xlu0 %v5353, 32
  %v5526 = vpop.permute.xlu0 %5525
  %5527 = vrot.lane.b32.xlu0 %v5354, 32
  %v5528 = vpop.permute.xlu0 %5527
  %5529 = vrot.lane.b32.xlu0 %v5355, 32
  %v5530 = vpop.permute.xlu0 %5529
  %5531 = vrot.lane.b32.xlu0 %v5356, 32
  %v5532 = vpop.permute.xlu0 %5531
  %5533 = vrot.lane.b32.xlu0 %v5357, 32
  %v5534 = vpop.permute.xlu0 %5533
  %5535 = vrot.lane.b32.xlu0 %v5358, 32
  %v5536 = vpop.permute.xlu0 %5535
  %5537 = vrot.lane.b32.xlu0 %v5359, 32
  %v5538 = vpop.permute.xlu0 %5537
  %5539 = vrot.lane.b32.xlu0 %v5360, 32
  %v5540 = vpop.permute.xlu0 %5539
  %5541 = vrot.lane.b32.xlu0 %v5361, 32
  %v5542 = vpop.permute.xlu0 %5541
  %5543 = vrot.lane.b32.xlu0 %v5362, 32
  %v5544 = vpop.permute.xlu0 %5543
  %5545 = vrot.lane.b32.xlu0 %v5363, 32
  %v5546 = vpop.permute.xlu0 %5545
  %5547 = vrot.lane.b32.xlu0 %v5364, 32
  %v5548 = vpop.permute.xlu0 %5547
  %5549 = vrot.lane.b32.xlu0 %v5365, 32
  %v5550 = vpop.permute.xlu0 %5549
  %5551 = vrot.lane.b32.xlu0 %v5366, 32
  %v5552 = vpop.permute.xlu0 %5551
  %5553 = vrot.lane.b32.xlu0 %v5367, 32
  %v5554 = vpop.permute.xlu0 %5553
  %5555 = vrot.lane.b32.xlu0 %v5368, 32
  %v5556 = vpop.permute.xlu0 %5555
  %5557 = vrot.lane.b32.xlu0 %v5369, 32
  %v5558 = vpop.permute.xlu0 %5557
  %5559 = vrot.lane.b32.xlu0 %v5370, 32
  %v5560 = vpop.permute.xlu0 %5559
  %5561 = vrot.lane.b32.xlu0 %v5371, 32
  %v5562 = vpop.permute.xlu0 %5561
  %5563 = vrot.lane.b32.xlu0 %v5372, 32
  %v5564 = vpop.permute.xlu0 %5563
  %vm5629 = vcmask 392448
  %5630 = vst.msk [vmem:[#allocation5] sm:$0xff] %vm5629, %v5438
  %5631 = vst.msk [vmem:[#allocation5 + $0x10] sm:$0xff] %vm5629, %v5440
  %5632 = vst.msk [vmem:[#allocation5 + $0x20] sm:$0xff] %vm5629, %v5442
  %5633 = vst.msk [vmem:[#allocation5 + $0x30] sm:$0xff] %vm5629, %v5444
  %5634 = vst.msk [vmem:[#allocation5 + $0x40] sm:$0xff] %vm5629, %v5446
  %5635 = vst.msk [vmem:[#allocation5 + $0x50] sm:$0xff] %vm5629, %v5448
  %5636 = vst.msk [vmem:[#allocation5 + $0x60] sm:$0xff] %vm5629, %v5450
  %5637 = vst.msk [vmem:[#allocation5 + $0x70] sm:$0xff] %vm5629, %v5452
  %5638 = vst.msk [vmem:[#allocation5 + $0x80] sm:$0xff] %vm5629, %v5454
  %5639 = vst.msk [vmem:[#allocation5 + $0x90] sm:$0xff] %vm5629, %v5456
  %5640 = vst.msk [vmem:[#allocation5 + $0xa0] sm:$0xff] %vm5629, %v5458
  %5641 = vst.msk [vmem:[#allocation5 + $0xb0] sm:$0xff] %vm5629, %v5460
  %5642 = vst.msk [vmem:[#allocation5 + $0xc0] sm:$0xff] %vm5629, %v5462
  %5643 = vst.msk [vmem:[#allocation5 + $0xd0] sm:$0xff] %vm5629, %v5464
  %5644 = vst.msk [vmem:[#allocation5 + $0xe0] sm:$0xff] %vm5629, %v5466
  %5645 = vst.msk [vmem:[#allocation5 + $0xf0] sm:$0xff] %vm5629, %v5468
  %5646 = vst.msk [vmem:[#allocation5 + $0x100] sm:$0xff] %vm5629, %v5470
  %5647 = vst.msk [vmem:[#allocation5 + $0x110] sm:$0xff] %vm5629, %v5472
  %5648 = vst.msk [vmem:[#allocation5 + $0x120] sm:$0xff] %vm5629, %v5474
  %5649 = vst.msk [vmem:[#allocation5 + $0x130] sm:$0xff] %vm5629, %v5476
  %5650 = vst.msk [vmem:[#allocation5 + $0x140] sm:$0xff] %vm5629, %v5478
  %5651 = vst.msk [vmem:[#allocation5 + $0x150] sm:$0xff] %vm5629, %v5480
  %5652 = vst.msk [vmem:[#allocation5 + $0x160] sm:$0xff] %vm5629, %v5482
  %5653 = vst.msk [vmem:[#allocation5 + $0x170] sm:$0xff] %vm5629, %v5484
  %5654 = vst.msk [vmem:[#allocation5 + $0x180] sm:$0xff] %vm5629, %v5486
  %5655 = vst.msk [vmem:[#allocation5 + $0x190] sm:$0xff] %vm5629, %v5488
  %5656 = vst.msk [vmem:[#allocation5 + $0x1a0] sm:$0xff] %vm5629, %v5490
  %5657 = vst.msk [vmem:[#allocation5 + $0x1b0] sm:$0xff] %vm5629, %v5492
  %5658 = vst.msk [vmem:[#allocation5 + $0x1c0] sm:$0xff] %vm5629, %v5494
  %5659 = vst.msk [vmem:[#allocation5 + $0x1d0] sm:$0xff] %vm5629, %v5496
  %5660 = vst.msk [vmem:[#allocation5 + $0x1e0] sm:$0xff] %vm5629, %v5498
  %5661 = vst.msk [vmem:[#allocation5 + $0x1f0] sm:$0xff] %vm5629, %v5500
  %5662 = vst.msk [vmem:[#allocation5 + $0x200] sm:$0xff] %vm5629, %v5502
  %5663 = vst.msk [vmem:[#allocation5 + $0x210] sm:$0xff] %vm5629, %v5504
  %5664 = vst.msk [vmem:[#allocation5 + $0x220] sm:$0xff] %vm5629, %v5506
  %5665 = vst.msk [vmem:[#allocation5 + $0x230] sm:$0xff] %vm5629, %v5508
  %5666 = vst.msk [vmem:[#allocation5 + $0x240] sm:$0xff] %vm5629, %v5510
  %5667 = vst.msk [vmem:[#allocation5 + $0x250] sm:$0xff] %vm5629, %v5512
  %5668 = vst.msk [vmem:[#allocation5 + $0x260] sm:$0xff] %vm5629, %v5514
  %5669 = vst.msk [vmem:[#allocation5 + $0x270] sm:$0xff] %vm5629, %v5516
  %5670 = vst.msk [vmem:[#allocation5 + $0x280] sm:$0xff] %vm5629, %v5518
  %5671 = vst.msk [vmem:[#allocation5 + $0x290] sm:$0xff] %vm5629, %v5520
  %5672 = vst.msk [vmem:[#allocation5 + $0x2a0] sm:$0xff] %vm5629, %v5522
  %5673 = vst.msk [vmem:[#allocation5 + $0x2b0] sm:$0xff] %vm5629, %v5524
  %5674 = vst.msk [vmem:[#allocation5 + $0x2c0] sm:$0xff] %vm5629, %v5526
  %5675 = vst.msk [vmem:[#allocation5 + $0x2d0] sm:$0xff] %vm5629, %v5528
  %5676 = vst.msk [vmem:[#allocation5 + $0x2e0] sm:$0xff] %vm5629, %v5530
  %5677 = vst.msk [vmem:[#allocation5 + $0x2f0] sm:$0xff] %vm5629, %v5532
  %5678 = vst.msk [vmem:[#allocation5 + $0x300] sm:$0xff] %vm5629, %v5534
  %5679 = vst.msk [vmem:[#allocation5 + $0x310] sm:$0xff] %vm5629, %v5536
  %5680 = vst.msk [vmem:[#allocation5 + $0x320] sm:$0xff] %vm5629, %v5538
  %5681 = vst.msk [vmem:[#allocation5 + $0x330] sm:$0xff] %vm5629, %v5540
  %5682 = vst.msk [vmem:[#allocation5 + $0x340] sm:$0xff] %vm5629, %v5542
  %5683 = vst.msk [vmem:[#allocation5 + $0x350] sm:$0xff] %vm5629, %v5544
  %5684 = vst.msk [vmem:[#allocation5 + $0x360] sm:$0xff] %vm5629, %v5546
  %5685 = vst.msk [vmem:[#allocation5 + $0x370] sm:$0xff] %vm5629, %v5548
  %5686 = vst.msk [vmem:[#allocation5 + $0x380] sm:$0xff] %vm5629, %v5550
  %5687 = vst.msk [vmem:[#allocation5 + $0x390] sm:$0xff] %vm5629, %v5552
  %5688 = vst.msk [vmem:[#allocation5 + $0x3a0] sm:$0xff] %vm5629, %v5554
  %5689 = vst.msk [vmem:[#allocation5 + $0x3b0] sm:$0xff] %vm5629, %v5556
  %5690 = vst.msk [vmem:[#allocation5 + $0x3c0] sm:$0xff] %vm5629, %v5558
  %5691 = vst.msk [vmem:[#allocation5 + $0x3d0] sm:$0xff] %vm5629, %v5560
  %5692 = vst.msk [vmem:[#allocation5 + $0x3e0] sm:$0xff] %vm5629, %v5562
  %5693 = vst.msk [vmem:[#allocation5 + $0x3f0] sm:$0xff] %vm5629, %v5564
  %v5694 = vld [vmem:[%s4731] sm:$0xff]
  %v5695 = vld [vmem:[%s4731 + $0x8] sm:$0xff]
  %v5696 = vld [vmem:[%s4731 + $0x18] sm:$0xff]
  %v5697 = vld [vmem:[%s4731 + $0x20] sm:$0xff]
  %v5698 = vld [vmem:[%s4731 + $0x30] sm:$0xff]
  %v5699 = vld [vmem:[%s4731 + $0x38] sm:$0xff]
  %v5700 = vld [vmem:[%s4731 + $0x48] sm:$0xff]
  %v5701 = vld [vmem:[%s4731 + $0x50] sm:$0xff]
  %v5702 = vld [vmem:[%s4731 + $0x60] sm:$0xff]
  %v5703 = vld [vmem:[%s4731 + $0x68] sm:$0xff]
  %v5704 = vld [vmem:[%s4731 + $0x78] sm:$0xff]
  %v5705 = vld [vmem:[%s4731 + $0x80] sm:$0xff]
  %v5706 = vld [vmem:[%s4731 + $0x90] sm:$0xff]
  %v5707 = vld [vmem:[%s4731 + $0x98] sm:$0xff]
  %v5708 = vld [vmem:[%s4731 + $0xa8] sm:$0xff]
  %v5709 = vld [vmem:[%s4731 + $0xb0] sm:$0xff]
  %v5710 = vld [vmem:[%s4731 + $0xc0] sm:$0xff]
  %v5711 = vld [vmem:[%s4731 + $0xc8] sm:$0xff]
  %v5712 = vld [vmem:[%s4731 + $0xd8] sm:$0xff]
  %v5713 = vld [vmem:[%s4731 + $0xe0] sm:$0xff]
  %v5714 = vld [vmem:[%s4731 + $0xf0] sm:$0xff]
  %v5715 = vld [vmem:[%s4731 + $0xf8] sm:$0xff]
  %v5716 = vld [vmem:[%s4731 + $0x108] sm:$0xff]
  %v5717 = vld [vmem:[%s4731 + $0x110] sm:$0xff]
  %v5718 = vld [vmem:[%s4731 + $0x120] sm:$0xff]
  %v5719 = vld [vmem:[%s4731 + $0x128] sm:$0xff]
  %v5720 = vld [vmem:[%s4731 + $0x138] sm:$0xff]
  %v5721 = vld [vmem:[%s4731 + $0x140] sm:$0xff]
  %v5722 = vld [vmem:[%s4731 + $0x150] sm:$0xff]
  %v5723 = vld [vmem:[%s4731 + $0x158] sm:$0xff]
  %v5724 = vld [vmem:[%s4731 + $0x168] sm:$0xff]
  %v5725 = vld [vmem:[%s4731 + $0x170] sm:$0xff]
  %v5726 = vld [vmem:[%s4731 + $0x1b0] sm:$0xff]
  %v5727 = vld [vmem:[%s4731 + $0x1b8] sm:$0xff]
  %v5728 = vld [vmem:[%s4731 + $0x1c8] sm:$0xff]
  %v5729 = vld [vmem:[%s4731 + $0x1d0] sm:$0xff]
  %v5730 = vld [vmem:[%s4731 + $0x1e0] sm:$0xff]
  %v5731 = vld [vmem:[%s4731 + $0x1e8] sm:$0xff]
  %v5732 = vld [vmem:[%s4731 + $0x1f8] sm:$0xff]
  %v5733 = vld [vmem:[%s4731 + $0x200] sm:$0xff]
  %v5734 = vld [vmem:[%s4731 + $0x210] sm:$0xff]
  %v5735 = vld [vmem:[%s4731 + $0x218] sm:$0xff]
  %v5736 = vld [vmem:[%s4731 + $0x228] sm:$0xff]
  %v5737 = vld [vmem:[%s4731 + $0x230] sm:$0xff]
  %v5738 = vld [vmem:[%s4731 + $0x240] sm:$0xff]
  %v5739 = vld [vmem:[%s4731 + $0x248] sm:$0xff]
  %v5740 = vld [vmem:[%s4731 + $0x258] sm:$0xff]
  %v5741 = vld [vmem:[%s4731 + $0x260] sm:$0xff]
  %v5742 = vld [vmem:[%s4731 + $0x270] sm:$0xff]
  %v5743 = vld [vmem:[%s4731 + $0x278] sm:$0xff]
  %v5744 = vld [vmem:[%s4731 + $0x288] sm:$0xff]
  %v5745 = vld [vmem:[%s4731 + $0x290] sm:$0xff]
  %v5746 = vld [vmem:[%s4731 + $0x2a0] sm:$0xff]
  %v5747 = vld [vmem:[%s4731 + $0x2a8] sm:$0xff]
  %v5748 = vld [vmem:[%s4731 + $0x2b8] sm:$0xff]
  %v5749 = vld [vmem:[%s4731 + $0x2c0] sm:$0xff]
  %v5750 = vld [vmem:[%s4731 + $0x2d0] sm:$0xff]
  %v5751 = vld [vmem:[%s4731 + $0x2d8] sm:$0xff]
  %v5752 = vld [vmem:[%s4731 + $0x2e8] sm:$0xff]
  %v5753 = vld [vmem:[%s4731 + $0x2f0] sm:$0xff]
  %v5754 = vld [vmem:[%s4731 + $0x300] sm:$0xff]
  %v5755 = vld [vmem:[%s4731 + $0x308] sm:$0xff]
  %v5756 = vld [vmem:[%s4731 + $0x318] sm:$0xff]
  %v5757 = vld [vmem:[%s4731 + $0x320] sm:$0xff]
  %5822 = vrot.lane.b32.xlu0 %v5694, 48
  %v5823 = vpop.permute.xlu0 %5822
  %5824 = vrot.lane.b32.xlu0 %v5695, 48
  %v5825 = vpop.permute.xlu0 %5824
  %5826 = vrot.lane.b32.xlu0 %v5696, 48
  %v5827 = vpop.permute.xlu0 %5826
  %5828 = vrot.lane.b32.xlu0 %v5697, 48
  %v5829 = vpop.permute.xlu0 %5828
  %5830 = vrot.lane.b32.xlu0 %v5698, 48
  %v5831 = vpop.permute.xlu0 %5830
  %5832 = vrot.lane.b32.xlu0 %v5699, 48
  %v5833 = vpop.permute.xlu0 %5832
  %5834 = vrot.lane.b32.xlu0 %v5700, 48
  %v5835 = vpop.permute.xlu0 %5834
  %5836 = vrot.lane.b32.xlu0 %v5701, 48
  %v5837 = vpop.permute.xlu0 %5836
  %5838 = vrot.lane.b32.xlu0 %v5702, 48
  %v5839 = vpop.permute.xlu0 %5838
  %5840 = vrot.lane.b32.xlu0 %v5703, 48
  %v5841 = vpop.permute.xlu0 %5840
  %5842 = vrot.lane.b32.xlu0 %v5704, 48
  %v5843 = vpop.permute.xlu0 %5842
  %5844 = vrot.lane.b32.xlu0 %v5705, 48
  %v5845 = vpop.permute.xlu0 %5844
  %5846 = vrot.lane.b32.xlu0 %v5706, 48
  %v5847 = vpop.permute.xlu0 %5846
  %5848 = vrot.lane.b32.xlu0 %v5707, 48
  %v5849 = vpop.permute.xlu0 %5848
  %5850 = vrot.lane.b32.xlu0 %v5708, 48
  %v5851 = vpop.permute.xlu0 %5850
  %5852 = vrot.lane.b32.xlu0 %v5709, 48
  %v5853 = vpop.permute.xlu0 %5852
  %5854 = vrot.lane.b32.xlu0 %v5710, 48
  %v5855 = vpop.permute.xlu0 %5854
  %5856 = vrot.lane.b32.xlu0 %v5711, 48
  %v5857 = vpop.permute.xlu0 %5856
  %5858 = vrot.lane.b32.xlu0 %v5712, 48
  %v5859 = vpop.permute.xlu0 %5858
  %5860 = vrot.lane.b32.xlu0 %v5713, 48
  %v5861 = vpop.permute.xlu0 %5860
  %5862 = vrot.lane.b32.xlu0 %v5714, 48
  %v5863 = vpop.permute.xlu0 %5862
  %5864 = vrot.lane.b32.xlu0 %v5715, 48
  %v5865 = vpop.permute.xlu0 %5864
  %5866 = vrot.lane.b32.xlu0 %v5716, 48
  %v5867 = vpop.permute.xlu0 %5866
  %5868 = vrot.lane.b32.xlu0 %v5717, 48
  %v5869 = vpop.permute.xlu0 %5868
  %5870 = vrot.lane.b32.xlu0 %v5718, 48
  %v5871 = vpop.permute.xlu0 %5870
  %5872 = vrot.lane.b32.xlu0 %v5719, 48
  %v5873 = vpop.permute.xlu0 %5872
  %5874 = vrot.lane.b32.xlu0 %v5720, 48
  %v5875 = vpop.permute.xlu0 %5874
  %5876 = vrot.lane.b32.xlu0 %v5721, 48
  %v5877 = vpop.permute.xlu0 %5876
  %5878 = vrot.lane.b32.xlu0 %v5722, 48
  %v5879 = vpop.permute.xlu0 %5878
  %5880 = vrot.lane.b32.xlu0 %v5723, 48
  %v5881 = vpop.permute.xlu0 %5880
  %5882 = vrot.lane.b32.xlu0 %v5724, 48
  %v5883 = vpop.permute.xlu0 %5882
  %5884 = vrot.lane.b32.xlu0 %v5725, 48
  %v5885 = vpop.permute.xlu0 %5884
  %5886 = vrot.lane.b32.xlu0 %v5726, 48
  %v5887 = vpop.permute.xlu0 %5886
  %5888 = vrot.lane.b32.xlu0 %v5727, 48
  %v5889 = vpop.permute.xlu0 %5888
  %5890 = vrot.lane.b32.xlu0 %v5728, 48
  %v5891 = vpop.permute.xlu0 %5890
  %5892 = vrot.lane.b32.xlu0 %v5729, 48
  %v5893 = vpop.permute.xlu0 %5892
  %5894 = vrot.lane.b32.xlu0 %v5730, 48
  %v5895 = vpop.permute.xlu0 %5894
  %5896 = vrot.lane.b32.xlu0 %v5731, 48
  %v5897 = vpop.permute.xlu0 %5896
  %5898 = vrot.lane.b32.xlu0 %v5732, 48
  %v5899 = vpop.permute.xlu0 %5898
  %5900 = vrot.lane.b32.xlu0 %v5733, 48
  %v5901 = vpop.permute.xlu0 %5900
  %5902 = vrot.lane.b32.xlu0 %v5734, 48
  %v5903 = vpop.permute.xlu0 %5902
  %5904 = vrot.lane.b32.xlu0 %v5735, 48
  %v5905 = vpop.permute.xlu0 %5904
  %5906 = vrot.lane.b32.xlu0 %v5736, 48
  %v5907 = vpop.permute.xlu0 %5906
  %5908 = vrot.lane.b32.xlu0 %v5737, 48
  %v5909 = vpop.permute.xlu0 %5908
  %5910 = vrot.lane.b32.xlu0 %v5738, 48
  %v5911 = vpop.permute.xlu0 %5910
  %5912 = vrot.lane.b32.xlu0 %v5739, 48
  %v5913 = vpop.permute.xlu0 %5912
  %5914 = vrot.lane.b32.xlu0 %v5740, 48
  %v5915 = vpop.permute.xlu0 %5914
  %5916 = vrot.lane.b32.xlu0 %v5741, 48
  %v5917 = vpop.permute.xlu0 %5916
  %5918 = vrot.lane.b32.xlu0 %v5742, 48
  %v5919 = vpop.permute.xlu0 %5918
  %5920 = vrot.lane.b32.xlu0 %v5743, 48
  %v5921 = vpop.permute.xlu0 %5920
  %5922 = vrot.lane.b32.xlu0 %v5744, 48
  %v5923 = vpop.permute.xlu0 %5922
  %5924 = vrot.lane.b32.xlu0 %v5745, 48
  %v5925 = vpop.permute.xlu0 %5924
  %5926 = vrot.lane.b32.xlu0 %v5746, 48
  %v5927 = vpop.permute.xlu0 %5926
  %5928 = vrot.lane.b32.xlu0 %v5747, 48
  %v5929 = vpop.permute.xlu0 %5928
  %5930 = vrot.lane.b32.xlu0 %v5748, 48
  %v5931 = vpop.permute.xlu0 %5930
  %5932 = vrot.lane.b32.xlu0 %v5749, 48
  %v5933 = vpop.permute.xlu0 %5932
  %5934 = vrot.lane.b32.xlu0 %v5750, 48
  %v5935 = vpop.permute.xlu0 %5934
  %5936 = vrot.lane.b32.xlu0 %v5751, 48
  %v5937 = vpop.permute.xlu0 %5936
  %5938 = vrot.lane.b32.xlu0 %v5752, 48
  %v5939 = vpop.permute.xlu0 %5938
  %5940 = vrot.lane.b32.xlu0 %v5753, 48
  %v5941 = vpop.permute.xlu0 %5940
  %5942 = vrot.lane.b32.xlu0 %v5754, 48
  %v5943 = vpop.permute.xlu0 %5942
  %5944 = vrot.lane.b32.xlu0 %v5755, 48
  %v5945 = vpop.permute.xlu0 %5944
  %5946 = vrot.lane.b32.xlu0 %v5756, 48
  %v5947 = vpop.permute.xlu0 %5946
  %5948 = vrot.lane.b32.xlu0 %v5757, 48
  %v5949 = vpop.permute.xlu0 %5948
  %vm6014 = vcmask 523648
  %6015 = vst.msk [vmem:[#allocation5] sm:$0xff] %vm6014, %v5823
  %6016 = vst.msk [vmem:[#allocation5 + $0x10] sm:$0xff] %vm6014, %v5825
  %6017 = vst.msk [vmem:[#allocation5 + $0x20] sm:$0xff] %vm6014, %v5827
  %6018 = vst.msk [vmem:[#allocation5 + $0x30] sm:$0xff] %vm6014, %v5829
  %6019 = vst.msk [vmem:[#allocation5 + $0x40] sm:$0xff] %vm6014, %v5831
  %6020 = vst.msk [vmem:[#allocation5 + $0x50] sm:$0xff] %vm6014, %v5833
  %6021 = vst.msk [vmem:[#allocation5 + $0x60] sm:$0xff] %vm6014, %v5835
  %6022 = vst.msk [vmem:[#allocation5 + $0x70] sm:$0xff] %vm6014, %v5837
  %6023 = vst.msk [vmem:[#allocation5 + $0x80] sm:$0xff] %vm6014, %v5839
  %6024 = vst.msk [vmem:[#allocation5 + $0x90] sm:$0xff] %vm6014, %v5841
  %6025 = vst.msk [vmem:[#allocation5 + $0xa0] sm:$0xff] %vm6014, %v5843
  %6026 = vst.msk [vmem:[#allocation5 + $0xb0] sm:$0xff] %vm6014, %v5845
  %6027 = vst.msk [vmem:[#allocation5 + $0xc0] sm:$0xff] %vm6014, %v5847
  %6028 = vst.msk [vmem:[#allocation5 + $0xd0] sm:$0xff] %vm6014, %v5849
  %6029 = vst.msk [vmem:[#allocation5 + $0xe0] sm:$0xff] %vm6014, %v5851
  %6030 = vst.msk [vmem:[#allocation5 + $0xf0] sm:$0xff] %vm6014, %v5853
  %6031 = vst.msk [vmem:[#allocation5 + $0x100] sm:$0xff] %vm6014, %v5855
  %6032 = vst.msk [vmem:[#allocation5 + $0x110] sm:$0xff] %vm6014, %v5857
  %6033 = vst.msk [vmem:[#allocation5 + $0x120] sm:$0xff] %vm6014, %v5859
  %6034 = vst.msk [vmem:[#allocation5 + $0x130] sm:$0xff] %vm6014, %v5861
  %6035 = vst.msk [vmem:[#allocation5 + $0x140] sm:$0xff] %vm6014, %v5863
  %6036 = vst.msk [vmem:[#allocation5 + $0x150] sm:$0xff] %vm6014, %v5865
  %6037 = vst.msk [vmem:[#allocation5 + $0x160] sm:$0xff] %vm6014, %v5867
  %6038 = vst.msk [vmem:[#allocation5 + $0x170] sm:$0xff] %vm6014, %v5869
  %6039 = vst.msk [vmem:[#allocation5 + $0x180] sm:$0xff] %vm6014, %v5871
  %6040 = vst.msk [vmem:[#allocation5 + $0x190] sm:$0xff] %vm6014, %v5873
  %6041 = vst.msk [vmem:[#allocation5 + $0x1a0] sm:$0xff] %vm6014, %v5875
  %6042 = vst.msk [vmem:[#allocation5 + $0x1b0] sm:$0xff] %vm6014, %v5877
  %6043 = vst.msk [vmem:[#allocation5 + $0x1c0] sm:$0xff] %vm6014, %v5879
  %6044 = vst.msk [vmem:[#allocation5 + $0x1d0] sm:$0xff] %vm6014, %v5881
  %6045 = vst.msk [vmem:[#allocation5 + $0x1e0] sm:$0xff] %vm6014, %v5883
  %6046 = vst.msk [vmem:[#allocation5 + $0x1f0] sm:$0xff] %vm6014, %v5885
  %6047 = vst.msk [vmem:[#allocation5 + $0x200] sm:$0xff] %vm6014, %v5887
  %6048 = vst.msk [vmem:[#allocation5 + $0x210] sm:$0xff] %vm6014, %v5889
  %6049 = vst.msk [vmem:[#allocation5 + $0x220] sm:$0xff] %vm6014, %v5891
  %6050 = vst.msk [vmem:[#allocation5 + $0x230] sm:$0xff] %vm6014, %v5893
  %6051 = vst.msk [vmem:[#allocation5 + $0x240] sm:$0xff] %vm6014, %v5895
  %6052 = vst.msk [vmem:[#allocation5 + $0x250] sm:$0xff] %vm6014, %v5897
  %6053 = vst.msk [vmem:[#allocation5 + $0x260] sm:$0xff] %vm6014, %v5899
  %6054 = vst.msk [vmem:[#allocation5 + $0x270] sm:$0xff] %vm6014, %v5901
  %6055 = vst.msk [vmem:[#allocation5 + $0x280] sm:$0xff] %vm6014, %v5903
  %6056 = vst.msk [vmem:[#allocation5 + $0x290] sm:$0xff] %vm6014, %v5905
  %6057 = vst.msk [vmem:[#allocation5 + $0x2a0] sm:$0xff] %vm6014, %v5907
  %6058 = vst.msk [vmem:[#allocation5 + $0x2b0] sm:$0xff] %vm6014, %v5909
  %6059 = vst.msk [vmem:[#allocation5 + $0x2c0] sm:$0xff] %vm6014, %v5911
  %6060 = vst.msk [vmem:[#allocation5 + $0x2d0] sm:$0xff] %vm6014, %v5913
  %6061 = vst.msk [vmem:[#allocation5 + $0x2e0] sm:$0xff] %vm6014, %v5915
  %6062 = vst.msk [vmem:[#allocation5 + $0x2f0] sm:$0xff] %vm6014, %v5917
  %6063 = vst.msk [vmem:[#allocation5 + $0x300] sm:$0xff] %vm6014, %v5919
  %6064 = vst.msk [vmem:[#allocation5 + $0x310] sm:$0xff] %vm6014, %v5921
  %6065 = vst.msk [vmem:[#allocation5 + $0x320] sm:$0xff] %vm6014, %v5923
  %6066 = vst.msk [vmem:[#allocation5 + $0x330] sm:$0xff] %vm6014, %v5925
  %6067 = vst.msk [vmem:[#allocation5 + $0x340] sm:$0xff] %vm6014, %v5927
  %6068 = vst.msk [vmem:[#allocation5 + $0x350] sm:$0xff] %vm6014, %v5929
  %6069 = vst.msk [vmem:[#allocation5 + $0x360] sm:$0xff] %vm6014, %v5931
  %6070 = vst.msk [vmem:[#allocation5 + $0x370] sm:$0xff] %vm6014, %v5933
  %6071 = vst.msk [vmem:[#allocation5 + $0x380] sm:$0xff] %vm6014, %v5935
  %6072 = vst.msk [vmem:[#allocation5 + $0x390] sm:$0xff] %vm6014, %v5937
  %6073 = vst.msk [vmem:[#allocation5 + $0x3a0] sm:$0xff] %vm6014, %v5939
  %6074 = vst.msk [vmem:[#allocation5 + $0x3b0] sm:$0xff] %vm6014, %v5941
  %6075 = vst.msk [vmem:[#allocation5 + $0x3c0] sm:$0xff] %vm6014, %v5943
  %6076 = vst.msk [vmem:[#allocation5 + $0x3d0] sm:$0xff] %vm6014, %v5945
  %6077 = vst.msk [vmem:[#allocation5 + $0x3e0] sm:$0xff] %vm6014, %v5947
  %6078 = vst.msk [vmem:[#allocation5 + $0x3f0] sm:$0xff] %vm6014, %v5949
  %v6079 = vld [vmem:[%s4731 + $0x1] sm:$0xff]
  %v6080 = vld [vmem:[%s4731 + $0x9] sm:$0xff]
  %v6081 = vld [vmem:[%s4731 + $0x19] sm:$0xff]
  %v6082 = vld [vmem:[%s4731 + $0x21] sm:$0xff]
  %v6083 = vld [vmem:[%s4731 + $0x31] sm:$0xff]
  %v6084 = vld [vmem:[%s4731 + $0x39] sm:$0xff]
  %v6085 = vld [vmem:[%s4731 + $0x49] sm:$0xff]
  %v6086 = vld [vmem:[%s4731 + $0x51] sm:$0xff]
  %v6087 = vld [vmem:[%s4731 + $0x61] sm:$0xff]
  %v6088 = vld [vmem:[%s4731 + $0x69] sm:$0xff]
  %v6089 = vld [vmem:[%s4731 + $0x79] sm:$0xff]
  %v6090 = vld [vmem:[%s4731 + $0x81] sm:$0xff]
  %v6091 = vld [vmem:[%s4731 + $0x91] sm:$0xff]
  %v6092 = vld [vmem:[%s4731 + $0x99] sm:$0xff]
  %v6093 = vld [vmem:[%s4731 + $0xa9] sm:$0xff]
  %v6094 = vld [vmem:[%s4731 + $0xb1] sm:$0xff]
  %v6095 = vld [vmem:[%s4731 + $0xc1] sm:$0xff]
  %v6096 = vld [vmem:[%s4731 + $0xc9] sm:$0xff]
  %v6097 = vld [vmem:[%s4731 + $0xd9] sm:$0xff]
  %v6098 = vld [vmem:[%s4731 + $0xe1] sm:$0xff]
  %v6099 = vld [vmem:[%s4731 + $0xf1] sm:$0xff]
  %v6100 = vld [vmem:[%s4731 + $0xf9] sm:$0xff]
  %v6101 = vld [vmem:[%s4731 + $0x109] sm:$0xff]
  %v6102 = vld [vmem:[%s4731 + $0x111] sm:$0xff]
  %v6103 = vld [vmem:[%s4731 + $0x121] sm:$0xff]
  %v6104 = vld [vmem:[%s4731 + $0x129] sm:$0xff]
  %v6105 = vld [vmem:[%s4731 + $0x139] sm:$0xff]
  %v6106 = vld [vmem:[%s4731 + $0x141] sm:$0xff]
  %v6107 = vld [vmem:[%s4731 + $0x151] sm:$0xff]
  %v6108 = vld [vmem:[%s4731 + $0x159] sm:$0xff]
  %v6109 = vld [vmem:[%s4731 + $0x169] sm:$0xff]
  %v6110 = vld [vmem:[%s4731 + $0x171] sm:$0xff]
  %v6111 = vld [vmem:[%s4731 + $0x1b1] sm:$0xff]
  %v6112 = vld [vmem:[%s4731 + $0x1b9] sm:$0xff]
  %v6113 = vld [vmem:[%s4731 + $0x1c9] sm:$0xff]
  %v6114 = vld [vmem:[%s4731 + $0x1d1] sm:$0xff]
  %v6115 = vld [vmem:[%s4731 + $0x1e1] sm:$0xff]
  %v6116 = vld [vmem:[%s4731 + $0x1e9] sm:$0xff]
  %v6117 = vld [vmem:[%s4731 + $0x1f9] sm:$0xff]
  %v6118 = vld [vmem:[%s4731 + $0x201] sm:$0xff]
  %v6119 = vld [vmem:[%s4731 + $0x211] sm:$0xff]
  %v6120 = vld [vmem:[%s4731 + $0x219] sm:$0xff]
  %v6121 = vld [vmem:[%s4731 + $0x229] sm:$0xff]
  %v6122 = vld [vmem:[%s4731 + $0x231] sm:$0xff]
  %v6123 = vld [vmem:[%s4731 + $0x241] sm:$0xff]
  %v6124 = vld [vmem:[%s4731 + $0x249] sm:$0xff]
  %v6125 = vld [vmem:[%s4731 + $0x259] sm:$0xff]
  %v6126 = vld [vmem:[%s4731 + $0x261] sm:$0xff]
  %v6127 = vld [vmem:[%s4731 + $0x271] sm:$0xff]
  %v6128 = vld [vmem:[%s4731 + $0x279] sm:$0xff]
  %v6129 = vld [vmem:[%s4731 + $0x289] sm:$0xff]
  %v6130 = vld [vmem:[%s4731 + $0x291] sm:$0xff]
  %v6131 = vld [vmem:[%s4731 + $0x2a1] sm:$0xff]
  %v6132 = vld [vmem:[%s4731 + $0x2a9] sm:$0xff]
  %v6133 = vld [vmem:[%s4731 + $0x2b9] sm:$0xff]
  %v6134 = vld [vmem:[%s4731 + $0x2c1] sm:$0xff]
  %v6135 = vld [vmem:[%s4731 + $0x2d1] sm:$0xff]
  %v6136 = vld [vmem:[%s4731 + $0x2d9] sm:$0xff]
  %v6137 = vld [vmem:[%s4731 + $0x2e9] sm:$0xff]
  %v6138 = vld [vmem:[%s4731 + $0x2f1] sm:$0xff]
  %v6139 = vld [vmem:[%s4731 + $0x301] sm:$0xff]
  %v6140 = vld [vmem:[%s4731 + $0x309] sm:$0xff]
  %v6141 = vld [vmem:[%s4731 + $0x319] sm:$0xff]
  %v6142 = vld [vmem:[%s4731 + $0x321] sm:$0xff]
  %6207 = vrot.lane.b32.xlu0 %v6079, 64
  %v6208 = vpop.permute.xlu0 %6207
  %6209 = vrot.lane.b32.xlu0 %v6080, 64
  %v6210 = vpop.permute.xlu0 %6209
  %6211 = vrot.lane.b32.xlu0 %v6081, 64
  %v6212 = vpop.permute.xlu0 %6211
  %6213 = vrot.lane.b32.xlu0 %v6082, 64
  %v6214 = vpop.permute.xlu0 %6213
  %6215 = vrot.lane.b32.xlu0 %v6083, 64
  %v6216 = vpop.permute.xlu0 %6215
  %6217 = vrot.lane.b32.xlu0 %v6084, 64
  %v6218 = vpop.permute.xlu0 %6217
  %6219 = vrot.lane.b32.xlu0 %v6085, 64
  %v6220 = vpop.permute.xlu0 %6219
  %6221 = vrot.lane.b32.xlu0 %v6086, 64
  %v6222 = vpop.permute.xlu0 %6221
  %6223 = vrot.lane.b32.xlu0 %v6087, 64
  %v6224 = vpop.permute.xlu0 %6223
  %6225 = vrot.lane.b32.xlu0 %v6088, 64
  %v6226 = vpop.permute.xlu0 %6225
  %6227 = vrot.lane.b32.xlu0 %v6089, 64
  %v6228 = vpop.permute.xlu0 %6227
  %6229 = vrot.lane.b32.xlu0 %v6090, 64
  %v6230 = vpop.permute.xlu0 %6229
  %6231 = vrot.lane.b32.xlu0 %v6091, 64
  %v6232 = vpop.permute.xlu0 %6231
  %6233 = vrot.lane.b32.xlu0 %v6092, 64
  %v6234 = vpop.permute.xlu0 %6233
  %6235 = vrot.lane.b32.xlu0 %v6093, 64
  %v6236 = vpop.permute.xlu0 %6235
  %6237 = vrot.lane.b32.xlu0 %v6094, 64
  %v6238 = vpop.permute.xlu0 %6237
  %6239 = vrot.lane.b32.xlu0 %v6095, 64
  %v6240 = vpop.permute.xlu0 %6239
  %6241 = vrot.lane.b32.xlu0 %v6096, 64
  %v6242 = vpop.permute.xlu0 %6241
  %6243 = vrot.lane.b32.xlu0 %v6097, 64
  %v6244 = vpop.permute.xlu0 %6243
  %6245 = vrot.lane.b32.xlu0 %v6098, 64
  %v6246 = vpop.permute.xlu0 %6245
  %6247 = vrot.lane.b32.xlu0 %v6099, 64
  %v6248 = vpop.permute.xlu0 %6247
  %6249 = vrot.lane.b32.xlu0 %v6100, 64
  %v6250 = vpop.permute.xlu0 %6249
  %6251 = vrot.lane.b32.xlu0 %v6101, 64
  %v6252 = vpop.permute.xlu0 %6251
  %6253 = vrot.lane.b32.xlu0 %v6102, 64
  %v6254 = vpop.permute.xlu0 %6253
  %6255 = vrot.lane.b32.xlu0 %v6103, 64
  %v6256 = vpop.permute.xlu0 %6255
  %6257 = vrot.lane.b32.xlu0 %v6104, 64
  %v6258 = vpop.permute.xlu0 %6257
  %6259 = vrot.lane.b32.xlu0 %v6105, 64
  %v6260 = vpop.permute.xlu0 %6259
  %6261 = vrot.lane.b32.xlu0 %v6106, 64
  %v6262 = vpop.permute.xlu0 %6261
  %6263 = vrot.lane.b32.xlu0 %v6107, 64
  %v6264 = vpop.permute.xlu0 %6263
  %6265 = vrot.lane.b32.xlu0 %v6108, 64
  %v6266 = vpop.permute.xlu0 %6265
  %6267 = vrot.lane.b32.xlu0 %v6109, 64
  %v6268 = vpop.permute.xlu0 %6267
  %6269 = vrot.lane.b32.xlu0 %v6110, 64
  %v6270 = vpop.permute.xlu0 %6269
  %6271 = vrot.lane.b32.xlu0 %v6111, 64
  %v6272 = vpop.permute.xlu0 %6271
  %6273 = vrot.lane.b32.xlu0 %v6112, 64
  %v6274 = vpop.permute.xlu0 %6273
  %6275 = vrot.lane.b32.xlu0 %v6113, 64
  %v6276 = vpop.permute.xlu0 %6275
  %6277 = vrot.lane.b32.xlu0 %v6114, 64
  %v6278 = vpop.permute.xlu0 %6277
  %6279 = vrot.lane.b32.xlu0 %v6115, 64
  %v6280 = vpop.permute.xlu0 %6279
  %6281 = vrot.lane.b32.xlu0 %v6116, 64
  %v6282 = vpop.permute.xlu0 %6281
  %6283 = vrot.lane.b32.xlu0 %v6117, 64
  %v6284 = vpop.permute.xlu0 %6283
  %6285 = vrot.lane.b32.xlu0 %v6118, 64
  %v6286 = vpop.permute.xlu0 %6285
  %6287 = vrot.lane.b32.xlu0 %v6119, 64
  %v6288 = vpop.permute.xlu0 %6287
  %6289 = vrot.lane.b32.xlu0 %v6120, 64
  %v6290 = vpop.permute.xlu0 %6289
  %6291 = vrot.lane.b32.xlu0 %v6121, 64
  %v6292 = vpop.permute.xlu0 %6291
  %6293 = vrot.lane.b32.xlu0 %v6122, 64
  %v6294 = vpop.permute.xlu0 %6293
  %6295 = vrot.lane.b32.xlu0 %v6123, 64
  %v6296 = vpop.permute.xlu0 %6295
  %6297 = vrot.lane.b32.xlu0 %v6124, 64
  %v6298 = vpop.permute.xlu0 %6297
  %6299 = vrot.lane.b32.xlu0 %v6125, 64
  %v6300 = vpop.permute.xlu0 %6299
  %6301 = vrot.lane.b32.xlu0 %v6126, 64
  %v6302 = vpop.permute.xlu0 %6301
  %6303 = vrot.lane.b32.xlu0 %v6127, 64
  %v6304 = vpop.permute.xlu0 %6303
  %6305 = vrot.lane.b32.xlu0 %v6128, 64
  %v6306 = vpop.permute.xlu0 %6305
  %6307 = vrot.lane.b32.xlu0 %v6129, 64
  %v6308 = vpop.permute.xlu0 %6307
  %6309 = vrot.lane.b32.xlu0 %v6130, 64
  %v6310 = vpop.permute.xlu0 %6309
  %6311 = vrot.lane.b32.xlu0 %v6131, 64
  %v6312 = vpop.permute.xlu0 %6311
  %6313 = vrot.lane.b32.xlu0 %v6132, 64
  %v6314 = vpop.permute.xlu0 %6313
  %6315 = vrot.lane.b32.xlu0 %v6133, 64
  %v6316 = vpop.permute.xlu0 %6315
  %6317 = vrot.lane.b32.xlu0 %v6134, 64
  %v6318 = vpop.permute.xlu0 %6317
  %6319 = vrot.lane.b32.xlu0 %v6135, 64
  %v6320 = vpop.permute.xlu0 %6319
  %6321 = vrot.lane.b32.xlu0 %v6136, 64
  %v6322 = vpop.permute.xlu0 %6321
  %6323 = vrot.lane.b32.xlu0 %v6137, 64
  %v6324 = vpop.permute.xlu0 %6323
  %6325 = vrot.lane.b32.xlu0 %v6138, 64
  %v6326 = vpop.permute.xlu0 %6325
  %6327 = vrot.lane.b32.xlu0 %v6139, 64
  %v6328 = vpop.permute.xlu0 %6327
  %6329 = vrot.lane.b32.xlu0 %v6140, 64
  %v6330 = vpop.permute.xlu0 %6329
  %6331 = vrot.lane.b32.xlu0 %v6141, 64
  %v6332 = vpop.permute.xlu0 %6331
  %6333 = vrot.lane.b32.xlu0 %v6142, 64
  %v6334 = vpop.permute.xlu0 %6333
  %vm6399 = vcmask 654848
  %6400 = vst.msk [vmem:[#allocation5] sm:$0xff] %vm6399, %v6208
  %6401 = vst.msk [vmem:[#allocation5 + $0x10] sm:$0xff] %vm6399, %v6210
  %6402 = vst.msk [vmem:[#allocation5 + $0x20] sm:$0xff] %vm6399, %v6212
  %6403 = vst.msk [vmem:[#allocation5 + $0x30] sm:$0xff] %vm6399, %v6214
  %6404 = vst.msk [vmem:[#allocation5 + $0x40] sm:$0xff] %vm6399, %v6216
  %6405 = vst.msk [vmem:[#allocation5 + $0x50] sm:$0xff] %vm6399, %v6218
  %6406 = vst.msk [vmem:[#allocation5 + $0x60] sm:$0xff] %vm6399, %v6220
  %6407 = vst.msk [vmem:[#allocation5 + $0x70] sm:$0xff] %vm6399, %v6222
  %6408 = vst.msk [vmem:[#allocation5 + $0x80] sm:$0xff] %vm6399, %v6224
  %6409 = vst.msk [vmem:[#allocation5 + $0x90] sm:$0xff] %vm6399, %v6226
  %6410 = vst.msk [vmem:[#allocation5 + $0xa0] sm:$0xff] %vm6399, %v6228
  %6411 = vst.msk [vmem:[#allocation5 + $0xb0] sm:$0xff] %vm6399, %v6230
  %6412 = vst.msk [vmem:[#allocation5 + $0xc0] sm:$0xff] %vm6399, %v6232
  %6413 = vst.msk [vmem:[#allocation5 + $0xd0] sm:$0xff] %vm6399, %v6234
  %6414 = vst.msk [vmem:[#allocation5 + $0xe0] sm:$0xff] %vm6399, %v6236
  %6415 = vst.msk [vmem:[#allocation5 + $0xf0] sm:$0xff] %vm6399, %v6238
  %6416 = vst.msk [vmem:[#allocation5 + $0x100] sm:$0xff] %vm6399, %v6240
  %6417 = vst.msk [vmem:[#allocation5 + $0x110] sm:$0xff] %vm6399, %v6242
  %6418 = vst.msk [vmem:[#allocation5 + $0x120] sm:$0xff] %vm6399, %v6244
  %6419 = vst.msk [vmem:[#allocation5 + $0x130] sm:$0xff] %vm6399, %v6246
  %6420 = vst.msk [vmem:[#allocation5 + $0x140] sm:$0xff] %vm6399, %v6248
  %6421 = vst.msk [vmem:[#allocation5 + $0x150] sm:$0xff] %vm6399, %v6250
  %6422 = vst.msk [vmem:[#allocation5 + $0x160] sm:$0xff] %vm6399, %v6252
  %6423 = vst.msk [vmem:[#allocation5 + $0x170] sm:$0xff] %vm6399, %v6254
  %6424 = vst.msk [vmem:[#allocation5 + $0x180] sm:$0xff] %vm6399, %v6256
  %6425 = vst.msk [vmem:[#allocation5 + $0x190] sm:$0xff] %vm6399, %v6258
  %6426 = vst.msk [vmem:[#allocation5 + $0x1a0] sm:$0xff] %vm6399, %v6260
  %6427 = vst.msk [vmem:[#allocation5 + $0x1b0] sm:$0xff] %vm6399, %v6262
  %6428 = vst.msk [vmem:[#allocation5 + $0x1c0] sm:$0xff] %vm6399, %v6264
  %6429 = vst.msk [vmem:[#allocation5 + $0x1d0] sm:$0xff] %vm6399, %v6266
  %6430 = vst.msk [vmem:[#allocation5 + $0x1e0] sm:$0xff] %vm6399, %v6268
  %6431 = vst.msk [vmem:[#allocation5 + $0x1f0] sm:$0xff] %vm6399, %v6270
  %6432 = vst.msk [vmem:[#allocation5 + $0x200] sm:$0xff] %vm6399, %v6272
  %6433 = vst.msk [vmem:[#allocation5 + $0x210] sm:$0xff] %vm6399, %v6274
  %6434 = vst.msk [vmem:[#allocation5 + $0x220] sm:$0xff] %vm6399, %v6276
  %6435 = vst.msk [vmem:[#allocation5 + $0x230] sm:$0xff] %vm6399, %v6278
  %6436 = vst.msk [vmem:[#allocation5 + $0x240] sm:$0xff] %vm6399, %v6280
  %6437 = vst.msk [vmem:[#allocation5 + $0x250] sm:$0xff] %vm6399, %v6282
  %6438 = vst.msk [vmem:[#allocation5 + $0x260] sm:$0xff] %vm6399, %v6284
  %6439 = vst.msk [vmem:[#allocation5 + $0x270] sm:$0xff] %vm6399, %v6286
  %6440 = vst.msk [vmem:[#allocation5 + $0x280] sm:$0xff] %vm6399, %v6288
  %6441 = vst.msk [vmem:[#allocation5 + $0x290] sm:$0xff] %vm6399, %v6290
  %6442 = vst.msk [vmem:[#allocation5 + $0x2a0] sm:$0xff] %vm6399, %v6292
  %6443 = vst.msk [vmem:[#allocation5 + $0x2b0] sm:$0xff] %vm6399, %v6294
  %6444 = vst.msk [vmem:[#allocation5 + $0x2c0] sm:$0xff] %vm6399, %v6296
  %6445 = vst.msk [vmem:[#allocation5 + $0x2d0] sm:$0xff] %vm6399, %v6298
  %6446 = vst.msk [vmem:[#allocation5 + $0x2e0] sm:$0xff] %vm6399, %v6300
  %6447 = vst.msk [vmem:[#allocation5 + $0x2f0] sm:$0xff] %vm6399, %v6302
  %6448 = vst.msk [vmem:[#allocation5 + $0x300] sm:$0xff] %vm6399, %v6304
  %6449 = vst.msk [vmem:[#allocation5 + $0x310] sm:$0xff] %vm6399, %v6306
  %6450 = vst.msk [vmem:[#allocation5 + $0x320] sm:$0xff] %vm6399, %v6308
  %6451 = vst.msk [vmem:[#allocation5 + $0x330] sm:$0xff] %vm6399, %v6310
  %6452 = vst.msk [vmem:[#allocation5 + $0x340] sm:$0xff] %vm6399, %v6312
  %6453 = vst.msk [vmem:[#allocation5 + $0x350] sm:$0xff] %vm6399, %v6314
  %6454 = vst.msk [vmem:[#allocation5 + $0x360] sm:$0xff] %vm6399, %v6316
  %6455 = vst.msk [vmem:[#allocation5 + $0x370] sm:$0xff] %vm6399, %v6318
  %6456 = vst.msk [vmem:[#allocation5 + $0x380] sm:$0xff] %vm6399, %v6320
  %6457 = vst.msk [vmem:[#allocation5 + $0x390] sm:$0xff] %vm6399, %v6322
  %6458 = vst.msk [vmem:[#allocation5 + $0x3a0] sm:$0xff] %vm6399, %v6324
  %6459 = vst.msk [vmem:[#allocation5 + $0x3b0] sm:$0xff] %vm6399, %v6326
  %6460 = vst.msk [vmem:[#allocation5 + $0x3c0] sm:$0xff] %vm6399, %v6328
  %6461 = vst.msk [vmem:[#allocation5 + $0x3d0] sm:$0xff] %vm6399, %v6330
  %6462 = vst.msk [vmem:[#allocation5 + $0x3e0] sm:$0xff] %vm6399, %v6332
  %6463 = vst.msk [vmem:[#allocation5 + $0x3f0] sm:$0xff] %vm6399, %v6334
  %v6464 = vld [vmem:[%s4731 + $0x2] sm:$0xff]
  %v6465 = vld [vmem:[%s4731 + $0xa] sm:$0xff]
  %v6466 = vld [vmem:[%s4731 + $0x1a] sm:$0xff]
  %v6467 = vld [vmem:[%s4731 + $0x22] sm:$0xff]
  %v6468 = vld [vmem:[%s4731 + $0x32] sm:$0xff]
  %v6469 = vld [vmem:[%s4731 + $0x3a] sm:$0xff]
  %v6470 = vld [vmem:[%s4731 + $0x4a] sm:$0xff]
  %v6471 = vld [vmem:[%s4731 + $0x52] sm:$0xff]
  %v6472 = vld [vmem:[%s4731 + $0x62] sm:$0xff]
  %v6473 = vld [vmem:[%s4731 + $0x6a] sm:$0xff]
  %v6474 = vld [vmem:[%s4731 + $0x7a] sm:$0xff]
  %v6475 = vld [vmem:[%s4731 + $0x82] sm:$0xff]
  %v6476 = vld [vmem:[%s4731 + $0x92] sm:$0xff]
  %v6477 = vld [vmem:[%s4731 + $0x9a] sm:$0xff]
  %v6478 = vld [vmem:[%s4731 + $0xaa] sm:$0xff]
  %v6479 = vld [vmem:[%s4731 + $0xb2] sm:$0xff]
  %v6480 = vld [vmem:[%s4731 + $0xc2] sm:$0xff]
  %v6481 = vld [vmem:[%s4731 + $0xca] sm:$0xff]
  %v6482 = vld [vmem:[%s4731 + $0xda] sm:$0xff]
  %v6483 = vld [vmem:[%s4731 + $0xe2] sm:$0xff]
  %v6484 = vld [vmem:[%s4731 + $0xf2] sm:$0xff]
  %v6485 = vld [vmem:[%s4731 + $0xfa] sm:$0xff]
  %v6486 = vld [vmem:[%s4731 + $0x10a] sm:$0xff]
  %v6487 = vld [vmem:[%s4731 + $0x112] sm:$0xff]
  %v6488 = vld [vmem:[%s4731 + $0x122] sm:$0xff]
  %v6489 = vld [vmem:[%s4731 + $0x12a] sm:$0xff]
  %v6490 = vld [vmem:[%s4731 + $0x13a] sm:$0xff]
  %v6491 = vld [vmem:[%s4731 + $0x142] sm:$0xff]
  %v6492 = vld [vmem:[%s4731 + $0x152] sm:$0xff]
  %v6493 = vld [vmem:[%s4731 + $0x15a] sm:$0xff]
  %v6494 = vld [vmem:[%s4731 + $0x16a] sm:$0xff]
  %v6495 = vld [vmem:[%s4731 + $0x172] sm:$0xff]
  %v6496 = vld [vmem:[%s4731 + $0x1b2] sm:$0xff]
  %v6497 = vld [vmem:[%s4731 + $0x1ba] sm:$0xff]
  %v6498 = vld [vmem:[%s4731 + $0x1ca] sm:$0xff]
  %v6499 = vld [vmem:[%s4731 + $0x1d2] sm:$0xff]
  %v6500 = vld [vmem:[%s4731 + $0x1e2] sm:$0xff]
  %v6501 = vld [vmem:[%s4731 + $0x1ea] sm:$0xff]
  %v6502 = vld [vmem:[%s4731 + $0x1fa] sm:$0xff]
  %v6503 = vld [vmem:[%s4731 + $0x202] sm:$0xff]
  %v6504 = vld [vmem:[%s4731 + $0x212] sm:$0xff]
  %v6505 = vld [vmem:[%s4731 + $0x21a] sm:$0xff]
  %v6506 = vld [vmem:[%s4731 + $0x22a] sm:$0xff]
  %v6507 = vld [vmem:[%s4731 + $0x232] sm:$0xff]
  %v6508 = vld [vmem:[%s4731 + $0x242] sm:$0xff]
  %v6509 = vld [vmem:[%s4731 + $0x24a] sm:$0xff]
  %v6510 = vld [vmem:[%s4731 + $0x25a] sm:$0xff]
  %v6511 = vld [vmem:[%s4731 + $0x262] sm:$0xff]
  %v6512 = vld [vmem:[%s4731 + $0x272] sm:$0xff]
  %v6513 = vld [vmem:[%s4731 + $0x27a] sm:$0xff]
  %v6514 = vld [vmem:[%s4731 + $0x28a] sm:$0xff]
  %v6515 = vld [vmem:[%s4731 + $0x292] sm:$0xff]
  %v6516 = vld [vmem:[%s4731 + $0x2a2] sm:$0xff]
  %v6517 = vld [vmem:[%s4731 + $0x2aa] sm:$0xff]
  %v6518 = vld [vmem:[%s4731 + $0x2ba] sm:$0xff]
  %v6519 = vld [vmem:[%s4731 + $0x2c2] sm:$0xff]
  %v6520 = vld [vmem:[%s4731 + $0x2d2] sm:$0xff]
  %v6521 = vld [vmem:[%s4731 + $0x2da] sm:$0xff]
  %v6522 = vld [vmem:[%s4731 + $0x2ea] sm:$0xff]
  %v6523 = vld [vmem:[%s4731 + $0x2f2] sm:$0xff]
  %v6524 = vld [vmem:[%s4731 + $0x302] sm:$0xff]
  %v6525 = vld [vmem:[%s4731 + $0x30a] sm:$0xff]
  %v6526 = vld [vmem:[%s4731 + $0x31a] sm:$0xff]
  %v6527 = vld [vmem:[%s4731 + $0x322] sm:$0xff]
  %6592 = vrot.lane.b32.xlu0 %v6464, 80
  %v6593 = vpop.permute.xlu0 %6592
  %6594 = vrot.lane.b32.xlu0 %v6465, 80
  %v6595 = vpop.permute.xlu0 %6594
  %6596 = vrot.lane.b32.xlu0 %v6466, 80
  %v6597 = vpop.permute.xlu0 %6596
  %6598 = vrot.lane.b32.xlu0 %v6467, 80
  %v6599 = vpop.permute.xlu0 %6598
  %6600 = vrot.lane.b32.xlu0 %v6468, 80
  %v6601 = vpop.permute.xlu0 %6600
  %6602 = vrot.lane.b32.xlu0 %v6469, 80
  %v6603 = vpop.permute.xlu0 %6602
  %6604 = vrot.lane.b32.xlu0 %v6470, 80
  %v6605 = vpop.permute.xlu0 %6604
  %6606 = vrot.lane.b32.xlu0 %v6471, 80
  %v6607 = vpop.permute.xlu0 %6606
  %6608 = vrot.lane.b32.xlu0 %v6472, 80
  %v6609 = vpop.permute.xlu0 %6608
  %6610 = vrot.lane.b32.xlu0 %v6473, 80
  %v6611 = vpop.permute.xlu0 %6610
  %6612 = vrot.lane.b32.xlu0 %v6474, 80
  %v6613 = vpop.permute.xlu0 %6612
  %6614 = vrot.lane.b32.xlu0 %v6475, 80
  %v6615 = vpop.permute.xlu0 %6614
  %6616 = vrot.lane.b32.xlu0 %v6476, 80
  %v6617 = vpop.permute.xlu0 %6616
  %6618 = vrot.lane.b32.xlu0 %v6477, 80
  %v6619 = vpop.permute.xlu0 %6618
  %6620 = vrot.lane.b32.xlu0 %v6478, 80
  %v6621 = vpop.permute.xlu0 %6620
  %6622 = vrot.lane.b32.xlu0 %v6479, 80
  %v6623 = vpop.permute.xlu0 %6622
  %6624 = vrot.lane.b32.xlu0 %v6480, 80
  %v6625 = vpop.permute.xlu0 %6624
  %6626 = vrot.lane.b32.xlu0 %v6481, 80
  %v6627 = vpop.permute.xlu0 %6626
  %6628 = vrot.lane.b32.xlu0 %v6482, 80
  %v6629 = vpop.permute.xlu0 %6628
  %6630 = vrot.lane.b32.xlu0 %v6483, 80
  %v6631 = vpop.permute.xlu0 %6630
  %6632 = vrot.lane.b32.xlu0 %v6484, 80
  %v6633 = vpop.permute.xlu0 %6632
  %6634 = vrot.lane.b32.xlu0 %v6485, 80
  %v6635 = vpop.permute.xlu0 %6634
  %6636 = vrot.lane.b32.xlu0 %v6486, 80
  %v6637 = vpop.permute.xlu0 %6636
  %6638 = vrot.lane.b32.xlu0 %v6487, 80
  %v6639 = vpop.permute.xlu0 %6638
  %6640 = vrot.lane.b32.xlu0 %v6488, 80
  %v6641 = vpop.permute.xlu0 %6640
  %6642 = vrot.lane.b32.xlu0 %v6489, 80
  %v6643 = vpop.permute.xlu0 %6642
  %6644 = vrot.lane.b32.xlu0 %v6490, 80
  %v6645 = vpop.permute.xlu0 %6644
  %6646 = vrot.lane.b32.xlu0 %v6491, 80
  %v6647 = vpop.permute.xlu0 %6646
  %6648 = vrot.lane.b32.xlu0 %v6492, 80
  %v6649 = vpop.permute.xlu0 %6648
  %6650 = vrot.lane.b32.xlu0 %v6493, 80
  %v6651 = vpop.permute.xlu0 %6650
  %6652 = vrot.lane.b32.xlu0 %v6494, 80
  %v6653 = vpop.permute.xlu0 %6652
  %6654 = vrot.lane.b32.xlu0 %v6495, 80
  %v6655 = vpop.permute.xlu0 %6654
  %6656 = vrot.lane.b32.xlu0 %v6496, 80
  %v6657 = vpop.permute.xlu0 %6656
  %6658 = vrot.lane.b32.xlu0 %v6497, 80
  %v6659 = vpop.permute.xlu0 %6658
  %6660 = vrot.lane.b32.xlu0 %v6498, 80
  %v6661 = vpop.permute.xlu0 %6660
  %6662 = vrot.lane.b32.xlu0 %v6499, 80
  %v6663 = vpop.permute.xlu0 %6662
  %6664 = vrot.lane.b32.xlu0 %v6500, 80
  %v6665 = vpop.permute.xlu0 %6664
  %6666 = vrot.lane.b32.xlu0 %v6501, 80
  %v6667 = vpop.permute.xlu0 %6666
  %6668 = vrot.lane.b32.xlu0 %v6502, 80
  %v6669 = vpop.permute.xlu0 %6668
  %6670 = vrot.lane.b32.xlu0 %v6503, 80
  %v6671 = vpop.permute.xlu0 %6670
  %6672 = vrot.lane.b32.xlu0 %v6504, 80
  %v6673 = vpop.permute.xlu0 %6672
  %6674 = vrot.lane.b32.xlu0 %v6505, 80
  %v6675 = vpop.permute.xlu0 %6674
  %6676 = vrot.lane.b32.xlu0 %v6506, 80
  %v6677 = vpop.permute.xlu0 %6676
  %6678 = vrot.lane.b32.xlu0 %v6507, 80
  %v6679 = vpop.permute.xlu0 %6678
  %6680 = vrot.lane.b32.xlu0 %v6508, 80
  %v6681 = vpop.permute.xlu0 %6680
  %6682 = vrot.lane.b32.xlu0 %v6509, 80
  %v6683 = vpop.permute.xlu0 %6682
  %6684 = vrot.lane.b32.xlu0 %v6510, 80
  %v6685 = vpop.permute.xlu0 %6684
  %6686 = vrot.lane.b32.xlu0 %v6511, 80
  %v6687 = vpop.permute.xlu0 %6686
  %6688 = vrot.lane.b32.xlu0 %v6512, 80
  %v6689 = vpop.permute.xlu0 %6688
  %6690 = vrot.lane.b32.xlu0 %v6513, 80
  %v6691 = vpop.permute.xlu0 %6690
  %6692 = vrot.lane.b32.xlu0 %v6514, 80
  %v6693 = vpop.permute.xlu0 %6692
  %6694 = vrot.lane.b32.xlu0 %v6515, 80
  %v6695 = vpop.permute.xlu0 %6694
  %6696 = vrot.lane.b32.xlu0 %v6516, 80
  %v6697 = vpop.permute.xlu0 %6696
  %6698 = vrot.lane.b32.xlu0 %v6517, 80
  %v6699 = vpop.permute.xlu0 %6698
  %6700 = vrot.lane.b32.xlu0 %v6518, 80
  %v6701 = vpop.permute.xlu0 %6700
  %6702 = vrot.lane.b32.xlu0 %v6519, 80
  %v6703 = vpop.permute.xlu0 %6702
  %6704 = vrot.lane.b32.xlu0 %v6520, 80
  %v6705 = vpop.permute.xlu0 %6704
  %6706 = vrot.lane.b32.xlu0 %v6521, 80
  %v6707 = vpop.permute.xlu0 %6706
  %6708 = vrot.lane.b32.xlu0 %v6522, 80
  %v6709 = vpop.permute.xlu0 %6708
  %6710 = vrot.lane.b32.xlu0 %v6523, 80
  %v6711 = vpop.permute.xlu0 %6710
  %6712 = vrot.lane.b32.xlu0 %v6524, 80
  %v6713 = vpop.permute.xlu0 %6712
  %6714 = vrot.lane.b32.xlu0 %v6525, 80
  %v6715 = vpop.permute.xlu0 %6714
  %6716 = vrot.lane.b32.xlu0 %v6526, 80
  %v6717 = vpop.permute.xlu0 %6716
  %6718 = vrot.lane.b32.xlu0 %v6527, 80
  %v6719 = vpop.permute.xlu0 %6718
  %vm6784 = vcmask 786048
  %6785 = vst.msk [vmem:[#allocation5] sm:$0xff] %vm6784, %v6593
  %6786 = vst.msk [vmem:[#allocation5 + $0x10] sm:$0xff] %vm6784, %v6595
  %6787 = vst.msk [vmem:[#allocation5 + $0x20] sm:$0xff] %vm6784, %v6597
  %6788 = vst.msk [vmem:[#allocation5 + $0x30] sm:$0xff] %vm6784, %v6599
  %6789 = vst.msk [vmem:[#allocation5 + $0x40] sm:$0xff] %vm6784, %v6601
  %6790 = vst.msk [vmem:[#allocation5 + $0x50] sm:$0xff] %vm6784, %v6603
  %6791 = vst.msk [vmem:[#allocation5 + $0x60] sm:$0xff] %vm6784, %v6605
  %6792 = vst.msk [vmem:[#allocation5 + $0x70] sm:$0xff] %vm6784, %v6607
  %6793 = vst.msk [vmem:[#allocation5 + $0x80] sm:$0xff] %vm6784, %v6609
  %6794 = vst.msk [vmem:[#allocation5 + $0x90] sm:$0xff] %vm6784, %v6611
  %6795 = vst.msk [vmem:[#allocation5 + $0xa0] sm:$0xff] %vm6784, %v6613
  %6796 = vst.msk [vmem:[#allocation5 + $0xb0] sm:$0xff] %vm6784, %v6615
  %6797 = vst.msk [vmem:[#allocation5 + $0xc0] sm:$0xff] %vm6784, %v6617
  %6798 = vst.msk [vmem:[#allocation5 + $0xd0] sm:$0xff] %vm6784, %v6619
  %6799 = vst.msk [vmem:[#allocation5 + $0xe0] sm:$0xff] %vm6784, %v6621
  %6800 = vst.msk [vmem:[#allocation5 + $0xf0] sm:$0xff] %vm6784, %v6623
  %6801 = vst.msk [vmem:[#allocation5 + $0x100] sm:$0xff] %vm6784, %v6625
  %6802 = vst.msk [vmem:[#allocation5 + $0x110] sm:$0xff] %vm6784, %v6627
  %6803 = vst.msk [vmem:[#allocation5 + $0x120] sm:$0xff] %vm6784, %v6629
  %6804 = vst.msk [vmem:[#allocation5 + $0x130] sm:$0xff] %vm6784, %v6631
  %6805 = vst.msk [vmem:[#allocation5 + $0x140] sm:$0xff] %vm6784, %v6633
  %6806 = vst.msk [vmem:[#allocation5 + $0x150] sm:$0xff] %vm6784, %v6635
  %6807 = vst.msk [vmem:[#allocation5 + $0x160] sm:$0xff] %vm6784, %v6637
  %6808 = vst.msk [vmem:[#allocation5 + $0x170] sm:$0xff] %vm6784, %v6639
  %6809 = vst.msk [vmem:[#allocation5 + $0x180] sm:$0xff] %vm6784, %v6641
  %6810 = vst.msk [vmem:[#allocation5 + $0x190] sm:$0xff] %vm6784, %v6643
  %6811 = vst.msk [vmem:[#allocation5 + $0x1a0] sm:$0xff] %vm6784, %v6645
  %6812 = vst.msk [vmem:[#allocation5 + $0x1b0] sm:$0xff] %vm6784, %v6647
  %6813 = vst.msk [vmem:[#allocation5 + $0x1c0] sm:$0xff] %vm6784, %v6649
  %6814 = vst.msk [vmem:[#allocation5 + $0x1d0] sm:$0xff] %vm6784, %v6651
  %6815 = vst.msk [vmem:[#allocation5 + $0x1e0] sm:$0xff] %vm6784, %v6653
  %6816 = vst.msk [vmem:[#allocation5 + $0x1f0] sm:$0xff] %vm6784, %v6655
  %6817 = vst.msk [vmem:[#allocation5 + $0x200] sm:$0xff] %vm6784, %v6657
  %6818 = vst.msk [vmem:[#allocation5 + $0x210] sm:$0xff] %vm6784, %v6659
  %6819 = vst.msk [vmem:[#allocation5 + $0x220] sm:$0xff] %vm6784, %v6661
  %6820 = vst.msk [vmem:[#allocation5 + $0x230] sm:$0xff] %vm6784, %v6663
  %6821 = vst.msk [vmem:[#allocation5 + $0x240] sm:$0xff] %vm6784, %v6665
  %6822 = vst.msk [vmem:[#allocation5 + $0x250] sm:$0xff] %vm6784, %v6667
  %6823 = vst.msk [vmem:[#allocation5 + $0x260] sm:$0xff] %vm6784, %v6669
  %6824 = vst.msk [vmem:[#allocation5 + $0x270] sm:$0xff] %vm6784, %v6671
  %6825 = vst.msk [vmem:[#allocation5 + $0x280] sm:$0xff] %vm6784, %v6673
  %6826 = vst.msk [vmem:[#allocation5 + $0x290] sm:$0xff] %vm6784, %v6675
  %6827 = vst.msk [vmem:[#allocation5 + $0x2a0] sm:$0xff] %vm6784, %v6677
  %6828 = vst.msk [vmem:[#allocation5 + $0x2b0] sm:$0xff] %vm6784, %v6679
  %6829 = vst.msk [vmem:[#allocation5 + $0x2c0] sm:$0xff] %vm6784, %v6681
  %6830 = vst.msk [vmem:[#allocation5 + $0x2d0] sm:$0xff] %vm6784, %v6683
  %6831 = vst.msk [vmem:[#allocation5 + $0x2e0] sm:$0xff] %vm6784, %v6685
  %6832 = vst.msk [vmem:[#allocation5 + $0x2f0] sm:$0xff] %vm6784, %v6687
  %6833 = vst.msk [vmem:[#allocation5 + $0x300] sm:$0xff] %vm6784, %v6689
  %6834 = vst.msk [vmem:[#allocation5 + $0x310] sm:$0xff] %vm6784, %v6691
  %6835 = vst.msk [vmem:[#allocation5 + $0x320] sm:$0xff] %vm6784, %v6693
  %6836 = vst.msk [vmem:[#allocation5 + $0x330] sm:$0xff] %vm6784, %v6695
  %6837 = vst.msk [vmem:[#allocation5 + $0x340] sm:$0xff] %vm6784, %v6697
  %6838 = vst.msk [vmem:[#allocation5 + $0x350] sm:$0xff] %vm6784, %v6699
  %6839 = vst.msk [vmem:[#allocation5 + $0x360] sm:$0xff] %vm6784, %v6701
  %6840 = vst.msk [vmem:[#allocation5 + $0x370] sm:$0xff] %vm6784, %v6703
  %6841 = vst.msk [vmem:[#allocation5 + $0x380] sm:$0xff] %vm6784, %v6705
  %6842 = vst.msk [vmem:[#allocation5 + $0x390] sm:$0xff] %vm6784, %v6707
  %6843 = vst.msk [vmem:[#allocation5 + $0x3a0] sm:$0xff] %vm6784, %v6709
  %6844 = vst.msk [vmem:[#allocation5 + $0x3b0] sm:$0xff] %vm6784, %v6711
  %6845 = vst.msk [vmem:[#allocation5 + $0x3c0] sm:$0xff] %vm6784, %v6713
  %6846 = vst.msk [vmem:[#allocation5 + $0x3d0] sm:$0xff] %vm6784, %v6715
  %6847 = vst.msk [vmem:[#allocation5 + $0x3e0] sm:$0xff] %vm6784, %v6717
  %6848 = vst.msk [vmem:[#allocation5 + $0x3f0] sm:$0xff] %vm6784, %v6719
  %s6849 = scalar_lea.vmem [#allocation3], 48
  %v6850 = vld [vmem:[%s6849] sm:$0xff]
  %v6851 = vld [vmem:[%s6849 + $0x8] sm:$0xff]
  %v6852 = vld [vmem:[%s6849 + $0x18] sm:$0xff]
  %v6853 = vld [vmem:[%s6849 + $0x20] sm:$0xff]
  %v6854 = vld [vmem:[%s6849 + $0x30] sm:$0xff]
  %v6855 = vld [vmem:[%s6849 + $0x38] sm:$0xff]
  %v6856 = vld [vmem:[%s6849 + $0x48] sm:$0xff]
  %v6857 = vld [vmem:[%s6849 + $0x50] sm:$0xff]
  %v6858 = vld [vmem:[%s6849 + $0x60] sm:$0xff]
  %v6859 = vld [vmem:[%s6849 + $0x68] sm:$0xff]
  %v6860 = vld [vmem:[%s6849 + $0x78] sm:$0xff]
  %v6861 = vld [vmem:[%s6849 + $0x80] sm:$0xff]
  %v6862 = vld [vmem:[%s6849 + $0x90] sm:$0xff]
  %v6863 = vld [vmem:[%s6849 + $0x98] sm:$0xff]
  %v6864 = vld [vmem:[%s6849 + $0xa8] sm:$0xff]
  %v6865 = vld [vmem:[%s6849 + $0xb0] sm:$0xff]
  %v6866 = vld [vmem:[%s6849 + $0xc0] sm:$0xff]
  %v6867 = vld [vmem:[%s6849 + $0xc8] sm:$0xff]
  %v6868 = vld [vmem:[%s6849 + $0xd8] sm:$0xff]
  %v6869 = vld [vmem:[%s6849 + $0xe0] sm:$0xff]
  %v6870 = vld [vmem:[%s6849 + $0xf0] sm:$0xff]
  %v6871 = vld [vmem:[%s6849 + $0xf8] sm:$0xff]
  %v6872 = vld [vmem:[%s6849 + $0x108] sm:$0xff]
  %v6873 = vld [vmem:[%s6849 + $0x110] sm:$0xff]
  %v6874 = vld [vmem:[%s6849 + $0x120] sm:$0xff]
  %v6875 = vld [vmem:[%s6849 + $0x128] sm:$0xff]
  %v6876 = vld [vmem:[%s6849 + $0x138] sm:$0xff]
  %v6877 = vld [vmem:[%s6849 + $0x140] sm:$0xff]
  %v6878 = vld [vmem:[%s6849 + $0x150] sm:$0xff]
  %v6879 = vld [vmem:[%s6849 + $0x158] sm:$0xff]
  %v6880 = vld [vmem:[%s6849 + $0x168] sm:$0xff]
  %v6881 = vld [vmem:[%s6849 + $0x170] sm:$0xff]
  %v6882 = vld [vmem:[%s6849 + $0x1b0] sm:$0xff]
  %v6883 = vld [vmem:[%s6849 + $0x1b8] sm:$0xff]
  %v6884 = vld [vmem:[%s6849 + $0x1c8] sm:$0xff]
  %v6885 = vld [vmem:[%s6849 + $0x1d0] sm:$0xff]
  %v6886 = vld [vmem:[%s6849 + $0x1e0] sm:$0xff]
  %v6887 = vld [vmem:[%s6849 + $0x1e8] sm:$0xff]
  %v6888 = vld [vmem:[%s6849 + $0x1f8] sm:$0xff]
  %v6889 = vld [vmem:[%s6849 + $0x200] sm:$0xff]
  %v6890 = vld [vmem:[%s6849 + $0x210] sm:$0xff]
  %v6891 = vld [vmem:[%s6849 + $0x218] sm:$0xff]
  %v6892 = vld [vmem:[%s6849 + $0x228] sm:$0xff]
  %v6893 = vld [vmem:[%s6849 + $0x230] sm:$0xff]
  %v6894 = vld [vmem:[%s6849 + $0x240] sm:$0xff]
  %v6895 = vld [vmem:[%s6849 + $0x248] sm:$0xff]
  %v6896 = vld [vmem:[%s6849 + $0x258] sm:$0xff]
  %v6897 = vld [vmem:[%s6849 + $0x260] sm:$0xff]
  %v6898 = vld [vmem:[%s6849 + $0x270] sm:$0xff]
  %v6899 = vld [vmem:[%s6849 + $0x278] sm:$0xff]
  %v6900 = vld [vmem:[%s6849 + $0x288] sm:$0xff]
  %v6901 = vld [vmem:[%s6849 + $0x290] sm:$0xff]
  %v6902 = vld [vmem:[%s6849 + $0x2a0] sm:$0xff]
  %v6903 = vld [vmem:[%s6849 + $0x2a8] sm:$0xff]
  %v6904 = vld [vmem:[%s6849 + $0x2b8] sm:$0xff]
  %v6905 = vld [vmem:[%s6849 + $0x2c0] sm:$0xff]
  %v6906 = vld [vmem:[%s6849 + $0x2d0] sm:$0xff]
  %v6907 = vld [vmem:[%s6849 + $0x2d8] sm:$0xff]
  %v6908 = vld [vmem:[%s6849 + $0x2e8] sm:$0xff]
  %v6909 = vld [vmem:[%s6849 + $0x2f0] sm:$0xff]
  %v6910 = vld [vmem:[%s6849 + $0x300] sm:$0xff]
  %v6911 = vld [vmem:[%s6849 + $0x308] sm:$0xff]
  %v6912 = vld [vmem:[%s6849 + $0x318] sm:$0xff]
  %v6913 = vld [vmem:[%s6849 + $0x320] sm:$0xff]
  %6978 = vrot.lane.b32.xlu0 %v6850, 96
  %v6979 = vpop.permute.xlu0 %6978
  %6980 = vrot.lane.b32.xlu0 %v6851, 96
  %v6981 = vpop.permute.xlu0 %6980
  %6982 = vrot.lane.b32.xlu0 %v6852, 96
  %v6983 = vpop.permute.xlu0 %6982
  %6984 = vrot.lane.b32.xlu0 %v6853, 96
  %v6985 = vpop.permute.xlu0 %6984
  %6986 = vrot.lane.b32.xlu0 %v6854, 96
  %v6987 = vpop.permute.xlu0 %6986
  %6988 = vrot.lane.b32.xlu0 %v6855, 96
  %v6989 = vpop.permute.xlu0 %6988
  %6990 = vrot.lane.b32.xlu0 %v6856, 96
  %v6991 = vpop.permute.xlu0 %6990
  %6992 = vrot.lane.b32.xlu0 %v6857, 96
  %v6993 = vpop.permute.xlu0 %6992
  %6994 = vrot.lane.b32.xlu0 %v6858, 96
  %v6995 = vpop.permute.xlu0 %6994
  %6996 = vrot.lane.b32.xlu0 %v6859, 96
  %v6997 = vpop.permute.xlu0 %6996
  %6998 = vrot.lane.b32.xlu0 %v6860, 96
  %v6999 = vpop.permute.xlu0 %6998
  %7000 = vrot.lane.b32.xlu0 %v6861, 96
  %v7001 = vpop.permute.xlu0 %7000
  %7002 = vrot.lane.b32.xlu0 %v6862, 96
  %v7003 = vpop.permute.xlu0 %7002
  %7004 = vrot.lane.b32.xlu0 %v6863, 96
  %v7005 = vpop.permute.xlu0 %7004
  %7006 = vrot.lane.b32.xlu0 %v6864, 96
  %v7007 = vpop.permute.xlu0 %7006
  %7008 = vrot.lane.b32.xlu0 %v6865, 96
  %v7009 = vpop.permute.xlu0 %7008
  %7010 = vrot.lane.b32.xlu0 %v6866, 96
  %v7011 = vpop.permute.xlu0 %7010
  %7012 = vrot.lane.b32.xlu0 %v6867, 96
  %v7013 = vpop.permute.xlu0 %7012
  %7014 = vrot.lane.b32.xlu0 %v6868, 96
  %v7015 = vpop.permute.xlu0 %7014
  %7016 = vrot.lane.b32.xlu0 %v6869, 96
  %v7017 = vpop.permute.xlu0 %7016
  %7018 = vrot.lane.b32.xlu0 %v6870, 96
  %v7019 = vpop.permute.xlu0 %7018
  %7020 = vrot.lane.b32.xlu0 %v6871, 96
  %v7021 = vpop.permute.xlu0 %7020
  %7022 = vrot.lane.b32.xlu0 %v6872, 96
  %v7023 = vpop.permute.xlu0 %7022
  %7024 = vrot.lane.b32.xlu0 %v6873, 96
  %v7025 = vpop.permute.xlu0 %7024
  %7026 = vrot.lane.b32.xlu0 %v6874, 96
  %v7027 = vpop.permute.xlu0 %7026
  %7028 = vrot.lane.b32.xlu0 %v6875, 96
  %v7029 = vpop.permute.xlu0 %7028
  %7030 = vrot.lane.b32.xlu0 %v6876, 96
  %v7031 = vpop.permute.xlu0 %7030
  %7032 = vrot.lane.b32.xlu0 %v6877, 96
  %v7033 = vpop.permute.xlu0 %7032
  %7034 = vrot.lane.b32.xlu0 %v6878, 96
  %v7035 = vpop.permute.xlu0 %7034
  %7036 = vrot.lane.b32.xlu0 %v6879, 96
  %v7037 = vpop.permute.xlu0 %7036
  %7038 = vrot.lane.b32.xlu0 %v6880, 96
  %v7039 = vpop.permute.xlu0 %7038
  %7040 = vrot.lane.b32.xlu0 %v6881, 96
  %v7041 = vpop.permute.xlu0 %7040
  %7042 = vrot.lane.b32.xlu0 %v6882, 96
  %v7043 = vpop.permute.xlu0 %7042
  %7044 = vrot.lane.b32.xlu0 %v6883, 96
  %v7045 = vpop.permute.xlu0 %7044
  %7046 = vrot.lane.b32.xlu0 %v6884, 96
  %v7047 = vpop.permute.xlu0 %7046
  %7048 = vrot.lane.b32.xlu0 %v6885, 96
  %v7049 = vpop.permute.xlu0 %7048
  %7050 = vrot.lane.b32.xlu0 %v6886, 96
  %v7051 = vpop.permute.xlu0 %7050
  %7052 = vrot.lane.b32.xlu0 %v6887, 96
  %v7053 = vpop.permute.xlu0 %7052
  %7054 = vrot.lane.b32.xlu0 %v6888, 96
  %v7055 = vpop.permute.xlu0 %7054
  %7056 = vrot.lane.b32.xlu0 %v6889, 96
  %v7057 = vpop.permute.xlu0 %7056
  %7058 = vrot.lane.b32.xlu0 %v6890, 96
  %v7059 = vpop.permute.xlu0 %7058
  %7060 = vrot.lane.b32.xlu0 %v6891, 96
  %v7061 = vpop.permute.xlu0 %7060
  %7062 = vrot.lane.b32.xlu0 %v6892, 96
  %v7063 = vpop.permute.xlu0 %7062
  %7064 = vrot.lane.b32.xlu0 %v6893, 96
  %v7065 = vpop.permute.xlu0 %7064
  %7066 = vrot.lane.b32.xlu0 %v6894, 96
  %v7067 = vpop.permute.xlu0 %7066
  %7068 = vrot.lane.b32.xlu0 %v6895, 96
  %v7069 = vpop.permute.xlu0 %7068
  %7070 = vrot.lane.b32.xlu0 %v6896, 96
  %v7071 = vpop.permute.xlu0 %7070
  %7072 = vrot.lane.b32.xlu0 %v6897, 96
  %v7073 = vpop.permute.xlu0 %7072
  %7074 = vrot.lane.b32.xlu0 %v6898, 96
  %v7075 = vpop.permute.xlu0 %7074
  %7076 = vrot.lane.b32.xlu0 %v6899, 96
  %v7077 = vpop.permute.xlu0 %7076
  %7078 = vrot.lane.b32.xlu0 %v6900, 96
  %v7079 = vpop.permute.xlu0 %7078
  %7080 = vrot.lane.b32.xlu0 %v6901, 96
  %v7081 = vpop.permute.xlu0 %7080
  %7082 = vrot.lane.b32.xlu0 %v6902, 96
  %v7083 = vpop.permute.xlu0 %7082
  %7084 = vrot.lane.b32.xlu0 %v6903, 96
  %v7085 = vpop.permute.xlu0 %7084
  %7086 = vrot.lane.b32.xlu0 %v6904, 96
  %v7087 = vpop.permute.xlu0 %7086
  %7088 = vrot.lane.b32.xlu0 %v6905, 96
  %v7089 = vpop.permute.xlu0 %7088
  %7090 = vrot.lane.b32.xlu0 %v6906, 96
  %v7091 = vpop.permute.xlu0 %7090
  %7092 = vrot.lane.b32.xlu0 %v6907, 96
  %v7093 = vpop.permute.xlu0 %7092
  %7094 = vrot.lane.b32.xlu0 %v6908, 96
  %v7095 = vpop.permute.xlu0 %7094
  %7096 = vrot.lane.b32.xlu0 %v6909, 96
  %v7097 = vpop.permute.xlu0 %7096
  %7098 = vrot.lane.b32.xlu0 %v6910, 96
  %v7099 = vpop.permute.xlu0 %7098
  %7100 = vrot.lane.b32.xlu0 %v6911, 96
  %v7101 = vpop.permute.xlu0 %7100
  %7102 = vrot.lane.b32.xlu0 %v6912, 96
  %v7103 = vpop.permute.xlu0 %7102
  %7104 = vrot.lane.b32.xlu0 %v6913, 96
  %v7105 = vpop.permute.xlu0 %7104
  %vm7170 = vcmask 917248
  %7171 = vst.msk [vmem:[#allocation5] sm:$0xff] %vm7170, %v6979
  %7172 = vst.msk [vmem:[#allocation5 + $0x10] sm:$0xff] %vm7170, %v6981
  %7173 = vst.msk [vmem:[#allocation5 + $0x20] sm:$0xff] %vm7170, %v6983
  %7174 = vst.msk [vmem:[#allocation5 + $0x30] sm:$0xff] %vm7170, %v6985
  %7175 = vst.msk [vmem:[#allocation5 + $0x40] sm:$0xff] %vm7170, %v6987
  %7176 = vst.msk [vmem:[#allocation5 + $0x50] sm:$0xff] %vm7170, %v6989
  %7177 = vst.msk [vmem:[#allocation5 + $0x60] sm:$0xff] %vm7170, %v6991
  %7178 = vst.msk [vmem:[#allocation5 + $0x70] sm:$0xff] %vm7170, %v6993
  %7179 = vst.msk [vmem:[#allocation5 + $0x80] sm:$0xff] %vm7170, %v6995
  %7180 = vst.msk [vmem:[#allocation5 + $0x90] sm:$0xff] %vm7170, %v6997
  %7181 = vst.msk [vmem:[#allocation5 + $0xa0] sm:$0xff] %vm7170, %v6999
  %7182 = vst.msk [vmem:[#allocation5 + $0xb0] sm:$0xff] %vm7170, %v7001
  %7183 = vst.msk [vmem:[#allocation5 + $0xc0] sm:$0xff] %vm7170, %v7003
  %7184 = vst.msk [vmem:[#allocation5 + $0xd0] sm:$0xff] %vm7170, %v7005
  %7185 = vst.msk [vmem:[#allocation5 + $0xe0] sm:$0xff] %vm7170, %v7007
  %7186 = vst.msk [vmem:[#allocation5 + $0xf0] sm:$0xff] %vm7170, %v7009
  %7187 = vst.msk [vmem:[#allocation5 + $0x100] sm:$0xff] %vm7170, %v7011
  %7188 = vst.msk [vmem:[#allocation5 + $0x110] sm:$0xff] %vm7170, %v7013
  %7189 = vst.msk [vmem:[#allocation5 + $0x120] sm:$0xff] %vm7170, %v7015
  %7190 = vst.msk [vmem:[#allocation5 + $0x130] sm:$0xff] %vm7170, %v7017
  %7191 = vst.msk [vmem:[#allocation5 + $0x140] sm:$0xff] %vm7170, %v7019
  %7192 = vst.msk [vmem:[#allocation5 + $0x150] sm:$0xff] %vm7170, %v7021
  %7193 = vst.msk [vmem:[#allocation5 + $0x160] sm:$0xff] %vm7170, %v7023
  %7194 = vst.msk [vmem:[#allocation5 + $0x170] sm:$0xff] %vm7170, %v7025
  %7195 = vst.msk [vmem:[#allocation5 + $0x180] sm:$0xff] %vm7170, %v7027
  %7196 = vst.msk [vmem:[#allocation5 + $0x190] sm:$0xff] %vm7170, %v7029
  %7197 = vst.msk [vmem:[#allocation5 + $0x1a0] sm:$0xff] %vm7170, %v7031
  %7198 = vst.msk [vmem:[#allocation5 + $0x1b0] sm:$0xff] %vm7170, %v7033
  %7199 = vst.msk [vmem:[#allocation5 + $0x1c0] sm:$0xff] %vm7170, %v7035
  %7200 = vst.msk [vmem:[#allocation5 + $0x1d0] sm:$0xff] %vm7170, %v7037
  %7201 = vst.msk [vmem:[#allocation5 + $0x1e0] sm:$0xff] %vm7170, %v7039
  %7202 = vst.msk [vmem:[#allocation5 + $0x1f0] sm:$0xff] %vm7170, %v7041
  %7203 = vst.msk [vmem:[#allocation5 + $0x200] sm:$0xff] %vm7170, %v7043
  %7204 = vst.msk [vmem:[#allocation5 + $0x210] sm:$0xff] %vm7170, %v7045
  %7205 = vst.msk [vmem:[#allocation5 + $0x220] sm:$0xff] %vm7170, %v7047
  %7206 = vst.msk [vmem:[#allocation5 + $0x230] sm:$0xff] %vm7170, %v7049
  %7207 = vst.msk [vmem:[#allocation5 + $0x240] sm:$0xff] %vm7170, %v7051
  %7208 = vst.msk [vmem:[#allocation5 + $0x250] sm:$0xff] %vm7170, %v7053
  %7209 = vst.msk [vmem:[#allocation5 + $0x260] sm:$0xff] %vm7170, %v7055
  %7210 = vst.msk [vmem:[#allocation5 + $0x270] sm:$0xff] %vm7170, %v7057
  %7211 = vst.msk [vmem:[#allocation5 + $0x280] sm:$0xff] %vm7170, %v7059
  %7212 = vst.msk [vmem:[#allocation5 + $0x290] sm:$0xff] %vm7170, %v7061
  %7213 = vst.msk [vmem:[#allocation5 + $0x2a0] sm:$0xff] %vm7170, %v7063
  %7214 = vst.msk [vmem:[#allocation5 + $0x2b0] sm:$0xff] %vm7170, %v7065
  %7215 = vst.msk [vmem:[#allocation5 + $0x2c0] sm:$0xff] %vm7170, %v7067
  %7216 = vst.msk [vmem:[#allocation5 + $0x2d0] sm:$0xff] %vm7170, %v7069
  %7217 = vst.msk [vmem:[#allocation5 + $0x2e0] sm:$0xff] %vm7170, %v7071
  %7218 = vst.msk [vmem:[#allocation5 + $0x2f0] sm:$0xff] %vm7170, %v7073
  %7219 = vst.msk [vmem:[#allocation5 + $0x300] sm:$0xff] %vm7170, %v7075
  %7220 = vst.msk [vmem:[#allocation5 + $0x310] sm:$0xff] %vm7170, %v7077
  %7221 = vst.msk [vmem:[#allocation5 + $0x320] sm:$0xff] %vm7170, %v7079
  %7222 = vst.msk [vmem:[#allocation5 + $0x330] sm:$0xff] %vm7170, %v7081
  %7223 = vst.msk [vmem:[#allocation5 + $0x340] sm:$0xff] %vm7170, %v7083
  %7224 = vst.msk [vmem:[#allocation5 + $0x350] sm:$0xff] %vm7170, %v7085
  %7225 = vst.msk [vmem:[#allocation5 + $0x360] sm:$0xff] %vm7170, %v7087
  %7226 = vst.msk [vmem:[#allocation5 + $0x370] sm:$0xff] %vm7170, %v7089
  %7227 = vst.msk [vmem:[#allocation5 + $0x380] sm:$0xff] %vm7170, %v7091
  %7228 = vst.msk [vmem:[#allocation5 + $0x390] sm:$0xff] %vm7170, %v7093
  %7229 = vst.msk [vmem:[#allocation5 + $0x3a0] sm:$0xff] %vm7170, %v7095
  %7230 = vst.msk [vmem:[#allocation5 + $0x3b0] sm:$0xff] %vm7170, %v7097
  %7231 = vst.msk [vmem:[#allocation5 + $0x3c0] sm:$0xff] %vm7170, %v7099
  %7232 = vst.msk [vmem:[#allocation5 + $0x3d0] sm:$0xff] %vm7170, %v7101
  %7233 = vst.msk [vmem:[#allocation5 + $0x3e0] sm:$0xff] %vm7170, %v7103
  %7234 = vst.msk [vmem:[#allocation5 + $0x3f0] sm:$0xff] %vm7170, %v7105
  %v7235 = vld [vmem:[%s6849 + $0x1] sm:$0xff]
  %v7236 = vld [vmem:[%s6849 + $0x9] sm:$0xff]
  %v7237 = vld [vmem:[%s6849 + $0x19] sm:$0xff]
  %v7238 = vld [vmem:[%s6849 + $0x21] sm:$0xff]
  %v7239 = vld [vmem:[%s6849 + $0x31] sm:$0xff]
  %v7240 = vld [vmem:[%s6849 + $0x39] sm:$0xff]
  %v7241 = vld [vmem:[%s6849 + $0x49] sm:$0xff]
  %v7242 = vld [vmem:[%s6849 + $0x51] sm:$0xff]
  %v7243 = vld [vmem:[%s6849 + $0x61] sm:$0xff]
  %v7244 = vld [vmem:[%s6849 + $0x69] sm:$0xff]
  %v7245 = vld [vmem:[%s6849 + $0x79] sm:$0xff]
  %v7246 = vld [vmem:[%s6849 + $0x81] sm:$0xff]
  %v7247 = vld [vmem:[%s6849 + $0x91] sm:$0xff]
  %v7248 = vld [vmem:[%s6849 + $0x99] sm:$0xff]
  %v7249 = vld [vmem:[%s6849 + $0xa9] sm:$0xff]
  %v7250 = vld [vmem:[%s6849 + $0xb1] sm:$0xff]
  %v7251 = vld [vmem:[%s6849 + $0xc1] sm:$0xff]
  %v7252 = vld [vmem:[%s6849 + $0xc9] sm:$0xff]
  %v7253 = vld [vmem:[%s6849 + $0xd9] sm:$0xff]
  %v7254 = vld [vmem:[%s6849 + $0xe1] sm:$0xff]
  %v7255 = vld [vmem:[%s6849 + $0xf1] sm:$0xff]
  %v7256 = vld [vmem:[%s6849 + $0xf9] sm:$0xff]
  %v7257 = vld [vmem:[%s6849 + $0x109] sm:$0xff]
  %v7258 = vld [vmem:[%s6849 + $0x111] sm:$0xff]
  %v7259 = vld [vmem:[%s6849 + $0x121] sm:$0xff]
  %v7260 = vld [vmem:[%s6849 + $0x129] sm:$0xff]
  %v7261 = vld [vmem:[%s6849 + $0x139] sm:$0xff]
  %v7262 = vld [vmem:[%s6849 + $0x141] sm:$0xff]
  %v7263 = vld [vmem:[%s6849 + $0x151] sm:$0xff]
  %v7264 = vld [vmem:[%s6849 + $0x159] sm:$0xff]
  %v7265 = vld [vmem:[%s6849 + $0x169] sm:$0xff]
  %v7266 = vld [vmem:[%s6849 + $0x171] sm:$0xff]
  %v7267 = vld [vmem:[%s6849 + $0x1b1] sm:$0xff]
  %v7268 = vld [vmem:[%s6849 + $0x1b9] sm:$0xff]
  %v7269 = vld [vmem:[%s6849 + $0x1c9] sm:$0xff]
  %v7270 = vld [vmem:[%s6849 + $0x1d1] sm:$0xff]
  %v7271 = vld [vmem:[%s6849 + $0x1e1] sm:$0xff]
  %v7272 = vld [vmem:[%s6849 + $0x1e9] sm:$0xff]
  %v7273 = vld [vmem:[%s6849 + $0x1f9] sm:$0xff]
  %v7274 = vld [vmem:[%s6849 + $0x201] sm:$0xff]
  %v7275 = vld [vmem:[%s6849 + $0x211] sm:$0xff]
  %v7276 = vld [vmem:[%s6849 + $0x219] sm:$0xff]
  %v7277 = vld [vmem:[%s6849 + $0x229] sm:$0xff]
  %v7278 = vld [vmem:[%s6849 + $0x231] sm:$0xff]
  %v7279 = vld [vmem:[%s6849 + $0x241] sm:$0xff]
  %v7280 = vld [vmem:[%s6849 + $0x249] sm:$0xff]
  %v7281 = vld [vmem:[%s6849 + $0x259] sm:$0xff]
  %v7282 = vld [vmem:[%s6849 + $0x261] sm:$0xff]
  %v7283 = vld [vmem:[%s6849 + $0x271] sm:$0xff]
  %v7284 = vld [vmem:[%s6849 + $0x279] sm:$0xff]
  %v7285 = vld [vmem:[%s6849 + $0x289] sm:$0xff]
  %v7286 = vld [vmem:[%s6849 + $0x291] sm:$0xff]
  %v7287 = vld [vmem:[%s6849 + $0x2a1] sm:$0xff]
  %v7288 = vld [vmem:[%s6849 + $0x2a9] sm:$0xff]
  %v7289 = vld [vmem:[%s6849 + $0x2b9] sm:$0xff]
  %v7290 = vld [vmem:[%s6849 + $0x2c1] sm:$0xff]
  %v7291 = vld [vmem:[%s6849 + $0x2d1] sm:$0xff]
  %v7292 = vld [vmem:[%s6849 + $0x2d9] sm:$0xff]
  %v7293 = vld [vmem:[%s6849 + $0x2e9] sm:$0xff]
  %v7294 = vld [vmem:[%s6849 + $0x2f1] sm:$0xff]
  %v7295 = vld [vmem:[%s6849 + $0x301] sm:$0xff]
  %v7296 = vld [vmem:[%s6849 + $0x309] sm:$0xff]
  %v7297 = vld [vmem:[%s6849 + $0x319] sm:$0xff]
  %v7298 = vld [vmem:[%s6849 + $0x321] sm:$0xff]
  %7363 = vrot.lane.b32.xlu0 %v7235, 112
  %v7364 = vpop.permute.xlu0 %7363
  %7365 = vrot.lane.b32.xlu0 %v7236, 112
  %v7366 = vpop.permute.xlu0 %7365
  %7367 = vrot.lane.b32.xlu0 %v7237, 112
  %v7368 = vpop.permute.xlu0 %7367
  %7369 = vrot.lane.b32.xlu0 %v7238, 112
  %v7370 = vpop.permute.xlu0 %7369
  %7371 = vrot.lane.b32.xlu0 %v7239, 112
  %v7372 = vpop.permute.xlu0 %7371
  %7373 = vrot.lane.b32.xlu0 %v7240, 112
  %v7374 = vpop.permute.xlu0 %7373
  %7375 = vrot.lane.b32.xlu0 %v7241, 112
  %v7376 = vpop.permute.xlu0 %7375
  %7377 = vrot.lane.b32.xlu0 %v7242, 112
  %v7378 = vpop.permute.xlu0 %7377
  %7379 = vrot.lane.b32.xlu0 %v7243, 112
  %v7380 = vpop.permute.xlu0 %7379
  %7381 = vrot.lane.b32.xlu0 %v7244, 112
  %v7382 = vpop.permute.xlu0 %7381
  %7383 = vrot.lane.b32.xlu0 %v7245, 112
  %v7384 = vpop.permute.xlu0 %7383
  %7385 = vrot.lane.b32.xlu0 %v7246, 112
  %v7386 = vpop.permute.xlu0 %7385
  %7387 = vrot.lane.b32.xlu0 %v7247, 112
  %v7388 = vpop.permute.xlu0 %7387
  %7389 = vrot.lane.b32.xlu0 %v7248, 112
  %v7390 = vpop.permute.xlu0 %7389
  %7391 = vrot.lane.b32.xlu0 %v7249, 112
  %v7392 = vpop.permute.xlu0 %7391
  %7393 = vrot.lane.b32.xlu0 %v7250, 112
  %v7394 = vpop.permute.xlu0 %7393
  %7395 = vrot.lane.b32.xlu0 %v7251, 112
  %v7396 = vpop.permute.xlu0 %7395
  %7397 = vrot.lane.b32.xlu0 %v7252, 112
  %v7398 = vpop.permute.xlu0 %7397
  %7399 = vrot.lane.b32.xlu0 %v7253, 112
  %v7400 = vpop.permute.xlu0 %7399
  %7401 = vrot.lane.b32.xlu0 %v7254, 112
  %v7402 = vpop.permute.xlu0 %7401
  %7403 = vrot.lane.b32.xlu0 %v7255, 112
  %v7404 = vpop.permute.xlu0 %7403
  %7405 = vrot.lane.b32.xlu0 %v7256, 112
  %v7406 = vpop.permute.xlu0 %7405
  %7407 = vrot.lane.b32.xlu0 %v7257, 112
  %v7408 = vpop.permute.xlu0 %7407
  %7409 = vrot.lane.b32.xlu0 %v7258, 112
  %v7410 = vpop.permute.xlu0 %7409
  %7411 = vrot.lane.b32.xlu0 %v7259, 112
  %v7412 = vpop.permute.xlu0 %7411
  %7413 = vrot.lane.b32.xlu0 %v7260, 112
  %v7414 = vpop.permute.xlu0 %7413
  %7415 = vrot.lane.b32.xlu0 %v7261, 112
  %v7416 = vpop.permute.xlu0 %7415
  %7417 = vrot.lane.b32.xlu0 %v7262, 112
  %v7418 = vpop.permute.xlu0 %7417
  %7419 = vrot.lane.b32.xlu0 %v7263, 112
  %v7420 = vpop.permute.xlu0 %7419
  %7421 = vrot.lane.b32.xlu0 %v7264, 112
  %v7422 = vpop.permute.xlu0 %7421
  %7423 = vrot.lane.b32.xlu0 %v7265, 112
  %v7424 = vpop.permute.xlu0 %7423
  %7425 = vrot.lane.b32.xlu0 %v7266, 112
  %v7426 = vpop.permute.xlu0 %7425
  %7427 = vrot.lane.b32.xlu0 %v7267, 112
  %v7428 = vpop.permute.xlu0 %7427
  %7429 = vrot.lane.b32.xlu0 %v7268, 112
  %v7430 = vpop.permute.xlu0 %7429
  %7431 = vrot.lane.b32.xlu0 %v7269, 112
  %v7432 = vpop.permute.xlu0 %7431
  %7433 = vrot.lane.b32.xlu0 %v7270, 112
  %v7434 = vpop.permute.xlu0 %7433
  %7435 = vrot.lane.b32.xlu0 %v7271, 112
  %v7436 = vpop.permute.xlu0 %7435
  %7437 = vrot.lane.b32.xlu0 %v7272, 112
  %v7438 = vpop.permute.xlu0 %7437
  %7439 = vrot.lane.b32.xlu0 %v7273, 112
  %v7440 = vpop.permute.xlu0 %7439
  %7441 = vrot.lane.b32.xlu0 %v7274, 112
  %v7442 = vpop.permute.xlu0 %7441
  %7443 = vrot.lane.b32.xlu0 %v7275, 112
  %v7444 = vpop.permute.xlu0 %7443
  %7445 = vrot.lane.b32.xlu0 %v7276, 112
  %v7446 = vpop.permute.xlu0 %7445
  %7447 = vrot.lane.b32.xlu0 %v7277, 112
  %v7448 = vpop.permute.xlu0 %7447
  %7449 = vrot.lane.b32.xlu0 %v7278, 112
  %v7450 = vpop.permute.xlu0 %7449
  %7451 = vrot.lane.b32.xlu0 %v7279, 112
  %v7452 = vpop.permute.xlu0 %7451
  %7453 = vrot.lane.b32.xlu0 %v7280, 112
  %v7454 = vpop.permute.xlu0 %7453
  %7455 = vrot.lane.b32.xlu0 %v7281, 112
  %v7456 = vpop.permute.xlu0 %7455
  %7457 = vrot.lane.b32.xlu0 %v7282, 112
  %v7458 = vpop.permute.xlu0 %7457
  %7459 = vrot.lane.b32.xlu0 %v7283, 112
  %v7460 = vpop.permute.xlu0 %7459
  %7461 = vrot.lane.b32.xlu0 %v7284, 112
  %v7462 = vpop.permute.xlu0 %7461
  %7463 = vrot.lane.b32.xlu0 %v7285, 112
  %v7464 = vpop.permute.xlu0 %7463
  %7465 = vrot.lane.b32.xlu0 %v7286, 112
  %v7466 = vpop.permute.xlu0 %7465
  %7467 = vrot.lane.b32.xlu0 %v7287, 112
  %v7468 = vpop.permute.xlu0 %7467
  %7469 = vrot.lane.b32.xlu0 %v7288, 112
  %v7470 = vpop.permute.xlu0 %7469
  %7471 = vrot.lane.b32.xlu0 %v7289, 112
  %v7472 = vpop.permute.xlu0 %7471
  %7473 = vrot.lane.b32.xlu0 %v7290, 112
  %v7474 = vpop.permute.xlu0 %7473
  %7475 = vrot.lane.b32.xlu0 %v7291, 112
  %v7476 = vpop.permute.xlu0 %7475
  %7477 = vrot.lane.b32.xlu0 %v7292, 112
  %v7478 = vpop.permute.xlu0 %7477
  %7479 = vrot.lane.b32.xlu0 %v7293, 112
  %v7480 = vpop.permute.xlu0 %7479
  %7481 = vrot.lane.b32.xlu0 %v7294, 112
  %v7482 = vpop.permute.xlu0 %7481
  %7483 = vrot.lane.b32.xlu0 %v7295, 112
  %v7484 = vpop.permute.xlu0 %7483
  %7485 = vrot.lane.b32.xlu0 %v7296, 112
  %v7486 = vpop.permute.xlu0 %7485
  %7487 = vrot.lane.b32.xlu0 %v7297, 112
  %v7488 = vpop.permute.xlu0 %7487
  %7489 = vrot.lane.b32.xlu0 %v7298, 112
  %v7490 = vpop.permute.xlu0 %7489
  %vm7555 = vcmask 1048448
  %7556 = vst.msk [vmem:[#allocation5] sm:$0xff] %vm7555, %v7364
  %7557 = vst.msk [vmem:[#allocation5 + $0x10] sm:$0xff] %vm7555, %v7366
  %7558 = vst.msk [vmem:[#allocation5 + $0x20] sm:$0xff] %vm7555, %v7368
  %7559 = vst.msk [vmem:[#allocation5 + $0x30] sm:$0xff] %vm7555, %v7370
  %7560 = vst.msk [vmem:[#allocation5 + $0x40] sm:$0xff] %vm7555, %v7372
  %7561 = vst.msk [vmem:[#allocation5 + $0x50] sm:$0xff] %vm7555, %v7374
  %7562 = vst.msk [vmem:[#allocation5 + $0x60] sm:$0xff] %vm7555, %v7376
  %7563 = vst.msk [vmem:[#allocation5 + $0x70] sm:$0xff] %vm7555, %v7378
  %7564 = vst.msk [vmem:[#allocation5 + $0x80] sm:$0xff] %vm7555, %v7380
  %7565 = vst.msk [vmem:[#allocation5 + $0x90] sm:$0xff] %vm7555, %v7382
  %7566 = vst.msk [vmem:[#allocation5 + $0xa0] sm:$0xff] %vm7555, %v7384
  %7567 = vst.msk [vmem:[#allocation5 + $0xb0] sm:$0xff] %vm7555, %v7386
  %7568 = vst.msk [vmem:[#allocation5 + $0xc0] sm:$0xff] %vm7555, %v7388
  %7569 = vst.msk [vmem:[#allocation5 + $0xd0] sm:$0xff] %vm7555, %v7390
  %7570 = vst.msk [vmem:[#allocation5 + $0xe0] sm:$0xff] %vm7555, %v7392
  %7571 = vst.msk [vmem:[#allocation5 + $0xf0] sm:$0xff] %vm7555, %v7394
  %7572 = vst.msk [vmem:[#allocation5 + $0x100] sm:$0xff] %vm7555, %v7396
  %7573 = vst.msk [vmem:[#allocation5 + $0x110] sm:$0xff] %vm7555, %v7398
  %7574 = vst.msk [vmem:[#allocation5 + $0x120] sm:$0xff] %vm7555, %v7400
  %7575 = vst.msk [vmem:[#allocation5 + $0x130] sm:$0xff] %vm7555, %v7402
  %7576 = vst.msk [vmem:[#allocation5 + $0x140] sm:$0xff] %vm7555, %v7404
  %7577 = vst.msk [vmem:[#allocation5 + $0x150] sm:$0xff] %vm7555, %v7406
  %7578 = vst.msk [vmem:[#allocation5 + $0x160] sm:$0xff] %vm7555, %v7408
  %7579 = vst.msk [vmem:[#allocation5 + $0x170] sm:$0xff] %vm7555, %v7410
  %7580 = vst.msk [vmem:[#allocation5 + $0x180] sm:$0xff] %vm7555, %v7412
  %7581 = vst.msk [vmem:[#allocation5 + $0x190] sm:$0xff] %vm7555, %v7414
  %7582 = vst.msk [vmem:[#allocation5 + $0x1a0] sm:$0xff] %vm7555, %v7416
  %7583 = vst.msk [vmem:[#allocation5 + $0x1b0] sm:$0xff] %vm7555, %v7418
  %7584 = vst.msk [vmem:[#allocation5 + $0x1c0] sm:$0xff] %vm7555, %v7420
  %7585 = vst.msk [vmem:[#allocation5 + $0x1d0] sm:$0xff] %vm7555, %v7422
  %7586 = vst.msk [vmem:[#allocation5 + $0x1e0] sm:$0xff] %vm7555, %v7424
  %7587 = vst.msk [vmem:[#allocation5 + $0x1f0] sm:$0xff] %vm7555, %v7426
  %7588 = vst.msk [vmem:[#allocation5 + $0x200] sm:$0xff] %vm7555, %v7428
  %7589 = vst.msk [vmem:[#allocation5 + $0x210] sm:$0xff] %vm7555, %v7430
  %7590 = vst.msk [vmem:[#allocation5 + $0x220] sm:$0xff] %vm7555, %v7432
  %7591 = vst.msk [vmem:[#allocation5 + $0x230] sm:$0xff] %vm7555, %v7434
  %7592 = vst.msk [vmem:[#allocation5 + $0x240] sm:$0xff] %vm7555, %v7436
  %7593 = vst.msk [vmem:[#allocation5 + $0x250] sm:$0xff] %vm7555, %v7438
  %7594 = vst.msk [vmem:[#allocation5 + $0x260] sm:$0xff] %vm7555, %v7440
  %7595 = vst.msk [vmem:[#allocation5 + $0x270] sm:$0xff] %vm7555, %v7442
  %7596 = vst.msk [vmem:[#allocation5 + $0x280] sm:$0xff] %vm7555, %v7444
  %7597 = vst.msk [vmem:[#allocation5 + $0x290] sm:$0xff] %vm7555, %v7446
  %7598 = vst.msk [vmem:[#allocation5 + $0x2a0] sm:$0xff] %vm7555, %v7448
  %7599 = vst.msk [vmem:[#allocation5 + $0x2b0] sm:$0xff] %vm7555, %v7450
  %7600 = vst.msk [vmem:[#allocation5 + $0x2c0] sm:$0xff] %vm7555, %v7452
  %7601 = vst.msk [vmem:[#allocation5 + $0x2d0] sm:$0xff] %vm7555, %v7454
  %7602 = vst.msk [vmem:[#allocation5 + $0x2e0] sm:$0xff] %vm7555, %v7456
  %7603 = vst.msk [vmem:[#allocation5 + $0x2f0] sm:$0xff] %vm7555, %v7458
  %7604 = vst.msk [vmem:[#allocation5 + $0x300] sm:$0xff] %vm7555, %v7460
  %7605 = vst.msk [vmem:[#allocation5 + $0x310] sm:$0xff] %vm7555, %v7462
  %7606 = vst.msk [vmem:[#allocation5 + $0x320] sm:$0xff] %vm7555, %v7464
  %7607 = vst.msk [vmem:[#allocation5 + $0x330] sm:$0xff] %vm7555, %v7466
  %7608 = vst.msk [vmem:[#allocation5 + $0x340] sm:$0xff] %vm7555, %v7468
  %7609 = vst.msk [vmem:[#allocation5 + $0x350] sm:$0xff] %vm7555, %v7470
  %7610 = vst.msk [vmem:[#allocation5 + $0x360] sm:$0xff] %vm7555, %v7472
  %7611 = vst.msk [vmem:[#allocation5 + $0x370] sm:$0xff] %vm7555, %v7474
  %7612 = vst.msk [vmem:[#allocation5 + $0x380] sm:$0xff] %vm7555, %v7476
  %7613 = vst.msk [vmem:[#allocation5 + $0x390] sm:$0xff] %vm7555, %v7478
  %7614 = vst.msk [vmem:[#allocation5 + $0x3a0] sm:$0xff] %vm7555, %v7480
  %7615 = vst.msk [vmem:[#allocation5 + $0x3b0] sm:$0xff] %vm7555, %v7482
  %7616 = vst.msk [vmem:[#allocation5 + $0x3c0] sm:$0xff] %vm7555, %v7484
  %7617 = vst.msk [vmem:[#allocation5 + $0x3d0] sm:$0xff] %vm7555, %v7486
  %7618 = vst.msk [vmem:[#allocation5 + $0x3e0] sm:$0xff] %vm7555, %v7488
  %7619 = vst.msk [vmem:[#allocation5 + $0x3f0] sm:$0xff] %vm7555, %v7490
  %v7620 = vld [vmem:[%s6849 + $0x2] sm:$0xff]
  %v7621 = vld [vmem:[%s6849 + $0xa] sm:$0xff]
  %v7622 = vld [vmem:[%s6849 + $0x1a] sm:$0xff]
  %v7623 = vld [vmem:[%s6849 + $0x22] sm:$0xff]
  %v7624 = vld [vmem:[%s6849 + $0x32] sm:$0xff]
  %v7625 = vld [vmem:[%s6849 + $0x3a] sm:$0xff]
  %v7626 = vld [vmem:[%s6849 + $0x4a] sm:$0xff]
  %v7627 = vld [vmem:[%s6849 + $0x52] sm:$0xff]
  %v7628 = vld [vmem:[%s6849 + $0x62] sm:$0xff]
  %v7629 = vld [vmem:[%s6849 + $0x6a] sm:$0xff]
  %v7630 = vld [vmem:[%s6849 + $0x7a] sm:$0xff]
  %v7631 = vld [vmem:[%s6849 + $0x82] sm:$0xff]
  %v7632 = vld [vmem:[%s6849 + $0x92] sm:$0xff]
  %v7633 = vld [vmem:[%s6849 + $0x9a] sm:$0xff]
  %v7634 = vld [vmem:[%s6849 + $0xaa] sm:$0xff]
  %v7635 = vld [vmem:[%s6849 + $0xb2] sm:$0xff]
  %v7636 = vld [vmem:[%s6849 + $0xc2] sm:$0xff]
  %v7637 = vld [vmem:[%s6849 + $0xca] sm:$0xff]
  %v7638 = vld [vmem:[%s6849 + $0xda] sm:$0xff]
  %v7639 = vld [vmem:[%s6849 + $0xe2] sm:$0xff]
  %v7640 = vld [vmem:[%s6849 + $0xf2] sm:$0xff]
  %v7641 = vld [vmem:[%s6849 + $0xfa] sm:$0xff]
  %v7642 = vld [vmem:[%s6849 + $0x10a] sm:$0xff]
  %v7643 = vld [vmem:[%s6849 + $0x112] sm:$0xff]
  %v7644 = vld [vmem:[%s6849 + $0x122] sm:$0xff]
  %v7645 = vld [vmem:[%s6849 + $0x12a] sm:$0xff]
  %v7646 = vld [vmem:[%s6849 + $0x13a] sm:$0xff]
  %v7647 = vld [vmem:[%s6849 + $0x142] sm:$0xff]
  %v7648 = vld [vmem:[%s6849 + $0x152] sm:$0xff]
  %v7649 = vld [vmem:[%s6849 + $0x15a] sm:$0xff]
  %v7650 = vld [vmem:[%s6849 + $0x16a] sm:$0xff]
  %v7651 = vld [vmem:[%s6849 + $0x172] sm:$0xff]
  %v7652 = vld [vmem:[%s6849 + $0x1b2] sm:$0xff]
  %v7653 = vld [vmem:[%s6849 + $0x1ba] sm:$0xff]
  %v7654 = vld [vmem:[%s6849 + $0x1ca] sm:$0xff]
  %v7655 = vld [vmem:[%s6849 + $0x1d2] sm:$0xff]
  %v7656 = vld [vmem:[%s6849 + $0x1e2] sm:$0xff]
  %v7657 = vld [vmem:[%s6849 + $0x1ea] sm:$0xff]
  %v7658 = vld [vmem:[%s6849 + $0x1fa] sm:$0xff]
  %v7659 = vld [vmem:[%s6849 + $0x202] sm:$0xff]
  %v7660 = vld [vmem:[%s6849 + $0x212] sm:$0xff]
  %v7661 = vld [vmem:[%s6849 + $0x21a] sm:$0xff]
  %v7662 = vld [vmem:[%s6849 + $0x22a] sm:$0xff]
  %v7663 = vld [vmem:[%s6849 + $0x232] sm:$0xff]
  %v7664 = vld [vmem:[%s6849 + $0x242] sm:$0xff]
  %v7665 = vld [vmem:[%s6849 + $0x24a] sm:$0xff]
  %v7666 = vld [vmem:[%s6849 + $0x25a] sm:$0xff]
  %v7667 = vld [vmem:[%s6849 + $0x262] sm:$0xff]
  %v7668 = vld [vmem:[%s6849 + $0x272] sm:$0xff]
  %v7669 = vld [vmem:[%s6849 + $0x27a] sm:$0xff]
  %v7670 = vld [vmem:[%s6849 + $0x28a] sm:$0xff]
  %v7671 = vld [vmem:[%s6849 + $0x292] sm:$0xff]
  %v7672 = vld [vmem:[%s6849 + $0x2a2] sm:$0xff]
  %v7673 = vld [vmem:[%s6849 + $0x2aa] sm:$0xff]
  %v7674 = vld [vmem:[%s6849 + $0x2ba] sm:$0xff]
  %v7675 = vld [vmem:[%s6849 + $0x2c2] sm:$0xff]
  %v7676 = vld [vmem:[%s6849 + $0x2d2] sm:$0xff]
  %v7677 = vld [vmem:[%s6849 + $0x2da] sm:$0xff]
  %v7678 = vld [vmem:[%s6849 + $0x2ea] sm:$0xff]
  %v7679 = vld [vmem:[%s6849 + $0x2f2] sm:$0xff]
  %v7680 = vld [vmem:[%s6849 + $0x302] sm:$0xff]
  %v7681 = vld [vmem:[%s6849 + $0x30a] sm:$0xff]
  %v7682 = vld [vmem:[%s6849 + $0x31a] sm:$0xff]
  %v7683 = vld [vmem:[%s6849 + $0x322] sm:$0xff]
  %7684 = vst.msk [vmem:[#allocation5 + $0x8] sm:$0xff] %vm3943, %v7620
  %7685 = vst.msk [vmem:[#allocation5 + $0x18] sm:$0xff] %vm3943, %v7621
  %7686 = vst.msk [vmem:[#allocation5 + $0x28] sm:$0xff] %vm3943, %v7622
  %7687 = vst.msk [vmem:[#allocation5 + $0x38] sm:$0xff] %vm3943, %v7623
  %7688 = vst.msk [vmem:[#allocation5 + $0x48] sm:$0xff] %vm3943, %v7624
  %7689 = vst.msk [vmem:[#allocation5 + $0x58] sm:$0xff] %vm3943, %v7625
  %7690 = vst.msk [vmem:[#allocation5 + $0x68] sm:$0xff] %vm3943, %v7626
  %7691 = vst.msk [vmem:[#allocation5 + $0x78] sm:$0xff] %vm3943, %v7627
  %7692 = vst.msk [vmem:[#allocation5 + $0x88] sm:$0xff] %vm3943, %v7628
  %7693 = vst.msk [vmem:[#allocation5 + $0x98] sm:$0xff] %vm3943, %v7629
  %7694 = vst.msk [vmem:[#allocation5 + $0xa8] sm:$0xff] %vm3943, %v7630
  %7695 = vst.msk [vmem:[#allocation5 + $0xb8] sm:$0xff] %vm3943, %v7631
  %7696 = vst.msk [vmem:[#allocation5 + $0xc8] sm:$0xff] %vm3943, %v7632
  %7697 = vst.msk [vmem:[#allocation5 + $0xd8] sm:$0xff] %vm3943, %v7633
  %7698 = vst.msk [vmem:[#allocation5 + $0xe8] sm:$0xff] %vm3943, %v7634
  %7699 = vst.msk [vmem:[#allocation5 + $0xf8] sm:$0xff] %vm3943, %v7635
  %7700 = vst.msk [vmem:[#allocation5 + $0x108] sm:$0xff] %vm3943, %v7636
  %7701 = vst.msk [vmem:[#allocation5 + $0x118] sm:$0xff] %vm3943, %v7637
  %7702 = vst.msk [vmem:[#allocation5 + $0x128] sm:$0xff] %vm3943, %v7638
  %7703 = vst.msk [vmem:[#allocation5 + $0x138] sm:$0xff] %vm3943, %v7639
  %7704 = vst.msk [vmem:[#allocation5 + $0x148] sm:$0xff] %vm3943, %v7640
  %7705 = vst.msk [vmem:[#allocation5 + $0x158] sm:$0xff] %vm3943, %v7641
  %7706 = vst.msk [vmem:[#allocation5 + $0x168] sm:$0xff] %vm3943, %v7642
  %7707 = vst.msk [vmem:[#allocation5 + $0x178] sm:$0xff] %vm3943, %v7643
  %7708 = vst.msk [vmem:[#allocation5 + $0x188] sm:$0xff] %vm3943, %v7644
  %7709 = vst.msk [vmem:[#allocation5 + $0x198] sm:$0xff] %vm3943, %v7645
  %7710 = vst.msk [vmem:[#allocation5 + $0x1a8] sm:$0xff] %vm3943, %v7646
  %7711 = vst.msk [vmem:[#allocation5 + $0x1b8] sm:$0xff] %vm3943, %v7647
  %7712 = vst.msk [vmem:[#allocation5 + $0x1c8] sm:$0xff] %vm3943, %v7648
  %7713 = vst.msk [vmem:[#allocation5 + $0x1d8] sm:$0xff] %vm3943, %v7649
  %7714 = vst.msk [vmem:[#allocation5 + $0x1e8] sm:$0xff] %vm3943, %v7650
  %7715 = vst.msk [vmem:[#allocation5 + $0x1f8] sm:$0xff] %vm3943, %v7651
  %7716 = vst.msk [vmem:[#allocation5 + $0x208] sm:$0xff] %vm3943, %v7652
  %7717 = vst.msk [vmem:[#allocation5 + $0x218] sm:$0xff] %vm3943, %v7653
  %7718 = vst.msk [vmem:[#allocation5 + $0x228] sm:$0xff] %vm3943, %v7654
  %7719 = vst.msk [vmem:[#allocation5 + $0x238] sm:$0xff] %vm3943, %v7655
  %7720 = vst.msk [vmem:[#allocation5 + $0x248] sm:$0xff] %vm3943, %v7656
  %7721 = vst.msk [vmem:[#allocation5 + $0x258] sm:$0xff] %vm3943, %v7657
  %7722 = vst.msk [vmem:[#allocation5 + $0x268] sm:$0xff] %vm3943, %v7658
  %7723 = vst.msk [vmem:[#allocation5 + $0x278] sm:$0xff] %vm3943, %v7659
  %7724 = vst.msk [vmem:[#allocation5 + $0x288] sm:$0xff] %vm3943, %v7660
  %7725 = vst.msk [vmem:[#allocation5 + $0x298] sm:$0xff] %vm3943, %v7661
  %7726 = vst.msk [vmem:[#allocation5 + $0x2a8] sm:$0xff] %vm3943, %v7662
  %7727 = vst.msk [vmem:[#allocation5 + $0x2b8] sm:$0xff] %vm3943, %v7663
  %7728 = vst.msk [vmem:[#allocation5 + $0x2c8] sm:$0xff] %vm3943, %v7664
  %7729 = vst.msk [vmem:[#allocation5 + $0x2d8] sm:$0xff] %vm3943, %v7665
  %7730 = vst.msk [vmem:[#allocation5 + $0x2e8] sm:$0xff] %vm3943, %v7666
  %7731 = vst.msk [vmem:[#allocation5 + $0x2f8] sm:$0xff] %vm3943, %v7667
  %7732 = vst.msk [vmem:[#allocation5 + $0x308] sm:$0xff] %vm3943, %v7668
  %7733 = vst.msk [vmem:[#allocation5 + $0x318] sm:$0xff] %vm3943, %v7669
  %7734 = vst.msk [vmem:[#allocation5 + $0x328] sm:$0xff] %vm3943, %v7670
  %7735 = vst.msk [vmem:[#allocation5 + $0x338] sm:$0xff] %vm3943, %v7671
  %7736 = vst.msk [vmem:[#allocation5 + $0x348] sm:$0xff] %vm3943, %v7672
  %7737 = vst.msk [vmem:[#allocation5 + $0x358] sm:$0xff] %vm3943, %v7673
  %7738 = vst.msk [vmem:[#allocation5 + $0x368] sm:$0xff] %vm3943, %v7674
  %7739 = vst.msk [vmem:[#allocation5 + $0x378] sm:$0xff] %vm3943, %v7675
  %7740 = vst.msk [vmem:[#allocation5 + $0x388] sm:$0xff] %vm3943, %v7676
  %7741 = vst.msk [vmem:[#allocation5 + $0x398] sm:$0xff] %vm3943, %v7677
  %7742 = vst.msk [vmem:[#allocation5 + $0x3a8] sm:$0xff] %vm3943, %v7678
  %7743 = vst.msk [vmem:[#allocation5 + $0x3b8] sm:$0xff] %vm3943, %v7679
  %7744 = vst.msk [vmem:[#allocation5 + $0x3c8] sm:$0xff] %vm3943, %v7680
  %7745 = vst.msk [vmem:[#allocation5 + $0x3d8] sm:$0xff] %vm3943, %v7681
  %7746 = vst.msk [vmem:[#allocation5 + $0x3e8] sm:$0xff] %vm3943, %v7682
  %7747 = vst.msk [vmem:[#allocation5 + $0x3f8] sm:$0xff] %vm3943, %v7683
  %v7748 = vld [vmem:[#allocation5] sm:$0xff]
  %v7749 = vld [vmem:[#allocation5 + $0x8] sm:$0xff]
  %v7750 = vld [vmem:[#allocation5 + $0x10] sm:$0xff]
  %v7751 = vld [vmem:[#allocation5 + $0x18] sm:$0xff]
  %v7752 = vld [vmem:[#allocation5 + $0x20] sm:$0xff]
  %v7753 = vld [vmem:[#allocation5 + $0x28] sm:$0xff]
  %v7754 = vld [vmem:[#allocation5 + $0x30] sm:$0xff]
  %v7755 = vld [vmem:[#allocation5 + $0x38] sm:$0xff]
  %v7756 = vld [vmem:[#allocation5 + $0x40] sm:$0xff]
  %v7757 = vld [vmem:[#allocation5 + $0x48] sm:$0xff]
  %v7758 = vld [vmem:[#allocation5 + $0x50] sm:$0xff]
  %v7759 = vld [vmem:[#allocation5 + $0x58] sm:$0xff]
  %v7760 = vld [vmem:[#allocation5 + $0x60] sm:$0xff]
  %v7761 = vld [vmem:[#allocation5 + $0x68] sm:$0xff]
  %v7762 = vld [vmem:[#allocation5 + $0x70] sm:$0xff]
  %v7763 = vld [vmem:[#allocation5 + $0x78] sm:$0xff]
  %v7764 = vld [vmem:[#allocation5 + $0x80] sm:$0xff]
  %v7765 = vld [vmem:[#allocation5 + $0x88] sm:$0xff]
  %v7766 = vld [vmem:[#allocation5 + $0x90] sm:$0xff]
  %v7767 = vld [vmem:[#allocation5 + $0x98] sm:$0xff]
  %v7768 = vld [vmem:[#allocation5 + $0xa0] sm:$0xff]
  %v7769 = vld [vmem:[#allocation5 + $0xa8] sm:$0xff]
  %v7770 = vld [vmem:[#allocation5 + $0xb0] sm:$0xff]
  %v7771 = vld [vmem:[#allocation5 + $0xb8] sm:$0xff]
  %v7772 = vld [vmem:[#allocation5 + $0xc0] sm:$0xff]
  %v7773 = vld [vmem:[#allocation5 + $0xc8] sm:$0xff]
  %v7774 = vld [vmem:[#allocation5 + $0xd0] sm:$0xff]
  %v7775 = vld [vmem:[#allocation5 + $0xd8] sm:$0xff]
  %v7776 = vld [vmem:[#allocation5 + $0xe0] sm:$0xff]
  %v7777 = vld [vmem:[#allocation5 + $0xe8] sm:$0xff]
  %v7778 = vld [vmem:[#allocation5 + $0xf0] sm:$0xff]
  %v7779 = vld [vmem:[#allocation5 + $0xf8] sm:$0xff]
  %v7780 = vld [vmem:[#allocation5 + $0x100] sm:$0xff]
  %v7781 = vld [vmem:[#allocation5 + $0x108] sm:$0xff]
  %v7782 = vld [vmem:[#allocation5 + $0x110] sm:$0xff]
  %v7783 = vld [vmem:[#allocation5 + $0x118] sm:$0xff]
  %v7784 = vld [vmem:[#allocation5 + $0x120] sm:$0xff]
  %v7785 = vld [vmem:[#allocation5 + $0x128] sm:$0xff]
  %v7786 = vld [vmem:[#allocation5 + $0x130] sm:$0xff]
  %v7787 = vld [vmem:[#allocation5 + $0x138] sm:$0xff]
  %v7788 = vld [vmem:[#allocation5 + $0x140] sm:$0xff]
  %v7789 = vld [vmem:[#allocation5 + $0x148] sm:$0xff]
  %v7790 = vld [vmem:[#allocation5 + $0x150] sm:$0xff]
  %v7791 = vld [vmem:[#allocation5 + $0x158] sm:$0xff]
  %v7792 = vld [vmem:[#allocation5 + $0x160] sm:$0xff]
  %v7793 = vld [vmem:[#allocation5 + $0x168] sm:$0xff]
  %v7794 = vld [vmem:[#allocation5 + $0x170] sm:$0xff]
  %v7795 = vld [vmem:[#allocation5 + $0x178] sm:$0xff]
  %v7796 = vld [vmem:[#allocation5 + $0x180] sm:$0xff]
  %v7797 = vld [vmem:[#allocation5 + $0x188] sm:$0xff]
  %v7798 = vld [vmem:[#allocation5 + $0x190] sm:$0xff]
  %v7799 = vld [vmem:[#allocation5 + $0x198] sm:$0xff]
  %v7800 = vld [vmem:[#allocation5 + $0x1a0] sm:$0xff]
  %v7801 = vld [vmem:[#allocation5 + $0x1a8] sm:$0xff]
  %v7802 = vld [vmem:[#allocation5 + $0x1b0] sm:$0xff]
  %v7803 = vld [vmem:[#allocation5 + $0x1b8] sm:$0xff]
  %v7804 = vld [vmem:[#allocation5 + $0x1c0] sm:$0xff]
  %v7805 = vld [vmem:[#allocation5 + $0x1c8] sm:$0xff]
  %v7806 = vld [vmem:[#allocation5 + $0x1d0] sm:$0xff]
  %v7807 = vld [vmem:[#allocation5 + $0x1d8] sm:$0xff]
  %v7808 = vld [vmem:[#allocation5 + $0x1e0] sm:$0xff]
  %v7809 = vld [vmem:[#allocation5 + $0x1e8] sm:$0xff]
  %v7810 = vld [vmem:[#allocation5 + $0x1f0] sm:$0xff]
  %v7811 = vld [vmem:[#allocation5 + $0x1f8] sm:$0xff]
  %v7812 = vld [vmem:[#allocation5 + $0x200] sm:$0xff]
  %v7813 = vld [vmem:[#allocation5 + $0x208] sm:$0xff]
  %v7814 = vld [vmem:[#allocation5 + $0x210] sm:$0xff]
  %v7815 = vld [vmem:[#allocation5 + $0x218] sm:$0xff]
  %v7816 = vld [vmem:[#allocation5 + $0x220] sm:$0xff]
  %v7817 = vld [vmem:[#allocation5 + $0x228] sm:$0xff]
  %v7818 = vld [vmem:[#allocation5 + $0x230] sm:$0xff]
  %v7819 = vld [vmem:[#allocation5 + $0x238] sm:$0xff]
  %v7820 = vld [vmem:[#allocation5 + $0x240] sm:$0xff]
  %v7821 = vld [vmem:[#allocation5 + $0x248] sm:$0xff]
  %v7822 = vld [vmem:[#allocation5 + $0x250] sm:$0xff]
  %v7823 = vld [vmem:[#allocation5 + $0x258] sm:$0xff]
  %v7824 = vld [vmem:[#allocation5 + $0x260] sm:$0xff]
  %v7825 = vld [vmem:[#allocation5 + $0x268] sm:$0xff]
  %v7826 = vld [vmem:[#allocation5 + $0x270] sm:$0xff]
  %v7827 = vld [vmem:[#allocation5 + $0x278] sm:$0xff]
  %v7828 = vld [vmem:[#allocation5 + $0x280] sm:$0xff]
  %v7829 = vld [vmem:[#allocation5 + $0x288] sm:$0xff]
  %v7830 = vld [vmem:[#allocation5 + $0x290] sm:$0xff]
  %v7831 = vld [vmem:[#allocation5 + $0x298] sm:$0xff]
  %v7832 = vld [vmem:[#allocation5 + $0x2a0] sm:$0xff]
  %v7833 = vld [vmem:[#allocation5 + $0x2a8] sm:$0xff]
  %v7834 = vld [vmem:[#allocation5 + $0x2b0] sm:$0xff]
  %v7835 = vld [vmem:[#allocation5 + $0x2b8] sm:$0xff]
  %v7836 = vld [vmem:[#allocation5 + $0x2c0] sm:$0xff]
  %v7837 = vld [vmem:[#allocation5 + $0x2c8] sm:$0xff]
  %v7838 = vld [vmem:[#allocation5 + $0x2d0] sm:$0xff]
  %v7839 = vld [vmem:[#allocation5 + $0x2d8] sm:$0xff]
  %v7840 = vld [vmem:[#allocation5 + $0x2e0] sm:$0xff]
  %v7841 = vld [vmem:[#allocation5 + $0x2e8] sm:$0xff]
  %v7842 = vld [vmem:[#allocation5 + $0x2f0] sm:$0xff]
  %v7843 = vld [vmem:[#allocation5 + $0x2f8] sm:$0xff]
  %v7844 = vld [vmem:[#allocation5 + $0x300] sm:$0xff]
  %v7845 = vld [vmem:[#allocation5 + $0x308] sm:$0xff]
  %v7846 = vld [vmem:[#allocation5 + $0x310] sm:$0xff]
  %v7847 = vld [vmem:[#allocation5 + $0x318] sm:$0xff]
  %v7848 = vld [vmem:[#allocation5 + $0x320] sm:$0xff]
  %v7849 = vld [vmem:[#allocation5 + $0x328] sm:$0xff]
  %v7850 = vld [vmem:[#allocation5 + $0x330] sm:$0xff]
  %v7851 = vld [vmem:[#allocation5 + $0x338] sm:$0xff]
  %v7852 = vld [vmem:[#allocation5 + $0x340] sm:$0xff]
  %v7853 = vld [vmem:[#allocation5 + $0x348] sm:$0xff]
  %v7854 = vld [vmem:[#allocation5 + $0x350] sm:$0xff]
  %v7855 = vld [vmem:[#allocation5 + $0x358] sm:$0xff]
  %v7856 = vld [vmem:[#allocation5 + $0x360] sm:$0xff]
  %v7857 = vld [vmem:[#allocation5 + $0x368] sm:$0xff]
  %v7858 = vld [vmem:[#allocation5 + $0x370] sm:$0xff]
  %v7859 = vld [vmem:[#allocation5 + $0x378] sm:$0xff]
  %v7860 = vld [vmem:[#allocation5 + $0x380] sm:$0xff]
  %v7861 = vld [vmem:[#allocation5 + $0x388] sm:$0xff]
  %v7862 = vld [vmem:[#allocation5 + $0x390] sm:$0xff]
  %v7863 = vld [vmem:[#allocation5 + $0x398] sm:$0xff]
  %v7864 = vld [vmem:[#allocation5 + $0x3a0] sm:$0xff]
  %v7865 = vld [vmem:[#allocation5 + $0x3a8] sm:$0xff]
  %v7866 = vld [vmem:[#allocation5 + $0x3b0] sm:$0xff]
  %v7867 = vld [vmem:[#allocation5 + $0x3b8] sm:$0xff]
  %v7868 = vld [vmem:[#allocation5 + $0x3c0] sm:$0xff]
  %v7869 = vld [vmem:[#allocation5 + $0x3c8] sm:$0xff]
  %v7870 = vld [vmem:[#allocation5 + $0x3d0] sm:$0xff]
  %v7871 = vld [vmem:[#allocation5 + $0x3d8] sm:$0xff]
  %v7872 = vld [vmem:[#allocation5 + $0x3e0] sm:$0xff]
  %v7873 = vld [vmem:[#allocation5 + $0x3e8] sm:$0xff]
  %v7874 = vld [vmem:[#allocation5 + $0x3f0] sm:$0xff]
  %v7875 = vld [vmem:[#allocation5 + $0x3f8] sm:$0xff]
  %v7876 = vld [vmem:[%s2] sm:$0xff]
  %v7877 = vld [vmem:[%s2 + $0x8] sm:$0xff]
  %v7878 = vld [vmem:[%s2 + $0x10] sm:$0xff]
  %v7879 = vld [vmem:[%s2 + $0x18] sm:$0xff]
  %v7880 = vld [vmem:[%s2 + $0x20] sm:$0xff]
  %v7881 = vld [vmem:[%s2 + $0x28] sm:$0xff]
  %v7882 = vld [vmem:[%s2 + $0x30] sm:$0xff]
  %v7883 = vld [vmem:[%s2 + $0x38] sm:$0xff]
  %v7884 = vld [vmem:[%s2 + $0x40] sm:$0xff]
  %v7885 = vld [vmem:[%s2 + $0x48] sm:$0xff]
  %v7886 = vld [vmem:[%s2 + $0x50] sm:$0xff]
  %v7887 = vld [vmem:[%s2 + $0x58] sm:$0xff]
  %v7888 = vld [vmem:[%s2 + $0x60] sm:$0xff]
  %v7889 = vld [vmem:[%s2 + $0x68] sm:$0xff]
  %v7890 = vld [vmem:[%s2 + $0x70] sm:$0xff]
  %v7891 = vld [vmem:[%s2 + $0x78] sm:$0xff]
  %v7892 = vld [vmem:[%s2 + $0x80] sm:$0xff]
  %v7893 = vld [vmem:[%s2 + $0x88] sm:$0xff]
  %v7895 = vsel %vm3943, %v7749, 0
  %v7898 = vsel %vm3943, %v7751, 0
  %v7901 = vsel %vm3943, %v7753, 0
  %v7904 = vsel %vm3943, %v7755, 0
  %v7907 = vsel %vm3943, %v7757, 0
  %v7910 = vsel %vm3943, %v7759, 0
  %v7913 = vsel %vm3943, %v7761, 0
  %v7916 = vsel %vm3943, %v7763, 0
  %v7919 = vsel %vm3943, %v7765, 0
  %v7922 = vsel %vm3943, %v7767, 0
  %v7925 = vsel %vm3943, %v7769, 0
  %v7928 = vsel %vm3943, %v7771, 0
  %v7931 = vsel %vm3943, %v7773, 0
  %v7934 = vsel %vm3943, %v7775, 0
  %v7937 = vsel %vm3943, %v7777, 0
  %v7940 = vsel %vm3943, %v7779, 0
  %v7943 = vsel %vm3943, %v7781, 0
  %v7946 = vsel %vm3943, %v7783, 0
  %v7949 = vsel %vm3943, %v7785, 0
  %v7952 = vsel %vm3943, %v7787, 0
  %v7955 = vsel %vm3943, %v7789, 0
  %v7958 = vsel %vm3943, %v7791, 0
  %v7961 = vsel %vm3943, %v7793, 0
  %v7964 = vsel %vm3943, %v7795, 0
  %v7967 = vsel %vm3943, %v7797, 0
  %v7970 = vsel %vm3943, %v7799, 0
  %v7973 = vsel %vm3943, %v7801, 0
  %v7976 = vsel %vm3943, %v7803, 0
  %v7979 = vsel %vm3943, %v7805, 0
  %v7982 = vsel %vm3943, %v7807, 0
  %v7985 = vsel %vm3943, %v7809, 0
  %v7988 = vsel %vm3943, %v7811, 0
  %v7991 = vsel %vm3943, %v7813, 0
  %v7994 = vsel %vm3943, %v7815, 0
  %v7997 = vsel %vm3943, %v7817, 0
  %v8000 = vsel %vm3943, %v7819, 0
  %v8003 = vsel %vm3943, %v7821, 0
  %v8006 = vsel %vm3943, %v7823, 0
  %v8009 = vsel %vm3943, %v7825, 0
  %v8012 = vsel %vm3943, %v7827, 0
  %v8015 = vsel %vm3943, %v7829, 0
  %v8018 = vsel %vm3943, %v7831, 0
  %v8021 = vsel %vm3943, %v7833, 0
  %v8024 = vsel %vm3943, %v7835, 0
  %v8027 = vsel %vm3943, %v7837, 0
  %v8030 = vsel %vm3943, %v7839, 0
  %v8033 = vsel %vm3943, %v7841, 0
  %v8036 = vsel %vm3943, %v7843, 0
  %v8039 = vsel %vm3943, %v7845, 0
  %v8042 = vsel %vm3943, %v7847, 0
  %v8045 = vsel %vm3943, %v7849, 0
  %v8048 = vsel %vm3943, %v7851, 0
  %v8051 = vsel %vm3943, %v7853, 0
  %v8054 = vsel %vm3943, %v7855, 0
  %v8057 = vsel %vm3943, %v7857, 0
  %v8060 = vsel %vm3943, %v7859, 0
  %v8063 = vsel %vm3943, %v7861, 0
  %v8066 = vsel %vm3943, %v7863, 0
  %v8069 = vsel %vm3943, %v7865, 0
  %v8072 = vsel %vm3943, %v7867, 0
  %v8075 = vsel %vm3943, %v7869, 0
  %v8078 = vsel %vm3943, %v7871, 0
  %v8081 = vsel %vm3943, %v7873, 0
  %v8084 = vsel %vm3943, %v7875, 0
  %8086 = vmatpush.msra.mxu0 %v7891
  %8087 = vmatpush.msra.mxu0 %v7890
  %8088 = vmatpush.msra.mxu0 %v7889
  %8089 = vmatpush.msra.mxu0 %v7888
  %8090 = vmatpush.msra.mxu0 %v7887
  %8091 = vmatpush.msra.mxu0 %v7886
  %8092 = vmatpush.msra.mxu0 %v7885
  %8093 = vmatpush.msra.mxu0 %v7884
  %8094 = vmatpush.msra.mxu0 %v7883
  %8095 = vmatpush.msra.mxu0 %v7882
  %8096 = vmatpush.msra.mxu0 %v7881
  %8097 = vmatpush.msra.mxu0 %v7880
  %8098 = vmatpush.msra.mxu0 %v7879
  %8099 = vmatpush.msra.mxu0 %v7878
  %8100 = vmatpush.msra.mxu0 %v7877
  %8101 = vmatpush.msra.mxu0 %v7876
  %8102 = vmatmul.f32.gmra.mxu0 %v7748
  %v8103 = vpop.f32.mrf.mxu0
  %v8104 = vadd.f32 0.0, %v8103
  %8105 = vmatmul.f32.gmra.mxu0 %v7750
  %v8106 = vpop.f32.mrf.mxu0
  %v8107 = vadd.f32 0.0, %v8106
  %8108 = vmatmul.f32.gmra.mxu0 %v7752
  %v8109 = vpop.f32.mrf.mxu0
  %v8110 = vadd.f32 0.0, %v8109
  %8111 = vmatmul.f32.gmra.mxu0 %v7754
  %v8112 = vpop.f32.mrf.mxu0
  %v8113 = vadd.f32 0.0, %v8112
  %8114 = vmatmul.f32.gmra.mxu0 %v7756
  %v8115 = vpop.f32.mrf.mxu0
  %v8116 = vadd.f32 0.0, %v8115
  %8117 = vmatmul.f32.gmra.mxu0 %v7758
  %v8118 = vpop.f32.mrf.mxu0
  %v8119 = vadd.f32 0.0, %v8118
  %8120 = vmatmul.f32.gmra.mxu0 %v7760
  %v8121 = vpop.f32.mrf.mxu0
  %v8122 = vadd.f32 0.0, %v8121
  %8123 = vmatmul.f32.gmra.mxu0 %v7762
  %v8124 = vpop.f32.mrf.mxu0
  %v8125 = vadd.f32 0.0, %v8124
  %8126 = vmatmul.f32.gmra.mxu0 %v7764
  %v8127 = vpop.f32.mrf.mxu0
  %v8128 = vadd.f32 0.0, %v8127
  %8129 = vmatmul.f32.gmra.mxu0 %v7766
  %v8130 = vpop.f32.mrf.mxu0
  %v8131 = vadd.f32 0.0, %v8130
  %8132 = vmatmul.f32.gmra.mxu0 %v7768
  %v8133 = vpop.f32.mrf.mxu0
  %v8134 = vadd.f32 0.0, %v8133
  %8135 = vmatmul.f32.gmra.mxu0 %v7770
  %v8136 = vpop.f32.mrf.mxu0
  %v8137 = vadd.f32 0.0, %v8136
  %8138 = vmatmul.f32.gmra.mxu0 %v7772
  %v8139 = vpop.f32.mrf.mxu0
  %v8140 = vadd.f32 0.0, %v8139
  %8141 = vmatmul.f32.gmra.mxu0 %v7774
  %v8142 = vpop.f32.mrf.mxu0
  %v8143 = vadd.f32 0.0, %v8142
  %8144 = vmatmul.f32.gmra.mxu0 %v7776
  %v8145 = vpop.f32.mrf.mxu0
  %v8146 = vadd.f32 0.0, %v8145
  %8147 = vmatmul.f32.gmra.mxu0 %v7778
  %v8148 = vpop.f32.mrf.mxu0
  %v8149 = vadd.f32 0.0, %v8148
  %8150 = vmatmul.f32.gmra.mxu0 %v7780
  %v8151 = vpop.f32.mrf.mxu0
  %v8152 = vadd.f32 0.0, %v8151
  %8153 = vmatmul.f32.gmra.mxu0 %v7782
  %v8154 = vpop.f32.mrf.mxu0
  %v8155 = vadd.f32 0.0, %v8154
  %8156 = vmatmul.f32.gmra.mxu0 %v7784
  %v8157 = vpop.f32.mrf.mxu0
  %v8158 = vadd.f32 0.0, %v8157
  %8159 = vmatmul.f32.gmra.mxu0 %v7786
  %v8160 = vpop.f32.mrf.mxu0
  %v8161 = vadd.f32 0.0, %v8160
  %8162 = vmatmul.f32.gmra.mxu0 %v7788
  %v8163 = vpop.f32.mrf.mxu0
  %v8164 = vadd.f32 0.0, %v8163
  %8165 = vmatmul.f32.gmra.mxu0 %v7790
  %v8166 = vpop.f32.mrf.mxu0
  %v8167 = vadd.f32 0.0, %v8166
  %8168 = vmatmul.f32.gmra.mxu0 %v7792
  %v8169 = vpop.f32.mrf.mxu0
  %v8170 = vadd.f32 0.0, %v8169
  %8171 = vmatmul.f32.gmra.mxu0 %v7794
  %v8172 = vpop.f32.mrf.mxu0
  %v8173 = vadd.f32 0.0, %v8172
  %8174 = vmatmul.f32.gmra.mxu0 %v7796
  %v8175 = vpop.f32.mrf.mxu0
  %v8176 = vadd.f32 0.0, %v8175
  %8177 = vmatmul.f32.gmra.mxu0 %v7798
  %v8178 = vpop.f32.mrf.mxu0
  %v8179 = vadd.f32 0.0, %v8178
  %8180 = vmatmul.f32.gmra.mxu0 %v7800
  %v8181 = vpop.f32.mrf.mxu0
  %v8182 = vadd.f32 0.0, %v8181
  %8183 = vmatmul.f32.gmra.mxu0 %v7802
  %v8184 = vpop.f32.mrf.mxu0
  %v8185 = vadd.f32 0.0, %v8184
  %8186 = vmatmul.f32.gmra.mxu0 %v7804
  %v8187 = vpop.f32.mrf.mxu0
  %v8188 = vadd.f32 0.0, %v8187
  %8189 = vmatmul.f32.gmra.mxu0 %v7806
  %v8190 = vpop.f32.mrf.mxu0
  %v8191 = vadd.f32 0.0, %v8190
  %8192 = vmatmul.f32.gmra.mxu0 %v7808
  %v8193 = vpop.f32.mrf.mxu0
  %v8194 = vadd.f32 0.0, %v8193
  %8195 = vmatmul.f32.gmra.mxu0 %v7810
  %v8196 = vpop.f32.mrf.mxu0
  %v8197 = vadd.f32 0.0, %v8196
  %8198 = vmatmul.f32.gmra.mxu0 %v7812
  %v8199 = vpop.f32.mrf.mxu0
  %v8200 = vadd.f32 0.0, %v8199
  %8201 = vmatmul.f32.gmra.mxu0 %v7814
  %v8202 = vpop.f32.mrf.mxu0
  %v8203 = vadd.f32 0.0, %v8202
  %8204 = vmatmul.f32.gmra.mxu0 %v7816
  %v8205 = vpop.f32.mrf.mxu0
  %v8206 = vadd.f32 0.0, %v8205
  %8207 = vmatmul.f32.gmra.mxu0 %v7818
  %v8208 = vpop.f32.mrf.mxu0
  %v8209 = vadd.f32 0.0, %v8208
  %8210 = vmatmul.f32.gmra.mxu0 %v7820
  %v8211 = vpop.f32.mrf.mxu0
  %v8212 = vadd.f32 0.0, %v8211
  %8213 = vmatmul.f32.gmra.mxu0 %v7822
  %v8214 = vpop.f32.mrf.mxu0
  %v8215 = vadd.f32 0.0, %v8214
  %8216 = vmatmul.f32.gmra.mxu0 %v7824
  %v8217 = vpop.f32.mrf.mxu0
  %v8218 = vadd.f32 0.0, %v8217
  %8219 = vmatmul.f32.gmra.mxu0 %v7826
  %v8220 = vpop.f32.mrf.mxu0
  %v8221 = vadd.f32 0.0, %v8220
  %8222 = vmatmul.f32.gmra.mxu0 %v7828
  %v8223 = vpop.f32.mrf.mxu0
  %v8224 = vadd.f32 0.0, %v8223
  %8225 = vmatmul.f32.gmra.mxu0 %v7830
  %v8226 = vpop.f32.mrf.mxu0
  %v8227 = vadd.f32 0.0, %v8226
  %8228 = vmatmul.f32.gmra.mxu0 %v7832
  %v8229 = vpop.f32.mrf.mxu0
  %v8230 = vadd.f32 0.0, %v8229
  %8231 = vmatmul.f32.gmra.mxu0 %v7834
  %v8232 = vpop.f32.mrf.mxu0
  %v8233 = vadd.f32 0.0, %v8232
  %8234 = vmatmul.f32.gmra.mxu0 %v7836
  %v8235 = vpop.f32.mrf.mxu0
  %v8236 = vadd.f32 0.0, %v8235
  %8237 = vmatmul.f32.gmra.mxu0 %v7838
  %v8238 = vpop.f32.mrf.mxu0
  %v8239 = vadd.f32 0.0, %v8238
  %8240 = vmatmul.f32.gmra.mxu0 %v7840
  %v8241 = vpop.f32.mrf.mxu0
  %v8242 = vadd.f32 0.0, %v8241
  %8243 = vmatmul.f32.gmra.mxu0 %v7842
  %v8244 = vpop.f32.mrf.mxu0
  %v8245 = vadd.f32 0.0, %v8244
  %8246 = vmatmul.f32.gmra.mxu0 %v7844
  %v8247 = vpop.f32.mrf.mxu0
  %v8248 = vadd.f32 0.0, %v8247
  %8249 = vmatmul.f32.gmra.mxu0 %v7846
  %v8250 = vpop.f32.mrf.mxu0
  %v8251 = vadd.f32 0.0, %v8250
  %8252 = vmatmul.f32.gmra.mxu0 %v7848
  %v8253 = vpop.f32.mrf.mxu0
  %v8254 = vadd.f32 0.0, %v8253
  %8255 = vmatmul.f32.gmra.mxu0 %v7850
  %v8256 = vpop.f32.mrf.mxu0
  %v8257 = vadd.f32 0.0, %v8256
  %8258 = vmatmul.f32.gmra.mxu0 %v7852
  %v8259 = vpop.f32.mrf.mxu0
  %v8260 = vadd.f32 0.0, %v8259
  %8261 = vmatmul.f32.gmra.mxu0 %v7854
  %v8262 = vpop.f32.mrf.mxu0
  %v8263 = vadd.f32 0.0, %v8262
  %8264 = vmatmul.f32.gmra.mxu0 %v7856
  %v8265 = vpop.f32.mrf.mxu0
  %v8266 = vadd.f32 0.0, %v8265
  %8267 = vmatmul.f32.gmra.mxu0 %v7858
  %v8268 = vpop.f32.mrf.mxu0
  %v8269 = vadd.f32 0.0, %v8268
  %8270 = vmatmul.f32.gmra.mxu0 %v7860
  %v8271 = vpop.f32.mrf.mxu0
  %v8272 = vadd.f32 0.0, %v8271
  %8273 = vmatmul.f32.gmra.mxu0 %v7862
  %v8274 = vpop.f32.mrf.mxu0
  %v8275 = vadd.f32 0.0, %v8274
  %8276 = vmatmul.f32.gmra.mxu0 %v7864
  %v8277 = vpop.f32.mrf.mxu0
  %v8278 = vadd.f32 0.0, %v8277
  %8279 = vmatmul.f32.gmra.mxu0 %v7866
  %v8280 = vpop.f32.mrf.mxu0
  %v8281 = vadd.f32 0.0, %v8280
  %8282 = vmatmul.f32.gmra.mxu0 %v7868
  %v8283 = vpop.f32.mrf.mxu0
  %v8284 = vadd.f32 0.0, %v8283
  %8285 = vmatmul.f32.gmra.mxu0 %v7870
  %v8286 = vpop.f32.mrf.mxu0
  %v8287 = vadd.f32 0.0, %v8286
  %8288 = vmatmul.f32.gmra.mxu0 %v7872
  %v8289 = vpop.f32.mrf.mxu0
  %v8290 = vadd.f32 0.0, %v8289
  %8291 = vmatmul.f32.gmra.mxu0 %v7874
  %v8292 = vpop.f32.mrf.mxu0
  %v8293 = vadd.f32 0.0, %v8292
  %8294 = vdwg.mxu0
  %8295 = vmatpush.msra.mxu0 0.0
  %8296 = vmatpush.msra.mxu0 0.0
  %8297 = vmatpush.msra.mxu0 0.0
  %8298 = vmatpush.msra.mxu0 0.0
  %8299 = vmatpush.msra.mxu0 0.0
  %8300 = vmatpush.msra.mxu0 0.0
  %8301 = vmatpush.msra.mxu0 0.0
  %8302 = vmatpush.msra.mxu0 0.0
  %8303 = vmatpush.msra.mxu0 0.0
  %8304 = vmatpush.msra.mxu0 0.0
  %8305 = vmatpush.msra.mxu0 0.0
  %8306 = vmatpush.msra.mxu0 0.0
  %8307 = vmatpush.msra.mxu0 0.0
  %8308 = vmatpush.msra.mxu0 0.0
  %8309 = vmatpush.msra.mxu0 %v7893
  %8310 = vmatpush.msra.mxu0 %v7892
  %8311 = vmatmul.f32.gmra.mxu0 %v7895
  %v8312 = vpop.f32.mrf.mxu0
  %v8313 = vadd.f32 %v8104, %v8312
  %8314 = vmatmul.f32.gmra.mxu0 %v7898
  %v8315 = vpop.f32.mrf.mxu0
  %v8316 = vadd.f32 %v8107, %v8315
  %8317 = vmatmul.f32.gmra.mxu0 %v7901
  %v8318 = vpop.f32.mrf.mxu0
  %v8319 = vadd.f32 %v8110, %v8318
  %8320 = vmatmul.f32.gmra.mxu0 %v7904
  %v8321 = vpop.f32.mrf.mxu0
  %v8322 = vadd.f32 %v8113, %v8321
  %8323 = vmatmul.f32.gmra.mxu0 %v7907
  %v8324 = vpop.f32.mrf.mxu0
  %v8325 = vadd.f32 %v8116, %v8324
  %8326 = vmatmul.f32.gmra.mxu0 %v7910
  %v8327 = vpop.f32.mrf.mxu0
  %v8328 = vadd.f32 %v8119, %v8327
  %8329 = vmatmul.f32.gmra.mxu0 %v7913
  %v8330 = vpop.f32.mrf.mxu0
  %v8331 = vadd.f32 %v8122, %v8330
  %8332 = vmatmul.f32.gmra.mxu0 %v7916
  %v8333 = vpop.f32.mrf.mxu0
  %v8334 = vadd.f32 %v8125, %v8333
  %8335 = vmatmul.f32.gmra.mxu0 %v7919
  %v8336 = vpop.f32.mrf.mxu0
  %v8337 = vadd.f32 %v8128, %v8336
  %8338 = vmatmul.f32.gmra.mxu0 %v7922
  %v8339 = vpop.f32.mrf.mxu0
  %v8340 = vadd.f32 %v8131, %v8339
  %8341 = vmatmul.f32.gmra.mxu0 %v7925
  %v8342 = vpop.f32.mrf.mxu0
  %v8343 = vadd.f32 %v8134, %v8342
  %8344 = vmatmul.f32.gmra.mxu0 %v7928
  %v8345 = vpop.f32.mrf.mxu0
  %v8346 = vadd.f32 %v8137, %v8345
  %8347 = vmatmul.f32.gmra.mxu0 %v7931
  %v8348 = vpop.f32.mrf.mxu0
  %v8349 = vadd.f32 %v8140, %v8348
  %8350 = vmatmul.f32.gmra.mxu0 %v7934
  %v8351 = vpop.f32.mrf.mxu0
  %v8352 = vadd.f32 %v8143, %v8351
  %8353 = vmatmul.f32.gmra.mxu0 %v7937
  %v8354 = vpop.f32.mrf.mxu0
  %v8355 = vadd.f32 %v8146, %v8354
  %8356 = vmatmul.f32.gmra.mxu0 %v7940
  %v8357 = vpop.f32.mrf.mxu0
  %v8358 = vadd.f32 %v8149, %v8357
  %8359 = vmatmul.f32.gmra.mxu0 %v7943
  %v8360 = vpop.f32.mrf.mxu0
  %v8361 = vadd.f32 %v8152, %v8360
  %8362 = vmatmul.f32.gmra.mxu0 %v7946
  %v8363 = vpop.f32.mrf.mxu0
  %v8364 = vadd.f32 %v8155, %v8363
  %8365 = vmatmul.f32.gmra.mxu0 %v7949
  %v8366 = vpop.f32.mrf.mxu0
  %v8367 = vadd.f32 %v8158, %v8366
  %8368 = vmatmul.f32.gmra.mxu0 %v7952
  %v8369 = vpop.f32.mrf.mxu0
  %v8370 = vadd.f32 %v8161, %v8369
  %8371 = vmatmul.f32.gmra.mxu0 %v7955
  %v8372 = vpop.f32.mrf.mxu0
  %v8373 = vadd.f32 %v8164, %v8372
  %8374 = vmatmul.f32.gmra.mxu0 %v7958
  %v8375 = vpop.f32.mrf.mxu0
  %v8376 = vadd.f32 %v8167, %v8375
  %8377 = vmatmul.f32.gmra.mxu0 %v7961
  %v8378 = vpop.f32.mrf.mxu0
  %v8379 = vadd.f32 %v8170, %v8378
  %8380 = vmatmul.f32.gmra.mxu0 %v7964
  %v8381 = vpop.f32.mrf.mxu0
  %v8382 = vadd.f32 %v8173, %v8381
  %8383 = vmatmul.f32.gmra.mxu0 %v7967
  %v8384 = vpop.f32.mrf.mxu0
  %v8385 = vadd.f32 %v8176, %v8384
  %8386 = vmatmul.f32.gmra.mxu0 %v7970
  %v8387 = vpop.f32.mrf.mxu0
  %v8388 = vadd.f32 %v8179, %v8387
  %8389 = vmatmul.f32.gmra.mxu0 %v7973
  %v8390 = vpop.f32.mrf.mxu0
  %v8391 = vadd.f32 %v8182, %v8390
  %8392 = vmatmul.f32.gmra.mxu0 %v7976
  %v8393 = vpop.f32.mrf.mxu0
  %v8394 = vadd.f32 %v8185, %v8393
  %8395 = vmatmul.f32.gmra.mxu0 %v7979
  %v8396 = vpop.f32.mrf.mxu0
  %v8397 = vadd.f32 %v8188, %v8396
  %8398 = vmatmul.f32.gmra.mxu0 %v7982
  %v8399 = vpop.f32.mrf.mxu0
  %v8400 = vadd.f32 %v8191, %v8399
  %8401 = vmatmul.f32.gmra.mxu0 %v7985
  %v8402 = vpop.f32.mrf.mxu0
  %v8403 = vadd.f32 %v8194, %v8402
  %8404 = vmatmul.f32.gmra.mxu0 %v7988
  %v8405 = vpop.f32.mrf.mxu0
  %v8406 = vadd.f32 %v8197, %v8405
  %8407 = vmatmul.f32.gmra.mxu0 %v7991
  %v8408 = vpop.f32.mrf.mxu0
  %v8409 = vadd.f32 %v8200, %v8408
  %8410 = vmatmul.f32.gmra.mxu0 %v7994
  %v8411 = vpop.f32.mrf.mxu0
  %v8412 = vadd.f32 %v8203, %v8411
  %8413 = vmatmul.f32.gmra.mxu0 %v7997
  %v8414 = vpop.f32.mrf.mxu0
  %v8415 = vadd.f32 %v8206, %v8414
  %8416 = vmatmul.f32.gmra.mxu0 %v8000
  %v8417 = vpop.f32.mrf.mxu0
  %v8418 = vadd.f32 %v8209, %v8417
  %8419 = vmatmul.f32.gmra.mxu0 %v8003
  %v8420 = vpop.f32.mrf.mxu0
  %v8421 = vadd.f32 %v8212, %v8420
  %8422 = vmatmul.f32.gmra.mxu0 %v8006
  %v8423 = vpop.f32.mrf.mxu0
  %v8424 = vadd.f32 %v8215, %v8423
  %8425 = vmatmul.f32.gmra.mxu0 %v8009
  %v8426 = vpop.f32.mrf.mxu0
  %v8427 = vadd.f32 %v8218, %v8426
  %8428 = vmatmul.f32.gmra.mxu0 %v8012
  %v8429 = vpop.f32.mrf.mxu0
  %v8430 = vadd.f32 %v8221, %v8429
  %8431 = vmatmul.f32.gmra.mxu0 %v8015
  %v8432 = vpop.f32.mrf.mxu0
  %v8433 = vadd.f32 %v8224, %v8432
  %8434 = vmatmul.f32.gmra.mxu0 %v8018
  %v8435 = vpop.f32.mrf.mxu0
  %v8436 = vadd.f32 %v8227, %v8435
  %8437 = vmatmul.f32.gmra.mxu0 %v8021
  %v8438 = vpop.f32.mrf.mxu0
  %v8439 = vadd.f32 %v8230, %v8438
  %8440 = vmatmul.f32.gmra.mxu0 %v8024
  %v8441 = vpop.f32.mrf.mxu0
  %v8442 = vadd.f32 %v8233, %v8441
  %8443 = vmatmul.f32.gmra.mxu0 %v8027
  %v8444 = vpop.f32.mrf.mxu0
  %v8445 = vadd.f32 %v8236, %v8444
  %8446 = vmatmul.f32.gmra.mxu0 %v8030
  %v8447 = vpop.f32.mrf.mxu0
  %v8448 = vadd.f32 %v8239, %v8447
  %8449 = vmatmul.f32.gmra.mxu0 %v8033
  %v8450 = vpop.f32.mrf.mxu0
  %v8451 = vadd.f32 %v8242, %v8450
  %8452 = vmatmul.f32.gmra.mxu0 %v8036
  %v8453 = vpop.f32.mrf.mxu0
  %v8454 = vadd.f32 %v8245, %v8453
  %8455 = vmatmul.f32.gmra.mxu0 %v8039
  %v8456 = vpop.f32.mrf.mxu0
  %v8457 = vadd.f32 %v8248, %v8456
  %8458 = vmatmul.f32.gmra.mxu0 %v8042
  %v8459 = vpop.f32.mrf.mxu0
  %v8460 = vadd.f32 %v8251, %v8459
  %8461 = vmatmul.f32.gmra.mxu0 %v8045
  %v8462 = vpop.f32.mrf.mxu0
  %v8463 = vadd.f32 %v8254, %v8462
  %8464 = vmatmul.f32.gmra.mxu0 %v8048
  %v8465 = vpop.f32.mrf.mxu0
  %v8466 = vadd.f32 %v8257, %v8465
  %8467 = vmatmul.f32.gmra.mxu0 %v8051
  %v8468 = vpop.f32.mrf.mxu0
  %v8469 = vadd.f32 %v8260, %v8468
  %8470 = vmatmul.f32.gmra.mxu0 %v8054
  %v8471 = vpop.f32.mrf.mxu0
  %v8472 = vadd.f32 %v8263, %v8471
  %8473 = vmatmul.f32.gmra.mxu0 %v8057
  %v8474 = vpop.f32.mrf.mxu0
  %v8475 = vadd.f32 %v8266, %v8474
  %8476 = vmatmul.f32.gmra.mxu0 %v8060
  %v8477 = vpop.f32.mrf.mxu0
  %v8478 = vadd.f32 %v8269, %v8477
  %8479 = vmatmul.f32.gmra.mxu0 %v8063
  %v8480 = vpop.f32.mrf.mxu0
  %v8481 = vadd.f32 %v8272, %v8480
  %8482 = vmatmul.f32.gmra.mxu0 %v8066
  %v8483 = vpop.f32.mrf.mxu0
  %v8484 = vadd.f32 %v8275, %v8483
  %8485 = vmatmul.f32.gmra.mxu0 %v8069
  %v8486 = vpop.f32.mrf.mxu0
  %v8487 = vadd.f32 %v8278, %v8486
  %8488 = vmatmul.f32.gmra.mxu0 %v8072
  %v8489 = vpop.f32.mrf.mxu0
  %v8490 = vadd.f32 %v8281, %v8489
  %8491 = vmatmul.f32.gmra.mxu0 %v8075
  %v8492 = vpop.f32.mrf.mxu0
  %v8493 = vadd.f32 %v8284, %v8492
  %8494 = vmatmul.f32.gmra.mxu0 %v8078
  %v8495 = vpop.f32.mrf.mxu0
  %v8496 = vadd.f32 %v8287, %v8495
  %8497 = vmatmul.f32.gmra.mxu0 %v8081
  %v8498 = vpop.f32.mrf.mxu0
  %v8499 = vadd.f32 %v8290, %v8498
  %8500 = vmatmul.f32.gmra.mxu0 %v8084
  %v8501 = vpop.f32.mrf.mxu0
  %v8502 = vadd.f32 %v8293, %v8501
  %8503 = vdwg.mxu0
  %v8504 = vsel %vm3943, %v8313, 0.0
  %v8505 = vsel %vm3943, %v8316, 0.0
  %v8506 = vadd.f32 %v8504, %v8505
  %v8507 = vsel %vm3943, %v8319, 0.0
  %v8508 = vadd.f32 %v8506, %v8507
  %v8509 = vsel %vm3943, %v8322, 0.0
  %v8510 = vadd.f32 %v8508, %v8509
  %v8511 = vsel %vm3943, %v8325, 0.0
  %v8512 = vadd.f32 %v8510, %v8511
  %v8513 = vsel %vm3943, %v8328, 0.0
  %v8514 = vadd.f32 %v8512, %v8513
  %v8515 = vsel %vm3943, %v8331, 0.0
  %v8516 = vadd.f32 %v8514, %v8515
  %v8517 = vsel %vm3943, %v8334, 0.0
  %v8518 = vadd.f32 %v8516, %v8517
  %v8519 = vsel %vm3943, %v8337, 0.0
  %v8520 = vadd.f32 %v8518, %v8519
  %v8521 = vsel %vm3943, %v8340, 0.0
  %v8522 = vadd.f32 %v8520, %v8521
  %v8523 = vsel %vm3943, %v8343, 0.0
  %v8524 = vadd.f32 %v8522, %v8523
  %v8525 = vsel %vm3943, %v8346, 0.0
  %v8526 = vadd.f32 %v8524, %v8525
  %v8527 = vsel %vm3943, %v8349, 0.0
  %v8528 = vadd.f32 %v8526, %v8527
  %v8529 = vsel %vm3943, %v8352, 0.0
  %v8530 = vadd.f32 %v8528, %v8529
  %v8531 = vsel %vm3943, %v8355, 0.0
  %v8532 = vadd.f32 %v8530, %v8531
  %v8533 = vsel %vm3943, %v8358, 0.0
  %v8534 = vadd.f32 %v8532, %v8533
  %v8535 = vsel %vm3943, %v8361, 0.0
  %v8536 = vadd.f32 %v8534, %v8535
  %v8537 = vsel %vm3943, %v8364, 0.0
  %v8538 = vadd.f32 %v8536, %v8537
  %v8539 = vsel %vm3943, %v8367, 0.0
  %v8540 = vadd.f32 %v8538, %v8539
  %v8541 = vsel %vm3943, %v8370, 0.0
  %v8542 = vadd.f32 %v8540, %v8541
  %v8543 = vsel %vm3943, %v8373, 0.0
  %v8544 = vadd.f32 %v8542, %v8543
  %v8545 = vsel %vm3943, %v8376, 0.0
  %v8546 = vadd.f32 %v8544, %v8545
  %v8547 = vsel %vm3943, %v8379, 0.0
  %v8548 = vadd.f32 %v8546, %v8547
  %v8549 = vsel %vm3943, %v8382, 0.0
  %v8550 = vadd.f32 %v8548, %v8549
  %v8551 = vsel %vm3943, %v8385, 0.0
  %v8552 = vadd.f32 %v8550, %v8551
  %v8553 = vsel %vm3943, %v8388, 0.0
  %v8554 = vadd.f32 %v8552, %v8553
  %v8555 = vsel %vm3943, %v8391, 0.0
  %v8556 = vadd.f32 %v8554, %v8555
  %v8557 = vsel %vm3943, %v8394, 0.0
  %v8558 = vadd.f32 %v8556, %v8557
  %v8559 = vsel %vm3943, %v8397, 0.0
  %v8560 = vadd.f32 %v8558, %v8559
  %v8561 = vsel %vm3943, %v8400, 0.0
  %v8562 = vadd.f32 %v8560, %v8561
  %v8563 = vsel %vm3943, %v8403, 0.0
  %v8564 = vadd.f32 %v8562, %v8563
  %v8565 = vsel %vm3943, %v8406, 0.0
  %v8566 = vadd.f32 %v8564, %v8565
  %v8567 = vsel %vm3943, %v8409, 0.0
  %v8568 = vadd.f32 %v8566, %v8567
  %v8569 = vsel %vm3943, %v8412, 0.0
  %v8570 = vadd.f32 %v8568, %v8569
  %v8571 = vsel %vm3943, %v8415, 0.0
  %v8572 = vadd.f32 %v8570, %v8571
  %v8573 = vsel %vm3943, %v8418, 0.0
  %v8574 = vadd.f32 %v8572, %v8573
  %v8575 = vsel %vm3943, %v8421, 0.0
  %v8576 = vadd.f32 %v8574, %v8575
  %v8577 = vsel %vm3943, %v8424, 0.0
  %v8578 = vadd.f32 %v8576, %v8577
  %v8579 = vsel %vm3943, %v8427, 0.0
  %v8580 = vadd.f32 %v8578, %v8579
  %v8581 = vsel %vm3943, %v8430, 0.0
  %v8582 = vadd.f32 %v8580, %v8581
  %v8583 = vsel %vm3943, %v8433, 0.0
  %v8584 = vadd.f32 %v8582, %v8583
  %v8585 = vsel %vm3943, %v8436, 0.0
  %v8586 = vadd.f32 %v8584, %v8585
  %v8587 = vsel %vm3943, %v8439, 0.0
  %v8588 = vadd.f32 %v8586, %v8587
  %v8589 = vsel %vm3943, %v8442, 0.0
  %v8590 = vadd.f32 %v8588, %v8589
  %v8591 = vsel %vm3943, %v8445, 0.0
  %v8592 = vadd.f32 %v8590, %v8591
  %v8593 = vsel %vm3943, %v8448, 0.0
  %v8594 = vadd.f32 %v8592, %v8593
  %v8595 = vsel %vm3943, %v8451, 0.0
  %v8596 = vadd.f32 %v8594, %v8595
  %v8597 = vsel %vm3943, %v8454, 0.0
  %v8598 = vadd.f32 %v8596, %v8597
  %v8599 = vsel %vm3943, %v8457, 0.0
  %v8600 = vadd.f32 %v8598, %v8599
  %v8601 = vsel %vm3943, %v8460, 0.0
  %v8602 = vadd.f32 %v8600, %v8601
  %v8603 = vsel %vm3943, %v8463, 0.0
  %v8604 = vadd.f32 %v8602, %v8603
  %v8605 = vsel %vm3943, %v8466, 0.0
  %v8606 = vadd.f32 %v8604, %v8605
  %v8607 = vsel %vm3943, %v8469, 0.0
  %v8608 = vadd.f32 %v8606, %v8607
  %v8609 = vsel %vm3943, %v8472, 0.0
  %v8610 = vadd.f32 %v8608, %v8609
  %v8611 = vsel %vm3943, %v8475, 0.0
  %v8612 = vadd.f32 %v8610, %v8611
  %v8613 = vsel %vm3943, %v8478, 0.0
  %v8614 = vadd.f32 %v8612, %v8613
  %v8615 = vsel %vm3943, %v8481, 0.0
  %v8616 = vadd.f32 %v8614, %v8615
  %v8617 = vsel %vm3943, %v8484, 0.0
  %v8618 = vadd.f32 %v8616, %v8617
  %v8619 = vsel %vm3943, %v8487, 0.0
  %v8620 = vadd.f32 %v8618, %v8619
  %v8621 = vsel %vm3943, %v8490, 0.0
  %v8622 = vadd.f32 %v8620, %v8621
  %v8623 = vsel %vm3943, %v8493, 0.0
  %v8624 = vadd.f32 %v8622, %v8623
  %v8625 = vsel %vm3943, %v8496, 0.0
  %v8626 = vadd.f32 %v8624, %v8625
  %v8627 = vsel %vm3943, %v8499, 0.0
  %v8628 = vadd.f32 %v8626, %v8627
  %v8629 = vsel %vm3943, %v8502, 0.0
  %v8630 = vadd.f32 %v8628, %v8629
  %v8631 = vrot.slane %v8630, 4
  %v8632 = vadd.f32 %v8630, %v8631
  %v8633 = vrot.slane %v8632, 2
  %v8634 = vadd.f32 %v8632, %v8633
  %v8635 = vrot.slane %v8634, 1
  %v8636 = vadd.f32 %v8634, %v8635
  %v8637 = vmul.f32 %v8636, %v4083
  %v8638 = vsub.f32 %v8313, %v8637
  %v8639 = vsub.f32 %v8316, %v8637
  %v8640 = vsub.f32 %v8319, %v8637
  %v8641 = vsub.f32 %v8322, %v8637
  %v8642 = vsub.f32 %v8325, %v8637
  %v8643 = vsub.f32 %v8328, %v8637
  %v8644 = vsub.f32 %v8331, %v8637
  %v8645 = vsub.f32 %v8334, %v8637
  %v8646 = vsub.f32 %v8337, %v8637
  %v8647 = vsub.f32 %v8340, %v8637
  %v8648 = vsub.f32 %v8343, %v8637
  %v8649 = vsub.f32 %v8346, %v8637
  %v8650 = vsub.f32 %v8349, %v8637
  %v8651 = vsub.f32 %v8352, %v8637
  %v8652 = vsub.f32 %v8355, %v8637
  %v8653 = vsub.f32 %v8358, %v8637
  %v8654 = vsub.f32 %v8361, %v8637
  %v8655 = vsub.f32 %v8364, %v8637
  %v8656 = vsub.f32 %v8367, %v8637
  %v8657 = vsub.f32 %v8370, %v8637
  %v8658 = vsub.f32 %v8373, %v8637
  %v8659 = vsub.f32 %v8376, %v8637
  %v8660 = vsub.f32 %v8379, %v8637
  %v8661 = vsub.f32 %v8382, %v8637
  %v8662 = vsub.f32 %v8385, %v8637
  %v8663 = vsub.f32 %v8388, %v8637
  %v8664 = vsub.f32 %v8391, %v8637
  %v8665 = vsub.f32 %v8394, %v8637
  %v8666 = vsub.f32 %v8397, %v8637
  %v8667 = vsub.f32 %v8400, %v8637
  %v8668 = vsub.f32 %v8403, %v8637
  %v8669 = vsub.f32 %v8406, %v8637
  %v8670 = vsub.f32 %v8409, %v8637
  %v8671 = vsub.f32 %v8412, %v8637
  %v8672 = vsub.f32 %v8415, %v8637
  %v8673 = vsub.f32 %v8418, %v8637
  %v8674 = vsub.f32 %v8421, %v8637
  %v8675 = vsub.f32 %v8424, %v8637
  %v8676 = vsub.f32 %v8427, %v8637
  %v8677 = vsub.f32 %v8430, %v8637
  %v8678 = vsub.f32 %v8433, %v8637
  %v8679 = vsub.f32 %v8436, %v8637
  %v8680 = vsub.f32 %v8439, %v8637
  %v8681 = vsub.f32 %v8442, %v8637
  %v8682 = vsub.f32 %v8445, %v8637
  %v8683 = vsub.f32 %v8448, %v8637
  %v8684 = vsub.f32 %v8451, %v8637
  %v8685 = vsub.f32 %v8454, %v8637
  %v8686 = vsub.f32 %v8457, %v8637
  %v8687 = vsub.f32 %v8460, %v8637
  %v8688 = vsub.f32 %v8463, %v8637
  %v8689 = vsub.f32 %v8466, %v8637
  %v8690 = vsub.f32 %v8469, %v8637
  %v8691 = vsub.f32 %v8472, %v8637
  %v8692 = vsub.f32 %v8475, %v8637
  %v8693 = vsub.f32 %v8478, %v8637
  %v8694 = vsub.f32 %v8481, %v8637
  %v8695 = vsub.f32 %v8484, %v8637
  %v8696 = vsub.f32 %v8487, %v8637
  %v8697 = vsub.f32 %v8490, %v8637
  %v8698 = vsub.f32 %v8493, %v8637
  %v8699 = vsub.f32 %v8496, %v8637
  %v8700 = vsub.f32 %v8499, %v8637
  %v8701 = vsub.f32 %v8502, %v8637
  %v8702 = vmul.f32 %v8638, %v8638
  %v8703 = vmul.f32 %v8639, %v8639
  %v8704 = vmul.f32 %v8640, %v8640
  %v8705 = vmul.f32 %v8641, %v8641
  %v8706 = vmul.f32 %v8642, %v8642
  %v8707 = vmul.f32 %v8643, %v8643
  %v8708 = vmul.f32 %v8644, %v8644
  %v8709 = vmul.f32 %v8645, %v8645
  %v8710 = vmul.f32 %v8646, %v8646
  %v8711 = vmul.f32 %v8647, %v8647
  %v8712 = vmul.f32 %v8648, %v8648
  %v8713 = vmul.f32 %v8649, %v8649
  %v8714 = vmul.f32 %v8650, %v8650
  %v8715 = vmul.f32 %v8651, %v8651
  %v8716 = vmul.f32 %v8652, %v8652
  %v8717 = vmul.f32 %v8653, %v8653
  %v8718 = vmul.f32 %v8654, %v8654
  %v8719 = vmul.f32 %v8655, %v8655
  %v8720 = vmul.f32 %v8656, %v8656
  %v8721 = vmul.f32 %v8657, %v8657
  %v8722 = vmul.f32 %v8658, %v8658
  %v8723 = vmul.f32 %v8659, %v8659
  %v8724 = vmul.f32 %v8660, %v8660
  %v8725 = vmul.f32 %v8661, %v8661
  %v8726 = vmul.f32 %v8662, %v8662
  %v8727 = vmul.f32 %v8663, %v8663
  %v8728 = vmul.f32 %v8664, %v8664
  %v8729 = vmul.f32 %v8665, %v8665
  %v8730 = vmul.f32 %v8666, %v8666
  %v8731 = vmul.f32 %v8667, %v8667
  %v8732 = vmul.f32 %v8668, %v8668
  %v8733 = vmul.f32 %v8669, %v8669
  %v8734 = vmul.f32 %v8670, %v8670
  %v8735 = vmul.f32 %v8671, %v8671
  %v8736 = vmul.f32 %v8672, %v8672
  %v8737 = vmul.f32 %v8673, %v8673
  %v8738 = vmul.f32 %v8674, %v8674
  %v8739 = vmul.f32 %v8675, %v8675
  %v8740 = vmul.f32 %v8676, %v8676
  %v8741 = vmul.f32 %v8677, %v8677
  %v8742 = vmul.f32 %v8678, %v8678
  %v8743 = vmul.f32 %v8679, %v8679
  %v8744 = vmul.f32 %v8680, %v8680
  %v8745 = vmul.f32 %v8681, %v8681
  %v8746 = vmul.f32 %v8682, %v8682
  %v8747 = vmul.f32 %v8683, %v8683
  %v8748 = vmul.f32 %v8684, %v8684
  %v8749 = vmul.f32 %v8685, %v8685
  %v8750 = vmul.f32 %v8686, %v8686
  %v8751 = vmul.f32 %v8687, %v8687
  %v8752 = vmul.f32 %v8688, %v8688
  %v8753 = vmul.f32 %v8689, %v8689
  %v8754 = vmul.f32 %v8690, %v8690
  %v8755 = vmul.f32 %v8691, %v8691
  %v8756 = vmul.f32 %v8692, %v8692
  %v8757 = vmul.f32 %v8693, %v8693
  %v8758 = vmul.f32 %v8694, %v8694
  %v8759 = vmul.f32 %v8695, %v8695
  %v8760 = vmul.f32 %v8696, %v8696
  %v8761 = vmul.f32 %v8697, %v8697
  %v8762 = vmul.f32 %v8698, %v8698
  %v8763 = vmul.f32 %v8699, %v8699
  %v8764 = vmul.f32 %v8700, %v8700
  %v8765 = vmul.f32 %v8701, %v8701
  %v8766 = vsel %vm3943, %v8702, 0.0
  %v8767 = vsel %vm3943, %v8703, 0.0
  %v8768 = vadd.f32 %v8766, %v8767
  %v8769 = vsel %vm3943, %v8704, 0.0
  %v8770 = vadd.f32 %v8768, %v8769
  %v8771 = vsel %vm3943, %v8705, 0.0
  %v8772 = vadd.f32 %v8770, %v8771
  %v8773 = vsel %vm3943, %v8706, 0.0
  %v8774 = vadd.f32 %v8772, %v8773
  %v8775 = vsel %vm3943, %v8707, 0.0
  %v8776 = vadd.f32 %v8774, %v8775
  %v8777 = vsel %vm3943, %v8708, 0.0
  %v8778 = vadd.f32 %v8776, %v8777
  %v8779 = vsel %vm3943, %v8709, 0.0
  %v8780 = vadd.f32 %v8778, %v8779
  %v8781 = vsel %vm3943, %v8710, 0.0
  %v8782 = vadd.f32 %v8780, %v8781
  %v8783 = vsel %vm3943, %v8711, 0.0
  %v8784 = vadd.f32 %v8782, %v8783
  %v8785 = vsel %vm3943, %v8712, 0.0
  %v8786 = vadd.f32 %v8784, %v8785
  %v8787 = vsel %vm3943, %v8713, 0.0
  %v8788 = vadd.f32 %v8786, %v8787
  %v8789 = vsel %vm3943, %v8714, 0.0
  %v8790 = vadd.f32 %v8788, %v8789
  %v8791 = vsel %vm3943, %v8715, 0.0
  %v8792 = vadd.f32 %v8790, %v8791
  %v8793 = vsel %vm3943, %v8716, 0.0
  %v8794 = vadd.f32 %v8792, %v8793
  %v8795 = vsel %vm3943, %v8717, 0.0
  %v8796 = vadd.f32 %v8794, %v8795
  %v8797 = vsel %vm3943, %v8718, 0.0
  %v8798 = vadd.f32 %v8796, %v8797
  %v8799 = vsel %vm3943, %v8719, 0.0
  %v8800 = vadd.f32 %v8798, %v8799
  %v8801 = vsel %vm3943, %v8720, 0.0
  %v8802 = vadd.f32 %v8800, %v8801
  %v8803 = vsel %vm3943, %v8721, 0.0
  %v8804 = vadd.f32 %v8802, %v8803
  %v8805 = vsel %vm3943, %v8722, 0.0
  %v8806 = vadd.f32 %v8804, %v8805
  %v8807 = vsel %vm3943, %v8723, 0.0
  %v8808 = vadd.f32 %v8806, %v8807
  %v8809 = vsel %vm3943, %v8724, 0.0
  %v8810 = vadd.f32 %v8808, %v8809
  %v8811 = vsel %vm3943, %v8725, 0.0
  %v8812 = vadd.f32 %v8810, %v8811
  %v8813 = vsel %vm3943, %v8726, 0.0
  %v8814 = vadd.f32 %v8812, %v8813
  %v8815 = vsel %vm3943, %v8727, 0.0
  %v8816 = vadd.f32 %v8814, %v8815
  %v8817 = vsel %vm3943, %v8728, 0.0
  %v8818 = vadd.f32 %v8816, %v8817
  %v8819 = vsel %vm3943, %v8729, 0.0
  %v8820 = vadd.f32 %v8818, %v8819
  %v8821 = vsel %vm3943, %v8730, 0.0
  %v8822 = vadd.f32 %v8820, %v8821
  %v8823 = vsel %vm3943, %v8731, 0.0
  %v8824 = vadd.f32 %v8822, %v8823
  %v8825 = vsel %vm3943, %v8732, 0.0
  %v8826 = vadd.f32 %v8824, %v8825
  %v8827 = vsel %vm3943, %v8733, 0.0
  %v8828 = vadd.f32 %v8826, %v8827
  %v8829 = vsel %vm3943, %v8734, 0.0
  %v8830 = vadd.f32 %v8828, %v8829
  %v8831 = vsel %vm3943, %v8735, 0.0
  %v8832 = vadd.f32 %v8830, %v8831
  %v8833 = vsel %vm3943, %v8736, 0.0
  %v8834 = vadd.f32 %v8832, %v8833
  %v8835 = vsel %vm3943, %v8737, 0.0
  %v8836 = vadd.f32 %v8834, %v8835
  %v8837 = vsel %vm3943, %v8738, 0.0
  %v8838 = vadd.f32 %v8836, %v8837
  %v8839 = vsel %vm3943, %v8739, 0.0
  %v8840 = vadd.f32 %v8838, %v8839
  %v8841 = vsel %vm3943, %v8740, 0.0
  %v8842 = vadd.f32 %v8840, %v8841
  %v8843 = vsel %vm3943, %v8741, 0.0
  %v8844 = vadd.f32 %v8842, %v8843
  %v8845 = vsel %vm3943, %v8742, 0.0
  %v8846 = vadd.f32 %v8844, %v8845
  %v8847 = vsel %vm3943, %v8743, 0.0
  %v8848 = vadd.f32 %v8846, %v8847
  %v8849 = vsel %vm3943, %v8744, 0.0
  %v8850 = vadd.f32 %v8848, %v8849
  %v8851 = vsel %vm3943, %v8745, 0.0
  %v8852 = vadd.f32 %v8850, %v8851
  %v8853 = vsel %vm3943, %v8746, 0.0
  %v8854 = vadd.f32 %v8852, %v8853
  %v8855 = vsel %vm3943, %v8747, 0.0
  %v8856 = vadd.f32 %v8854, %v8855
  %v8857 = vsel %vm3943, %v8748, 0.0
  %v8858 = vadd.f32 %v8856, %v8857
  %v8859 = vsel %vm3943, %v8749, 0.0
  %v8860 = vadd.f32 %v8858, %v8859
  %v8861 = vsel %vm3943, %v8750, 0.0
  %v8862 = vadd.f32 %v8860, %v8861
  %v8863 = vsel %vm3943, %v8751, 0.0
  %v8864 = vadd.f32 %v8862, %v8863
  %v8865 = vsel %vm3943, %v8752, 0.0
  %v8866 = vadd.f32 %v8864, %v8865
  %v8867 = vsel %vm3943, %v8753, 0.0
  %v8868 = vadd.f32 %v8866, %v8867
  %v8869 = vsel %vm3943, %v8754, 0.0
  %v8870 = vadd.f32 %v8868, %v8869
  %v8871 = vsel %vm3943, %v8755, 0.0
  %v8872 = vadd.f32 %v8870, %v8871
  %v8873 = vsel %vm3943, %v8756, 0.0
  %v8874 = vadd.f32 %v8872, %v8873
  %v8875 = vsel %vm3943, %v8757, 0.0
  %v8876 = vadd.f32 %v8874, %v8875
  %v8877 = vsel %vm3943, %v8758, 0.0
  %v8878 = vadd.f32 %v8876, %v8877
  %v8879 = vsel %vm3943, %v8759, 0.0
  %v8880 = vadd.f32 %v8878, %v8879
  %v8881 = vsel %vm3943, %v8760, 0.0
  %v8882 = vadd.f32 %v8880, %v8881
  %v8883 = vsel %vm3943, %v8761, 0.0
  %v8884 = vadd.f32 %v8882, %v8883
  %v8885 = vsel %vm3943, %v8762, 0.0
  %v8886 = vadd.f32 %v8884, %v8885
  %v8887 = vsel %vm3943, %v8763, 0.0
  %v8888 = vadd.f32 %v8886, %v8887
  %v8889 = vsel %vm3943, %v8764, 0.0
  %v8890 = vadd.f32 %v8888, %v8889
  %v8891 = vsel %vm3943, %v8765, 0.0
  %v8892 = vadd.f32 %v8890, %v8891
  %v8893 = vrot.slane %v8892, 4
  %v8894 = vadd.f32 %v8892, %v8893
  %v8895 = vrot.slane %v8894, 2
  %v8896 = vadd.f32 %v8894, %v8895
  %v8897 = vrot.slane %v8896, 1
  %v8898 = vadd.f32 %v8896, %v8897
  %v8899 = vmul.f32 %v8898, %v4083
  %v8900 = vadd.f32 %v8899, 1e-05
  %v8901 = vrsqrt.pop %v8900
  %v8902 = vmul.f32 %v8901, %v8900
  %v8903 = vmul.f32 %v8902, %v8901
  %v8904 = vmul.f32 0.5, %v8903
  %v8905 = vsub.f32 1.5, %v8904
  %v8906 = vmul.f32 %v8901, %v8905
  %vm8907 = vweird.f32 %v8900
  %vm8908 = vweird.f32 %v8901
  %vm8909 = vmor %vm8907, %vm8908
  %v8910 = vsel %vm8909, %v8901, %v8906
  %v8911 = vmul.f32 %v8638, %v8910
  %v8912 = vmul.f32 %v8639, %v8910
  %v8913 = vmul.f32 %v8640, %v8910
  %v8914 = vmul.f32 %v8641, %v8910
  %v8915 = vmul.f32 %v8642, %v8910
  %v8916 = vmul.f32 %v8643, %v8910
  %v8917 = vmul.f32 %v8644, %v8910
  %v8918 = vmul.f32 %v8645, %v8910
  %v8919 = vmul.f32 %v8646, %v8910
  %v8920 = vmul.f32 %v8647, %v8910
  %v8921 = vmul.f32 %v8648, %v8910
  %v8922 = vmul.f32 %v8649, %v8910
  %v8923 = vmul.f32 %v8650, %v8910
  %v8924 = vmul.f32 %v8651, %v8910
  %v8925 = vmul.f32 %v8652, %v8910
  %v8926 = vmul.f32 %v8653, %v8910
  %v8927 = vmul.f32 %v8654, %v8910
  %v8928 = vmul.f32 %v8655, %v8910
  %v8929 = vmul.f32 %v8656, %v8910
  %v8930 = vmul.f32 %v8657, %v8910
  %v8931 = vmul.f32 %v8658, %v8910
  %v8932 = vmul.f32 %v8659, %v8910
  %v8933 = vmul.f32 %v8660, %v8910
  %v8934 = vmul.f32 %v8661, %v8910
  %v8935 = vmul.f32 %v8662, %v8910
  %v8936 = vmul.f32 %v8663, %v8910
  %v8937 = vmul.f32 %v8664, %v8910
  %v8938 = vmul.f32 %v8665, %v8910
  %v8939 = vmul.f32 %v8666, %v8910
  %v8940 = vmul.f32 %v8667, %v8910
  %v8941 = vmul.f32 %v8668, %v8910
  %v8942 = vmul.f32 %v8669, %v8910
  %v8943 = vmul.f32 %v8670, %v8910
  %v8944 = vmul.f32 %v8671, %v8910
  %v8945 = vmul.f32 %v8672, %v8910
  %v8946 = vmul.f32 %v8673, %v8910
  %v8947 = vmul.f32 %v8674, %v8910
  %v8948 = vmul.f32 %v8675, %v8910
  %v8949 = vmul.f32 %v8676, %v8910
  %v8950 = vmul.f32 %v8677, %v8910
  %v8951 = vmul.f32 %v8678, %v8910
  %v8952 = vmul.f32 %v8679, %v8910
  %v8953 = vmul.f32 %v8680, %v8910
  %v8954 = vmul.f32 %v8681, %v8910
  %v8955 = vmul.f32 %v8682, %v8910
  %v8956 = vmul.f32 %v8683, %v8910
  %v8957 = vmul.f32 %v8684, %v8910
  %v8958 = vmul.f32 %v8685, %v8910
  %v8959 = vmul.f32 %v8686, %v8910
  %v8960 = vmul.f32 %v8687, %v8910
  %v8961 = vmul.f32 %v8688, %v8910
  %v8962 = vmul.f32 %v8689, %v8910
  %v8963 = vmul.f32 %v8690, %v8910
  %v8964 = vmul.f32 %v8691, %v8910
  %v8965 = vmul.f32 %v8692, %v8910
  %v8966 = vmul.f32 %v8693, %v8910
  %v8967 = vmul.f32 %v8694, %v8910
  %v8968 = vmul.f32 %v8695, %v8910
  %v8969 = vmul.f32 %v8696, %v8910
  %v8970 = vmul.f32 %v8697, %v8910
  %v8971 = vmul.f32 %v8698, %v8910
  %v8972 = vmul.f32 %v8699, %v8910
  %v8973 = vmul.f32 %v8700, %v8910
  %v8974 = vmul.f32 %v8701, %v8910
  %v8975 = vld [vmem:[%s3] sm:$0x1]
  %v8977 = vperm.slane %v8975, 0
  %v8979 = vmul.f32 %v8911, %v8977
  %v8980 = vmul.f32 %v8912, %v8977
  %v8981 = vmul.f32 %v8913, %v8977
  %v8982 = vmul.f32 %v8914, %v8977
  %v8983 = vmul.f32 %v8915, %v8977
  %v8984 = vmul.f32 %v8916, %v8977
  %v8985 = vmul.f32 %v8917, %v8977
  %v8986 = vmul.f32 %v8918, %v8977
  %v8987 = vmul.f32 %v8919, %v8977
  %v8988 = vmul.f32 %v8920, %v8977
  %v8989 = vmul.f32 %v8921, %v8977
  %v8990 = vmul.f32 %v8922, %v8977
  %v8991 = vmul.f32 %v8923, %v8977
  %v8992 = vmul.f32 %v8924, %v8977
  %v8993 = vmul.f32 %v8925, %v8977
  %v8994 = vmul.f32 %v8926, %v8977
  %v8995 = vmul.f32 %v8927, %v8977
  %v8996 = vmul.f32 %v8928, %v8977
  %v8997 = vmul.f32 %v8929, %v8977
  %v8998 = vmul.f32 %v8930, %v8977
  %v8999 = vmul.f32 %v8931, %v8977
  %v9000 = vmul.f32 %v8932, %v8977
  %v9001 = vmul.f32 %v8933, %v8977
  %v9002 = vmul.f32 %v8934, %v8977
  %v9003 = vmul.f32 %v8935, %v8977
  %v9004 = vmul.f32 %v8936, %v8977
  %v9005 = vmul.f32 %v8937, %v8977
  %v9006 = vmul.f32 %v8938, %v8977
  %v9007 = vmul.f32 %v8939, %v8977
  %v9008 = vmul.f32 %v8940, %v8977
  %v9009 = vmul.f32 %v8941, %v8977
  %v9010 = vmul.f32 %v8942, %v8977
  %v9011 = vmul.f32 %v8943, %v8977
  %v9012 = vmul.f32 %v8944, %v8977
  %v9013 = vmul.f32 %v8945, %v8977
  %v9014 = vmul.f32 %v8946, %v8977
  %v9015 = vmul.f32 %v8947, %v8977
  %v9016 = vmul.f32 %v8948, %v8977
  %v9017 = vmul.f32 %v8949, %v8977
  %v9018 = vmul.f32 %v8950, %v8977
  %v9019 = vmul.f32 %v8951, %v8977
  %v9020 = vmul.f32 %v8952, %v8977
  %v9021 = vmul.f32 %v8953, %v8977
  %v9022 = vmul.f32 %v8954, %v8977
  %v9023 = vmul.f32 %v8955, %v8977
  %v9024 = vmul.f32 %v8956, %v8977
  %v9025 = vmul.f32 %v8957, %v8977
  %v9026 = vmul.f32 %v8958, %v8977
  %v9027 = vmul.f32 %v8959, %v8977
  %v9028 = vmul.f32 %v8960, %v8977
  %v9029 = vmul.f32 %v8961, %v8977
  %v9030 = vmul.f32 %v8962, %v8977
  %v9031 = vmul.f32 %v8963, %v8977
  %v9032 = vmul.f32 %v8964, %v8977
  %v9033 = vmul.f32 %v8965, %v8977
  %v9034 = vmul.f32 %v8966, %v8977
  %v9035 = vmul.f32 %v8967, %v8977
  %v9036 = vmul.f32 %v8968, %v8977
  %v9037 = vmul.f32 %v8969, %v8977
  %v9038 = vmul.f32 %v8970, %v8977
  %v9039 = vmul.f32 %v8971, %v8977
  %v9040 = vmul.f32 %v8972, %v8977
  %v9041 = vmul.f32 %v8973, %v8977
  %v9042 = vmul.f32 %v8974, %v8977
  %v9043 = vld [vmem:[%s4] sm:$0x1]
  %v9045 = vperm.slane %v9043, 0
  %v9047 = vadd.f32 %v8979, %v9045
  %v9048 = vadd.f32 %v8980, %v9045
  %v9049 = vadd.f32 %v8981, %v9045
  %v9050 = vadd.f32 %v8982, %v9045
  %v9051 = vadd.f32 %v8983, %v9045
  %v9052 = vadd.f32 %v8984, %v9045
  %v9053 = vadd.f32 %v8985, %v9045
  %v9054 = vadd.f32 %v8986, %v9045
  %v9055 = vadd.f32 %v8987, %v9045
  %v9056 = vadd.f32 %v8988, %v9045
  %v9057 = vadd.f32 %v8989, %v9045
  %v9058 = vadd.f32 %v8990, %v9045
  %v9059 = vadd.f32 %v8991, %v9045
  %v9060 = vadd.f32 %v8992, %v9045
  %v9061 = vadd.f32 %v8993, %v9045
  %v9062 = vadd.f32 %v8994, %v9045
  %v9063 = vadd.f32 %v8995, %v9045
  %v9064 = vadd.f32 %v8996, %v9045
  %v9065 = vadd.f32 %v8997, %v9045
  %v9066 = vadd.f32 %v8998, %v9045
  %v9067 = vadd.f32 %v8999, %v9045
  %v9068 = vadd.f32 %v9000, %v9045
  %v9069 = vadd.f32 %v9001, %v9045
  %v9070 = vadd.f32 %v9002, %v9045
  %v9071 = vadd.f32 %v9003, %v9045
  %v9072 = vadd.f32 %v9004, %v9045
  %v9073 = vadd.f32 %v9005, %v9045
  %v9074 = vadd.f32 %v9006, %v9045
  %v9075 = vadd.f32 %v9007, %v9045
  %v9076 = vadd.f32 %v9008, %v9045
  %v9077 = vadd.f32 %v9009, %v9045
  %v9078 = vadd.f32 %v9010, %v9045
  %v9079 = vadd.f32 %v9011, %v9045
  %v9080 = vadd.f32 %v9012, %v9045
  %v9081 = vadd.f32 %v9013, %v9045
  %v9082 = vadd.f32 %v9014, %v9045
  %v9083 = vadd.f32 %v9015, %v9045
  %v9084 = vadd.f32 %v9016, %v9045
  %v9085 = vadd.f32 %v9017, %v9045
  %v9086 = vadd.f32 %v9018, %v9045
  %v9087 = vadd.f32 %v9019, %v9045
  %v9088 = vadd.f32 %v9020, %v9045
  %v9089 = vadd.f32 %v9021, %v9045
  %v9090 = vadd.f32 %v9022, %v9045
  %v9091 = vadd.f32 %v9023, %v9045
  %v9092 = vadd.f32 %v9024, %v9045
  %v9093 = vadd.f32 %v9025, %v9045
  %v9094 = vadd.f32 %v9026, %v9045
  %v9095 = vadd.f32 %v9027, %v9045
  %v9096 = vadd.f32 %v9028, %v9045
  %v9097 = vadd.f32 %v9029, %v9045
  %v9098 = vadd.f32 %v9030, %v9045
  %v9099 = vadd.f32 %v9031, %v9045
  %v9100 = vadd.f32 %v9032, %v9045
  %v9101 = vadd.f32 %v9033, %v9045
  %v9102 = vadd.f32 %v9034, %v9045
  %v9103 = vadd.f32 %v9035, %v9045
  %v9104 = vadd.f32 %v9036, %v9045
  %v9105 = vadd.f32 %v9037, %v9045
  %v9106 = vadd.f32 %v9038, %v9045
  %v9107 = vadd.f32 %v9039, %v9045
  %v9108 = vadd.f32 %v9040, %v9045
  %v9109 = vadd.f32 %v9041, %v9045
  %v9110 = vadd.f32 %v9042, %v9045
  %v9111 = vmax.f32 %v9047, 0.0
  %v9112 = vmax.f32 %v9048, 0.0
  %v9113 = vmax.f32 %v9049, 0.0
  %v9114 = vmax.f32 %v9050, 0.0
  %v9115 = vmax.f32 %v9051, 0.0
  %v9116 = vmax.f32 %v9052, 0.0
  %v9117 = vmax.f32 %v9053, 0.0
  %v9118 = vmax.f32 %v9054, 0.0
  %v9119 = vmax.f32 %v9055, 0.0
  %v9120 = vmax.f32 %v9056, 0.0
  %v9121 = vmax.f32 %v9057, 0.0
  %v9122 = vmax.f32 %v9058, 0.0
  %v9123 = vmax.f32 %v9059, 0.0
  %v9124 = vmax.f32 %v9060, 0.0
  %v9125 = vmax.f32 %v9061, 0.0
  %v9126 = vmax.f32 %v9062, 0.0
  %v9127 = vmax.f32 %v9063, 0.0
  %v9128 = vmax.f32 %v9064, 0.0
  %v9129 = vmax.f32 %v9065, 0.0
  %v9130 = vmax.f32 %v9066, 0.0
  %v9131 = vmax.f32 %v9067, 0.0
  %v9132 = vmax.f32 %v9068, 0.0
  %v9133 = vmax.f32 %v9069, 0.0
  %v9134 = vmax.f32 %v9070, 0.0
  %v9135 = vmax.f32 %v9071, 0.0
  %v9136 = vmax.f32 %v9072, 0.0
  %v9137 = vmax.f32 %v9073, 0.0
  %v9138 = vmax.f32 %v9074, 0.0
  %v9139 = vmax.f32 %v9075, 0.0
  %v9140 = vmax.f32 %v9076, 0.0
  %v9141 = vmax.f32 %v9077, 0.0
  %v9142 = vmax.f32 %v9078, 0.0
  %v9143 = vmax.f32 %v9079, 0.0
  %v9144 = vmax.f32 %v9080, 0.0
  %v9145 = vmax.f32 %v9081, 0.0
  %v9146 = vmax.f32 %v9082, 0.0
  %v9147 = vmax.f32 %v9083, 0.0
  %v9148 = vmax.f32 %v9084, 0.0
  %v9149 = vmax.f32 %v9085, 0.0
  %v9150 = vmax.f32 %v9086, 0.0
  %v9151 = vmax.f32 %v9087, 0.0
  %v9152 = vmax.f32 %v9088, 0.0
  %v9153 = vmax.f32 %v9089, 0.0
  %v9154 = vmax.f32 %v9090, 0.0
  %v9155 = vmax.f32 %v9091, 0.0
  %v9156 = vmax.f32 %v9092, 0.0
  %v9157 = vmax.f32 %v9093, 0.0
  %v9158 = vmax.f32 %v9094, 0.0
  %v9159 = vmax.f32 %v9095, 0.0
  %v9160 = vmax.f32 %v9096, 0.0
  %v9161 = vmax.f32 %v9097, 0.0
  %v9162 = vmax.f32 %v9098, 0.0
  %v9163 = vmax.f32 %v9099, 0.0
  %v9164 = vmax.f32 %v9100, 0.0
  %v9165 = vmax.f32 %v9101, 0.0
  %v9166 = vmax.f32 %v9102, 0.0
  %v9167 = vmax.f32 %v9103, 0.0
  %v9168 = vmax.f32 %v9104, 0.0
  %v9169 = vmax.f32 %v9105, 0.0
  %v9170 = vmax.f32 %v9106, 0.0
  %v9171 = vmax.f32 %v9107, 0.0
  %v9172 = vmax.f32 %v9108, 0.0
  %v9173 = vmax.f32 %v9109, 0.0
  %v9174 = vmax.f32 %v9110, 0.0
  %9175 = vst.msk [vmem:[%s5] sm:$0xff] %vm3943, %v9111
  %9176 = vst.msk [vmem:[%s5 + $0x8] sm:$0xff] %vm3943, %v9112
  %9177 = vst.msk [vmem:[%s5 + $0x10] sm:$0xff] %vm3943, %v9113
  %9178 = vst.msk [vmem:[%s5 + $0x18] sm:$0xff] %vm3943, %v9114
  %9179 = vst.msk [vmem:[%s5 + $0x20] sm:$0xff] %vm3943, %v9115
  %9180 = vst.msk [vmem:[%s5 + $0x28] sm:$0xff] %vm3943, %v9116
  %9181 = vst.msk [vmem:[%s5 + $0x30] sm:$0xff] %vm3943, %v9117
  %9182 = vst.msk [vmem:[%s5 + $0x38] sm:$0xff] %vm3943, %v9118
  %9183 = vst.msk [vmem:[%s5 + $0x40] sm:$0xff] %vm3943, %v9119
  %9184 = vst.msk [vmem:[%s5 + $0x48] sm:$0xff] %vm3943, %v9120
  %9185 = vst.msk [vmem:[%s5 + $0x50] sm:$0xff] %vm3943, %v9121
  %9186 = vst.msk [vmem:[%s5 + $0x58] sm:$0xff] %vm3943, %v9122
  %9187 = vst.msk [vmem:[%s5 + $0x60] sm:$0xff] %vm3943, %v9123
  %9188 = vst.msk [vmem:[%s5 + $0x68] sm:$0xff] %vm3943, %v9124
  %9189 = vst.msk [vmem:[%s5 + $0x70] sm:$0xff] %vm3943, %v9125
  %9190 = vst.msk [vmem:[%s5 + $0x78] sm:$0xff] %vm3943, %v9126
  %9191 = vst.msk [vmem:[%s5 + $0x80] sm:$0xff] %vm3943, %v9127
  %9192 = vst.msk [vmem:[%s5 + $0x88] sm:$0xff] %vm3943, %v9128
  %9193 = vst.msk [vmem:[%s5 + $0x90] sm:$0xff] %vm3943, %v9129
  %9194 = vst.msk [vmem:[%s5 + $0x98] sm:$0xff] %vm3943, %v9130
  %9195 = vst.msk [vmem:[%s5 + $0xa0] sm:$0xff] %vm3943, %v9131
  %9196 = vst.msk [vmem:[%s5 + $0xa8] sm:$0xff] %vm3943, %v9132
  %9197 = vst.msk [vmem:[%s5 + $0xb0] sm:$0xff] %vm3943, %v9133
  %9198 = vst.msk [vmem:[%s5 + $0xb8] sm:$0xff] %vm3943, %v9134
  %9199 = vst.msk [vmem:[%s5 + $0xc0] sm:$0xff] %vm3943, %v9135
  %9200 = vst.msk [vmem:[%s5 + $0xc8] sm:$0xff] %vm3943, %v9136
  %9201 = vst.msk [vmem:[%s5 + $0xd0] sm:$0xff] %vm3943, %v9137
  %9202 = vst.msk [vmem:[%s5 + $0xd8] sm:$0xff] %vm3943, %v9138
  %9203 = vst.msk [vmem:[%s5 + $0xe0] sm:$0xff] %vm3943, %v9139
  %9204 = vst.msk [vmem:[%s5 + $0xe8] sm:$0xff] %vm3943, %v9140
  %9205 = vst.msk [vmem:[%s5 + $0xf0] sm:$0xff] %vm3943, %v9141
  %9206 = vst.msk [vmem:[%s5 + $0xf8] sm:$0xff] %vm3943, %v9142
  %9207 = vst.msk [vmem:[%s5 + $0x100] sm:$0xff] %vm3943, %v9143
  %9208 = vst.msk [vmem:[%s5 + $0x108] sm:$0xff] %vm3943, %v9144
  %9209 = vst.msk [vmem:[%s5 + $0x110] sm:$0xff] %vm3943, %v9145
  %9210 = vst.msk [vmem:[%s5 + $0x118] sm:$0xff] %vm3943, %v9146
  %9211 = vst.msk [vmem:[%s5 + $0x120] sm:$0xff] %vm3943, %v9147
  %9212 = vst.msk [vmem:[%s5 + $0x128] sm:$0xff] %vm3943, %v9148
  %9213 = vst.msk [vmem:[%s5 + $0x130] sm:$0xff] %vm3943, %v9149
  %9214 = vst.msk [vmem:[%s5 + $0x138] sm:$0xff] %vm3943, %v9150
  %9215 = vst.msk [vmem:[%s5 + $0x140] sm:$0xff] %vm3943, %v9151
  %9216 = vst.msk [vmem:[%s5 + $0x148] sm:$0xff] %vm3943, %v9152
  %9217 = vst.msk [vmem:[%s5 + $0x150] sm:$0xff] %vm3943, %v9153
  %9218 = vst.msk [vmem:[%s5 + $0x158] sm:$0xff] %vm3943, %v9154
  %9219 = vst.msk [vmem:[%s5 + $0x160] sm:$0xff] %vm3943, %v9155
  %9220 = vst.msk [vmem:[%s5 + $0x168] sm:$0xff] %vm3943, %v9156
  %9221 = vst.msk [vmem:[%s5 + $0x170] sm:$0xff] %vm3943, %v9157
  %9222 = vst.msk [vmem:[%s5 + $0x178] sm:$0xff] %vm3943, %v9158
  %9223 = vst.msk [vmem:[%s5 + $0x180] sm:$0xff] %vm3943, %v9159
  %9224 = vst.msk [vmem:[%s5 + $0x188] sm:$0xff] %vm3943, %v9160
  %9225 = vst.msk [vmem:[%s5 + $0x190] sm:$0xff] %vm3943, %v9161
  %9226 = vst.msk [vmem:[%s5 + $0x198] sm:$0xff] %vm3943, %v9162
  %9227 = vst.msk [vmem:[%s5 + $0x1a0] sm:$0xff] %vm3943, %v9163
  %9228 = vst.msk [vmem:[%s5 + $0x1a8] sm:$0xff] %vm3943, %v9164
  %9229 = vst.msk [vmem:[%s5 + $0x1b0] sm:$0xff] %vm3943, %v9165
  %9230 = vst.msk [vmem:[%s5 + $0x1b8] sm:$0xff] %vm3943, %v9166
  %9231 = vst.msk [vmem:[%s5 + $0x1c0] sm:$0xff] %vm3943, %v9167
  %9232 = vst.msk [vmem:[%s5 + $0x1c8] sm:$0xff] %vm3943, %v9168
  %9233 = vst.msk [vmem:[%s5 + $0x1d0] sm:$0xff] %vm3943, %v9169
  %9234 = vst.msk [vmem:[%s5 + $0x1d8] sm:$0xff] %vm3943, %v9170
  %9235 = vst.msk [vmem:[%s5 + $0x1e0] sm:$0xff] %vm3943, %v9171
  %9236 = vst.msk [vmem:[%s5 + $0x1e8] sm:$0xff] %vm3943, %v9172
  %9237 = vst.msk [vmem:[%s5 + $0x1f0] sm:$0xff] %vm3943, %v9173
  %9238 = vst.msk [vmem:[%s5 + $0x1f8] sm:$0xff] %vm3943, %v9174
  // Predicated region
  $region22: #{conv_forward.1} parent=0 // pred_check
    _
  $region23: #{conv_forward.1} parent=0 // pred_check_branch
    %9240 = sbr.rel (0) target = $region25
  $region24: #{conv_forward.1} parent=0 // pred_region
    _
  $region25: #{conv_forward.1} parent=0 // pred_fallthru
    _
  // Predicated region
  $region26: #{conv_forward.1} parent=0 // pred_check
    _
  $region27: #{conv_forward.1} parent=0 // pred_check_branch
    %9242 = sbr.rel (0) target = $region29
  $region28: #{conv_forward.1} parent=0 // pred_region
    _
  $region29: #{conv_forward.1} parent=0 // pred_fallthru
    _

</llo_original>
